<compile_context>
chip_gen: v7x
topology: tpu7x:2x2x1
jax: 0.10.0
libtpu: 0.0.40
codegen_flags: <defaults>
</compile_context>

<pallas_src>
import math

import jax
import jax.numpy as jnp
from jax.experimental import pallas as pl
from jax.experimental.pallas import tpu as pltpu

# ---------------- model hyper-parameters (scaled-down, consistent) ----------------
BATCH = 2
SEQ = 8                      # transformer sequence length
D_MODEL = 32                 # scaled from 40000
NUM_HEADS = 4
D_HEAD = D_MODEL // NUM_HEADS
DIM_FF = 64                  # scaled from 512
NUM_LAYERS = 3
MLP_DIMS = (128, 64, 32, 1)  # scaled from (1024, 512, 256, 1)
CNN_CH = 16
SIG_LEN = SEQ * D_MODEL      # Conv1d signal length L (per batch element)
TOKENS = BATCH * SEQ         # rows of the token matrix


# ---------------- fused Pallas kernel ----------------

def _combined_kernel(
    x_ref,                                            # (TOKENS, D) raw signal in token layout
    w1_ref, b1_ref, w2_ref, b2_ref,                   # SMEM conv params
    pe_ref, emb_w_ref, emb_b_ref,
    wqkv_ref, bqkv_ref, wo_ref, bo_ref,
    ln1_g_ref, ln1_b_ref, fw1_ref, fb1_ref, fw2_ref, fb2_ref,
    ln2_g_ref, ln2_b_ref,
    mw0_ref, mb0_ref, mw1_ref, mb1_ref, mw2_ref, mb2_ref, mw3_ref, mb3_ref,
    o_ref,
):
    """Fused: CNN + embedding + PE + 3 encoder layers + mean over seq + MLP head.

    Token layout is (B*S, D) = (16, 32) with row r = b*S + s; the per-batch
    Conv1d signal of length S*D is this matrix read row-major within a batch.
    """
    f32 = jnp.float32
    R, C = TOKENS, D_MODEL

    # ---------------- SimpleCNN (conv1d 1->16 -> relu -> conv1d 16->1 -> relu) ----------------
    x = x_ref[...]                                     # (R, C)
    col = jax.lax.broadcasted_iota(jnp.int32, (R, C), 1)
    row = jax.lax.broadcasted_iota(jnp.int32, (R, C), 0)

    # per-batch signal boundaries (zero padding of each independent signal)
    at_sig_start = (row == 0) & (col == 0)
    at_sig_end = (row == SEQ - 1) & (col == C - 1)
    for b in range(1, BATCH):
        at_sig_start = at_sig_start | ((row == b * SEQ) & (col == 0))
        at_sig_end = at_sig_end | ((row == (b + 1) * SEQ - 1) & (col == C - 1))

    def left_nb(a):
        # n[r, c] = signal value at position (l - 1); 0 at each batch's start.
        prev_rows = jnp.concatenate([jnp.zeros((1, C), f32), a[:R - 1, :]], axis=0)
        n = jnp.concatenate([prev_rows[:, C - 1:C], a[:, :C - 1]], axis=1)
        return jnp.where(at_sig_start, 0.0, n)

    def right_nb(a):
        # n[r, c] = signal value at position (l + 1); 0 at each batch's end.
        next_rows = jnp.concatenate([a[1:, :], jnp.zeros((1, C), f32)], axis=0)
        n = jnp.concatenate([a[:, 1:], next_rows[:, 0:1]], axis=1)
        return jnp.where(at_sig_end, 0.0, n)

    xl = left_nb(x)
    xr = right_nb(x)

    # conv1 (1 -> 16 ch) + relu, immediately folded into conv2's tap-sums:
    #   y[l] = sum_t sum_ch w2[ch, t] * relu(h[ch, l + t - 1]) + b2
    #        = g0[l-1] + g1[l] + g2[l+1] + b2,  g_t[l] = sum_ch w2[ch, t] * relu(h[ch, l])
    g0 = jnp.zeros((R, C), f32)
    g1 = jnp.zeros((R, C), f32)
    g2 = jnp.zeros((R, C), f32)
    for ch in range(CNN_CH):
        h = (w1_ref[ch, 0] * xl + w1_ref[ch, 1] * x + w1_ref[ch, 2] * xr
             + b1_ref[ch, 0])
        h = jnp.maximum(h, 0.0)
        g0 = g0 + w2_ref[ch, 0] * h
        g1 = g1 + w2_ref[ch, 1] * h
        g2 = g2 + w2_ref[ch, 2] * h

    tok = jnp.maximum(left_nb(g0) + g1 + right_nb(g2) + b2_ref[0, 0], 0.0)   # (R, C)

    # ---------------- Transformer encoder + MLP head ----------------
    def linear(a, w, b):
        return jnp.dot(a, w, preferred_element_type=f32) + b

    def layernorm(a, g, b):
        mu = jnp.mean(a, axis=-1, keepdims=True)
        var = jnp.mean(jnp.square(a - mu), axis=-1, keepdims=True)
        return (a - mu) * jax.lax.rsqrt(var + 1e-5) * g + b

    # head-indicator matrices: G (D, H) reduces per-head dot products,
    # Gt (H, D) broadcasts per-head scalars back across the head's lanes.
    d_i = jax.lax.broadcasted_iota(jnp.int32, (D_MODEL, NUM_HEADS), 0)
    h_i = jax.lax.broadcasted_iota(jnp.int32, (D_MODEL, NUM_HEADS), 1)
    G = jnp.where((d_i >= h_i * D_HEAD) & (d_i < (h_i + 1) * D_HEAD), 1.0, 0.0)
    h_j = jax.lax.broadcasted_iota(jnp.int32, (NUM_HEADS, D_MODEL), 0)
    d_j = jax.lax.broadcasted_iota(jnp.int32, (NUM_HEADS, D_MODEL), 1)
    Gt = jnp.where((d_j >= h_j * D_HEAD) & (d_j < (h_j + 1) * D_HEAD), 1.0, 0.0)
    scale = 1.0 / math.sqrt(D_HEAD)

    # embedding linear + positional encoding (dropout = identity)
    xcur = linear(tok, emb_w_ref[...], emb_b_ref[...]) + pe_ref[...]       # (R, D)

    for l in range(NUM_LAYERS):
        # ---- self-attention (fused QKV projection), attended axis = B = 2 ----
        qkv = linear(xcur, wqkv_ref[l], bqkv_ref[l])                       # (R, 3D)
        q = qkv[:, 0:D_MODEL]
        k = qkv[:, D_MODEL:2 * D_MODEL]
        v = qkv[:, 2 * D_MODEL:3 * D_MODEL]

        q0, q1 = q[0:SEQ, :], q[SEQ:2 * SEQ, :]
        k0, k1 = k[0:SEQ, :], k[SEQ:2 * SEQ, :]
        v0, v1 = v[0:SEQ, :], v[SEQ:2 * SEQ, :]

        # per-(s, head) scores: (S, H)
        s00 = jnp.dot(q0 * k0, G, preferred_element_type=f32) * scale
        s01 = jnp.dot(q0 * k1, G, preferred_element_type=f32) * scale
        s10 = jnp.dot(q1 * k0, G, preferred_element_type=f32) * scale
        s11 = jnp.dot(q1 * k1, G, preferred_element_type=f32) * scale

        # softmax over the two key positions, per (s, head)
        mx0 = jnp.maximum(s00, s01)
        e00 = jnp.exp(s00 - mx0)
        e01 = jnp.exp(s01 - mx0)
        z0 = e00 + e01
        mx1 = jnp.maximum(s10, s11)
        e10 = jnp.exp(s10 - mx1)
        e11 = jnp.exp(s11 - mx1)
        z1 = e10 + e11

        # broadcast per-head probabilities across their lanes and mix values
        p00 = jnp.dot(e00 / z0, Gt, preferred_element_type=f32)            # (S, D)
        p01 = jnp.dot(e01 / z0, Gt, preferred_element_type=f32)
        p10 = jnp.dot(e10 / z1, Gt, preferred_element_type=f32)
        p11 = jnp.dot(e11 / z1, Gt, preferred_element_type=f32)

        a0 = p00 * v0 + p01 * v1
        a1 = p10 * v0 + p11 * v1
        attn = jnp.concatenate([a0, a1], axis=0)                           # (R, D)
        attn = linear(attn, wo_ref[l], bo_ref[l])

        # post-norm encoder layer (PyTorch defaults: relu, norm_first=False)
        xcur = layernorm(xcur + attn, ln1_g_ref[l], ln1_b_ref[l])
        f = jnp.maximum(linear(xcur, fw1_ref[l], fb1_ref[l]), 0.0)
        f = linear(f, fw2_ref[l], fb2_ref[l])
        xcur = layernorm(xcur + f, ln2_g_ref[l], ln2_b_ref[l])

    # mean over dim=1 (the S axis) -> (B, D)
    m0 = jnp.mean(xcur[0:SEQ, :], axis=0, keepdims=True)
    m1 = jnp.mean(xcur[SEQ:2 * SEQ, :], axis=0, keepdims=True)
    m = jnp.concatenate([m0, m1], axis=0)

    # MLP head (dropouts = identity)
    o = jnp.maximum(linear(m, mw0_ref[...], mb0_ref[...]), 0.0)
    o = jnp.maximum(linear(o, mw1_ref[...], mb1_ref[...]), 0.0)
    o = jnp.maximum(linear(o, mw2_ref[...], mb2_ref[...]), 0.0)
    o_ref[...] = linear(o, mw3_ref[...], mb3_ref[...])                     # (B, 1)


# ---------------- wrapper ----------------

def combined_forward(x, p):
    # x: (B, 1, L) NCW.  Row-major (B, L) == (B, S, D) flattened == (B*S, D) tokens.
    tokens = x.reshape(TOKENS, D_MODEL)

    vmem = pl.BlockSpec(memory_space=pltpu.MemorySpace.VMEM)
    smem = pl.BlockSpec(memory_space=pltpu.MemorySpace.SMEM)
    in_specs = [vmem, smem, smem, smem, smem] + [vmem] * 23

    return pl.pallas_call(
        _combined_kernel,
        out_shape=jax.ShapeDtypeStruct((BATCH, 1), jnp.float32),
        in_specs=in_specs,
        out_specs=pl.BlockSpec(memory_space=pltpu.MemorySpace.VMEM),
    )(tokens,
      p["cnn_w1"], p["cnn_b1"], p["cnn_w2"], p["cnn_b2"],
      p["pe_full"], p["emb_w"], p["emb_b"],
      p["wqkv"], p["bqkv"], p["wo"], p["bo"],
      p["ln1_g"], p["ln1_b"], p["ffn_w1"], p["ffn_b1"],
      p["ffn_w2"], p["ffn_b2"], p["ln2_g"], p["ln2_b"],
      p["mlp_w0"], p["mlp_b0"], p["mlp_w1"], p["mlp_b1"],
      p["mlp_w2"], p["mlp_b2"], p["mlp_w3"], p["mlp_b3"])


# ---------------- deterministic parameter init ----------------

def make_pe(max_len, d_model):
    position = jnp.arange(max_len, dtype=jnp.float32)[:, None]
    div_term = jnp.exp(jnp.arange(0, d_model, 2, dtype=jnp.float32)
                       * (-math.log(10000.0) / d_model))
    pe = jnp.zeros((max_len, d_model), jnp.float32)
    pe = pe.at[:, 0::2].set(jnp.sin(position * div_term))
    pe = pe.at[:, 1::2].set(jnp.cos(position * div_term))
    return pe


def init_params(key):
    keys = iter(jax.random.split(key, 128))

    def nrm(shape, scale=0.1):
        return scale * jax.random.normal(next(keys), shape, dtype=jnp.float32)

    def stack(shape):
        return jnp.stack([nrm(shape) for _ in range(NUM_LAYERS)])

    p = {
        "cnn_w1": nrm((CNN_CH, 3)),
        "cnn_b1": nrm((CNN_CH, 1)),
        "cnn_w2": nrm((CNN_CH, 3)),
        "cnn_b2": nrm((1, 1)),
        "emb_w": nrm((D_MODEL, D_MODEL)),
        "emb_b": nrm((1, D_MODEL)),
    }

    # PositionalEncoding: x + pe[:x.size(0)] with x (B, S, D) -> row b of pe is
    # added to every s of batch b; pre-broadcast to the (B*S, D) token layout.
    pe = make_pe(64, D_MODEL)
    p["pe_full"] = jnp.repeat(pe[:BATCH], SEQ, axis=0)            # (B*S, D)

    # transformer layers, stacked along a leading layer axis (fused QKV weight)
    p["wqkv"] = stack((D_MODEL, 3 * D_MODEL))
    p["bqkv"] = stack((1, 3 * D_MODEL))
    p["wo"] = stack((D_MODEL, D_MODEL))
    p["bo"] = stack((1, D_MODEL))
    p["ln1_g"] = jnp.ones((NUM_LAYERS, 1, D_MODEL), jnp.float32)
    p["ln1_b"] = jnp.zeros((NUM_LAYERS, 1, D_MODEL), jnp.float32)
    p["ffn_w1"] = stack((D_MODEL, DIM_FF))
    p["ffn_b1"] = stack((1, DIM_FF))
    p["ffn_w2"] = stack((DIM_FF, D_MODEL))
    p["ffn_b2"] = stack((1, D_MODEL))
    p["ln2_g"] = jnp.ones((NUM_LAYERS, 1, D_MODEL), jnp.float32)
    p["ln2_b"] = jnp.zeros((NUM_LAYERS, 1, D_MODEL), jnp.float32)

    dims = (D_MODEL,) + MLP_DIMS
    for i in range(4):
        p[f"mlp_w{i}"] = nrm((dims[i], dims[i + 1]))
        p[f"mlp_b{i}"] = nrm((1, dims[i + 1]))
    return p


if __name__ == "__main__":
    key = jax.random.PRNGKey(0)
    kx, kp = jax.random.split(key)
    x = jax.random.normal(kx, (BATCH, 1, SIG_LEN), dtype=jnp.float32)
    params = init_params(kp)

    fwd = jax.jit(combined_forward)
    out = jax.block_until_ready(fwd(x, params))
    assert out.shape == (BATCH, 1) and out.dtype == jnp.float32
    print("KERNEL_OK")
</pallas_src>

<mosaic_0001>
module attributes {stable_mosaic.version = 11 : i64} {
  func.func @_combined_kernel(%arg0: memref<16x32xf32, #tpu.memory_space<vmem>>, %arg1: memref<16x3xf32, #tpu.memory_space<smem>>, %arg2: memref<16x1xf32, #tpu.memory_space<smem>>, %arg3: memref<16x3xf32, #tpu.memory_space<smem>>, %arg4: memref<1x1xf32, #tpu.memory_space<smem>>, %arg5: memref<16x32xf32, #tpu.memory_space<vmem>>, %arg6: memref<32x32xf32, #tpu.memory_space<vmem>>, %arg7: memref<1x32xf32, #tpu.memory_space<vmem>>, %arg8: memref<3x32x96xf32, #tpu.memory_space<vmem>>, %arg9: memref<3x1x96xf32, #tpu.memory_space<vmem>>, %arg10: memref<3x32x32xf32, #tpu.memory_space<vmem>>, %arg11: memref<3x1x32xf32, #tpu.memory_space<vmem>>, %arg12: memref<3x1x32xf32, #tpu.memory_space<vmem>>, %arg13: memref<3x1x32xf32, #tpu.memory_space<vmem>>, %arg14: memref<3x32x64xf32, #tpu.memory_space<vmem>>, %arg15: memref<3x1x64xf32, #tpu.memory_space<vmem>>, %arg16: memref<3x64x32xf32, #tpu.memory_space<vmem>>, %arg17: memref<3x1x32xf32, #tpu.memory_space<vmem>>, %arg18: memref<3x1x32xf32, #tpu.memory_space<vmem>>, %arg19: memref<3x1x32xf32, #tpu.memory_space<vmem>>, %arg20: memref<32x128xf32, #tpu.memory_space<vmem>>, %arg21: memref<1x128xf32, #tpu.memory_space<vmem>>, %arg22: memref<128x64xf32, #tpu.memory_space<vmem>>, %arg23: memref<1x64xf32, #tpu.memory_space<vmem>>, %arg24: memref<64x32xf32, #tpu.memory_space<vmem>>, %arg25: memref<1x32xf32, #tpu.memory_space<vmem>>, %arg26: memref<32x1xf32, #tpu.memory_space<vmem>>, %arg27: memref<1x1xf32, #tpu.memory_space<vmem>>, %arg28: memref<2x1xf32, #tpu.memory_space<vmem>>) attributes {dimension_semantics = [], scalar_prefetch = 0 : i64, scratch_operands = 0 : i64, tpu.core_type = #tpu.core_type<tc>} {
    %c0 = arith.constant 0 : index
    %c0_0 = arith.constant 0 : index
    %0 = vector.load %arg0[%c0, %c0_0] : memref<16x32xf32, #tpu.memory_space<vmem>>, vector<16x32xf32>
    %1 = tpu.iota {dimensions = array<i32: 1>} : vector<16x32xi32>
    %2 = tpu.iota {dimensions = array<i32: 0>} : vector<16x32xi32>
    %c0_i32 = arith.constant 0 : i32
    %3 = vector.broadcast %c0_i32 : i32 to vector<16x32xi32>
    %4 = arith.cmpi eq, %2, %3 : vector<16x32xi32>
    %c0_i32_1 = arith.constant 0 : i32
    %5 = vector.broadcast %c0_i32_1 : i32 to vector<16x32xi32>
    %6 = arith.cmpi eq, %1, %5 : vector<16x32xi32>
    %7 = arith.andi %4, %6 : vector<16x32xi1>
    %c7_i32 = arith.constant 7 : i32
    %8 = vector.broadcast %c7_i32 : i32 to vector<16x32xi32>
    %9 = arith.cmpi eq, %2, %8 : vector<16x32xi32>
    %c31_i32 = arith.constant 31 : i32
    %10 = vector.broadcast %c31_i32 : i32 to vector<16x32xi32>
    %11 = arith.cmpi eq, %1, %10 : vector<16x32xi32>
    %12 = arith.andi %9, %11 : vector<16x32xi1>
    %c8_i32 = arith.constant 8 : i32
    %13 = vector.broadcast %c8_i32 : i32 to vector<16x32xi32>
    %14 = arith.cmpi eq, %2, %13 : vector<16x32xi32>
    %c0_i32_2 = arith.constant 0 : i32
    %15 = vector.broadcast %c0_i32_2 : i32 to vector<16x32xi32>
    %16 = arith.cmpi eq, %1, %15 : vector<16x32xi32>
    %17 = arith.andi %14, %16 : vector<16x32xi1>
    %18 = arith.ori %7, %17 : vector<16x32xi1>
    %c15_i32 = arith.constant 15 : i32
    %19 = vector.broadcast %c15_i32 : i32 to vector<16x32xi32>
    %20 = arith.cmpi eq, %2, %19 : vector<16x32xi32>
    %c31_i32_3 = arith.constant 31 : i32
    %21 = vector.broadcast %c31_i32_3 : i32 to vector<16x32xi32>
    %22 = arith.cmpi eq, %1, %21 : vector<16x32xi32>
    %23 = arith.andi %20, %22 : vector<16x32xi1>
    %24 = arith.ori %12, %23 : vector<16x32xi1>
    %cst = arith.constant 0.000000e+00 : f32
    %25 = vector.broadcast %cst : f32 to vector<1x32xf32>
    %26 = vector.extract_strided_slice %0 {offsets = [0, 0], sizes = [15, 32], strides = [1, 1]} : vector<16x32xf32> to vector<15x32xf32>
    %27 = tpu.concatenate %25, %26 in 0 : vector<1x32xf32>, vector<15x32xf32> -> vector<16x32xf32>
    %28 = vector.extract_strided_slice %27 {offsets = [0, 31], sizes = [16, 1], strides = [1, 1]} : vector<16x32xf32> to vector<16x1xf32>
    %29 = vector.extract_strided_slice %0 {offsets = [0, 0], sizes = [16, 31], strides = [1, 1]} : vector<16x32xf32> to vector<16x31xf32>
    %30 = tpu.concatenate %28, %29 in 1 : vector<16x1xf32>, vector<16x31xf32> -> vector<16x32xf32>
    %cst_4 = arith.constant 0.000000e+00 : f32
    %31 = vector.broadcast %cst_4 : f32 to vector<16x32xf32>
    %32 = arith.select %18, %31, %30 : vector<16x32xi1>, vector<16x32xf32>
    %33 = vector.extract_strided_slice %0 {offsets = [1, 0], sizes = [15, 32], strides = [1, 1]} : vector<16x32xf32> to vector<15x32xf32>
    %cst_5 = arith.constant 0.000000e+00 : f32
    %34 = vector.broadcast %cst_5 : f32 to vector<1x32xf32>
    %35 = tpu.concatenate %33, %34 in 0 : vector<15x32xf32>, vector<1x32xf32> -> vector<16x32xf32>
    %36 = vector.extract_strided_slice %0 {offsets = [0, 1], sizes = [16, 31], strides = [1, 1]} : vector<16x32xf32> to vector<16x31xf32>
    %37 = vector.extract_strided_slice %35 {offsets = [0, 0], sizes = [16, 1], strides = [1, 1]} : vector<16x32xf32> to vector<16x1xf32>
    %38 = tpu.concatenate %36, %37 in 1 : vector<16x31xf32>, vector<16x1xf32> -> vector<16x32xf32>
    %cst_6 = arith.constant 0.000000e+00 : f32
    %39 = vector.broadcast %cst_6 : f32 to vector<16x32xf32>
    %40 = arith.select %24, %39, %38 : vector<16x32xi1>, vector<16x32xf32>
    %cst_7 = arith.constant 0.000000e+00 : f32
    %41 = vector.broadcast %cst_7 : f32 to vector<16x32xf32>
    %cst_8 = arith.constant 0.000000e+00 : f32
    %42 = vector.broadcast %cst_8 : f32 to vector<16x32xf32>
    %cst_9 = arith.constant 0.000000e+00 : f32
    %43 = vector.broadcast %cst_9 : f32 to vector<16x32xf32>
    %c0_10 = arith.constant 0 : index
    %c0_11 = arith.constant 0 : index
    %44 = memref.load %arg1[%c0_10, %c0_11] : memref<16x3xf32, #tpu.memory_space<smem>>
    %45 = vector.broadcast %44 : f32 to vector<16x32xf32>
    %46 = arith.mulf %45, %32 : vector<16x32xf32>
    %c0_12 = arith.constant 0 : index
    %c1 = arith.constant 1 : index
    %47 = memref.load %arg1[%c0_12, %c1] : memref<16x3xf32, #tpu.memory_space<smem>>
    %48 = vector.broadcast %47 : f32 to vector<16x32xf32>
    %49 = arith.mulf %48, %0 : vector<16x32xf32>
    %50 = arith.addf %46, %49 : vector<16x32xf32>
    %c0_13 = arith.constant 0 : index
    %c2 = arith.constant 2 : index
    %51 = memref.load %arg1[%c0_13, %c2] : memref<16x3xf32, #tpu.memory_space<smem>>
    %52 = vector.broadcast %51 : f32 to vector<16x32xf32>
    %53 = arith.mulf %52, %40 : vector<16x32xf32>
    %54 = arith.addf %50, %53 : vector<16x32xf32>
    %c0_14 = arith.constant 0 : index
    %c0_15 = arith.constant 0 : index
    %55 = memref.load %arg2[%c0_14, %c0_15] : memref<16x1xf32, #tpu.memory_space<smem>>
    %56 = vector.broadcast %55 : f32 to vector<16x32xf32>
    %57 = arith.addf %54, %56 : vector<16x32xf32>
    %cst_16 = arith.constant 0.000000e+00 : f32
    %58 = vector.broadcast %cst_16 : f32 to vector<16x32xf32>
    %59 = arith.maximumf %57, %58 : vector<16x32xf32>
    %c0_17 = arith.constant 0 : index
    %c0_18 = arith.constant 0 : index
    %60 = memref.load %arg3[%c0_17, %c0_18] : memref<16x3xf32, #tpu.memory_space<smem>>
    %61 = vector.broadcast %60 : f32 to vector<16x32xf32>
    %62 = arith.mulf %61, %59 : vector<16x32xf32>
    %63 = arith.addf %41, %62 : vector<16x32xf32>
    %c0_19 = arith.constant 0 : index
    %c1_20 = arith.constant 1 : index
    %64 = memref.load %arg3[%c0_19, %c1_20] : memref<16x3xf32, #tpu.memory_space<smem>>
    %65 = vector.broadcast %64 : f32 to vector<16x32xf32>
    %66 = arith.mulf %65, %59 : vector<16x32xf32>
    %67 = arith.addf %42, %66 : vector<16x32xf32>
    %c0_21 = arith.constant 0 : index
    %c2_22 = arith.constant 2 : index
    %68 = memref.load %arg3[%c0_21, %c2_22] : memref<16x3xf32, #tpu.memory_space<smem>>
    %69 = vector.broadcast %68 : f32 to vector<16x32xf32>
    %70 = arith.mulf %69, %59 : vector<16x32xf32>
    %71 = arith.addf %43, %70 : vector<16x32xf32>
    %c1_23 = arith.constant 1 : index
    %c0_24 = arith.constant 0 : index
    %72 = memref.load %arg1[%c1_23, %c0_24] : memref<16x3xf32, #tpu.memory_space<smem>>
    %73 = vector.broadcast %72 : f32 to vector<16x32xf32>
    %74 = arith.mulf %73, %32 : vector<16x32xf32>
    %c1_25 = arith.constant 1 : index
    %c1_26 = arith.constant 1 : index
    %75 = memref.load %arg1[%c1_25, %c1_26] : memref<16x3xf32, #tpu.memory_space<smem>>
    %76 = vector.broadcast %75 : f32 to vector<16x32xf32>
    %77 = arith.mulf %76, %0 : vector<16x32xf32>
    %78 = arith.addf %74, %77 : vector<16x32xf32>
    %c1_27 = arith.constant 1 : index
    %c2_28 = arith.constant 2 : index
    %79 = memref.load %arg1[%c1_27, %c2_28] : memref<16x3xf32, #tpu.memory_space<smem>>
    %80 = vector.broadcast %79 : f32 to vector<16x32xf32>
    %81 = arith.mulf %80, %40 : vector<16x32xf32>
    %82 = arith.addf %78, %81 : vector<16x32xf32>
    %c1_29 = arith.constant 1 : index
    %c0_30 = arith.constant 0 : index
    %83 = memref.load %arg2[%c1_29, %c0_30] : memref<16x1xf32, #tpu.memory_space<smem>>
    %84 = vector.broadcast %83 : f32 to vector<16x32xf32>
    %85 = arith.addf %82, %84 : vector<16x32xf32>
    %cst_31 = arith.constant 0.000000e+00 : f32
    %86 = vector.broadcast %cst_31 : f32 to vector<16x32xf32>
    %87 = arith.maximumf %85, %86 : vector<16x32xf32>
    %c1_32 = arith.constant 1 : index
    %c0_33 = arith.constant 0 : index
    %88 = memref.load %arg3[%c1_32, %c0_33] : memref<16x3xf32, #tpu.memory_space<smem>>
    %89 = vector.broadcast %88 : f32 to vector<16x32xf32>
    %90 = arith.mulf %89, %87 : vector<16x32xf32>
    %91 = arith.addf %63, %90 : vector<16x32xf32>
    %c1_34 = arith.constant 1 : index
    %c1_35 = arith.constant 1 : index
    %92 = memref.load %arg3[%c1_34, %c1_35] : memref<16x3xf32, #tpu.memory_space<smem>>
    %93 = vector.broadcast %92 : f32 to vector<16x32xf32>
    %94 = arith.mulf %93, %87 : vector<16x32xf32>
    %95 = arith.addf %67, %94 : vector<16x32xf32>
    %c1_36 = arith.constant 1 : index
    %c2_37 = arith.constant 2 : index
    %96 = memref.load %arg3[%c1_36, %c2_37] : memref<16x3xf32, #tpu.memory_space<smem>>
    %97 = vector.broadcast %96 : f32 to vector<16x32xf32>
    %98 = arith.mulf %97, %87 : vector<16x32xf32>
    %99 = arith.addf %71, %98 : vector<16x32xf32>
    %c2_38 = arith.constant 2 : index
    %c0_39 = arith.constant 0 : index
    %100 = memref.load %arg1[%c2_38, %c0_39] : memref<16x3xf32, #tpu.memory_space<smem>>
    %101 = vector.broadcast %100 : f32 to vector<16x32xf32>
    %102 = arith.mulf %101, %32 : vector<16x32xf32>
    %c2_40 = arith.constant 2 : index
    %c1_41 = arith.constant 1 : index
    %103 = memref.load %arg1[%c2_40, %c1_41] : memref<16x3xf32, #tpu.memory_space<smem>>
    %104 = vector.broadcast %103 : f32 to vector<16x32xf32>
    %105 = arith.mulf %104, %0 : vector<16x32xf32>
    %106 = arith.addf %102, %105 : vector<16x32xf32>
    %c2_42 = arith.constant 2 : index
    %c2_43 = arith.constant 2 : index
    %107 = memref.load %arg1[%c2_42, %c2_43] : memref<16x3xf32, #tpu.memory_space<smem>>
    %108 = vector.broadcast %107 : f32 to vector<16x32xf32>
    %109 = arith.mulf %108, %40 : vector<16x32xf32>
    %110 = arith.addf %106, %109 : vector<16x32xf32>
    %c2_44 = arith.constant 2 : index
    %c0_45 = arith.constant 0 : index
    %111 = memref.load %arg2[%c2_44, %c0_45] : memref<16x1xf32, #tpu.memory_space<smem>>
    %112 = vector.broadcast %111 : f32 to vector<16x32xf32>
    %113 = arith.addf %110, %112 : vector<16x32xf32>
    %cst_46 = arith.constant 0.000000e+00 : f32
    %114 = vector.broadcast %cst_46 : f32 to vector<16x32xf32>
    %115 = arith.maximumf %113, %114 : vector<16x32xf32>
    %c2_47 = arith.constant 2 : index
    %c0_48 = arith.constant 0 : index
    %116 = memref.load %arg3[%c2_47, %c0_48] : memref<16x3xf32, #tpu.memory_space<smem>>
    %117 = vector.broadcast %116 : f32 to vector<16x32xf32>
    %118 = arith.mulf %117, %115 : vector<16x32xf32>
    %119 = arith.addf %91, %118 : vector<16x32xf32>
    %c2_49 = arith.constant 2 : index
    %c1_50 = arith.constant 1 : index
    %120 = memref.load %arg3[%c2_49, %c1_50] : memref<16x3xf32, #tpu.memory_space<smem>>
    %121 = vector.broadcast %120 : f32 to vector<16x32xf32>
    %122 = arith.mulf %121, %115 : vector<16x32xf32>
    %123 = arith.addf %95, %122 : vector<16x32xf32>
    %c2_51 = arith.constant 2 : index
    %c2_52 = arith.constant 2 : index
    %124 = memref.load %arg3[%c2_51, %c2_52] : memref<16x3xf32, #tpu.memory_space<smem>>
    %125 = vector.broadcast %124 : f32 to vector<16x32xf32>
    %126 = arith.mulf %125, %115 : vector<16x32xf32>
    %127 = arith.addf %99, %126 : vector<16x32xf32>
    %c3 = arith.constant 3 : index
    %c0_53 = arith.constant 0 : index
    %128 = memref.load %arg1[%c3, %c0_53] : memref<16x3xf32, #tpu.memory_space<smem>>
    %129 = vector.broadcast %128 : f32 to vector<16x32xf32>
    %130 = arith.mulf %129, %32 : vector<16x32xf32>
    %c3_54 = arith.constant 3 : index
    %c1_55 = arith.constant 1 : index
    %131 = memref.load %arg1[%c3_54, %c1_55] : memref<16x3xf32, #tpu.memory_space<smem>>
    %132 = vector.broadcast %131 : f32 to vector<16x32xf32>
    %133 = arith.mulf %132, %0 : vector<16x32xf32>
    %134 = arith.addf %130, %133 : vector<16x32xf32>
    %c3_56 = arith.constant 3 : index
    %c2_57 = arith.constant 2 : index
    %135 = memref.load %arg1[%c3_56, %c2_57] : memref<16x3xf32, #tpu.memory_space<smem>>
    %136 = vector.broadcast %135 : f32 to vector<16x32xf32>
    %137 = arith.mulf %136, %40 : vector<16x32xf32>
    %138 = arith.addf %134, %137 : vector<16x32xf32>
    %c3_58 = arith.constant 3 : index
    %c0_59 = arith.constant 0 : index
    %139 = memref.load %arg2[%c3_58, %c0_59] : memref<16x1xf32, #tpu.memory_space<smem>>
    %140 = vector.broadcast %139 : f32 to vector<16x32xf32>
    %141 = arith.addf %138, %140 : vector<16x32xf32>
    %cst_60 = arith.constant 0.000000e+00 : f32
    %142 = vector.broadcast %cst_60 : f32 to vector<16x32xf32>
    %143 = arith.maximumf %141, %142 : vector<16x32xf32>
    %c3_61 = arith.constant 3 : index
    %c0_62 = arith.constant 0 : index
    %144 = memref.load %arg3[%c3_61, %c0_62] : memref<16x3xf32, #tpu.memory_space<smem>>
    %145 = vector.broadcast %144 : f32 to vector<16x32xf32>
    %146 = arith.mulf %145, %143 : vector<16x32xf32>
    %147 = arith.addf %119, %146 : vector<16x32xf32>
    %c3_63 = arith.constant 3 : index
    %c1_64 = arith.constant 1 : index
    %148 = memref.load %arg3[%c3_63, %c1_64] : memref<16x3xf32, #tpu.memory_space<smem>>
    %149 = vector.broadcast %148 : f32 to vector<16x32xf32>
    %150 = arith.mulf %149, %143 : vector<16x32xf32>
    %151 = arith.addf %123, %150 : vector<16x32xf32>
    %c3_65 = arith.constant 3 : index
    %c2_66 = arith.constant 2 : index
    %152 = memref.load %arg3[%c3_65, %c2_66] : memref<16x3xf32, #tpu.memory_space<smem>>
    %153 = vector.broadcast %152 : f32 to vector<16x32xf32>
    %154 = arith.mulf %153, %143 : vector<16x32xf32>
    %155 = arith.addf %127, %154 : vector<16x32xf32>
    %c4 = arith.constant 4 : index
    %c0_67 = arith.constant 0 : index
    %156 = memref.load %arg1[%c4, %c0_67] : memref<16x3xf32, #tpu.memory_space<smem>>
    %157 = vector.broadcast %156 : f32 to vector<16x32xf32>
    %158 = arith.mulf %157, %32 : vector<16x32xf32>
    %c4_68 = arith.constant 4 : index
    %c1_69 = arith.constant 1 : index
    %159 = memref.load %arg1[%c4_68, %c1_69] : memref<16x3xf32, #tpu.memory_space<smem>>
    %160 = vector.broadcast %159 : f32 to vector<16x32xf32>
    %161 = arith.mulf %160, %0 : vector<16x32xf32>
    %162 = arith.addf %158, %161 : vector<16x32xf32>
    %c4_70 = arith.constant 4 : index
    %c2_71 = arith.constant 2 : index
    %163 = memref.load %arg1[%c4_70, %c2_71] : memref<16x3xf32, #tpu.memory_space<smem>>
    %164 = vector.broadcast %163 : f32 to vector<16x32xf32>
    %165 = arith.mulf %164, %40 : vector<16x32xf32>
    %166 = arith.addf %162, %165 : vector<16x32xf32>
    %c4_72 = arith.constant 4 : index
    %c0_73 = arith.constant 0 : index
    %167 = memref.load %arg2[%c4_72, %c0_73] : memref<16x1xf32, #tpu.memory_space<smem>>
    %168 = vector.broadcast %167 : f32 to vector<16x32xf32>
    %169 = arith.addf %166, %168 : vector<16x32xf32>
    %cst_74 = arith.constant 0.000000e+00 : f32
    %170 = vector.broadcast %cst_74 : f32 to vector<16x32xf32>
    %171 = arith.maximumf %169, %170 : vector<16x32xf32>
    %c4_75 = arith.constant 4 : index
    %c0_76 = arith.constant 0 : index
    %172 = memref.load %arg3[%c4_75, %c0_76] : memref<16x3xf32, #tpu.memory_space<smem>>
    %173 = vector.broadcast %172 : f32 to vector<16x32xf32>
    %174 = arith.mulf %173, %171 : vector<16x32xf32>
    %175 = arith.addf %147, %174 : vector<16x32xf32>
    %c4_77 = arith.constant 4 : index
    %c1_78 = arith.constant 1 : index
    %176 = memref.load %arg3[%c4_77, %c1_78] : memref<16x3xf32, #tpu.memory_space<smem>>
    %177 = vector.broadcast %176 : f32 to vector<16x32xf32>
    %178 = arith.mulf %177, %171 : vector<16x32xf32>
    %179 = arith.addf %151, %178 : vector<16x32xf32>
    %c4_79 = arith.constant 4 : index
    %c2_80 = arith.constant 2 : index
    %180 = memref.load %arg3[%c4_79, %c2_80] : memref<16x3xf32, #tpu.memory_space<smem>>
    %181 = vector.broadcast %180 : f32 to vector<16x32xf32>
    %182 = arith.mulf %181, %171 : vector<16x32xf32>
    %183 = arith.addf %155, %182 : vector<16x32xf32>
    %c5 = arith.constant 5 : index
    %c0_81 = arith.constant 0 : index
    %184 = memref.load %arg1[%c5, %c0_81] : memref<16x3xf32, #tpu.memory_space<smem>>
    %185 = vector.broadcast %184 : f32 to vector<16x32xf32>
    %186 = arith.mulf %185, %32 : vector<16x32xf32>
    %c5_82 = arith.constant 5 : index
    %c1_83 = arith.constant 1 : index
    %187 = memref.load %arg1[%c5_82, %c1_83] : memref<16x3xf32, #tpu.memory_space<smem>>
    %188 = vector.broadcast %187 : f32 to vector<16x32xf32>
    %189 = arith.mulf %188, %0 : vector<16x32xf32>
    %190 = arith.addf %186, %189 : vector<16x32xf32>
    %c5_84 = arith.constant 5 : index
    %c2_85 = arith.constant 2 : index
    %191 = memref.load %arg1[%c5_84, %c2_85] : memref<16x3xf32, #tpu.memory_space<smem>>
    %192 = vector.broadcast %191 : f32 to vector<16x32xf32>
    %193 = arith.mulf %192, %40 : vector<16x32xf32>
    %194 = arith.addf %190, %193 : vector<16x32xf32>
    %c5_86 = arith.constant 5 : index
    %c0_87 = arith.constant 0 : index
    %195 = memref.load %arg2[%c5_86, %c0_87] : memref<16x1xf32, #tpu.memory_space<smem>>
    %196 = vector.broadcast %195 : f32 to vector<16x32xf32>
    %197 = arith.addf %194, %196 : vector<16x32xf32>
    %cst_88 = arith.constant 0.000000e+00 : f32
    %198 = vector.broadcast %cst_88 : f32 to vector<16x32xf32>
    %199 = arith.maximumf %197, %198 : vector<16x32xf32>
    %c5_89 = arith.constant 5 : index
    %c0_90 = arith.constant 0 : index
    %200 = memref.load %arg3[%c5_89, %c0_90] : memref<16x3xf32, #tpu.memory_space<smem>>
    %201 = vector.broadcast %200 : f32 to vector<16x32xf32>
    %202 = arith.mulf %201, %199 : vector<16x32xf32>
    %203 = arith.addf %175, %202 : vector<16x32xf32>
    %c5_91 = arith.constant 5 : index
    %c1_92 = arith.constant 1 : index
    %204 = memref.load %arg3[%c5_91, %c1_92] : memref<16x3xf32, #tpu.memory_space<smem>>
    %205 = vector.broadcast %204 : f32 to vector<16x32xf32>
    %206 = arith.mulf %205, %199 : vector<16x32xf32>
    %207 = arith.addf %179, %206 : vector<16x32xf32>
    %c5_93 = arith.constant 5 : index
    %c2_94 = arith.constant 2 : index
    %208 = memref.load %arg3[%c5_93, %c2_94] : memref<16x3xf32, #tpu.memory_space<smem>>
    %209 = vector.broadcast %208 : f32 to vector<16x32xf32>
    %210 = arith.mulf %209, %199 : vector<16x32xf32>
    %211 = arith.addf %183, %210 : vector<16x32xf32>
    %c6 = arith.constant 6 : index
    %c0_95 = arith.constant 0 : index
    %212 = memref.load %arg1[%c6, %c0_95] : memref<16x3xf32, #tpu.memory_space<smem>>
    %213 = vector.broadcast %212 : f32 to vector<16x32xf32>
    %214 = arith.mulf %213, %32 : vector<16x32xf32>
    %c6_96 = arith.constant 6 : index
    %c1_97 = arith.constant 1 : index
    %215 = memref.load %arg1[%c6_96, %c1_97] : memref<16x3xf32, #tpu.memory_space<smem>>
    %216 = vector.broadcast %215 : f32 to vector<16x32xf32>
    %217 = arith.mulf %216, %0 : vector<16x32xf32>
    %218 = arith.addf %214, %217 : vector<16x32xf32>
    %c6_98 = arith.constant 6 : index
    %c2_99 = arith.constant 2 : index
    %219 = memref.load %arg1[%c6_98, %c2_99] : memref<16x3xf32, #tpu.memory_space<smem>>
    %220 = vector.broadcast %219 : f32 to vector<16x32xf32>
    %221 = arith.mulf %220, %40 : vector<16x32xf32>
    %222 = arith.addf %218, %221 : vector<16x32xf32>
    %c6_100 = arith.constant 6 : index
    %c0_101 = arith.constant 0 : index
    %223 = memref.load %arg2[%c6_100, %c0_101] : memref<16x1xf32, #tpu.memory_space<smem>>
    %224 = vector.broadcast %223 : f32 to vector<16x32xf32>
    %225 = arith.addf %222, %224 : vector<16x32xf32>
    %cst_102 = arith.constant 0.000000e+00 : f32
    %226 = vector.broadcast %cst_102 : f32 to vector<16x32xf32>
    %227 = arith.maximumf %225, %226 : vector<16x32xf32>
    %c6_103 = arith.constant 6 : index
    %c0_104 = arith.constant 0 : index
    %228 = memref.load %arg3[%c6_103, %c0_104] : memref<16x3xf32, #tpu.memory_space<smem>>
    %229 = vector.broadcast %228 : f32 to vector<16x32xf32>
    %230 = arith.mulf %229, %227 : vector<16x32xf32>
    %231 = arith.addf %203, %230 : vector<16x32xf32>
    %c6_105 = arith.constant 6 : index
    %c1_106 = arith.constant 1 : index
    %232 = memref.load %arg3[%c6_105, %c1_106] : memref<16x3xf32, #tpu.memory_space<smem>>
    %233 = vector.broadcast %232 : f32 to vector<16x32xf32>
    %234 = arith.mulf %233, %227 : vector<16x32xf32>
    %235 = arith.addf %207, %234 : vector<16x32xf32>
    %c6_107 = arith.constant 6 : index
    %c2_108 = arith.constant 2 : index
    %236 = memref.load %arg3[%c6_107, %c2_108] : memref<16x3xf32, #tpu.memory_space<smem>>
    %237 = vector.broadcast %236 : f32 to vector<16x32xf32>
    %238 = arith.mulf %237, %227 : vector<16x32xf32>
    %239 = arith.addf %211, %238 : vector<16x32xf32>
    %c7 = arith.constant 7 : index
    %c0_109 = arith.constant 0 : index
    %240 = memref.load %arg1[%c7, %c0_109] : memref<16x3xf32, #tpu.memory_space<smem>>
    %241 = vector.broadcast %240 : f32 to vector<16x32xf32>
    %242 = arith.mulf %241, %32 : vector<16x32xf32>
    %c7_110 = arith.constant 7 : index
    %c1_111 = arith.constant 1 : index
    %243 = memref.load %arg1[%c7_110, %c1_111] : memref<16x3xf32, #tpu.memory_space<smem>>
    %244 = vector.broadcast %243 : f32 to vector<16x32xf32>
    %245 = arith.mulf %244, %0 : vector<16x32xf32>
    %246 = arith.addf %242, %245 : vector<16x32xf32>
    %c7_112 = arith.constant 7 : index
    %c2_113 = arith.constant 2 : index
    %247 = memref.load %arg1[%c7_112, %c2_113] : memref<16x3xf32, #tpu.memory_space<smem>>
    %248 = vector.broadcast %247 : f32 to vector<16x32xf32>
    %249 = arith.mulf %248, %40 : vector<16x32xf32>
    %250 = arith.addf %246, %249 : vector<16x32xf32>
    %c7_114 = arith.constant 7 : index
    %c0_115 = arith.constant 0 : index
    %251 = memref.load %arg2[%c7_114, %c0_115] : memref<16x1xf32, #tpu.memory_space<smem>>
    %252 = vector.broadcast %251 : f32 to vector<16x32xf32>
    %253 = arith.addf %250, %252 : vector<16x32xf32>
    %cst_116 = arith.constant 0.000000e+00 : f32
    %254 = vector.broadcast %cst_116 : f32 to vector<16x32xf32>
    %255 = arith.maximumf %253, %254 : vector<16x32xf32>
    %c7_117 = arith.constant 7 : index
    %c0_118 = arith.constant 0 : index
    %256 = memref.load %arg3[%c7_117, %c0_118] : memref<16x3xf32, #tpu.memory_space<smem>>
    %257 = vector.broadcast %256 : f32 to vector<16x32xf32>
    %258 = arith.mulf %257, %255 : vector<16x32xf32>
    %259 = arith.addf %231, %258 : vector<16x32xf32>
    %c7_119 = arith.constant 7 : index
    %c1_120 = arith.constant 1 : index
    %260 = memref.load %arg3[%c7_119, %c1_120] : memref<16x3xf32, #tpu.memory_space<smem>>
    %261 = vector.broadcast %260 : f32 to vector<16x32xf32>
    %262 = arith.mulf %261, %255 : vector<16x32xf32>
    %263 = arith.addf %235, %262 : vector<16x32xf32>
    %c7_121 = arith.constant 7 : index
    %c2_122 = arith.constant 2 : index
    %264 = memref.load %arg3[%c7_121, %c2_122] : memref<16x3xf32, #tpu.memory_space<smem>>
    %265 = vector.broadcast %264 : f32 to vector<16x32xf32>
    %266 = arith.mulf %265, %255 : vector<16x32xf32>
    %267 = arith.addf %239, %266 : vector<16x32xf32>
    %c8 = arith.constant 8 : index
    %c0_123 = arith.constant 0 : index
    %268 = memref.load %arg1[%c8, %c0_123] : memref<16x3xf32, #tpu.memory_space<smem>>
    %269 = vector.broadcast %268 : f32 to vector<16x32xf32>
    %270 = arith.mulf %269, %32 : vector<16x32xf32>
    %c8_124 = arith.constant 8 : index
    %c1_125 = arith.constant 1 : index
    %271 = memref.load %arg1[%c8_124, %c1_125] : memref<16x3xf32, #tpu.memory_space<smem>>
    %272 = vector.broadcast %271 : f32 to vector<16x32xf32>
    %273 = arith.mulf %272, %0 : vector<16x32xf32>
    %274 = arith.addf %270, %273 : vector<16x32xf32>
    %c8_126 = arith.constant 8 : index
    %c2_127 = arith.constant 2 : index
    %275 = memref.load %arg1[%c8_126, %c2_127] : memref<16x3xf32, #tpu.memory_space<smem>>
    %276 = vector.broadcast %275 : f32 to vector<16x32xf32>
    %277 = arith.mulf %276, %40 : vector<16x32xf32>
    %278 = arith.addf %274, %277 : vector<16x32xf32>
    %c8_128 = arith.constant 8 : index
    %c0_129 = arith.constant 0 : index
    %279 = memref.load %arg2[%c8_128, %c0_129] : memref<16x1xf32, #tpu.memory_space<smem>>
    %280 = vector.broadcast %279 : f32 to vector<16x32xf32>
    %281 = arith.addf %278, %280 : vector<16x32xf32>
    %cst_130 = arith.constant 0.000000e+00 : f32
    %282 = vector.broadcast %cst_130 : f32 to vector<16x32xf32>
    %283 = arith.maximumf %281, %282 : vector<16x32xf32>
    %c8_131 = arith.constant 8 : index
    %c0_132 = arith.constant 0 : index
    %284 = memref.load %arg3[%c8_131, %c0_132] : memref<16x3xf32, #tpu.memory_space<smem>>
    %285 = vector.broadcast %284 : f32 to vector<16x32xf32>
    %286 = arith.mulf %285, %283 : vector<16x32xf32>
    %287 = arith.addf %259, %286 : vector<16x32xf32>
    %c8_133 = arith.constant 8 : index
    %c1_134 = arith.constant 1 : index
    %288 = memref.load %arg3[%c8_133, %c1_134] : memref<16x3xf32, #tpu.memory_space<smem>>
    %289 = vector.broadcast %288 : f32 to vector<16x32xf32>
    %290 = arith.mulf %289, %283 : vector<16x32xf32>
    %291 = arith.addf %263, %290 : vector<16x32xf32>
    %c8_135 = arith.constant 8 : index
    %c2_136 = arith.constant 2 : index
    %292 = memref.load %arg3[%c8_135, %c2_136] : memref<16x3xf32, #tpu.memory_space<smem>>
    %293 = vector.broadcast %292 : f32 to vector<16x32xf32>
    %294 = arith.mulf %293, %283 : vector<16x32xf32>
    %295 = arith.addf %267, %294 : vector<16x32xf32>
    %c9 = arith.constant 9 : index
    %c0_137 = arith.constant 0 : index
    %296 = memref.load %arg1[%c9, %c0_137] : memref<16x3xf32, #tpu.memory_space<smem>>
    %297 = vector.broadcast %296 : f32 to vector<16x32xf32>
    %298 = arith.mulf %297, %32 : vector<16x32xf32>
    %c9_138 = arith.constant 9 : index
    %c1_139 = arith.constant 1 : index
    %299 = memref.load %arg1[%c9_138, %c1_139] : memref<16x3xf32, #tpu.memory_space<smem>>
    %300 = vector.broadcast %299 : f32 to vector<16x32xf32>
    %301 = arith.mulf %300, %0 : vector<16x32xf32>
    %302 = arith.addf %298, %301 : vector<16x32xf32>
    %c9_140 = arith.constant 9 : index
    %c2_141 = arith.constant 2 : index
    %303 = memref.load %arg1[%c9_140, %c2_141] : memref<16x3xf32, #tpu.memory_space<smem>>
    %304 = vector.broadcast %303 : f32 to vector<16x32xf32>
    %305 = arith.mulf %304, %40 : vector<16x32xf32>
    %306 = arith.addf %302, %305 : vector<16x32xf32>
    %c9_142 = arith.constant 9 : index
    %c0_143 = arith.constant 0 : index
    %307 = memref.load %arg2[%c9_142, %c0_143] : memref<16x1xf32, #tpu.memory_space<smem>>
    %308 = vector.broadcast %307 : f32 to vector<16x32xf32>
    %309 = arith.addf %306, %308 : vector<16x32xf32>
    %cst_144 = arith.constant 0.000000e+00 : f32
    %310 = vector.broadcast %cst_144 : f32 to vector<16x32xf32>
    %311 = arith.maximumf %309, %310 : vector<16x32xf32>
    %c9_145 = arith.constant 9 : index
    %c0_146 = arith.constant 0 : index
    %312 = memref.load %arg3[%c9_145, %c0_146] : memref<16x3xf32, #tpu.memory_space<smem>>
    %313 = vector.broadcast %312 : f32 to vector<16x32xf32>
    %314 = arith.mulf %313, %311 : vector<16x32xf32>
    %315 = arith.addf %287, %314 : vector<16x32xf32>
    %c9_147 = arith.constant 9 : index
    %c1_148 = arith.constant 1 : index
    %316 = memref.load %arg3[%c9_147, %c1_148] : memref<16x3xf32, #tpu.memory_space<smem>>
    %317 = vector.broadcast %316 : f32 to vector<16x32xf32>
    %318 = arith.mulf %317, %311 : vector<16x32xf32>
    %319 = arith.addf %291, %318 : vector<16x32xf32>
    %c9_149 = arith.constant 9 : index
    %c2_150 = arith.constant 2 : index
    %320 = memref.load %arg3[%c9_149, %c2_150] : memref<16x3xf32, #tpu.memory_space<smem>>
    %321 = vector.broadcast %320 : f32 to vector<16x32xf32>
    %322 = arith.mulf %321, %311 : vector<16x32xf32>
    %323 = arith.addf %295, %322 : vector<16x32xf32>
    %c10 = arith.constant 10 : index
    %c0_151 = arith.constant 0 : index
    %324 = memref.load %arg1[%c10, %c0_151] : memref<16x3xf32, #tpu.memory_space<smem>>
    %325 = vector.broadcast %324 : f32 to vector<16x32xf32>
    %326 = arith.mulf %325, %32 : vector<16x32xf32>
    %c10_152 = arith.constant 10 : index
    %c1_153 = arith.constant 1 : index
    %327 = memref.load %arg1[%c10_152, %c1_153] : memref<16x3xf32, #tpu.memory_space<smem>>
    %328 = vector.broadcast %327 : f32 to vector<16x32xf32>
    %329 = arith.mulf %328, %0 : vector<16x32xf32>
    %330 = arith.addf %326, %329 : vector<16x32xf32>
    %c10_154 = arith.constant 10 : index
    %c2_155 = arith.constant 2 : index
    %331 = memref.load %arg1[%c10_154, %c2_155] : memref<16x3xf32, #tpu.memory_space<smem>>
    %332 = vector.broadcast %331 : f32 to vector<16x32xf32>
    %333 = arith.mulf %332, %40 : vector<16x32xf32>
    %334 = arith.addf %330, %333 : vector<16x32xf32>
    %c10_156 = arith.constant 10 : index
    %c0_157 = arith.constant 0 : index
    %335 = memref.load %arg2[%c10_156, %c0_157] : memref<16x1xf32, #tpu.memory_space<smem>>
    %336 = vector.broadcast %335 : f32 to vector<16x32xf32>
    %337 = arith.addf %334, %336 : vector<16x32xf32>
    %cst_158 = arith.constant 0.000000e+00 : f32
    %338 = vector.broadcast %cst_158 : f32 to vector<16x32xf32>
    %339 = arith.maximumf %337, %338 : vector<16x32xf32>
    %c10_159 = arith.constant 10 : index
    %c0_160 = arith.constant 0 : index
    %340 = memref.load %arg3[%c10_159, %c0_160] : memref<16x3xf32, #tpu.memory_space<smem>>
    %341 = vector.broadcast %340 : f32 to vector<16x32xf32>
    %342 = arith.mulf %341, %339 : vector<16x32xf32>
    %343 = arith.addf %315, %342 : vector<16x32xf32>
    %c10_161 = arith.constant 10 : index
    %c1_162 = arith.constant 1 : index
    %344 = memref.load %arg3[%c10_161, %c1_162] : memref<16x3xf32, #tpu.memory_space<smem>>
    %345 = vector.broadcast %344 : f32 to vector<16x32xf32>
    %346 = arith.mulf %345, %339 : vector<16x32xf32>
    %347 = arith.addf %319, %346 : vector<16x32xf32>
    %c10_163 = arith.constant 10 : index
    %c2_164 = arith.constant 2 : index
    %348 = memref.load %arg3[%c10_163, %c2_164] : memref<16x3xf32, #tpu.memory_space<smem>>
    %349 = vector.broadcast %348 : f32 to vector<16x32xf32>
    %350 = arith.mulf %349, %339 : vector<16x32xf32>
    %351 = arith.addf %323, %350 : vector<16x32xf32>
    %c11 = arith.constant 11 : index
    %c0_165 = arith.constant 0 : index
    %352 = memref.load %arg1[%c11, %c0_165] : memref<16x3xf32, #tpu.memory_space<smem>>
    %353 = vector.broadcast %352 : f32 to vector<16x32xf32>
    %354 = arith.mulf %353, %32 : vector<16x32xf32>
    %c11_166 = arith.constant 11 : index
    %c1_167 = arith.constant 1 : index
    %355 = memref.load %arg1[%c11_166, %c1_167] : memref<16x3xf32, #tpu.memory_space<smem>>
    %356 = vector.broadcast %355 : f32 to vector<16x32xf32>
    %357 = arith.mulf %356, %0 : vector<16x32xf32>
    %358 = arith.addf %354, %357 : vector<16x32xf32>
    %c11_168 = arith.constant 11 : index
    %c2_169 = arith.constant 2 : index
    %359 = memref.load %arg1[%c11_168, %c2_169] : memref<16x3xf32, #tpu.memory_space<smem>>
    %360 = vector.broadcast %359 : f32 to vector<16x32xf32>
    %361 = arith.mulf %360, %40 : vector<16x32xf32>
    %362 = arith.addf %358, %361 : vector<16x32xf32>
    %c11_170 = arith.constant 11 : index
    %c0_171 = arith.constant 0 : index
    %363 = memref.load %arg2[%c11_170, %c0_171] : memref<16x1xf32, #tpu.memory_space<smem>>
    %364 = vector.broadcast %363 : f32 to vector<16x32xf32>
    %365 = arith.addf %362, %364 : vector<16x32xf32>
    %cst_172 = arith.constant 0.000000e+00 : f32
    %366 = vector.broadcast %cst_172 : f32 to vector<16x32xf32>
    %367 = arith.maximumf %365, %366 : vector<16x32xf32>
    %c11_173 = arith.constant 11 : index
    %c0_174 = arith.constant 0 : index
    %368 = memref.load %arg3[%c11_173, %c0_174] : memref<16x3xf32, #tpu.memory_space<smem>>
    %369 = vector.broadcast %368 : f32 to vector<16x32xf32>
    %370 = arith.mulf %369, %367 : vector<16x32xf32>
    %371 = arith.addf %343, %370 : vector<16x32xf32>
    %c11_175 = arith.constant 11 : index
    %c1_176 = arith.constant 1 : index
    %372 = memref.load %arg3[%c11_175, %c1_176] : memref<16x3xf32, #tpu.memory_space<smem>>
    %373 = vector.broadcast %372 : f32 to vector<16x32xf32>
    %374 = arith.mulf %373, %367 : vector<16x32xf32>
    %375 = arith.addf %347, %374 : vector<16x32xf32>
    %c11_177 = arith.constant 11 : index
    %c2_178 = arith.constant 2 : index
    %376 = memref.load %arg3[%c11_177, %c2_178] : memref<16x3xf32, #tpu.memory_space<smem>>
    %377 = vector.broadcast %376 : f32 to vector<16x32xf32>
    %378 = arith.mulf %377, %367 : vector<16x32xf32>
    %379 = arith.addf %351, %378 : vector<16x32xf32>
    %c12 = arith.constant 12 : index
    %c0_179 = arith.constant 0 : index
    %380 = memref.load %arg1[%c12, %c0_179] : memref<16x3xf32, #tpu.memory_space<smem>>
    %381 = vector.broadcast %380 : f32 to vector<16x32xf32>
    %382 = arith.mulf %381, %32 : vector<16x32xf32>
    %c12_180 = arith.constant 12 : index
    %c1_181 = arith.constant 1 : index
    %383 = memref.load %arg1[%c12_180, %c1_181] : memref<16x3xf32, #tpu.memory_space<smem>>
    %384 = vector.broadcast %383 : f32 to vector<16x32xf32>
    %385 = arith.mulf %384, %0 : vector<16x32xf32>
    %386 = arith.addf %382, %385 : vector<16x32xf32>
    %c12_182 = arith.constant 12 : index
    %c2_183 = arith.constant 2 : index
    %387 = memref.load %arg1[%c12_182, %c2_183] : memref<16x3xf32, #tpu.memory_space<smem>>
    %388 = vector.broadcast %387 : f32 to vector<16x32xf32>
    %389 = arith.mulf %388, %40 : vector<16x32xf32>
    %390 = arith.addf %386, %389 : vector<16x32xf32>
    %c12_184 = arith.constant 12 : index
    %c0_185 = arith.constant 0 : index
    %391 = memref.load %arg2[%c12_184, %c0_185] : memref<16x1xf32, #tpu.memory_space<smem>>
    %392 = vector.broadcast %391 : f32 to vector<16x32xf32>
    %393 = arith.addf %390, %392 : vector<16x32xf32>
    %cst_186 = arith.constant 0.000000e+00 : f32
    %394 = vector.broadcast %cst_186 : f32 to vector<16x32xf32>
    %395 = arith.maximumf %393, %394 : vector<16x32xf32>
    %c12_187 = arith.constant 12 : index
    %c0_188 = arith.constant 0 : index
    %396 = memref.load %arg3[%c12_187, %c0_188] : memref<16x3xf32, #tpu.memory_space<smem>>
    %397 = vector.broadcast %396 : f32 to vector<16x32xf32>
    %398 = arith.mulf %397, %395 : vector<16x32xf32>
    %399 = arith.addf %371, %398 : vector<16x32xf32>
    %c12_189 = arith.constant 12 : index
    %c1_190 = arith.constant 1 : index
    %400 = memref.load %arg3[%c12_189, %c1_190] : memref<16x3xf32, #tpu.memory_space<smem>>
    %401 = vector.broadcast %400 : f32 to vector<16x32xf32>
    %402 = arith.mulf %401, %395 : vector<16x32xf32>
    %403 = arith.addf %375, %402 : vector<16x32xf32>
    %c12_191 = arith.constant 12 : index
    %c2_192 = arith.constant 2 : index
    %404 = memref.load %arg3[%c12_191, %c2_192] : memref<16x3xf32, #tpu.memory_space<smem>>
    %405 = vector.broadcast %404 : f32 to vector<16x32xf32>
    %406 = arith.mulf %405, %395 : vector<16x32xf32>
    %407 = arith.addf %379, %406 : vector<16x32xf32>
    %c13 = arith.constant 13 : index
    %c0_193 = arith.constant 0 : index
    %408 = memref.load %arg1[%c13, %c0_193] : memref<16x3xf32, #tpu.memory_space<smem>>
    %409 = vector.broadcast %408 : f32 to vector<16x32xf32>
    %410 = arith.mulf %409, %32 : vector<16x32xf32>
    %c13_194 = arith.constant 13 : index
    %c1_195 = arith.constant 1 : index
    %411 = memref.load %arg1[%c13_194, %c1_195] : memref<16x3xf32, #tpu.memory_space<smem>>
    %412 = vector.broadcast %411 : f32 to vector<16x32xf32>
    %413 = arith.mulf %412, %0 : vector<16x32xf32>
    %414 = arith.addf %410, %413 : vector<16x32xf32>
    %c13_196 = arith.constant 13 : index
    %c2_197 = arith.constant 2 : index
    %415 = memref.load %arg1[%c13_196, %c2_197] : memref<16x3xf32, #tpu.memory_space<smem>>
    %416 = vector.broadcast %415 : f32 to vector<16x32xf32>
    %417 = arith.mulf %416, %40 : vector<16x32xf32>
    %418 = arith.addf %414, %417 : vector<16x32xf32>
    %c13_198 = arith.constant 13 : index
    %c0_199 = arith.constant 0 : index
    %419 = memref.load %arg2[%c13_198, %c0_199] : memref<16x1xf32, #tpu.memory_space<smem>>
    %420 = vector.broadcast %419 : f32 to vector<16x32xf32>
    %421 = arith.addf %418, %420 : vector<16x32xf32>
    %cst_200 = arith.constant 0.000000e+00 : f32
    %422 = vector.broadcast %cst_200 : f32 to vector<16x32xf32>
    %423 = arith.maximumf %421, %422 : vector<16x32xf32>
    %c13_201 = arith.constant 13 : index
    %c0_202 = arith.constant 0 : index
    %424 = memref.load %arg3[%c13_201, %c0_202] : memref<16x3xf32, #tpu.memory_space<smem>>
    %425 = vector.broadcast %424 : f32 to vector<16x32xf32>
    %426 = arith.mulf %425, %423 : vector<16x32xf32>
    %427 = arith.addf %399, %426 : vector<16x32xf32>
    %c13_203 = arith.constant 13 : index
    %c1_204 = arith.constant 1 : index
    %428 = memref.load %arg3[%c13_203, %c1_204] : memref<16x3xf32, #tpu.memory_space<smem>>
    %429 = vector.broadcast %428 : f32 to vector<16x32xf32>
    %430 = arith.mulf %429, %423 : vector<16x32xf32>
    %431 = arith.addf %403, %430 : vector<16x32xf32>
    %c13_205 = arith.constant 13 : index
    %c2_206 = arith.constant 2 : index
    %432 = memref.load %arg3[%c13_205, %c2_206] : memref<16x3xf32, #tpu.memory_space<smem>>
    %433 = vector.broadcast %432 : f32 to vector<16x32xf32>
    %434 = arith.mulf %433, %423 : vector<16x32xf32>
    %435 = arith.addf %407, %434 : vector<16x32xf32>
    %c14 = arith.constant 14 : index
    %c0_207 = arith.constant 0 : index
    %436 = memref.load %arg1[%c14, %c0_207] : memref<16x3xf32, #tpu.memory_space<smem>>
    %437 = vector.broadcast %436 : f32 to vector<16x32xf32>
    %438 = arith.mulf %437, %32 : vector<16x32xf32>
    %c14_208 = arith.constant 14 : index
    %c1_209 = arith.constant 1 : index
    %439 = memref.load %arg1[%c14_208, %c1_209] : memref<16x3xf32, #tpu.memory_space<smem>>
    %440 = vector.broadcast %439 : f32 to vector<16x32xf32>
    %441 = arith.mulf %440, %0 : vector<16x32xf32>
    %442 = arith.addf %438, %441 : vector<16x32xf32>
    %c14_210 = arith.constant 14 : index
    %c2_211 = arith.constant 2 : index
    %443 = memref.load %arg1[%c14_210, %c2_211] : memref<16x3xf32, #tpu.memory_space<smem>>
    %444 = vector.broadcast %443 : f32 to vector<16x32xf32>
    %445 = arith.mulf %444, %40 : vector<16x32xf32>
    %446 = arith.addf %442, %445 : vector<16x32xf32>
    %c14_212 = arith.constant 14 : index
    %c0_213 = arith.constant 0 : index
    %447 = memref.load %arg2[%c14_212, %c0_213] : memref<16x1xf32, #tpu.memory_space<smem>>
    %448 = vector.broadcast %447 : f32 to vector<16x32xf32>
    %449 = arith.addf %446, %448 : vector<16x32xf32>
    %cst_214 = arith.constant 0.000000e+00 : f32
    %450 = vector.broadcast %cst_214 : f32 to vector<16x32xf32>
    %451 = arith.maximumf %449, %450 : vector<16x32xf32>
    %c14_215 = arith.constant 14 : index
    %c0_216 = arith.constant 0 : index
    %452 = memref.load %arg3[%c14_215, %c0_216] : memref<16x3xf32, #tpu.memory_space<smem>>
    %453 = vector.broadcast %452 : f32 to vector<16x32xf32>
    %454 = arith.mulf %453, %451 : vector<16x32xf32>
    %455 = arith.addf %427, %454 : vector<16x32xf32>
    %c14_217 = arith.constant 14 : index
    %c1_218 = arith.constant 1 : index
    %456 = memref.load %arg3[%c14_217, %c1_218] : memref<16x3xf32, #tpu.memory_space<smem>>
    %457 = vector.broadcast %456 : f32 to vector<16x32xf32>
    %458 = arith.mulf %457, %451 : vector<16x32xf32>
    %459 = arith.addf %431, %458 : vector<16x32xf32>
    %c14_219 = arith.constant 14 : index
    %c2_220 = arith.constant 2 : index
    %460 = memref.load %arg3[%c14_219, %c2_220] : memref<16x3xf32, #tpu.memory_space<smem>>
    %461 = vector.broadcast %460 : f32 to vector<16x32xf32>
    %462 = arith.mulf %461, %451 : vector<16x32xf32>
    %463 = arith.addf %435, %462 : vector<16x32xf32>
    %c15 = arith.constant 15 : index
    %c0_221 = arith.constant 0 : index
    %464 = memref.load %arg1[%c15, %c0_221] : memref<16x3xf32, #tpu.memory_space<smem>>
    %465 = vector.broadcast %464 : f32 to vector<16x32xf32>
    %466 = arith.mulf %465, %32 : vector<16x32xf32>
    %c15_222 = arith.constant 15 : index
    %c1_223 = arith.constant 1 : index
    %467 = memref.load %arg1[%c15_222, %c1_223] : memref<16x3xf32, #tpu.memory_space<smem>>
    %468 = vector.broadcast %467 : f32 to vector<16x32xf32>
    %469 = arith.mulf %468, %0 : vector<16x32xf32>
    %470 = arith.addf %466, %469 : vector<16x32xf32>
    %c15_224 = arith.constant 15 : index
    %c2_225 = arith.constant 2 : index
    %471 = memref.load %arg1[%c15_224, %c2_225] : memref<16x3xf32, #tpu.memory_space<smem>>
    %472 = vector.broadcast %471 : f32 to vector<16x32xf32>
    %473 = arith.mulf %472, %40 : vector<16x32xf32>
    %474 = arith.addf %470, %473 : vector<16x32xf32>
    %c15_226 = arith.constant 15 : index
    %c0_227 = arith.constant 0 : index
    %475 = memref.load %arg2[%c15_226, %c0_227] : memref<16x1xf32, #tpu.memory_space<smem>>
    %476 = vector.broadcast %475 : f32 to vector<16x32xf32>
    %477 = arith.addf %474, %476 : vector<16x32xf32>
    %cst_228 = arith.constant 0.000000e+00 : f32
    %478 = vector.broadcast %cst_228 : f32 to vector<16x32xf32>
    %479 = arith.maximumf %477, %478 : vector<16x32xf32>
    %c15_229 = arith.constant 15 : index
    %c0_230 = arith.constant 0 : index
    %480 = memref.load %arg3[%c15_229, %c0_230] : memref<16x3xf32, #tpu.memory_space<smem>>
    %481 = vector.broadcast %480 : f32 to vector<16x32xf32>
    %482 = arith.mulf %481, %479 : vector<16x32xf32>
    %483 = arith.addf %455, %482 : vector<16x32xf32>
    %c15_231 = arith.constant 15 : index
    %c1_232 = arith.constant 1 : index
    %484 = memref.load %arg3[%c15_231, %c1_232] : memref<16x3xf32, #tpu.memory_space<smem>>
    %485 = vector.broadcast %484 : f32 to vector<16x32xf32>
    %486 = arith.mulf %485, %479 : vector<16x32xf32>
    %487 = arith.addf %459, %486 : vector<16x32xf32>
    %c15_233 = arith.constant 15 : index
    %c2_234 = arith.constant 2 : index
    %488 = memref.load %arg3[%c15_233, %c2_234] : memref<16x3xf32, #tpu.memory_space<smem>>
    %489 = vector.broadcast %488 : f32 to vector<16x32xf32>
    %490 = arith.mulf %489, %479 : vector<16x32xf32>
    %491 = arith.addf %463, %490 : vector<16x32xf32>
    %cst_235 = arith.constant 0.000000e+00 : f32
    %492 = vector.broadcast %cst_235 : f32 to vector<1x32xf32>
    %493 = vector.extract_strided_slice %483 {offsets = [0, 0], sizes = [15, 32], strides = [1, 1]} : vector<16x32xf32> to vector<15x32xf32>
    %494 = tpu.concatenate %492, %493 in 0 : vector<1x32xf32>, vector<15x32xf32> -> vector<16x32xf32>
    %495 = vector.extract_strided_slice %494 {offsets = [0, 31], sizes = [16, 1], strides = [1, 1]} : vector<16x32xf32> to vector<16x1xf32>
    %496 = vector.extract_strided_slice %483 {offsets = [0, 0], sizes = [16, 31], strides = [1, 1]} : vector<16x32xf32> to vector<16x31xf32>
    %497 = tpu.concatenate %495, %496 in 1 : vector<16x1xf32>, vector<16x31xf32> -> vector<16x32xf32>
    %cst_236 = arith.constant 0.000000e+00 : f32
    %498 = vector.broadcast %cst_236 : f32 to vector<16x32xf32>
    %499 = arith.select %18, %498, %497 : vector<16x32xi1>, vector<16x32xf32>
    %500 = arith.addf %499, %487 : vector<16x32xf32>
    %501 = vector.extract_strided_slice %491 {offsets = [1, 0], sizes = [15, 32], strides = [1, 1]} : vector<16x32xf32> to vector<15x32xf32>
    %cst_237 = arith.constant 0.000000e+00 : f32
    %502 = vector.broadcast %cst_237 : f32 to vector<1x32xf32>
    %503 = tpu.concatenate %501, %502 in 0 : vector<15x32xf32>, vector<1x32xf32> -> vector<16x32xf32>
    %504 = vector.extract_strided_slice %491 {offsets = [0, 1], sizes = [16, 31], strides = [1, 1]} : vector<16x32xf32> to vector<16x31xf32>
    %505 = vector.extract_strided_slice %503 {offsets = [0, 0], sizes = [16, 1], strides = [1, 1]} : vector<16x32xf32> to vector<16x1xf32>
    %506 = tpu.concatenate %504, %505 in 1 : vector<16x31xf32>, vector<16x1xf32> -> vector<16x32xf32>
    %cst_238 = arith.constant 0.000000e+00 : f32
    %507 = vector.broadcast %cst_238 : f32 to vector<16x32xf32>
    %508 = arith.select %24, %507, %506 : vector<16x32xi1>, vector<16x32xf32>
    %509 = arith.addf %500, %508 : vector<16x32xf32>
    %c0_239 = arith.constant 0 : index
    %c0_240 = arith.constant 0 : index
    %510 = memref.load %arg4[%c0_239, %c0_240] : memref<1x1xf32, #tpu.memory_space<smem>>
    %511 = vector.broadcast %510 : f32 to vector<16x32xf32>
    %512 = arith.addf %509, %511 : vector<16x32xf32>
    %cst_241 = arith.constant 0.000000e+00 : f32
    %513 = vector.broadcast %cst_241 : f32 to vector<16x32xf32>
    %514 = arith.maximumf %512, %513 : vector<16x32xf32>
    %515 = tpu.iota {dimensions = array<i32: 0>} : vector<32x4xi32>
    %516 = tpu.iota {dimensions = array<i32: 1>} : vector<32x4xi32>
    %c8_i32_242 = arith.constant 8 : i32
    %517 = vector.broadcast %c8_i32_242 : i32 to vector<32x4xi32>
    %518 = arith.muli %516, %517 : vector<32x4xi32>
    %519 = arith.cmpi sge, %515, %518 : vector<32x4xi32>
    %c1_i32 = arith.constant 1 : i32
    %520 = vector.broadcast %c1_i32 : i32 to vector<32x4xi32>
    %521 = arith.addi %516, %520 : vector<32x4xi32>
    %c8_i32_243 = arith.constant 8 : i32
    %522 = vector.broadcast %c8_i32_243 : i32 to vector<32x4xi32>
    %523 = arith.muli %521, %522 : vector<32x4xi32>
    %524 = arith.cmpi slt, %515, %523 : vector<32x4xi32>
    %525 = arith.andi %519, %524 : vector<32x4xi1>
    %cst_244 = arith.constant 1.000000e+00 : f32
    %cst_245 = arith.constant 0.000000e+00 : f32
    %526 = vector.broadcast %cst_244 : f32 to vector<32x4xf32>
    %527 = vector.broadcast %cst_245 : f32 to vector<32x4xf32>
    %528 = arith.select %525, %526, %527 : vector<32x4xi1>, vector<32x4xf32>
    %529 = tpu.iota {dimensions = array<i32: 0>} : vector<4x32xi32>
    %530 = tpu.iota {dimensions = array<i32: 1>} : vector<4x32xi32>
    %c8_i32_246 = arith.constant 8 : i32
    %531 = vector.broadcast %c8_i32_246 : i32 to vector<4x32xi32>
    %532 = arith.muli %529, %531 : vector<4x32xi32>
    %533 = arith.cmpi sge, %530, %532 : vector<4x32xi32>
    %c1_i32_247 = arith.constant 1 : i32
    %534 = vector.broadcast %c1_i32_247 : i32 to vector<4x32xi32>
    %535 = arith.addi %529, %534 : vector<4x32xi32>
    %c8_i32_248 = arith.constant 8 : i32
    %536 = vector.broadcast %c8_i32_248 : i32 to vector<4x32xi32>
    %537 = arith.muli %535, %536 : vector<4x32xi32>
    %538 = arith.cmpi slt, %530, %537 : vector<4x32xi32>
    %539 = arith.andi %533, %538 : vector<4x32xi1>
    %cst_249 = arith.constant 1.000000e+00 : f32
    %cst_250 = arith.constant 0.000000e+00 : f32
    %540 = vector.broadcast %cst_249 : f32 to vector<4x32xf32>
    %541 = vector.broadcast %cst_250 : f32 to vector<4x32xf32>
    %542 = arith.select %539, %540, %541 : vector<4x32xi1>, vector<4x32xf32>
    %c0_251 = arith.constant 0 : index
    %c0_252 = arith.constant 0 : index
    %543 = vector.load %arg6[%c0_251, %c0_252] : memref<32x32xf32, #tpu.memory_space<vmem>>, vector<32x32xf32>
    %c0_253 = arith.constant 0 : index
    %c0_254 = arith.constant 0 : index
    %544 = vector.load %arg7[%c0_253, %c0_254] : memref<1x32xf32, #tpu.memory_space<vmem>>, vector<1x32xf32>
    %cst_255 = arith.constant dense<0.000000e+00> : vector<16x32xf32>
    %545 = tpu.matmul %514, %543, %cst_255 {dimension_numbers = #tpu.dot_dimension_numbers<[1], [0], [0], [1], [0, 0, 1, 1], [], []>} : vector<16x32xf32>, vector<32x32xf32>, vector<16x32xf32> -> vector<16x32xf32>
    %546 = vector.broadcast %544 : vector<1x32xf32> to vector<16x32xf32>
    %547 = arith.addf %545, %546 : vector<16x32xf32>
    %c0_256 = arith.constant 0 : index
    %c0_257 = arith.constant 0 : index
    %548 = vector.load %arg5[%c0_256, %c0_257] : memref<16x32xf32, #tpu.memory_space<vmem>>, vector<16x32xf32>
    %549 = arith.addf %547, %548 : vector<16x32xf32>
    %c0_258 = arith.constant 0 : index
    %c0_259 = arith.constant 0 : index
    %c0_260 = arith.constant 0 : index
    %550 = vector.load %arg8[%c0_258, %c0_259, %c0_260] : memref<3x32x96xf32, #tpu.memory_space<vmem>>, vector<1x32x96xf32>
    %551 = vector.shape_cast %550 : vector<1x32x96xf32> to vector<32x96xf32>
    %c0_261 = arith.constant 0 : index
    %c0_262 = arith.constant 0 : index
    %c0_263 = arith.constant 0 : index
    %552 = vector.load %arg9[%c0_261, %c0_262, %c0_263] : memref<3x1x96xf32, #tpu.memory_space<vmem>>, vector<1x1x96xf32>
    %553 = vector.shape_cast %552 : vector<1x1x96xf32> to vector<1x96xf32>
    %cst_264 = arith.constant dense<0.000000e+00> : vector<16x96xf32>
    %554 = tpu.matmul %549, %551, %cst_264 {dimension_numbers = #tpu.dot_dimension_numbers<[1], [0], [0], [1], [0, 0, 1, 1], [], []>} : vector<16x32xf32>, vector<32x96xf32>, vector<16x96xf32> -> vector<16x96xf32>
    %555 = vector.broadcast %553 : vector<1x96xf32> to vector<16x96xf32>
    %556 = arith.addf %554, %555 : vector<16x96xf32>
    %557 = vector.extract_strided_slice %556 {offsets = [0, 0], sizes = [16, 32], strides = [1, 1]} : vector<16x96xf32> to vector<16x32xf32>
    %558 = vector.extract_strided_slice %556 {offsets = [0, 32], sizes = [16, 32], strides = [1, 1]} : vector<16x96xf32> to vector<16x32xf32>
    %559 = vector.extract_strided_slice %556 {offsets = [0, 64], sizes = [16, 32], strides = [1, 1]} : vector<16x96xf32> to vector<16x32xf32>
    %560 = vector.extract_strided_slice %557 {offsets = [0, 0], sizes = [8, 32], strides = [1, 1]} : vector<16x32xf32> to vector<8x32xf32>
    %561 = vector.extract_strided_slice %557 {offsets = [8, 0], sizes = [8, 32], strides = [1, 1]} : vector<16x32xf32> to vector<8x32xf32>
    %562 = vector.extract_strided_slice %558 {offsets = [0, 0], sizes = [8, 32], strides = [1, 1]} : vector<16x32xf32> to vector<8x32xf32>
    %563 = vector.extract_strided_slice %558 {offsets = [8, 0], sizes = [8, 32], strides = [1, 1]} : vector<16x32xf32> to vector<8x32xf32>
    %564 = vector.extract_strided_slice %559 {offsets = [0, 0], sizes = [8, 32], strides = [1, 1]} : vector<16x32xf32> to vector<8x32xf32>
    %565 = vector.extract_strided_slice %559 {offsets = [8, 0], sizes = [8, 32], strides = [1, 1]} : vector<16x32xf32> to vector<8x32xf32>
    %566 = arith.mulf %560, %562 : vector<8x32xf32>
    %cst_265 = arith.constant dense<0.000000e+00> : vector<8x4xf32>
    %567 = tpu.matmul %566, %528, %cst_265 {dimension_numbers = #tpu.dot_dimension_numbers<[1], [0], [0], [1], [0, 0, 1, 1], [], []>} : vector<8x32xf32>, vector<32x4xf32>, vector<8x4xf32> -> vector<8x4xf32>
    %cst_266 = arith.constant 0.353553385 : f32
    %568 = vector.broadcast %cst_266 : f32 to vector<8x4xf32>
    %569 = arith.mulf %567, %568 : vector<8x4xf32>
    %570 = arith.mulf %560, %563 : vector<8x32xf32>
    %cst_267 = arith.constant dense<0.000000e+00> : vector<8x4xf32>
    %571 = tpu.matmul %570, %528, %cst_267 {dimension_numbers = #tpu.dot_dimension_numbers<[1], [0], [0], [1], [0, 0, 1, 1], [], []>} : vector<8x32xf32>, vector<32x4xf32>, vector<8x4xf32> -> vector<8x4xf32>
    %cst_268 = arith.constant 0.353553385 : f32
    %572 = vector.broadcast %cst_268 : f32 to vector<8x4xf32>
    %573 = arith.mulf %571, %572 : vector<8x4xf32>
    %574 = arith.mulf %561, %562 : vector<8x32xf32>
    %cst_269 = arith.constant dense<0.000000e+00> : vector<8x4xf32>
    %575 = tpu.matmul %574, %528, %cst_269 {dimension_numbers = #tpu.dot_dimension_numbers<[1], [0], [0], [1], [0, 0, 1, 1], [], []>} : vector<8x32xf32>, vector<32x4xf32>, vector<8x4xf32> -> vector<8x4xf32>
    %cst_270 = arith.constant 0.353553385 : f32
    %576 = vector.broadcast %cst_270 : f32 to vector<8x4xf32>
    %577 = arith.mulf %575, %576 : vector<8x4xf32>
    %578 = arith.mulf %561, %563 : vector<8x32xf32>
    %cst_271 = arith.constant dense<0.000000e+00> : vector<8x4xf32>
    %579 = tpu.matmul %578, %528, %cst_271 {dimension_numbers = #tpu.dot_dimension_numbers<[1], [0], [0], [1], [0, 0, 1, 1], [], []>} : vector<8x32xf32>, vector<32x4xf32>, vector<8x4xf32> -> vector<8x4xf32>
    %cst_272 = arith.constant 0.353553385 : f32
    %580 = vector.broadcast %cst_272 : f32 to vector<8x4xf32>
    %581 = arith.mulf %579, %580 : vector<8x4xf32>
    %582 = arith.maximumf %569, %573 : vector<8x4xf32>
    %583 = arith.subf %569, %582 : vector<8x4xf32>
    %584 = math.exp %583 : vector<8x4xf32>
    %585 = arith.subf %573, %582 : vector<8x4xf32>
    %586 = math.exp %585 : vector<8x4xf32>
    %587 = arith.addf %584, %586 : vector<8x4xf32>
    %588 = arith.maximumf %577, %581 : vector<8x4xf32>
    %589 = arith.subf %577, %588 : vector<8x4xf32>
    %590 = math.exp %589 : vector<8x4xf32>
    %591 = arith.subf %581, %588 : vector<8x4xf32>
    %592 = math.exp %591 : vector<8x4xf32>
    %593 = arith.addf %590, %592 : vector<8x4xf32>
    %594 = arith.divf %584, %587 : vector<8x4xf32>
    %cst_273 = arith.constant dense<0.000000e+00> : vector<8x32xf32>
    %595 = tpu.matmul %594, %542, %cst_273 {dimension_numbers = #tpu.dot_dimension_numbers<[1], [0], [0], [1], [0, 0, 1, 1], [], []>} : vector<8x4xf32>, vector<4x32xf32>, vector<8x32xf32> -> vector<8x32xf32>
    %596 = arith.divf %586, %587 : vector<8x4xf32>
    %cst_274 = arith.constant dense<0.000000e+00> : vector<8x32xf32>
    %597 = tpu.matmul %596, %542, %cst_274 {dimension_numbers = #tpu.dot_dimension_numbers<[1], [0], [0], [1], [0, 0, 1, 1], [], []>} : vector<8x4xf32>, vector<4x32xf32>, vector<8x32xf32> -> vector<8x32xf32>
    %598 = arith.divf %590, %593 : vector<8x4xf32>
    %cst_275 = arith.constant dense<0.000000e+00> : vector<8x32xf32>
    %599 = tpu.matmul %598, %542, %cst_275 {dimension_numbers = #tpu.dot_dimension_numbers<[1], [0], [0], [1], [0, 0, 1, 1], [], []>} : vector<8x4xf32>, vector<4x32xf32>, vector<8x32xf32> -> vector<8x32xf32>
    %600 = arith.divf %592, %593 : vector<8x4xf32>
    %cst_276 = arith.constant dense<0.000000e+00> : vector<8x32xf32>
    %601 = tpu.matmul %600, %542, %cst_276 {dimension_numbers = #tpu.dot_dimension_numbers<[1], [0], [0], [1], [0, 0, 1, 1], [], []>} : vector<8x4xf32>, vector<4x32xf32>, vector<8x32xf32> -> vector<8x32xf32>
    %602 = arith.mulf %595, %564 : vector<8x32xf32>
    %603 = arith.mulf %597, %565 : vector<8x32xf32>
    %604 = arith.addf %602, %603 : vector<8x32xf32>
    %605 = arith.mulf %599, %564 : vector<8x32xf32>
    %606 = arith.mulf %601, %565 : vector<8x32xf32>
    %607 = arith.addf %605, %606 : vector<8x32xf32>
    %608 = tpu.concatenate %604, %607 in 0 : vector<8x32xf32>, vector<8x32xf32> -> vector<16x32xf32>
    %c0_277 = arith.constant 0 : index
    %c0_278 = arith.constant 0 : index
    %c0_279 = arith.constant 0 : index
    %609 = vector.load %arg10[%c0_277, %c0_278, %c0_279] : memref<3x32x32xf32, #tpu.memory_space<vmem>>, vector<1x32x32xf32>
    %610 = vector.shape_cast %609 : vector<1x32x32xf32> to vector<32x32xf32>
    %c0_280 = arith.constant 0 : index
    %c0_281 = arith.constant 0 : index
    %c0_282 = arith.constant 0 : index
    %611 = vector.load %arg11[%c0_280, %c0_281, %c0_282] : memref<3x1x32xf32, #tpu.memory_space<vmem>>, vector<1x1x32xf32>
    %612 = vector.shape_cast %611 : vector<1x1x32xf32> to vector<1x32xf32>
    %cst_283 = arith.constant dense<0.000000e+00> : vector<16x32xf32>
    %613 = tpu.matmul %608, %610, %cst_283 {dimension_numbers = #tpu.dot_dimension_numbers<[1], [0], [0], [1], [0, 0, 1, 1], [], []>} : vector<16x32xf32>, vector<32x32xf32>, vector<16x32xf32> -> vector<16x32xf32>
    %614 = vector.broadcast %612 : vector<1x32xf32> to vector<16x32xf32>
    %615 = arith.addf %613, %614 : vector<16x32xf32>
    %616 = arith.addf %549, %615 : vector<16x32xf32>
    %c0_284 = arith.constant 0 : index
    %c0_285 = arith.constant 0 : index
    %c0_286 = arith.constant 0 : index
    %617 = vector.load %arg12[%c0_284, %c0_285, %c0_286] : memref<3x1x32xf32, #tpu.memory_space<vmem>>, vector<1x1x32xf32>
    %618 = vector.shape_cast %617 : vector<1x1x32xf32> to vector<1x32xf32>
    %c0_287 = arith.constant 0 : index
    %c0_288 = arith.constant 0 : index
    %c0_289 = arith.constant 0 : index
    %619 = vector.load %arg13[%c0_287, %c0_288, %c0_289] : memref<3x1x32xf32, #tpu.memory_space<vmem>>, vector<1x1x32xf32>
    %620 = vector.shape_cast %619 : vector<1x1x32xf32> to vector<1x32xf32>
    %cst_290 = arith.constant dense<0.000000e+00> : vector<16xf32>
    %621 = vector.multi_reduction <add>, %616, %cst_290 [1] : vector<16x32xf32> to vector<16xf32>
    %622 = vector.shape_cast %621 : vector<16xf32> to vector<16x1xf32>
    %cst_291 = arith.constant 3.200000e+01 : f32
    %623 = vector.broadcast %cst_291 : f32 to vector<16x1xf32>
    %624 = arith.divf %622, %623 : vector<16x1xf32>
    %625 = vector.broadcast %624 : vector<16x1xf32> to vector<16x32xf32>
    %626 = arith.subf %616, %625 : vector<16x32xf32>
    %627 = arith.mulf %626, %626 : vector<16x32xf32>
    %cst_292 = arith.constant dense<0.000000e+00> : vector<16xf32>
    %628 = vector.multi_reduction <add>, %627, %cst_292 [1] : vector<16x32xf32> to vector<16xf32>
    %629 = vector.shape_cast %628 : vector<16xf32> to vector<16x1xf32>
    %cst_293 = arith.constant 3.200000e+01 : f32
    %630 = vector.broadcast %cst_293 : f32 to vector<16x1xf32>
    %631 = arith.divf %629, %630 : vector<16x1xf32>
    %632 = vector.broadcast %624 : vector<16x1xf32> to vector<16x32xf32>
    %633 = arith.subf %616, %632 : vector<16x32xf32>
    %cst_294 = arith.constant 9.99999974E-6 : f32
    %634 = vector.broadcast %cst_294 : f32 to vector<16x1xf32>
    %635 = arith.addf %631, %634 : vector<16x1xf32>
    %636 = math.rsqrt %635 : vector<16x1xf32>
    %637 = vector.broadcast %636 : vector<16x1xf32> to vector<16x32xf32>
    %638 = arith.mulf %633, %637 : vector<16x32xf32>
    %639 = vector.broadcast %618 : vector<1x32xf32> to vector<16x32xf32>
    %640 = arith.mulf %638, %639 : vector<16x32xf32>
    %641 = vector.broadcast %620 : vector<1x32xf32> to vector<16x32xf32>
    %642 = arith.addf %640, %641 : vector<16x32xf32>
    %c0_295 = arith.constant 0 : index
    %c0_296 = arith.constant 0 : index
    %c0_297 = arith.constant 0 : index
    %643 = vector.load %arg14[%c0_295, %c0_296, %c0_297] : memref<3x32x64xf32, #tpu.memory_space<vmem>>, vector<1x32x64xf32>
    %644 = vector.shape_cast %643 : vector<1x32x64xf32> to vector<32x64xf32>
    %c0_298 = arith.constant 0 : index
    %c0_299 = arith.constant 0 : index
    %c0_300 = arith.constant 0 : index
    %645 = vector.load %arg15[%c0_298, %c0_299, %c0_300] : memref<3x1x64xf32, #tpu.memory_space<vmem>>, vector<1x1x64xf32>
    %646 = vector.shape_cast %645 : vector<1x1x64xf32> to vector<1x64xf32>
    %cst_301 = arith.constant dense<0.000000e+00> : vector<16x64xf32>
    %647 = tpu.matmul %642, %644, %cst_301 {dimension_numbers = #tpu.dot_dimension_numbers<[1], [0], [0], [1], [0, 0, 1, 1], [], []>} : vector<16x32xf32>, vector<32x64xf32>, vector<16x64xf32> -> vector<16x64xf32>
    %648 = vector.broadcast %646 : vector<1x64xf32> to vector<16x64xf32>
    %649 = arith.addf %647, %648 : vector<16x64xf32>
    %cst_302 = arith.constant 0.000000e+00 : f32
    %650 = vector.broadcast %cst_302 : f32 to vector<16x64xf32>
    %651 = arith.maximumf %649, %650 : vector<16x64xf32>
    %c0_303 = arith.constant 0 : index
    %c0_304 = arith.constant 0 : index
    %c0_305 = arith.constant 0 : index
    %652 = vector.load %arg16[%c0_303, %c0_304, %c0_305] : memref<3x64x32xf32, #tpu.memory_space<vmem>>, vector<1x64x32xf32>
    %653 = vector.shape_cast %652 : vector<1x64x32xf32> to vector<64x32xf32>
    %c0_306 = arith.constant 0 : index
    %c0_307 = arith.constant 0 : index
    %c0_308 = arith.constant 0 : index
    %654 = vector.load %arg17[%c0_306, %c0_307, %c0_308] : memref<3x1x32xf32, #tpu.memory_space<vmem>>, vector<1x1x32xf32>
    %655 = vector.shape_cast %654 : vector<1x1x32xf32> to vector<1x32xf32>
    %cst_309 = arith.constant dense<0.000000e+00> : vector<16x32xf32>
    %656 = tpu.matmul %651, %653, %cst_309 {dimension_numbers = #tpu.dot_dimension_numbers<[1], [0], [0], [1], [0, 0, 1, 1], [], []>} : vector<16x64xf32>, vector<64x32xf32>, vector<16x32xf32> -> vector<16x32xf32>
    %657 = vector.broadcast %655 : vector<1x32xf32> to vector<16x32xf32>
    %658 = arith.addf %656, %657 : vector<16x32xf32>
    %659 = arith.addf %642, %658 : vector<16x32xf32>
    %c0_310 = arith.constant 0 : index
    %c0_311 = arith.constant 0 : index
    %c0_312 = arith.constant 0 : index
    %660 = vector.load %arg18[%c0_310, %c0_311, %c0_312] : memref<3x1x32xf32, #tpu.memory_space<vmem>>, vector<1x1x32xf32>
    %661 = vector.shape_cast %660 : vector<1x1x32xf32> to vector<1x32xf32>
    %c0_313 = arith.constant 0 : index
    %c0_314 = arith.constant 0 : index
    %c0_315 = arith.constant 0 : index
    %662 = vector.load %arg19[%c0_313, %c0_314, %c0_315] : memref<3x1x32xf32, #tpu.memory_space<vmem>>, vector<1x1x32xf32>
    %663 = vector.shape_cast %662 : vector<1x1x32xf32> to vector<1x32xf32>
    %cst_316 = arith.constant dense<0.000000e+00> : vector<16xf32>
    %664 = vector.multi_reduction <add>, %659, %cst_316 [1] : vector<16x32xf32> to vector<16xf32>
    %665 = vector.shape_cast %664 : vector<16xf32> to vector<16x1xf32>
    %cst_317 = arith.constant 3.200000e+01 : f32
    %666 = vector.broadcast %cst_317 : f32 to vector<16x1xf32>
    %667 = arith.divf %665, %666 : vector<16x1xf32>
    %668 = vector.broadcast %667 : vector<16x1xf32> to vector<16x32xf32>
    %669 = arith.subf %659, %668 : vector<16x32xf32>
    %670 = arith.mulf %669, %669 : vector<16x32xf32>
    %cst_318 = arith.constant dense<0.000000e+00> : vector<16xf32>
    %671 = vector.multi_reduction <add>, %670, %cst_318 [1] : vector<16x32xf32> to vector<16xf32>
    %672 = vector.shape_cast %671 : vector<16xf32> to vector<16x1xf32>
    %cst_319 = arith.constant 3.200000e+01 : f32
    %673 = vector.broadcast %cst_319 : f32 to vector<16x1xf32>
    %674 = arith.divf %672, %673 : vector<16x1xf32>
    %675 = vector.broadcast %667 : vector<16x1xf32> to vector<16x32xf32>
    %676 = arith.subf %659, %675 : vector<16x32xf32>
    %cst_320 = arith.constant 9.99999974E-6 : f32
    %677 = vector.broadcast %cst_320 : f32 to vector<16x1xf32>
    %678 = arith.addf %674, %677 : vector<16x1xf32>
    %679 = math.rsqrt %678 : vector<16x1xf32>
    %680 = vector.broadcast %679 : vector<16x1xf32> to vector<16x32xf32>
    %681 = arith.mulf %676, %680 : vector<16x32xf32>
    %682 = vector.broadcast %661 : vector<1x32xf32> to vector<16x32xf32>
    %683 = arith.mulf %681, %682 : vector<16x32xf32>
    %684 = vector.broadcast %663 : vector<1x32xf32> to vector<16x32xf32>
    %685 = arith.addf %683, %684 : vector<16x32xf32>
    %c1_321 = arith.constant 1 : index
    %c0_322 = arith.constant 0 : index
    %c0_323 = arith.constant 0 : index
    %686 = vector.load %arg8[%c1_321, %c0_322, %c0_323] : memref<3x32x96xf32, #tpu.memory_space<vmem>>, vector<1x32x96xf32>
    %687 = vector.shape_cast %686 : vector<1x32x96xf32> to vector<32x96xf32>
    %c1_324 = arith.constant 1 : index
    %c0_325 = arith.constant 0 : index
    %c0_326 = arith.constant 0 : index
    %688 = vector.load %arg9[%c1_324, %c0_325, %c0_326] : memref<3x1x96xf32, #tpu.memory_space<vmem>>, vector<1x1x96xf32>
    %689 = vector.shape_cast %688 : vector<1x1x96xf32> to vector<1x96xf32>
    %cst_327 = arith.constant dense<0.000000e+00> : vector<16x96xf32>
    %690 = tpu.matmul %685, %687, %cst_327 {dimension_numbers = #tpu.dot_dimension_numbers<[1], [0], [0], [1], [0, 0, 1, 1], [], []>} : vector<16x32xf32>, vector<32x96xf32>, vector<16x96xf32> -> vector<16x96xf32>
    %691 = vector.broadcast %689 : vector<1x96xf32> to vector<16x96xf32>
    %692 = arith.addf %690, %691 : vector<16x96xf32>
    %693 = vector.extract_strided_slice %692 {offsets = [0, 0], sizes = [16, 32], strides = [1, 1]} : vector<16x96xf32> to vector<16x32xf32>
    %694 = vector.extract_strided_slice %692 {offsets = [0, 32], sizes = [16, 32], strides = [1, 1]} : vector<16x96xf32> to vector<16x32xf32>
    %695 = vector.extract_strided_slice %692 {offsets = [0, 64], sizes = [16, 32], strides = [1, 1]} : vector<16x96xf32> to vector<16x32xf32>
    %696 = vector.extract_strided_slice %693 {offsets = [0, 0], sizes = [8, 32], strides = [1, 1]} : vector<16x32xf32> to vector<8x32xf32>
    %697 = vector.extract_strided_slice %693 {offsets = [8, 0], sizes = [8, 32], strides = [1, 1]} : vector<16x32xf32> to vector<8x32xf32>
    %698 = vector.extract_strided_slice %694 {offsets = [0, 0], sizes = [8, 32], strides = [1, 1]} : vector<16x32xf32> to vector<8x32xf32>
    %699 = vector.extract_strided_slice %694 {offsets = [8, 0], sizes = [8, 32], strides = [1, 1]} : vector<16x32xf32> to vector<8x32xf32>
    %700 = vector.extract_strided_slice %695 {offsets = [0, 0], sizes = [8, 32], strides = [1, 1]} : vector<16x32xf32> to vector<8x32xf32>
    %701 = vector.extract_strided_slice %695 {offsets = [8, 0], sizes = [8, 32], strides = [1, 1]} : vector<16x32xf32> to vector<8x32xf32>
    %702 = arith.mulf %696, %698 : vector<8x32xf32>
    %cst_328 = arith.constant dense<0.000000e+00> : vector<8x4xf32>
    %703 = tpu.matmul %702, %528, %cst_328 {dimension_numbers = #tpu.dot_dimension_numbers<[1], [0], [0], [1], [0, 0, 1, 1], [], []>} : vector<8x32xf32>, vector<32x4xf32>, vector<8x4xf32> -> vector<8x4xf32>
    %cst_329 = arith.constant 0.353553385 : f32
    %704 = vector.broadcast %cst_329 : f32 to vector<8x4xf32>
    %705 = arith.mulf %703, %704 : vector<8x4xf32>
    %706 = arith.mulf %696, %699 : vector<8x32xf32>
    %cst_330 = arith.constant dense<0.000000e+00> : vector<8x4xf32>
    %707 = tpu.matmul %706, %528, %cst_330 {dimension_numbers = #tpu.dot_dimension_numbers<[1], [0], [0], [1], [0, 0, 1, 1], [], []>} : vector<8x32xf32>, vector<32x4xf32>, vector<8x4xf32> -> vector<8x4xf32>
    %cst_331 = arith.constant 0.353553385 : f32
    %708 = vector.broadcast %cst_331 : f32 to vector<8x4xf32>
    %709 = arith.mulf %707, %708 : vector<8x4xf32>
    %710 = arith.mulf %697, %698 : vector<8x32xf32>
    %cst_332 = arith.constant dense<0.000000e+00> : vector<8x4xf32>
    %711 = tpu.matmul %710, %528, %cst_332 {dimension_numbers = #tpu.dot_dimension_numbers<[1], [0], [0], [1], [0, 0, 1, 1], [], []>} : vector<8x32xf32>, vector<32x4xf32>, vector<8x4xf32> -> vector<8x4xf32>
    %cst_333 = arith.constant 0.353553385 : f32
    %712 = vector.broadcast %cst_333 : f32 to vector<8x4xf32>
    %713 = arith.mulf %711, %712 : vector<8x4xf32>
    %714 = arith.mulf %697, %699 : vector<8x32xf32>
    %cst_334 = arith.constant dense<0.000000e+00> : vector<8x4xf32>
    %715 = tpu.matmul %714, %528, %cst_334 {dimension_numbers = #tpu.dot_dimension_numbers<[1], [0], [0], [1], [0, 0, 1, 1], [], []>} : vector<8x32xf32>, vector<32x4xf32>, vector<8x4xf32> -> vector<8x4xf32>
    %cst_335 = arith.constant 0.353553385 : f32
    %716 = vector.broadcast %cst_335 : f32 to vector<8x4xf32>
    %717 = arith.mulf %715, %716 : vector<8x4xf32>
    %718 = arith.maximumf %705, %709 : vector<8x4xf32>
    %719 = arith.subf %705, %718 : vector<8x4xf32>
    %720 = math.exp %719 : vector<8x4xf32>
    %721 = arith.subf %709, %718 : vector<8x4xf32>
    %722 = math.exp %721 : vector<8x4xf32>
    %723 = arith.addf %720, %722 : vector<8x4xf32>
    %724 = arith.maximumf %713, %717 : vector<8x4xf32>
    %725 = arith.subf %713, %724 : vector<8x4xf32>
    %726 = math.exp %725 : vector<8x4xf32>
    %727 = arith.subf %717, %724 : vector<8x4xf32>
    %728 = math.exp %727 : vector<8x4xf32>
    %729 = arith.addf %726, %728 : vector<8x4xf32>
    %730 = arith.divf %720, %723 : vector<8x4xf32>
    %cst_336 = arith.constant dense<0.000000e+00> : vector<8x32xf32>
    %731 = tpu.matmul %730, %542, %cst_336 {dimension_numbers = #tpu.dot_dimension_numbers<[1], [0], [0], [1], [0, 0, 1, 1], [], []>} : vector<8x4xf32>, vector<4x32xf32>, vector<8x32xf32> -> vector<8x32xf32>
    %732 = arith.divf %722, %723 : vector<8x4xf32>
    %cst_337 = arith.constant dense<0.000000e+00> : vector<8x32xf32>
    %733 = tpu.matmul %732, %542, %cst_337 {dimension_numbers = #tpu.dot_dimension_numbers<[1], [0], [0], [1], [0, 0, 1, 1], [], []>} : vector<8x4xf32>, vector<4x32xf32>, vector<8x32xf32> -> vector<8x32xf32>
    %734 = arith.divf %726, %729 : vector<8x4xf32>
    %cst_338 = arith.constant dense<0.000000e+00> : vector<8x32xf32>
    %735 = tpu.matmul %734, %542, %cst_338 {dimension_numbers = #tpu.dot_dimension_numbers<[1], [0], [0], [1], [0, 0, 1, 1], [], []>} : vector<8x4xf32>, vector<4x32xf32>, vector<8x32xf32> -> vector<8x32xf32>
    %736 = arith.divf %728, %729 : vector<8x4xf32>
    %cst_339 = arith.constant dense<0.000000e+00> : vector<8x32xf32>
    %737 = tpu.matmul %736, %542, %cst_339 {dimension_numbers = #tpu.dot_dimension_numbers<[1], [0], [0], [1], [0, 0, 1, 1], [], []>} : vector<8x4xf32>, vector<4x32xf32>, vector<8x32xf32> -> vector<8x32xf32>
    %738 = arith.mulf %731, %700 : vector<8x32xf32>
    %739 = arith.mulf %733, %701 : vector<8x32xf32>
    %740 = arith.addf %738, %739 : vector<8x32xf32>
    %741 = arith.mulf %735, %700 : vector<8x32xf32>
    %742 = arith.mulf %737, %701 : vector<8x32xf32>
    %743 = arith.addf %741, %742 : vector<8x32xf32>
    %744 = tpu.concatenate %740, %743 in 0 : vector<8x32xf32>, vector<8x32xf32> -> vector<16x32xf32>
    %c1_340 = arith.constant 1 : index
    %c0_341 = arith.constant 0 : index
    %c0_342 = arith.constant 0 : index
    %745 = vector.load %arg10[%c1_340, %c0_341, %c0_342] : memref<3x32x32xf32, #tpu.memory_space<vmem>>, vector<1x32x32xf32>
    %746 = vector.shape_cast %745 : vector<1x32x32xf32> to vector<32x32xf32>
    %c1_343 = arith.constant 1 : index
    %c0_344 = arith.constant 0 : index
    %c0_345 = arith.constant 0 : index
    %747 = vector.load %arg11[%c1_343, %c0_344, %c0_345] : memref<3x1x32xf32, #tpu.memory_space<vmem>>, vector<1x1x32xf32>
    %748 = vector.shape_cast %747 : vector<1x1x32xf32> to vector<1x32xf32>
    %cst_346 = arith.constant dense<0.000000e+00> : vector<16x32xf32>
    %749 = tpu.matmul %744, %746, %cst_346 {dimension_numbers = #tpu.dot_dimension_numbers<[1], [0], [0], [1], [0, 0, 1, 1], [], []>} : vector<16x32xf32>, vector<32x32xf32>, vector<16x32xf32> -> vector<16x32xf32>
    %750 = vector.broadcast %748 : vector<1x32xf32> to vector<16x32xf32>
    %751 = arith.addf %749, %750 : vector<16x32xf32>
    %752 = arith.addf %685, %751 : vector<16x32xf32>
    %c1_347 = arith.constant 1 : index
    %c0_348 = arith.constant 0 : index
    %c0_349 = arith.constant 0 : index
    %753 = vector.load %arg12[%c1_347, %c0_348, %c0_349] : memref<3x1x32xf32, #tpu.memory_space<vmem>>, vector<1x1x32xf32>
    %754 = vector.shape_cast %753 : vector<1x1x32xf32> to vector<1x32xf32>
    %c1_350 = arith.constant 1 : index
    %c0_351 = arith.constant 0 : index
    %c0_352 = arith.constant 0 : index
    %755 = vector.load %arg13[%c1_350, %c0_351, %c0_352] : memref<3x1x32xf32, #tpu.memory_space<vmem>>, vector<1x1x32xf32>
    %756 = vector.shape_cast %755 : vector<1x1x32xf32> to vector<1x32xf32>
    %cst_353 = arith.constant dense<0.000000e+00> : vector<16xf32>
    %757 = vector.multi_reduction <add>, %752, %cst_353 [1] : vector<16x32xf32> to vector<16xf32>
    %758 = vector.shape_cast %757 : vector<16xf32> to vector<16x1xf32>
    %cst_354 = arith.constant 3.200000e+01 : f32
    %759 = vector.broadcast %cst_354 : f32 to vector<16x1xf32>
    %760 = arith.divf %758, %759 : vector<16x1xf32>
    %761 = vector.broadcast %760 : vector<16x1xf32> to vector<16x32xf32>
    %762 = arith.subf %752, %761 : vector<16x32xf32>
    %763 = arith.mulf %762, %762 : vector<16x32xf32>
    %cst_355 = arith.constant dense<0.000000e+00> : vector<16xf32>
    %764 = vector.multi_reduction <add>, %763, %cst_355 [1] : vector<16x32xf32> to vector<16xf32>
    %765 = vector.shape_cast %764 : vector<16xf32> to vector<16x1xf32>
    %cst_356 = arith.constant 3.200000e+01 : f32
    %766 = vector.broadcast %cst_356 : f32 to vector<16x1xf32>
    %767 = arith.divf %765, %766 : vector<16x1xf32>
    %768 = vector.broadcast %760 : vector<16x1xf32> to vector<16x32xf32>
    %769 = arith.subf %752, %768 : vector<16x32xf32>
    %cst_357 = arith.constant 9.99999974E-6 : f32
    %770 = vector.broadcast %cst_357 : f32 to vector<16x1xf32>
    %771 = arith.addf %767, %770 : vector<16x1xf32>
    %772 = math.rsqrt %771 : vector<16x1xf32>
    %773 = vector.broadcast %772 : vector<16x1xf32> to vector<16x32xf32>
    %774 = arith.mulf %769, %773 : vector<16x32xf32>
    %775 = vector.broadcast %754 : vector<1x32xf32> to vector<16x32xf32>
    %776 = arith.mulf %774, %775 : vector<16x32xf32>
    %777 = vector.broadcast %756 : vector<1x32xf32> to vector<16x32xf32>
    %778 = arith.addf %776, %777 : vector<16x32xf32>
    %c1_358 = arith.constant 1 : index
    %c0_359 = arith.constant 0 : index
    %c0_360 = arith.constant 0 : index
    %779 = vector.load %arg14[%c1_358, %c0_359, %c0_360] : memref<3x32x64xf32, #tpu.memory_space<vmem>>, vector<1x32x64xf32>
    %780 = vector.shape_cast %779 : vector<1x32x64xf32> to vector<32x64xf32>
    %c1_361 = arith.constant 1 : index
    %c0_362 = arith.constant 0 : index
    %c0_363 = arith.constant 0 : index
    %781 = vector.load %arg15[%c1_361, %c0_362, %c0_363] : memref<3x1x64xf32, #tpu.memory_space<vmem>>, vector<1x1x64xf32>
    %782 = vector.shape_cast %781 : vector<1x1x64xf32> to vector<1x64xf32>
    %cst_364 = arith.constant dense<0.000000e+00> : vector<16x64xf32>
    %783 = tpu.matmul %778, %780, %cst_364 {dimension_numbers = #tpu.dot_dimension_numbers<[1], [0], [0], [1], [0, 0, 1, 1], [], []>} : vector<16x32xf32>, vector<32x64xf32>, vector<16x64xf32> -> vector<16x64xf32>
    %784 = vector.broadcast %782 : vector<1x64xf32> to vector<16x64xf32>
    %785 = arith.addf %783, %784 : vector<16x64xf32>
    %cst_365 = arith.constant 0.000000e+00 : f32
    %786 = vector.broadcast %cst_365 : f32 to vector<16x64xf32>
    %787 = arith.maximumf %785, %786 : vector<16x64xf32>
    %c1_366 = arith.constant 1 : index
    %c0_367 = arith.constant 0 : index
    %c0_368 = arith.constant 0 : index
    %788 = vector.load %arg16[%c1_366, %c0_367, %c0_368] : memref<3x64x32xf32, #tpu.memory_space<vmem>>, vector<1x64x32xf32>
    %789 = vector.shape_cast %788 : vector<1x64x32xf32> to vector<64x32xf32>
    %c1_369 = arith.constant 1 : index
    %c0_370 = arith.constant 0 : index
    %c0_371 = arith.constant 0 : index
    %790 = vector.load %arg17[%c1_369, %c0_370, %c0_371] : memref<3x1x32xf32, #tpu.memory_space<vmem>>, vector<1x1x32xf32>
    %791 = vector.shape_cast %790 : vector<1x1x32xf32> to vector<1x32xf32>
    %cst_372 = arith.constant dense<0.000000e+00> : vector<16x32xf32>
    %792 = tpu.matmul %787, %789, %cst_372 {dimension_numbers = #tpu.dot_dimension_numbers<[1], [0], [0], [1], [0, 0, 1, 1], [], []>} : vector<16x64xf32>, vector<64x32xf32>, vector<16x32xf32> -> vector<16x32xf32>
    %793 = vector.broadcast %791 : vector<1x32xf32> to vector<16x32xf32>
    %794 = arith.addf %792, %793 : vector<16x32xf32>
    %795 = arith.addf %778, %794 : vector<16x32xf32>
    %c1_373 = arith.constant 1 : index
    %c0_374 = arith.constant 0 : index
    %c0_375 = arith.constant 0 : index
    %796 = vector.load %arg18[%c1_373, %c0_374, %c0_375] : memref<3x1x32xf32, #tpu.memory_space<vmem>>, vector<1x1x32xf32>
    %797 = vector.shape_cast %796 : vector<1x1x32xf32> to vector<1x32xf32>
    %c1_376 = arith.constant 1 : index
    %c0_377 = arith.constant 0 : index
    %c0_378 = arith.constant 0 : index
    %798 = vector.load %arg19[%c1_376, %c0_377, %c0_378] : memref<3x1x32xf32, #tpu.memory_space<vmem>>, vector<1x1x32xf32>
    %799 = vector.shape_cast %798 : vector<1x1x32xf32> to vector<1x32xf32>
    %cst_379 = arith.constant dense<0.000000e+00> : vector<16xf32>
    %800 = vector.multi_reduction <add>, %795, %cst_379 [1] : vector<16x32xf32> to vector<16xf32>
    %801 = vector.shape_cast %800 : vector<16xf32> to vector<16x1xf32>
    %cst_380 = arith.constant 3.200000e+01 : f32
    %802 = vector.broadcast %cst_380 : f32 to vector<16x1xf32>
    %803 = arith.divf %801, %802 : vector<16x1xf32>
    %804 = vector.broadcast %803 : vector<16x1xf32> to vector<16x32xf32>
    %805 = arith.subf %795, %804 : vector<16x32xf32>
    %806 = arith.mulf %805, %805 : vector<16x32xf32>
    %cst_381 = arith.constant dense<0.000000e+00> : vector<16xf32>
    %807 = vector.multi_reduction <add>, %806, %cst_381 [1] : vector<16x32xf32> to vector<16xf32>
    %808 = vector.shape_cast %807 : vector<16xf32> to vector<16x1xf32>
    %cst_382 = arith.constant 3.200000e+01 : f32
    %809 = vector.broadcast %cst_382 : f32 to vector<16x1xf32>
    %810 = arith.divf %808, %809 : vector<16x1xf32>
    %811 = vector.broadcast %803 : vector<16x1xf32> to vector<16x32xf32>
    %812 = arith.subf %795, %811 : vector<16x32xf32>
    %cst_383 = arith.constant 9.99999974E-6 : f32
    %813 = vector.broadcast %cst_383 : f32 to vector<16x1xf32>
    %814 = arith.addf %810, %813 : vector<16x1xf32>
    %815 = math.rsqrt %814 : vector<16x1xf32>
    %816 = vector.broadcast %815 : vector<16x1xf32> to vector<16x32xf32>
    %817 = arith.mulf %812, %816 : vector<16x32xf32>
    %818 = vector.broadcast %797 : vector<1x32xf32> to vector<16x32xf32>
    %819 = arith.mulf %817, %818 : vector<16x32xf32>
    %820 = vector.broadcast %799 : vector<1x32xf32> to vector<16x32xf32>
    %821 = arith.addf %819, %820 : vector<16x32xf32>
    %c2_384 = arith.constant 2 : index
    %c0_385 = arith.constant 0 : index
    %c0_386 = arith.constant 0 : index
    %822 = vector.load %arg8[%c2_384, %c0_385, %c0_386] : memref<3x32x96xf32, #tpu.memory_space<vmem>>, vector<1x32x96xf32>
    %823 = vector.shape_cast %822 : vector<1x32x96xf32> to vector<32x96xf32>
    %c2_387 = arith.constant 2 : index
    %c0_388 = arith.constant 0 : index
    %c0_389 = arith.constant 0 : index
    %824 = vector.load %arg9[%c2_387, %c0_388, %c0_389] : memref<3x1x96xf32, #tpu.memory_space<vmem>>, vector<1x1x96xf32>
    %825 = vector.shape_cast %824 : vector<1x1x96xf32> to vector<1x96xf32>
    %cst_390 = arith.constant dense<0.000000e+00> : vector<16x96xf32>
    %826 = tpu.matmul %821, %823, %cst_390 {dimension_numbers = #tpu.dot_dimension_numbers<[1], [0], [0], [1], [0, 0, 1, 1], [], []>} : vector<16x32xf32>, vector<32x96xf32>, vector<16x96xf32> -> vector<16x96xf32>
    %827 = vector.broadcast %825 : vector<1x96xf32> to vector<16x96xf32>
    %828 = arith.addf %826, %827 : vector<16x96xf32>
    %829 = vector.extract_strided_slice %828 {offsets = [0, 0], sizes = [16, 32], strides = [1, 1]} : vector<16x96xf32> to vector<16x32xf32>
    %830 = vector.extract_strided_slice %828 {offsets = [0, 32], sizes = [16, 32], strides = [1, 1]} : vector<16x96xf32> to vector<16x32xf32>
    %831 = vector.extract_strided_slice %828 {offsets = [0, 64], sizes = [16, 32], strides = [1, 1]} : vector<16x96xf32> to vector<16x32xf32>
    %832 = vector.extract_strided_slice %829 {offsets = [0, 0], sizes = [8, 32], strides = [1, 1]} : vector<16x32xf32> to vector<8x32xf32>
    %833 = vector.extract_strided_slice %829 {offsets = [8, 0], sizes = [8, 32], strides = [1, 1]} : vector<16x32xf32> to vector<8x32xf32>
    %834 = vector.extract_strided_slice %830 {offsets = [0, 0], sizes = [8, 32], strides = [1, 1]} : vector<16x32xf32> to vector<8x32xf32>
    %835 = vector.extract_strided_slice %830 {offsets = [8, 0], sizes = [8, 32], strides = [1, 1]} : vector<16x32xf32> to vector<8x32xf32>
    %836 = vector.extract_strided_slice %831 {offsets = [0, 0], sizes = [8, 32], strides = [1, 1]} : vector<16x32xf32> to vector<8x32xf32>
    %837 = vector.extract_strided_slice %831 {offsets = [8, 0], sizes = [8, 32], strides = [1, 1]} : vector<16x32xf32> to vector<8x32xf32>
    %838 = arith.mulf %832, %834 : vector<8x32xf32>
    %cst_391 = arith.constant dense<0.000000e+00> : vector<8x4xf32>
    %839 = tpu.matmul %838, %528, %cst_391 {dimension_numbers = #tpu.dot_dimension_numbers<[1], [0], [0], [1], [0, 0, 1, 1], [], []>} : vector<8x32xf32>, vector<32x4xf32>, vector<8x4xf32> -> vector<8x4xf32>
    %cst_392 = arith.constant 0.353553385 : f32
    %840 = vector.broadcast %cst_392 : f32 to vector<8x4xf32>
    %841 = arith.mulf %839, %840 : vector<8x4xf32>
    %842 = arith.mulf %832, %835 : vector<8x32xf32>
    %cst_393 = arith.constant dense<0.000000e+00> : vector<8x4xf32>
    %843 = tpu.matmul %842, %528, %cst_393 {dimension_numbers = #tpu.dot_dimension_numbers<[1], [0], [0], [1], [0, 0, 1, 1], [], []>} : vector<8x32xf32>, vector<32x4xf32>, vector<8x4xf32> -> vector<8x4xf32>
    %cst_394 = arith.constant 0.353553385 : f32
    %844 = vector.broadcast %cst_394 : f32 to vector<8x4xf32>
    %845 = arith.mulf %843, %844 : vector<8x4xf32>
    %846 = arith.mulf %833, %834 : vector<8x32xf32>
    %cst_395 = arith.constant dense<0.000000e+00> : vector<8x4xf32>
    %847 = tpu.matmul %846, %528, %cst_395 {dimension_numbers = #tpu.dot_dimension_numbers<[1], [0], [0], [1], [0, 0, 1, 1], [], []>} : vector<8x32xf32>, vector<32x4xf32>, vector<8x4xf32> -> vector<8x4xf32>
    %cst_396 = arith.constant 0.353553385 : f32
    %848 = vector.broadcast %cst_396 : f32 to vector<8x4xf32>
    %849 = arith.mulf %847, %848 : vector<8x4xf32>
    %850 = arith.mulf %833, %835 : vector<8x32xf32>
    %cst_397 = arith.constant dense<0.000000e+00> : vector<8x4xf32>
    %851 = tpu.matmul %850, %528, %cst_397 {dimension_numbers = #tpu.dot_dimension_numbers<[1], [0], [0], [1], [0, 0, 1, 1], [], []>} : vector<8x32xf32>, vector<32x4xf32>, vector<8x4xf32> -> vector<8x4xf32>
    %cst_398 = arith.constant 0.353553385 : f32
    %852 = vector.broadcast %cst_398 : f32 to vector<8x4xf32>
    %853 = arith.mulf %851, %852 : vector<8x4xf32>
    %854 = arith.maximumf %841, %845 : vector<8x4xf32>
    %855 = arith.subf %841, %854 : vector<8x4xf32>
    %856 = math.exp %855 : vector<8x4xf32>
    %857 = arith.subf %845, %854 : vector<8x4xf32>
    %858 = math.exp %857 : vector<8x4xf32>
    %859 = arith.addf %856, %858 : vector<8x4xf32>
    %860 = arith.maximumf %849, %853 : vector<8x4xf32>
    %861 = arith.subf %849, %860 : vector<8x4xf32>
    %862 = math.exp %861 : vector<8x4xf32>
    %863 = arith.subf %853, %860 : vector<8x4xf32>
    %864 = math.exp %863 : vector<8x4xf32>
    %865 = arith.addf %862, %864 : vector<8x4xf32>
    %866 = arith.divf %856, %859 : vector<8x4xf32>
    %cst_399 = arith.constant dense<0.000000e+00> : vector<8x32xf32>
    %867 = tpu.matmul %866, %542, %cst_399 {dimension_numbers = #tpu.dot_dimension_numbers<[1], [0], [0], [1], [0, 0, 1, 1], [], []>} : vector<8x4xf32>, vector<4x32xf32>, vector<8x32xf32> -> vector<8x32xf32>
    %868 = arith.divf %858, %859 : vector<8x4xf32>
    %cst_400 = arith.constant dense<0.000000e+00> : vector<8x32xf32>
    %869 = tpu.matmul %868, %542, %cst_400 {dimension_numbers = #tpu.dot_dimension_numbers<[1], [0], [0], [1], [0, 0, 1, 1], [], []>} : vector<8x4xf32>, vector<4x32xf32>, vector<8x32xf32> -> vector<8x32xf32>
    %870 = arith.divf %862, %865 : vector<8x4xf32>
    %cst_401 = arith.constant dense<0.000000e+00> : vector<8x32xf32>
    %871 = tpu.matmul %870, %542, %cst_401 {dimension_numbers = #tpu.dot_dimension_numbers<[1], [0], [0], [1], [0, 0, 1, 1], [], []>} : vector<8x4xf32>, vector<4x32xf32>, vector<8x32xf32> -> vector<8x32xf32>
    %872 = arith.divf %864, %865 : vector<8x4xf32>
    %cst_402 = arith.constant dense<0.000000e+00> : vector<8x32xf32>
    %873 = tpu.matmul %872, %542, %cst_402 {dimension_numbers = #tpu.dot_dimension_numbers<[1], [0], [0], [1], [0, 0, 1, 1], [], []>} : vector<8x4xf32>, vector<4x32xf32>, vector<8x32xf32> -> vector<8x32xf32>
    %874 = arith.mulf %867, %836 : vector<8x32xf32>
    %875 = arith.mulf %869, %837 : vector<8x32xf32>
    %876 = arith.addf %874, %875 : vector<8x32xf32>
    %877 = arith.mulf %871, %836 : vector<8x32xf32>
    %878 = arith.mulf %873, %837 : vector<8x32xf32>
    %879 = arith.addf %877, %878 : vector<8x32xf32>
    %880 = tpu.concatenate %876, %879 in 0 : vector<8x32xf32>, vector<8x32xf32> -> vector<16x32xf32>
    %c2_403 = arith.constant 2 : index
    %c0_404 = arith.constant 0 : index
    %c0_405 = arith.constant 0 : index
    %881 = vector.load %arg10[%c2_403, %c0_404, %c0_405] : memref<3x32x32xf32, #tpu.memory_space<vmem>>, vector<1x32x32xf32>
    %882 = vector.shape_cast %881 : vector<1x32x32xf32> to vector<32x32xf32>
    %c2_406 = arith.constant 2 : index
    %c0_407 = arith.constant 0 : index
    %c0_408 = arith.constant 0 : index
    %883 = vector.load %arg11[%c2_406, %c0_407, %c0_408] : memref<3x1x32xf32, #tpu.memory_space<vmem>>, vector<1x1x32xf32>
    %884 = vector.shape_cast %883 : vector<1x1x32xf32> to vector<1x32xf32>
    %cst_409 = arith.constant dense<0.000000e+00> : vector<16x32xf32>
    %885 = tpu.matmul %880, %882, %cst_409 {dimension_numbers = #tpu.dot_dimension_numbers<[1], [0], [0], [1], [0, 0, 1, 1], [], []>} : vector<16x32xf32>, vector<32x32xf32>, vector<16x32xf32> -> vector<16x32xf32>
    %886 = vector.broadcast %884 : vector<1x32xf32> to vector<16x32xf32>
    %887 = arith.addf %885, %886 : vector<16x32xf32>
    %888 = arith.addf %821, %887 : vector<16x32xf32>
    %c2_410 = arith.constant 2 : index
    %c0_411 = arith.constant 0 : index
    %c0_412 = arith.constant 0 : index
    %889 = vector.load %arg12[%c2_410, %c0_411, %c0_412] : memref<3x1x32xf32, #tpu.memory_space<vmem>>, vector<1x1x32xf32>
    %890 = vector.shape_cast %889 : vector<1x1x32xf32> to vector<1x32xf32>
    %c2_413 = arith.constant 2 : index
    %c0_414 = arith.constant 0 : index
    %c0_415 = arith.constant 0 : index
    %891 = vector.load %arg13[%c2_413, %c0_414, %c0_415] : memref<3x1x32xf32, #tpu.memory_space<vmem>>, vector<1x1x32xf32>
    %892 = vector.shape_cast %891 : vector<1x1x32xf32> to vector<1x32xf32>
    %cst_416 = arith.constant dense<0.000000e+00> : vector<16xf32>
    %893 = vector.multi_reduction <add>, %888, %cst_416 [1] : vector<16x32xf32> to vector<16xf32>
    %894 = vector.shape_cast %893 : vector<16xf32> to vector<16x1xf32>
    %cst_417 = arith.constant 3.200000e+01 : f32
    %895 = vector.broadcast %cst_417 : f32 to vector<16x1xf32>
    %896 = arith.divf %894, %895 : vector<16x1xf32>
    %897 = vector.broadcast %896 : vector<16x1xf32> to vector<16x32xf32>
    %898 = arith.subf %888, %897 : vector<16x32xf32>
    %899 = arith.mulf %898, %898 : vector<16x32xf32>
    %cst_418 = arith.constant dense<0.000000e+00> : vector<16xf32>
    %900 = vector.multi_reduction <add>, %899, %cst_418 [1] : vector<16x32xf32> to vector<16xf32>
    %901 = vector.shape_cast %900 : vector<16xf32> to vector<16x1xf32>
    %cst_419 = arith.constant 3.200000e+01 : f32
    %902 = vector.broadcast %cst_419 : f32 to vector<16x1xf32>
    %903 = arith.divf %901, %902 : vector<16x1xf32>
    %904 = vector.broadcast %896 : vector<16x1xf32> to vector<16x32xf32>
    %905 = arith.subf %888, %904 : vector<16x32xf32>
    %cst_420 = arith.constant 9.99999974E-6 : f32
    %906 = vector.broadcast %cst_420 : f32 to vector<16x1xf32>
    %907 = arith.addf %903, %906 : vector<16x1xf32>
    %908 = math.rsqrt %907 : vector<16x1xf32>
    %909 = vector.broadcast %908 : vector<16x1xf32> to vector<16x32xf32>
    %910 = arith.mulf %905, %909 : vector<16x32xf32>
    %911 = vector.broadcast %890 : vector<1x32xf32> to vector<16x32xf32>
    %912 = arith.mulf %910, %911 : vector<16x32xf32>
    %913 = vector.broadcast %892 : vector<1x32xf32> to vector<16x32xf32>
    %914 = arith.addf %912, %913 : vector<16x32xf32>
    %c2_421 = arith.constant 2 : index
    %c0_422 = arith.constant 0 : index
    %c0_423 = arith.constant 0 : index
    %915 = vector.load %arg14[%c2_421, %c0_422, %c0_423] : memref<3x32x64xf32, #tpu.memory_space<vmem>>, vector<1x32x64xf32>
    %916 = vector.shape_cast %915 : vector<1x32x64xf32> to vector<32x64xf32>
    %c2_424 = arith.constant 2 : index
    %c0_425 = arith.constant 0 : index
    %c0_426 = arith.constant 0 : index
    %917 = vector.load %arg15[%c2_424, %c0_425, %c0_426] : memref<3x1x64xf32, #tpu.memory_space<vmem>>, vector<1x1x64xf32>
    %918 = vector.shape_cast %917 : vector<1x1x64xf32> to vector<1x64xf32>
    %cst_427 = arith.constant dense<0.000000e+00> : vector<16x64xf32>
    %919 = tpu.matmul %914, %916, %cst_427 {dimension_numbers = #tpu.dot_dimension_numbers<[1], [0], [0], [1], [0, 0, 1, 1], [], []>} : vector<16x32xf32>, vector<32x64xf32>, vector<16x64xf32> -> vector<16x64xf32>
    %920 = vector.broadcast %918 : vector<1x64xf32> to vector<16x64xf32>
    %921 = arith.addf %919, %920 : vector<16x64xf32>
    %cst_428 = arith.constant 0.000000e+00 : f32
    %922 = vector.broadcast %cst_428 : f32 to vector<16x64xf32>
    %923 = arith.maximumf %921, %922 : vector<16x64xf32>
    %c2_429 = arith.constant 2 : index
    %c0_430 = arith.constant 0 : index
    %c0_431 = arith.constant 0 : index
    %924 = vector.load %arg16[%c2_429, %c0_430, %c0_431] : memref<3x64x32xf32, #tpu.memory_space<vmem>>, vector<1x64x32xf32>
    %925 = vector.shape_cast %924 : vector<1x64x32xf32> to vector<64x32xf32>
    %c2_432 = arith.constant 2 : index
    %c0_433 = arith.constant 0 : index
    %c0_434 = arith.constant 0 : index
    %926 = vector.load %arg17[%c2_432, %c0_433, %c0_434] : memref<3x1x32xf32, #tpu.memory_space<vmem>>, vector<1x1x32xf32>
    %927 = vector.shape_cast %926 : vector<1x1x32xf32> to vector<1x32xf32>
    %cst_435 = arith.constant dense<0.000000e+00> : vector<16x32xf32>
    %928 = tpu.matmul %923, %925, %cst_435 {dimension_numbers = #tpu.dot_dimension_numbers<[1], [0], [0], [1], [0, 0, 1, 1], [], []>} : vector<16x64xf32>, vector<64x32xf32>, vector<16x32xf32> -> vector<16x32xf32>
    %929 = vector.broadcast %927 : vector<1x32xf32> to vector<16x32xf32>
    %930 = arith.addf %928, %929 : vector<16x32xf32>
    %931 = arith.addf %914, %930 : vector<16x32xf32>
    %c2_436 = arith.constant 2 : index
    %c0_437 = arith.constant 0 : index
    %c0_438 = arith.constant 0 : index
    %932 = vector.load %arg18[%c2_436, %c0_437, %c0_438] : memref<3x1x32xf32, #tpu.memory_space<vmem>>, vector<1x1x32xf32>
    %933 = vector.shape_cast %932 : vector<1x1x32xf32> to vector<1x32xf32>
    %c2_439 = arith.constant 2 : index
    %c0_440 = arith.constant 0 : index
    %c0_441 = arith.constant 0 : index
    %934 = vector.load %arg19[%c2_439, %c0_440, %c0_441] : memref<3x1x32xf32, #tpu.memory_space<vmem>>, vector<1x1x32xf32>
    %935 = vector.shape_cast %934 : vector<1x1x32xf32> to vector<1x32xf32>
    %cst_442 = arith.constant dense<0.000000e+00> : vector<16xf32>
    %936 = vector.multi_reduction <add>, %931, %cst_442 [1] : vector<16x32xf32> to vector<16xf32>
    %937 = vector.shape_cast %936 : vector<16xf32> to vector<16x1xf32>
    %cst_443 = arith.constant 3.200000e+01 : f32
    %938 = vector.broadcast %cst_443 : f32 to vector<16x1xf32>
    %939 = arith.divf %937, %938 : vector<16x1xf32>
    %940 = vector.broadcast %939 : vector<16x1xf32> to vector<16x32xf32>
    %941 = arith.subf %931, %940 : vector<16x32xf32>
    %942 = arith.mulf %941, %941 : vector<16x32xf32>
    %cst_444 = arith.constant dense<0.000000e+00> : vector<16xf32>
    %943 = vector.multi_reduction <add>, %942, %cst_444 [1] : vector<16x32xf32> to vector<16xf32>
    %944 = vector.shape_cast %943 : vector<16xf32> to vector<16x1xf32>
    %cst_445 = arith.constant 3.200000e+01 : f32
    %945 = vector.broadcast %cst_445 : f32 to vector<16x1xf32>
    %946 = arith.divf %944, %945 : vector<16x1xf32>
    %947 = vector.broadcast %939 : vector<16x1xf32> to vector<16x32xf32>
    %948 = arith.subf %931, %947 : vector<16x32xf32>
    %cst_446 = arith.constant 9.99999974E-6 : f32
    %949 = vector.broadcast %cst_446 : f32 to vector<16x1xf32>
    %950 = arith.addf %946, %949 : vector<16x1xf32>
    %951 = math.rsqrt %950 : vector<16x1xf32>
    %952 = vector.broadcast %951 : vector<16x1xf32> to vector<16x32xf32>
    %953 = arith.mulf %948, %952 : vector<16x32xf32>
    %954 = vector.broadcast %933 : vector<1x32xf32> to vector<16x32xf32>
    %955 = arith.mulf %953, %954 : vector<16x32xf32>
    %956 = vector.broadcast %935 : vector<1x32xf32> to vector<16x32xf32>
    %957 = arith.addf %955, %956 : vector<16x32xf32>
    %958 = vector.extract_strided_slice %957 {offsets = [0, 0], sizes = [8, 32], strides = [1, 1]} : vector<16x32xf32> to vector<8x32xf32>
    %cst_447 = arith.constant dense<0.000000e+00> : vector<32xf32>
    %959 = vector.multi_reduction <add>, %958, %cst_447 [0] : vector<8x32xf32> to vector<32xf32>
    %960 = vector.shape_cast %959 : vector<32xf32> to vector<1x32xf32>
    %cst_448 = arith.constant 8.000000e+00 : f32
    %961 = vector.broadcast %cst_448 : f32 to vector<1x32xf32>
    %962 = arith.divf %960, %961 : vector<1x32xf32>
    %963 = vector.extract_strided_slice %957 {offsets = [8, 0], sizes = [8, 32], strides = [1, 1]} : vector<16x32xf32> to vector<8x32xf32>
    %cst_449 = arith.constant dense<0.000000e+00> : vector<32xf32>
    %964 = vector.multi_reduction <add>, %963, %cst_449 [0] : vector<8x32xf32> to vector<32xf32>
    %965 = vector.shape_cast %964 : vector<32xf32> to vector<1x32xf32>
    %cst_450 = arith.constant 8.000000e+00 : f32
    %966 = vector.broadcast %cst_450 : f32 to vector<1x32xf32>
    %967 = arith.divf %965, %966 : vector<1x32xf32>
    %968 = tpu.concatenate %962, %967 in 0 : vector<1x32xf32>, vector<1x32xf32> -> vector<2x32xf32>
    %c0_451 = arith.constant 0 : index
    %c0_452 = arith.constant 0 : index
    %969 = vector.load %arg20[%c0_451, %c0_452] : memref<32x128xf32, #tpu.memory_space<vmem>>, vector<32x128xf32>
    %c0_453 = arith.constant 0 : index
    %c0_454 = arith.constant 0 : index
    %970 = vector.load %arg21[%c0_453, %c0_454] : memref<1x128xf32, #tpu.memory_space<vmem>>, vector<1x128xf32>
    %cst_455 = arith.constant dense<0.000000e+00> : vector<2x128xf32>
    %971 = tpu.matmul %968, %969, %cst_455 {dimension_numbers = #tpu.dot_dimension_numbers<[1], [0], [0], [1], [0, 0, 1, 1], [], []>} : vector<2x32xf32>, vector<32x128xf32>, vector<2x128xf32> -> vector<2x128xf32>
    %972 = vector.broadcast %970 : vector<1x128xf32> to vector<2x128xf32>
    %973 = arith.addf %971, %972 : vector<2x128xf32>
    %cst_456 = arith.constant 0.000000e+00 : f32
    %974 = vector.broadcast %cst_456 : f32 to vector<2x128xf32>
    %975 = arith.maximumf %973, %974 : vector<2x128xf32>
    %c0_457 = arith.constant 0 : index
    %c0_458 = arith.constant 0 : index
    %976 = vector.load %arg22[%c0_457, %c0_458] : memref<128x64xf32, #tpu.memory_space<vmem>>, vector<128x64xf32>
    %c0_459 = arith.constant 0 : index
    %c0_460 = arith.constant 0 : index
    %977 = vector.load %arg23[%c0_459, %c0_460] : memref<1x64xf32, #tpu.memory_space<vmem>>, vector<1x64xf32>
    %cst_461 = arith.constant dense<0.000000e+00> : vector<2x64xf32>
    %978 = tpu.matmul %975, %976, %cst_461 {dimension_numbers = #tpu.dot_dimension_numbers<[1], [0], [0], [1], [0, 0, 1, 1], [], []>} : vector<2x128xf32>, vector<128x64xf32>, vector<2x64xf32> -> vector<2x64xf32>
    %979 = vector.broadcast %977 : vector<1x64xf32> to vector<2x64xf32>
    %980 = arith.addf %978, %979 : vector<2x64xf32>
    %cst_462 = arith.constant 0.000000e+00 : f32
    %981 = vector.broadcast %cst_462 : f32 to vector<2x64xf32>
    %982 = arith.maximumf %980, %981 : vector<2x64xf32>
    %c0_463 = arith.constant 0 : index
    %c0_464 = arith.constant 0 : index
    %983 = vector.load %arg24[%c0_463, %c0_464] : memref<64x32xf32, #tpu.memory_space<vmem>>, vector<64x32xf32>
    %c0_465 = arith.constant 0 : index
    %c0_466 = arith.constant 0 : index
    %984 = vector.load %arg25[%c0_465, %c0_466] : memref<1x32xf32, #tpu.memory_space<vmem>>, vector<1x32xf32>
    %cst_467 = arith.constant dense<0.000000e+00> : vector<2x32xf32>
    %985 = tpu.matmul %982, %983, %cst_467 {dimension_numbers = #tpu.dot_dimension_numbers<[1], [0], [0], [1], [0, 0, 1, 1], [], []>} : vector<2x64xf32>, vector<64x32xf32>, vector<2x32xf32> -> vector<2x32xf32>
    %986 = vector.broadcast %984 : vector<1x32xf32> to vector<2x32xf32>
    %987 = arith.addf %985, %986 : vector<2x32xf32>
    %cst_468 = arith.constant 0.000000e+00 : f32
    %988 = vector.broadcast %cst_468 : f32 to vector<2x32xf32>
    %989 = arith.maximumf %987, %988 : vector<2x32xf32>
    %c0_469 = arith.constant 0 : index
    %c0_470 = arith.constant 0 : index
    %990 = vector.load %arg26[%c0_469, %c0_470] : memref<32x1xf32, #tpu.memory_space<vmem>>, vector<32x1xf32>
    %c0_471 = arith.constant 0 : index
    %c0_472 = arith.constant 0 : index
    %991 = vector.load %arg27[%c0_471, %c0_472] : memref<1x1xf32, #tpu.memory_space<vmem>>, vector<1x1xf32>
    %cst_473 = arith.constant dense<0.000000e+00> : vector<2x1xf32>
    %992 = tpu.matmul %989, %990, %cst_473 {dimension_numbers = #tpu.dot_dimension_numbers<[1], [0], [0], [1], [0, 0, 1, 1], [], []>} : vector<2x32xf32>, vector<32x1xf32>, vector<2x1xf32> -> vector<2x1xf32>
    %993 = vector.broadcast %991 : vector<1x1xf32> to vector<2x1xf32>
    %994 = arith.addf %992, %993 : vector<2x1xf32>
    %c0_474 = arith.constant 0 : index
    %c0_475 = arith.constant 0 : index
    %995 = vector.load %arg28[%c0_474, %c0_475] : memref<2x1xf32, #tpu.memory_space<vmem>>, vector<2x1xf32>
    tpu.vector_store %arg28[%c0_474, %c0_475], %994 {strides = array<i32>} : memref<2x1xf32, #tpu.memory_space<vmem>>, vector<2x1xf32>,
    return
  }
}

</mosaic_0001>

<llo_original>
// kernel: combined_forward.1
$region0: #{combined_forward.1}
  #allocation0 [shape = 'u32[]', space=smem, size = 0x4, offset = 0x4, fixed_abs, tag = 'smem constant byte address 0x4 - core index']
  #allocation1 [shape = 'u32[144,128]{1,0:T(1,128)}', space=vmem, size = 0x12000, scoped, tag = 'internal scratch']
  #allocation2 [shape = 'f32[1,1]{1,0:T(1,128)S(6)}', space=smem, size = 0x200, scoped, tag = 'scoped memory for combined_forward.1']
  #allocation3 [shape = 'f32[1,1]{1,0:T(1,128)S(1)}', space=vmem, size = 0x200, scoped, tag = 'scoped memory for combined_forward.1']
  %s0 = inlined_call_operand.vmem [shape: f32[16,32], index: 0, kind: input, shape index: {}]
  %s1 = inlined_call_operand.vmem [shape: f32[16,3], index: 1, kind: input, shape index: {}]
  %s2 = inlined_call_operand.vmem [shape: f32[16,1], index: 2, kind: input, shape index: {}]
  %s3 = inlined_call_operand.vmem [shape: f32[16,3], index: 3, kind: input, shape index: {}]
  %s4 = inlined_call_operand.<no memory space> [shape: f32[1,1], index: 4, kind: input, shape index: {}]
  %s5 = inlined_call_operand.vmem [shape: f32[16,32], index: 5, kind: input, shape index: {}]
  %s6 = inlined_call_operand.vmem [shape: f32[32,32], index: 6, kind: input, shape index: {}]
  %s7 = inlined_call_operand.vmem [shape: f32[1,32], index: 7, kind: input, shape index: {}]
  %s8 = inlined_call_operand.vmem [shape: f32[3,32,96], index: 8, kind: input, shape index: {}]
  %s9 = inlined_call_operand.vmem [shape: f32[3,1,96], index: 9, kind: input, shape index: {}]
  %s10 = inlined_call_operand.vmem [shape: f32[3,32,32], index: 10, kind: input, shape index: {}]
  %s11 = inlined_call_operand.vmem [shape: f32[3,1,32], index: 11, kind: input, shape index: {}]
  %s12 = inlined_call_operand.vmem [shape: f32[3,1,32], index: 12, kind: input, shape index: {}]
  %s13 = inlined_call_operand.vmem [shape: f32[3,1,32], index: 13, kind: input, shape index: {}]
  %s14 = inlined_call_operand.vmem [shape: f32[3,32,64], index: 14, kind: input, shape index: {}]
  %s15 = inlined_call_operand.vmem [shape: f32[3,1,64], index: 15, kind: input, shape index: {}]
  %s16 = inlined_call_operand.vmem [shape: f32[3,64,32], index: 16, kind: input, shape index: {}]
  %s17 = inlined_call_operand.vmem [shape: f32[3,1,32], index: 17, kind: input, shape index: {}]
  %s18 = inlined_call_operand.vmem [shape: f32[3,1,32], index: 18, kind: input, shape index: {}]
  %s19 = inlined_call_operand.vmem [shape: f32[3,1,32], index: 19, kind: input, shape index: {}]
  %s20 = inlined_call_operand.vmem [shape: f32[32,128], index: 20, kind: input, shape index: {}]
  %s21 = inlined_call_operand.vmem [shape: f32[1,128], index: 21, kind: input, shape index: {}]
  %s22 = inlined_call_operand.vmem [shape: f32[128,64], index: 22, kind: input, shape index: {}]
  %s23 = inlined_call_operand.vmem [shape: f32[1,64], index: 23, kind: input, shape index: {}]
  %s24 = inlined_call_operand.vmem [shape: f32[64,32], index: 24, kind: input, shape index: {}]
  %s25 = inlined_call_operand.vmem [shape: f32[1,32], index: 25, kind: input, shape index: {}]
  %s26 = inlined_call_operand.vmem [shape: f32[32,1], index: 26, kind: input, shape index: {}]
  %s27 = inlined_call_operand.<no memory space> [shape: f32[1,1], index: 27, kind: input, shape index: {}]
  %s28 = inlined_call_operand.vmem [shape: f32[2,1], index: 28, kind: output, shape index: {}]
  %s29 = sld [smem:[#allocation0]]
  $region134: #{combined_forward.1} parent=0
    _
  %s31 = ssub.s32 1, %s29
  %s32 = scalar_select 0, %s31, %s29
  %33 = sst [smem:[#allocation2]] %s4
  %v34 = vstv %s27
  %35 = vst [vmem:[#allocation3] sm:$0x1] %v34
  $region1: #{combined_forward.1} parent=0
    #allocation4 [shape = 'u8[8192]{0}', space=smem, size = 0x2000, scoped, tag = 'input window, operand 1, single buffered']
    #allocation5 [shape = 's32[1]{0}', space=sflag, size = 0x4, scoped, tag = 'scoped memory for combined_forward.1']
    #allocation6 [shape = 'u8[8192]{0}', space=smem, size = 0x2000, scoped, tag = 'input window, operand 2, single buffered']
    #allocation7 [shape = 's32[1]{0}', space=sflag, size = 0x4, scoped, tag = 'scoped memory for combined_forward.1']
    #allocation8 [shape = 'u8[8192]{0}', space=smem, size = 0x2000, scoped, tag = 'input window, operand 3, single buffered']
    %36 = vsyncpa [#allocation5], 0
    %37 = vsyncpa [#allocation7], 0
    // Predicated region
    $region2: #{combined_forward.1} parent=1 // pred_check
      _
    $region3: #{combined_forward.1} parent=1 // pred_check_branch
      %39 = sbr.rel (0) target = $region5
    $region4: #{combined_forward.1} parent=1 // pred_region
      _
    $region5: #{combined_forward.1} parent=1 // pred_fallthru
      _
    // Predicated region
    $region6: #{combined_forward.1} parent=1 // pred_check
      _
    $region7: #{combined_forward.1} parent=1 // pred_check_branch
      %41 = sbr.rel (0) target = $region9
    $region8: #{combined_forward.1} parent=1 // pred_region
      %s43 = ssub.s32 256, 256
      %44 = vsyncadd [#allocation5], %s43
      %s45 = sshll.u32 %s1, 4
      %s46 = int_to_ptr.vmem [resolvable:$true] %s45
      %51 = dma.vmem_to_smem %s46, 256, [#allocation4], [#allocation5], 128, 128, 8
    $region9: #{combined_forward.1} parent=1 // pred_fallthru
      _
    // Predicated region
    $region10: #{combined_forward.1} parent=1 // pred_check
      _
    $region11: #{combined_forward.1} parent=1 // pred_check_branch
      %53 = sbr.rel (0) target = $region13
    $region12: #{combined_forward.1} parent=1 // pred_region
      %s55 = ssub.s32 256, 256
      %56 = vsyncadd [#allocation7], %s55
      %s57 = sshll.u32 %s2, 4
      %s58 = int_to_ptr.vmem [resolvable:$true] %s57
      %63 = dma.vmem_to_smem %s58, 256, [#allocation6], [#allocation7], 128, 128, 8
    $region13: #{combined_forward.1} parent=1 // pred_fallthru
      _
    // Predicated region
    $region14: #{combined_forward.1} parent=1 // pred_check
      _
    $region15: #{combined_forward.1} parent=1 // pred_check_branch
      %65 = sbr.rel (0) target = $region17
    $region16: #{combined_forward.1} parent=1 // pred_region
      %s67 = ssub.s32 256, 256
      %68 = vsyncadd [#allocation7], %s67
      %s69 = sshll.u32 %s3, 4
      %s70 = int_to_ptr.vmem [resolvable:$true] %s69
      %75 = dma.vmem_to_smem %s70, 256, [#allocation8], [#allocation7], 128, 128, 8
    $region17: #{combined_forward.1} parent=1 // pred_fallthru
      _
    // Predicated region
    $region18: #{combined_forward.1} parent=1 // pred_check
      _
    $region19: #{combined_forward.1} parent=1 // pred_check_branch
      %77 = sbr.rel (0) target = $region21
    $region20: #{combined_forward.1} parent=1 // pred_region
      _
    $region21: #{combined_forward.1} parent=1 // pred_fallthru
      _
    // Predicated region
    $region22: #{combined_forward.1} parent=1 // pred_check
      _
    $region23: #{combined_forward.1} parent=1 // pred_check_branch
      %79 = sbr.rel (0) target = $region25
    $region24: #{combined_forward.1} parent=1 // pred_region
      _
    $region25: #{combined_forward.1} parent=1 // pred_fallthru
      _
    // Predicated region
    $region26: #{combined_forward.1} parent=1 // pred_check
      _
    $region27: #{combined_forward.1} parent=1 // pred_check_branch
      %81 = sbr.rel (0) target = $region29
    $region28: #{combined_forward.1} parent=1 // pred_region
      _
    $region29: #{combined_forward.1} parent=1 // pred_fallthru
      _
    // Predicated region
    $region30: #{combined_forward.1} parent=1 // pred_check
      _
    $region31: #{combined_forward.1} parent=1 // pred_check_branch
      %83 = sbr.rel (0) target = $region33
    $region32: #{combined_forward.1} parent=1 // pred_region
      _
    $region33: #{combined_forward.1} parent=1 // pred_fallthru
      _
    // Predicated region
    $region34: #{combined_forward.1} parent=1 // pred_check
      _
    $region35: #{combined_forward.1} parent=1 // pred_check_branch
      %85 = sbr.rel (0) target = $region37
    $region36: #{combined_forward.1} parent=1 // pred_region
      _
    $region37: #{combined_forward.1} parent=1 // pred_fallthru
      _
    // Predicated region
    $region38: #{combined_forward.1} parent=1 // pred_check
      _
    $region39: #{combined_forward.1} parent=1 // pred_check_branch
      %87 = sbr.rel (0) target = $region41
    $region40: #{combined_forward.1} parent=1 // pred_region
      _
    $region41: #{combined_forward.1} parent=1 // pred_fallthru
      _
    // Predicated region
    $region42: #{combined_forward.1} parent=1 // pred_check
      _
    $region43: #{combined_forward.1} parent=1 // pred_check_branch
      %89 = sbr.rel (0) target = $region45
    $region44: #{combined_forward.1} parent=1 // pred_region
      _
    $region45: #{combined_forward.1} parent=1 // pred_fallthru
      _
    // Predicated region
    $region46: #{combined_forward.1} parent=1 // pred_check
      _
    $region47: #{combined_forward.1} parent=1 // pred_check_branch
      %91 = sbr.rel (0) target = $region49
    $region48: #{combined_forward.1} parent=1 // pred_region
      _
    $region49: #{combined_forward.1} parent=1 // pred_fallthru
      _
    // Predicated region
    $region50: #{combined_forward.1} parent=1 // pred_check
      _
    $region51: #{combined_forward.1} parent=1 // pred_check_branch
      %93 = sbr.rel (0) target = $region53
    $region52: #{combined_forward.1} parent=1 // pred_region
      _
    $region53: #{combined_forward.1} parent=1 // pred_fallthru
      _
    // Predicated region
    $region54: #{combined_forward.1} parent=1 // pred_check
      _
    $region55: #{combined_forward.1} parent=1 // pred_check_branch
      %95 = sbr.rel (0) target = $region57
    $region56: #{combined_forward.1} parent=1 // pred_region
      _
    $region57: #{combined_forward.1} parent=1 // pred_fallthru
      _
    // Predicated region
    $region58: #{combined_forward.1} parent=1 // pred_check
      _
    $region59: #{combined_forward.1} parent=1 // pred_check_branch
      %97 = sbr.rel (0) target = $region61
    $region60: #{combined_forward.1} parent=1 // pred_region
      _
    $region61: #{combined_forward.1} parent=1 // pred_fallthru
      _
    // Predicated region
    $region62: #{combined_forward.1} parent=1 // pred_check
      _
    $region63: #{combined_forward.1} parent=1 // pred_check_branch
      %99 = sbr.rel (0) target = $region65
    $region64: #{combined_forward.1} parent=1 // pred_region
      _
    $region65: #{combined_forward.1} parent=1 // pred_fallthru
      _
    // Predicated region
    $region66: #{combined_forward.1} parent=1 // pred_check
      _
    $region67: #{combined_forward.1} parent=1 // pred_check_branch
      %101 = sbr.rel (0) target = $region69
    $region68: #{combined_forward.1} parent=1 // pred_region
      _
    $region69: #{combined_forward.1} parent=1 // pred_fallthru
      _
    // Predicated region
    $region70: #{combined_forward.1} parent=1 // pred_check
      _
    $region71: #{combined_forward.1} parent=1 // pred_check_branch
      %103 = sbr.rel (0) target = $region73
    $region72: #{combined_forward.1} parent=1 // pred_region
      _
    $region73: #{combined_forward.1} parent=1 // pred_fallthru
      _
    // Predicated region
    $region74: #{combined_forward.1} parent=1 // pred_check
      _
    $region75: #{combined_forward.1} parent=1 // pred_check_branch
      %105 = sbr.rel (0) target = $region77
    $region76: #{combined_forward.1} parent=1 // pred_region
      _
    $region77: #{combined_forward.1} parent=1 // pred_fallthru
      _
    // Predicated region
    $region78: #{combined_forward.1} parent=1 // pred_check
      _
    $region79: #{combined_forward.1} parent=1 // pred_check_branch
      %107 = sbr.rel (0) target = $region81
    $region80: #{combined_forward.1} parent=1 // pred_region
      _
    $region81: #{combined_forward.1} parent=1 // pred_fallthru
      _
    // Predicated region
    $region82: #{combined_forward.1} parent=1 // pred_check
      _
    $region83: #{combined_forward.1} parent=1 // pred_check_branch
      %109 = sbr.rel (0) target = $region85
    $region84: #{combined_forward.1} parent=1 // pred_region
      _
    $region85: #{combined_forward.1} parent=1 // pred_fallthru
      _
    // Predicated region
    $region86: #{combined_forward.1} parent=1 // pred_check
      _
    $region87: #{combined_forward.1} parent=1 // pred_check_branch
      %111 = sbr.rel (0) target = $region89
    $region88: #{combined_forward.1} parent=1 // pred_region
      _
    $region89: #{combined_forward.1} parent=1 // pred_fallthru
      _
    // Predicated region
    $region90: #{combined_forward.1} parent=1 // pred_check
      _
    $region91: #{combined_forward.1} parent=1 // pred_check_branch
      %113 = sbr.rel (0) target = $region93
    $region92: #{combined_forward.1} parent=1 // pred_region
      _
    $region93: #{combined_forward.1} parent=1 // pred_fallthru
      _
    // Predicated region
    $region94: #{combined_forward.1} parent=1 // pred_check
      _
    $region95: #{combined_forward.1} parent=1 // pred_check_branch
      %115 = sbr.rel (0) target = $region97
    $region96: #{combined_forward.1} parent=1 // pred_region
      _
    $region97: #{combined_forward.1} parent=1 // pred_fallthru
      _
    // Predicated region
    $region98: #{combined_forward.1} parent=1 // pred_check
      _
    $region99: #{combined_forward.1} parent=1 // pred_check_branch
      %117 = sbr.rel (0) target = $region101
    $region100: #{combined_forward.1} parent=1 // pred_region
      _
    $region101: #{combined_forward.1} parent=1 // pred_fallthru
      _
    // Predicated region
    $region102: #{combined_forward.1} parent=1 // pred_check
      _
    $region103: #{combined_forward.1} parent=1 // pred_check_branch
      %119 = sbr.rel (0) target = $region105
    $region104: #{combined_forward.1} parent=1 // pred_region
      _
    $region105: #{combined_forward.1} parent=1 // pred_fallthru
      _
    // Predicated region
    $region106: #{combined_forward.1} parent=1 // pred_check
      _
    $region107: #{combined_forward.1} parent=1 // pred_check_branch
      %121 = sbr.rel (0) target = $region109
    $region108: #{combined_forward.1} parent=1 // pred_region
      _
    $region109: #{combined_forward.1} parent=1 // pred_fallthru
      _
    // Predicated region
    $region110: #{combined_forward.1} parent=1 // pred_check
      _
    $region111: #{combined_forward.1} parent=1 // pred_check_branch
      %123 = sbr.rel (0) target = $region113
    $region112: #{combined_forward.1} parent=1 // pred_region
      _
    $region113: #{combined_forward.1} parent=1 // pred_fallthru
      _
    // Predicated region
    $region114: #{combined_forward.1} parent=1 // pred_check
      _
    $region115: #{combined_forward.1} parent=1 // pred_check_branch
      %125 = sbr.rel (0) target = $region117
    $region116: #{combined_forward.1} parent=1 // pred_region
      %126 = dma.done [#allocation5], 256
    $region117: #{combined_forward.1} parent=1 // pred_fallthru
      _
    // Predicated region
    $region118: #{combined_forward.1} parent=1 // pred_check
      _
    $region119: #{combined_forward.1} parent=1 // pred_check_branch
      %128 = sbr.rel (0) target = $region121
    $region120: #{combined_forward.1} parent=1 // pred_region
      %129 = dma.done [#allocation7], 256
    $region121: #{combined_forward.1} parent=1 // pred_fallthru
      _
    // Predicated region
    $region122: #{combined_forward.1} parent=1 // pred_check
      _
    $region123: #{combined_forward.1} parent=1 // pred_check_branch
      %131 = sbr.rel (0) target = $region125
    $region124: #{combined_forward.1} parent=1 // pred_region
      %132 = dma.done [#allocation7], 256
    $region125: #{combined_forward.1} parent=1 // pred_fallthru
      _
    %133 = sfence
    %v134 = vld [vmem:[%s0] sm:$0xff]
    %v135 = vld [vmem:[%s0 + $0x8] sm:$0xff]
    %v136 = vlaneseq
    %v137 = vand.u32 %v136, 127
    %v138 = vlaneseq
    %v139 = vshrl.u32 %v138, 7
    %v140 = vadd.s32 %v139, 8
    %vm141 = vcmp.eq.s32.totalorder %v139, 0
    %vm142 = vcmp.eq.s32.totalorder %v140, 0
    %vm143 = vcmp.eq.s32.totalorder %v137, 0
    %vm144 = vmand %vm141, %vm143
    %vm145 = vmand %vm142, %vm143
    %vm146 = vcmp.eq.s32.totalorder %v139, 7
    %vm147 = vcmp.eq.s32.totalorder %v140, 7
    %vm148 = vcmp.eq.s32.totalorder %v137, 31
    %vm149 = vmand %vm146, %vm148
    %vm150 = vmand %vm147, %vm148
    %vm151 = vcmp.eq.s32.totalorder %v139, 8
    %vm152 = vcmp.eq.s32.totalorder %v140, 8
    %vm153 = vmand %vm151, %vm143
    %vm154 = vmand %vm152, %vm143
    %vm155 = vmor %vm144, %vm153
    %vm156 = vmor %vm145, %vm154
    %vm157 = vcmp.eq.s32.totalorder %v139, 15
    %vm158 = vcmp.eq.s32.totalorder %v140, 15
    %vm159 = vmand %vm157, %vm148
    %vm160 = vmand %vm158, %vm148
    %vm161 = vmor %vm149, %vm159
    %vm162 = vmor %vm150, %vm160
    %vm165 = vcmask 1040384
    %v166 = vrot.slane %v134, 7
    %v167 = vrot.slane %v135, 7
    %v168 = vsel %vm165, %v166, %v167
    %v170 = vsel %vm165, 0.0, %v166
    %172 = vrot.lane.b32.xlu0 %v170, 97
    %v173 = vpop.permute.xlu0 %172
    %174 = vrot.lane.b32.xlu0 %v168, 97
    %v175 = vpop.permute.xlu0 %174
    %178 = vrot.lane.b32.xlu0 %v134, 1
    %v179 = vpop.permute.xlu0 %178
    %180 = vrot.lane.b32.xlu0 %v135, 1
    %v181 = vpop.permute.xlu0 %180
    %vm184 = vcmask 7168
    %v185 = vsel %vm184, %v173, %v179
    %v186 = vsel %vm184, %v175, %v181
    %v187 = vsel %vm155, 0.0, %v185
    %v188 = vsel %vm156, 0.0, %v186
    %vm189 = vcmask 1046528
    %v190 = vrot.slane %v134, 1
    %v191 = vrot.slane %v135, 1
    %v192 = vsel %vm189, %v190, %v191
    %v194 = vsel %vm189, %v191, 0.0
    %195 = vrot.lane.b32.xlu0 %v134, 127
    %v196 = vpop.permute.xlu0 %195
    %197 = vrot.lane.b32.xlu0 %v135, 127
    %v198 = vpop.permute.xlu0 %197
    %202 = vrot.lane.b32.xlu0 %v192, 31
    %v203 = vpop.permute.xlu0 %202
    %204 = vrot.lane.b32.xlu0 %v194, 31
    %v205 = vpop.permute.xlu0 %204
    %vm208 = vcmask 252928
    %v209 = vsel %vm208, %v196, %v203
    %v210 = vsel %vm208, %v198, %v205
    %v211 = vsel %vm161, 0.0, %v209
    %v212 = vsel %vm162, 0.0, %v210
    %s213 = sld [smem:[#allocation4]]
    %v214 = vstv %s213
    %v215 = vmul.f32 %v214, %v187
    %v216 = vmul.f32 %v214, %v188
    %s217 = sld [smem:[#allocation4 + $0x1]]
    %v218 = vstv %s217
    %v219 = vmul.f32 %v218, %v134
    %v220 = vmul.f32 %v218, %v135
    %v221 = vadd.f32 %v215, %v219
    %v222 = vadd.f32 %v216, %v220
    %s223 = sld [smem:[#allocation4 + $0x2]]
    %v224 = vstv %s223
    %v225 = vmul.f32 %v224, %v211
    %v226 = vmul.f32 %v224, %v212
    %v227 = vadd.f32 %v221, %v225
    %v228 = vadd.f32 %v222, %v226
    %s229 = sld [smem:[#allocation6]]
    %v230 = vstv %s229
    %v231 = vadd.f32 %v227, %v230
    %v232 = vadd.f32 %v228, %v230
    %v233 = vmax.f32 %v231, 0.0
    %v234 = vmax.f32 %v232, 0.0
    %s235 = sld [smem:[#allocation8]]
    %v236 = vstv %s235
    %v237 = vmul.f32 %v236, %v233
    %v238 = vmul.f32 %v236, %v234
    %v239 = vadd.f32 %v237, 0.0
    %v240 = vadd.f32 %v238, 0.0
    %s241 = sld [smem:[#allocation8 + $0x1]]
    %v242 = vstv %s241
    %v243 = vmul.f32 %v242, %v233
    %v244 = vmul.f32 %v242, %v234
    %v245 = vadd.f32 %v243, 0.0
    %v246 = vadd.f32 %v244, 0.0
    %s247 = sld [smem:[#allocation8 + $0x2]]
    %v248 = vstv %s247
    %v249 = vmul.f32 %v248, %v233
    %v250 = vmul.f32 %v248, %v234
    %v251 = vadd.f32 %v249, 0.0
    %v252 = vadd.f32 %v250, 0.0
    %s253 = sld [smem:[#allocation4 + $0x80]]
    %v254 = vstv %s253
    %v255 = vmul.f32 %v254, %v187
    %v256 = vmul.f32 %v254, %v188
    %s257 = sld [smem:[#allocation4 + $0x81]]
    %v258 = vstv %s257
    %v259 = vmul.f32 %v258, %v134
    %v260 = vmul.f32 %v258, %v135
    %v261 = vadd.f32 %v255, %v259
    %v262 = vadd.f32 %v256, %v260
    %s263 = sld [smem:[#allocation4 + $0x82]]
    %v264 = vstv %s263
    %v265 = vmul.f32 %v264, %v211
    %v266 = vmul.f32 %v264, %v212
    %v267 = vadd.f32 %v261, %v265
    %v268 = vadd.f32 %v262, %v266
    %s269 = sld [smem:[#allocation6 + $0x80]]
    %v270 = vstv %s269
    %v271 = vadd.f32 %v267, %v270
    %v272 = vadd.f32 %v268, %v270
    %v273 = vmax.f32 %v271, 0.0
    %v274 = vmax.f32 %v272, 0.0
    %s275 = sld [smem:[#allocation8 + $0x80]]
    %v276 = vstv %s275
    %v277 = vmul.f32 %v276, %v273
    %v278 = vmul.f32 %v276, %v274
    %v279 = vadd.f32 %v239, %v277
    %v280 = vadd.f32 %v240, %v278
    %s281 = sld [smem:[#allocation8 + $0x81]]
    %v282 = vstv %s281
    %v283 = vmul.f32 %v282, %v273
    %v284 = vmul.f32 %v282, %v274
    %v285 = vadd.f32 %v245, %v283
    %v286 = vadd.f32 %v246, %v284
    %s287 = sld [smem:[#allocation8 + $0x82]]
    %v288 = vstv %s287
    %v289 = vmul.f32 %v288, %v273
    %v290 = vmul.f32 %v288, %v274
    %v291 = vadd.f32 %v251, %v289
    %v292 = vadd.f32 %v252, %v290
    %s293 = sld [smem:[#allocation4 + $0x100]]
    %v294 = vstv %s293
    %v295 = vmul.f32 %v294, %v187
    %v296 = vmul.f32 %v294, %v188
    %s297 = sld [smem:[#allocation4 + $0x101]]
    %v298 = vstv %s297
    %v299 = vmul.f32 %v298, %v134
    %v300 = vmul.f32 %v298, %v135
    %v301 = vadd.f32 %v295, %v299
    %v302 = vadd.f32 %v296, %v300
    %s303 = sld [smem:[#allocation4 + $0x102]]
    %v304 = vstv %s303
    %v305 = vmul.f32 %v304, %v211
    %v306 = vmul.f32 %v304, %v212
    %v307 = vadd.f32 %v301, %v305
    %v308 = vadd.f32 %v302, %v306
    %s309 = sld [smem:[#allocation6 + $0x100]]
    %v310 = vstv %s309
    %v311 = vadd.f32 %v307, %v310
    %v312 = vadd.f32 %v308, %v310
    %v313 = vmax.f32 %v311, 0.0
    %v314 = vmax.f32 %v312, 0.0
    %s315 = sld [smem:[#allocation8 + $0x100]]
    %v316 = vstv %s315
    %v317 = vmul.f32 %v316, %v313
    %v318 = vmul.f32 %v316, %v314
    %v319 = vadd.f32 %v279, %v317
    %v320 = vadd.f32 %v280, %v318
    %s321 = sld [smem:[#allocation8 + $0x101]]
    %v322 = vstv %s321
    %v323 = vmul.f32 %v322, %v313
    %v324 = vmul.f32 %v322, %v314
    %v325 = vadd.f32 %v285, %v323
    %v326 = vadd.f32 %v286, %v324
    %s327 = sld [smem:[#allocation8 + $0x102]]
    %v328 = vstv %s327
    %v329 = vmul.f32 %v328, %v313
    %v330 = vmul.f32 %v328, %v314
    %v331 = vadd.f32 %v291, %v329
    %v332 = vadd.f32 %v292, %v330
    %s333 = sld [smem:[#allocation4 + $0x180]]
    %v334 = vstv %s333
    %v335 = vmul.f32 %v334, %v187
    %v336 = vmul.f32 %v334, %v188
    %s337 = sld [smem:[#allocation4 + $0x181]]
    %v338 = vstv %s337
    %v339 = vmul.f32 %v338, %v134
    %v340 = vmul.f32 %v338, %v135
    %v341 = vadd.f32 %v335, %v339
    %v342 = vadd.f32 %v336, %v340
    %s343 = sld [smem:[#allocation4 + $0x182]]
    %v344 = vstv %s343
    %v345 = vmul.f32 %v344, %v211
    %v346 = vmul.f32 %v344, %v212
    %v347 = vadd.f32 %v341, %v345
    %v348 = vadd.f32 %v342, %v346
    %s349 = sld [smem:[#allocation6 + $0x180]]
    %v350 = vstv %s349
    %v351 = vadd.f32 %v347, %v350
    %v352 = vadd.f32 %v348, %v350
    %v353 = vmax.f32 %v351, 0.0
    %v354 = vmax.f32 %v352, 0.0
    %s355 = sld [smem:[#allocation8 + $0x180]]
    %v356 = vstv %s355
    %v357 = vmul.f32 %v356, %v353
    %v358 = vmul.f32 %v356, %v354
    %v359 = vadd.f32 %v319, %v357
    %v360 = vadd.f32 %v320, %v358
    %s361 = sld [smem:[#allocation8 + $0x181]]
    %v362 = vstv %s361
    %v363 = vmul.f32 %v362, %v353
    %v364 = vmul.f32 %v362, %v354
    %v365 = vadd.f32 %v325, %v363
    %v366 = vadd.f32 %v326, %v364
    %s367 = sld [smem:[#allocation8 + $0x182]]
    %v368 = vstv %s367
    %v369 = vmul.f32 %v368, %v353
    %v370 = vmul.f32 %v368, %v354
    %v371 = vadd.f32 %v331, %v369
    %v372 = vadd.f32 %v332, %v370
    %s373 = sld [smem:[#allocation4 + $0x200]]
    %v374 = vstv %s373
    %v375 = vmul.f32 %v374, %v187
    %v376 = vmul.f32 %v374, %v188
    %s377 = sld [smem:[#allocation4 + $0x201]]
    %v378 = vstv %s377
    %v379 = vmul.f32 %v378, %v134
    %v380 = vmul.f32 %v378, %v135
    %v381 = vadd.f32 %v375, %v379
    %v382 = vadd.f32 %v376, %v380
    %s383 = sld [smem:[#allocation4 + $0x202]]
    %v384 = vstv %s383
    %v385 = vmul.f32 %v384, %v211
    %v386 = vmul.f32 %v384, %v212
    %v387 = vadd.f32 %v381, %v385
    %v388 = vadd.f32 %v382, %v386
    %s389 = sld [smem:[#allocation6 + $0x200]]
    %v390 = vstv %s389
    %v391 = vadd.f32 %v387, %v390
    %v392 = vadd.f32 %v388, %v390
    %v393 = vmax.f32 %v391, 0.0
    %v394 = vmax.f32 %v392, 0.0
    %s395 = sld [smem:[#allocation8 + $0x200]]
    %v396 = vstv %s395
    %v397 = vmul.f32 %v396, %v393
    %v398 = vmul.f32 %v396, %v394
    %v399 = vadd.f32 %v359, %v397
    %v400 = vadd.f32 %v360, %v398
    %s401 = sld [smem:[#allocation8 + $0x201]]
    %v402 = vstv %s401
    %v403 = vmul.f32 %v402, %v393
    %v404 = vmul.f32 %v402, %v394
    %v405 = vadd.f32 %v365, %v403
    %v406 = vadd.f32 %v366, %v404
    %s407 = sld [smem:[#allocation8 + $0x202]]
    %v408 = vstv %s407
    %v409 = vmul.f32 %v408, %v393
    %v410 = vmul.f32 %v408, %v394
    %v411 = vadd.f32 %v371, %v409
    %v412 = vadd.f32 %v372, %v410
    %s413 = sld [smem:[#allocation4 + $0x280]]
    %v414 = vstv %s413
    %v415 = vmul.f32 %v414, %v187
    %v416 = vmul.f32 %v414, %v188
    %s417 = sld [smem:[#allocation4 + $0x281]]
    %v418 = vstv %s417
    %v419 = vmul.f32 %v418, %v134
    %v420 = vmul.f32 %v418, %v135
    %v421 = vadd.f32 %v415, %v419
    %v422 = vadd.f32 %v416, %v420
    %s423 = sld [smem:[#allocation4 + $0x282]]
    %v424 = vstv %s423
    %v425 = vmul.f32 %v424, %v211
    %v426 = vmul.f32 %v424, %v212
    %v427 = vadd.f32 %v421, %v425
    %v428 = vadd.f32 %v422, %v426
    %s429 = sld [smem:[#allocation6 + $0x280]]
    %v430 = vstv %s429
    %v431 = vadd.f32 %v427, %v430
    %v432 = vadd.f32 %v428, %v430
    %v433 = vmax.f32 %v431, 0.0
    %v434 = vmax.f32 %v432, 0.0
    %s435 = sld [smem:[#allocation8 + $0x280]]
    %v436 = vstv %s435
    %v437 = vmul.f32 %v436, %v433
    %v438 = vmul.f32 %v436, %v434
    %v439 = vadd.f32 %v399, %v437
    %v440 = vadd.f32 %v400, %v438
    %s441 = sld [smem:[#allocation8 + $0x281]]
    %v442 = vstv %s441
    %v443 = vmul.f32 %v442, %v433
    %v444 = vmul.f32 %v442, %v434
    %v445 = vadd.f32 %v405, %v443
    %v446 = vadd.f32 %v406, %v444
    %s447 = sld [smem:[#allocation8 + $0x282]]
    %v448 = vstv %s447
    %v449 = vmul.f32 %v448, %v433
    %v450 = vmul.f32 %v448, %v434
    %v451 = vadd.f32 %v411, %v449
    %v452 = vadd.f32 %v412, %v450
    %s453 = sld [smem:[#allocation4 + $0x300]]
    %v454 = vstv %s453
    %v455 = vmul.f32 %v454, %v187
    %v456 = vmul.f32 %v454, %v188
    %s457 = sld [smem:[#allocation4 + $0x301]]
    %v458 = vstv %s457
    %v459 = vmul.f32 %v458, %v134
    %v460 = vmul.f32 %v458, %v135
    %v461 = vadd.f32 %v455, %v459
    %v462 = vadd.f32 %v456, %v460
    %s463 = sld [smem:[#allocation4 + $0x302]]
    %v464 = vstv %s463
    %v465 = vmul.f32 %v464, %v211
    %v466 = vmul.f32 %v464, %v212
    %v467 = vadd.f32 %v461, %v465
    %v468 = vadd.f32 %v462, %v466
    %s469 = sld [smem:[#allocation6 + $0x300]]
    %v470 = vstv %s469
    %v471 = vadd.f32 %v467, %v470
    %v472 = vadd.f32 %v468, %v470
    %v473 = vmax.f32 %v471, 0.0
    %v474 = vmax.f32 %v472, 0.0
    %s475 = sld [smem:[#allocation8 + $0x300]]
    %v476 = vstv %s475
    %v477 = vmul.f32 %v476, %v473
    %v478 = vmul.f32 %v476, %v474
    %v479 = vadd.f32 %v439, %v477
    %v480 = vadd.f32 %v440, %v478
    %s481 = sld [smem:[#allocation8 + $0x301]]
    %v482 = vstv %s481
    %v483 = vmul.f32 %v482, %v473
    %v484 = vmul.f32 %v482, %v474
    %v485 = vadd.f32 %v445, %v483
    %v486 = vadd.f32 %v446, %v484
    %s487 = sld [smem:[#allocation8 + $0x302]]
    %v488 = vstv %s487
    %v489 = vmul.f32 %v488, %v473
    %v490 = vmul.f32 %v488, %v474
    %v491 = vadd.f32 %v451, %v489
    %v492 = vadd.f32 %v452, %v490
    %s493 = sld [smem:[#allocation4 + $0x380]]
    %v494 = vstv %s493
    %v495 = vmul.f32 %v494, %v187
    %v496 = vmul.f32 %v494, %v188
    %s497 = sld [smem:[#allocation4 + $0x381]]
    %v498 = vstv %s497
    %v499 = vmul.f32 %v498, %v134
    %v500 = vmul.f32 %v498, %v135
    %v501 = vadd.f32 %v495, %v499
    %v502 = vadd.f32 %v496, %v500
    %s503 = sld [smem:[#allocation4 + $0x382]]
    %v504 = vstv %s503
    %v505 = vmul.f32 %v504, %v211
    %v506 = vmul.f32 %v504, %v212
    %v507 = vadd.f32 %v501, %v505
    %v508 = vadd.f32 %v502, %v506
    %s509 = sld [smem:[#allocation6 + $0x380]]
    %v510 = vstv %s509
    %v511 = vadd.f32 %v507, %v510
    %v512 = vadd.f32 %v508, %v510
    %v513 = vmax.f32 %v511, 0.0
    %v514 = vmax.f32 %v512, 0.0
    %s515 = sld [smem:[#allocation8 + $0x380]]
    %v516 = vstv %s515
    %v517 = vmul.f32 %v516, %v513
    %v518 = vmul.f32 %v516, %v514
    %v519 = vadd.f32 %v479, %v517
    %v520 = vadd.f32 %v480, %v518
    %s521 = sld [smem:[#allocation8 + $0x381]]
    %v522 = vstv %s521
    %v523 = vmul.f32 %v522, %v513
    %v524 = vmul.f32 %v522, %v514
    %v525 = vadd.f32 %v485, %v523
    %v526 = vadd.f32 %v486, %v524
    %s527 = sld [smem:[#allocation8 + $0x382]]
    %v528 = vstv %s527
    %v529 = vmul.f32 %v528, %v513
    %v530 = vmul.f32 %v528, %v514
    %v531 = vadd.f32 %v491, %v529
    %v532 = vadd.f32 %v492, %v530
    %s533 = sld [smem:[#allocation4 + $0x400]]
    %v534 = vstv %s533
    %v535 = vmul.f32 %v534, %v187
    %v536 = vmul.f32 %v534, %v188
    %s537 = sld [smem:[#allocation4 + $0x401]]
    %v538 = vstv %s537
    %v539 = vmul.f32 %v538, %v134
    %v540 = vmul.f32 %v538, %v135
    %v541 = vadd.f32 %v535, %v539
    %v542 = vadd.f32 %v536, %v540
    %s543 = sld [smem:[#allocation4 + $0x402]]
    %v544 = vstv %s543
    %v545 = vmul.f32 %v544, %v211
    %v546 = vmul.f32 %v544, %v212
    %v547 = vadd.f32 %v541, %v545
    %v548 = vadd.f32 %v542, %v546
    %s549 = sld [smem:[#allocation6 + $0x400]]
    %v550 = vstv %s549
    %v551 = vadd.f32 %v547, %v550
    %v552 = vadd.f32 %v548, %v550
    %v553 = vmax.f32 %v551, 0.0
    %v554 = vmax.f32 %v552, 0.0
    %s555 = sld [smem:[#allocation8 + $0x400]]
    %v556 = vstv %s555
    %v557 = vmul.f32 %v556, %v553
    %v558 = vmul.f32 %v556, %v554
    %v559 = vadd.f32 %v519, %v557
    %v560 = vadd.f32 %v520, %v558
    %s561 = sld [smem:[#allocation8 + $0x401]]
    %v562 = vstv %s561
    %v563 = vmul.f32 %v562, %v553
    %v564 = vmul.f32 %v562, %v554
    %v565 = vadd.f32 %v525, %v563
    %v566 = vadd.f32 %v526, %v564
    %s567 = sld [smem:[#allocation8 + $0x402]]
    %v568 = vstv %s567
    %v569 = vmul.f32 %v568, %v553
    %v570 = vmul.f32 %v568, %v554
    %v571 = vadd.f32 %v531, %v569
    %v572 = vadd.f32 %v532, %v570
    %s573 = sld [smem:[#allocation4 + $0x480]]
    %v574 = vstv %s573
    %v575 = vmul.f32 %v574, %v187
    %v576 = vmul.f32 %v574, %v188
    %s577 = sld [smem:[#allocation4 + $0x481]]
    %v578 = vstv %s577
    %v579 = vmul.f32 %v578, %v134
    %v580 = vmul.f32 %v578, %v135
    %v581 = vadd.f32 %v575, %v579
    %v582 = vadd.f32 %v576, %v580
    %s583 = sld [smem:[#allocation4 + $0x482]]
    %v584 = vstv %s583
    %v585 = vmul.f32 %v584, %v211
    %v586 = vmul.f32 %v584, %v212
    %v587 = vadd.f32 %v581, %v585
    %v588 = vadd.f32 %v582, %v586
    %s589 = sld [smem:[#allocation6 + $0x480]]
    %v590 = vstv %s589
    %v591 = vadd.f32 %v587, %v590
    %v592 = vadd.f32 %v588, %v590
    %v593 = vmax.f32 %v591, 0.0
    %v594 = vmax.f32 %v592, 0.0
    %s595 = sld [smem:[#allocation8 + $0x480]]
    %v596 = vstv %s595
    %v597 = vmul.f32 %v596, %v593
    %v598 = vmul.f32 %v596, %v594
    %v599 = vadd.f32 %v559, %v597
    %v600 = vadd.f32 %v560, %v598
    %s601 = sld [smem:[#allocation8 + $0x481]]
    %v602 = vstv %s601
    %v603 = vmul.f32 %v602, %v593
    %v604 = vmul.f32 %v602, %v594
    %v605 = vadd.f32 %v565, %v603
    %v606 = vadd.f32 %v566, %v604
    %s607 = sld [smem:[#allocation8 + $0x482]]
    %v608 = vstv %s607
    %v609 = vmul.f32 %v608, %v593
    %v610 = vmul.f32 %v608, %v594
    %v611 = vadd.f32 %v571, %v609
    %v612 = vadd.f32 %v572, %v610
    %s613 = sld [smem:[#allocation4 + $0x500]]
    %v614 = vstv %s613
    %v615 = vmul.f32 %v614, %v187
    %v616 = vmul.f32 %v614, %v188
    %s617 = sld [smem:[#allocation4 + $0x501]]
    %v618 = vstv %s617
    %v619 = vmul.f32 %v618, %v134
    %v620 = vmul.f32 %v618, %v135
    %v621 = vadd.f32 %v615, %v619
    %v622 = vadd.f32 %v616, %v620
    %s623 = sld [smem:[#allocation4 + $0x502]]
    %v624 = vstv %s623
    %v625 = vmul.f32 %v624, %v211
    %v626 = vmul.f32 %v624, %v212
    %v627 = vadd.f32 %v621, %v625
    %v628 = vadd.f32 %v622, %v626
    %s629 = sld [smem:[#allocation6 + $0x500]]
    %v630 = vstv %s629
    %v631 = vadd.f32 %v627, %v630
    %v632 = vadd.f32 %v628, %v630
    %v633 = vmax.f32 %v631, 0.0
    %v634 = vmax.f32 %v632, 0.0
    %s635 = sld [smem:[#allocation8 + $0x500]]
    %v636 = vstv %s635
    %v637 = vmul.f32 %v636, %v633
    %v638 = vmul.f32 %v636, %v634
    %v639 = vadd.f32 %v599, %v637
    %v640 = vadd.f32 %v600, %v638
    %s641 = sld [smem:[#allocation8 + $0x501]]
    %v642 = vstv %s641
    %v643 = vmul.f32 %v642, %v633
    %v644 = vmul.f32 %v642, %v634
    %v645 = vadd.f32 %v605, %v643
    %v646 = vadd.f32 %v606, %v644
    %s647 = sld [smem:[#allocation8 + $0x502]]
    %v648 = vstv %s647
    %v649 = vmul.f32 %v648, %v633
    %v650 = vmul.f32 %v648, %v634
    %v651 = vadd.f32 %v611, %v649
    %v652 = vadd.f32 %v612, %v650
    %s653 = sld [smem:[#allocation4 + $0x580]]
    %v654 = vstv %s653
    %v655 = vmul.f32 %v654, %v187
    %v656 = vmul.f32 %v654, %v188
    %s657 = sld [smem:[#allocation4 + $0x581]]
    %v658 = vstv %s657
    %v659 = vmul.f32 %v658, %v134
    %v660 = vmul.f32 %v658, %v135
    %v661 = vadd.f32 %v655, %v659
    %v662 = vadd.f32 %v656, %v660
    %s663 = sld [smem:[#allocation4 + $0x582]]
    %v664 = vstv %s663
    %v665 = vmul.f32 %v664, %v211
    %v666 = vmul.f32 %v664, %v212
    %v667 = vadd.f32 %v661, %v665
    %v668 = vadd.f32 %v662, %v666
    %s669 = sld [smem:[#allocation6 + $0x580]]
    %v670 = vstv %s669
    %v671 = vadd.f32 %v667, %v670
    %v672 = vadd.f32 %v668, %v670
    %v673 = vmax.f32 %v671, 0.0
    %v674 = vmax.f32 %v672, 0.0
    %s675 = sld [smem:[#allocation8 + $0x580]]
    %v676 = vstv %s675
    %v677 = vmul.f32 %v676, %v673
    %v678 = vmul.f32 %v676, %v674
    %v679 = vadd.f32 %v639, %v677
    %v680 = vadd.f32 %v640, %v678
    %s681 = sld [smem:[#allocation8 + $0x581]]
    %v682 = vstv %s681
    %v683 = vmul.f32 %v682, %v673
    %v684 = vmul.f32 %v682, %v674
    %v685 = vadd.f32 %v645, %v683
    %v686 = vadd.f32 %v646, %v684
    %s687 = sld [smem:[#allocation8 + $0x582]]
    %v688 = vstv %s687
    %v689 = vmul.f32 %v688, %v673
    %v690 = vmul.f32 %v688, %v674
    %v691 = vadd.f32 %v651, %v689
    %v692 = vadd.f32 %v652, %v690
    %s693 = sld [smem:[#allocation4 + $0x600]]
    %v694 = vstv %s693
    %v695 = vmul.f32 %v694, %v187
    %v696 = vmul.f32 %v694, %v188
    %s697 = sld [smem:[#allocation4 + $0x601]]
    %v698 = vstv %s697
    %v699 = vmul.f32 %v698, %v134
    %v700 = vmul.f32 %v698, %v135
    %v701 = vadd.f32 %v695, %v699
    %v702 = vadd.f32 %v696, %v700
    %s703 = sld [smem:[#allocation4 + $0x602]]
    %v704 = vstv %s703
    %v705 = vmul.f32 %v704, %v211
    %v706 = vmul.f32 %v704, %v212
    %v707 = vadd.f32 %v701, %v705
    %v708 = vadd.f32 %v702, %v706
    %s709 = sld [smem:[#allocation6 + $0x600]]
    %v710 = vstv %s709
    %v711 = vadd.f32 %v707, %v710
    %v712 = vadd.f32 %v708, %v710
    %v713 = vmax.f32 %v711, 0.0
    %v714 = vmax.f32 %v712, 0.0
    %s715 = sld [smem:[#allocation8 + $0x600]]
    %v716 = vstv %s715
    %v717 = vmul.f32 %v716, %v713
    %v718 = vmul.f32 %v716, %v714
    %v719 = vadd.f32 %v679, %v717
    %v720 = vadd.f32 %v680, %v718
    %s721 = sld [smem:[#allocation8 + $0x601]]
    %v722 = vstv %s721
    %v723 = vmul.f32 %v722, %v713
    %v724 = vmul.f32 %v722, %v714
    %v725 = vadd.f32 %v685, %v723
    %v726 = vadd.f32 %v686, %v724
    %s727 = sld [smem:[#allocation8 + $0x602]]
    %v728 = vstv %s727
    %v729 = vmul.f32 %v728, %v713
    %v730 = vmul.f32 %v728, %v714
    %v731 = vadd.f32 %v691, %v729
    %v732 = vadd.f32 %v692, %v730
    %s733 = sld [smem:[#allocation4 + $0x680]]
    %v734 = vstv %s733
    %v735 = vmul.f32 %v734, %v187
    %v736 = vmul.f32 %v734, %v188
    %s737 = sld [smem:[#allocation4 + $0x681]]
    %v738 = vstv %s737
    %v739 = vmul.f32 %v738, %v134
    %v740 = vmul.f32 %v738, %v135
    %v741 = vadd.f32 %v735, %v739
    %v742 = vadd.f32 %v736, %v740
    %s743 = sld [smem:[#allocation4 + $0x682]]
    %v744 = vstv %s743
    %v745 = vmul.f32 %v744, %v211
    %v746 = vmul.f32 %v744, %v212
    %v747 = vadd.f32 %v741, %v745
    %v748 = vadd.f32 %v742, %v746
    %s749 = sld [smem:[#allocation6 + $0x680]]
    %v750 = vstv %s749
    %v751 = vadd.f32 %v747, %v750
    %v752 = vadd.f32 %v748, %v750
    %v753 = vmax.f32 %v751, 0.0
    %v754 = vmax.f32 %v752, 0.0
    %s755 = sld [smem:[#allocation8 + $0x680]]
    %v756 = vstv %s755
    %v757 = vmul.f32 %v756, %v753
    %v758 = vmul.f32 %v756, %v754
    %v759 = vadd.f32 %v719, %v757
    %v760 = vadd.f32 %v720, %v758
    %s761 = sld [smem:[#allocation8 + $0x681]]
    %v762 = vstv %s761
    %v763 = vmul.f32 %v762, %v753
    %v764 = vmul.f32 %v762, %v754
    %v765 = vadd.f32 %v725, %v763
    %v766 = vadd.f32 %v726, %v764
    %s767 = sld [smem:[#allocation8 + $0x682]]
    %v768 = vstv %s767
    %v769 = vmul.f32 %v768, %v753
    %v770 = vmul.f32 %v768, %v754
    %v771 = vadd.f32 %v731, %v769
    %v772 = vadd.f32 %v732, %v770
    %s773 = sld [smem:[#allocation4 + $0x700]]
    %v774 = vstv %s773
    %v775 = vmul.f32 %v774, %v187
    %v776 = vmul.f32 %v774, %v188
    %s777 = sld [smem:[#allocation4 + $0x701]]
    %v778 = vstv %s777
    %v779 = vmul.f32 %v778, %v134
    %v780 = vmul.f32 %v778, %v135
    %v781 = vadd.f32 %v775, %v779
    %v782 = vadd.f32 %v776, %v780
    %s783 = sld [smem:[#allocation4 + $0x702]]
    %v784 = vstv %s783
    %v785 = vmul.f32 %v784, %v211
    %v786 = vmul.f32 %v784, %v212
    %v787 = vadd.f32 %v781, %v785
    %v788 = vadd.f32 %v782, %v786
    %s789 = sld [smem:[#allocation6 + $0x700]]
    %v790 = vstv %s789
    %v791 = vadd.f32 %v787, %v790
    %v792 = vadd.f32 %v788, %v790
    %v793 = vmax.f32 %v791, 0.0
    %v794 = vmax.f32 %v792, 0.0
    %s795 = sld [smem:[#allocation8 + $0x700]]
    %v796 = vstv %s795
    %v797 = vmul.f32 %v796, %v793
    %v798 = vmul.f32 %v796, %v794
    %v799 = vadd.f32 %v759, %v797
    %v800 = vadd.f32 %v760, %v798
    %s801 = sld [smem:[#allocation8 + $0x701]]
    %v802 = vstv %s801
    %v803 = vmul.f32 %v802, %v793
    %v804 = vmul.f32 %v802, %v794
    %v805 = vadd.f32 %v765, %v803
    %v806 = vadd.f32 %v766, %v804
    %s807 = sld [smem:[#allocation8 + $0x702]]
    %v808 = vstv %s807
    %v809 = vmul.f32 %v808, %v793
    %v810 = vmul.f32 %v808, %v794
    %v811 = vadd.f32 %v771, %v809
    %v812 = vadd.f32 %v772, %v810
    %s813 = sld [smem:[#allocation4 + $0x780]]
    %v814 = vstv %s813
    %v815 = vmul.f32 %v814, %v187
    %v816 = vmul.f32 %v814, %v188
    %s817 = sld [smem:[#allocation4 + $0x781]]
    %v818 = vstv %s817
    %v819 = vmul.f32 %v818, %v134
    %v820 = vmul.f32 %v818, %v135
    %v821 = vadd.f32 %v815, %v819
    %v822 = vadd.f32 %v816, %v820
    %s823 = sld [smem:[#allocation4 + $0x782]]
    %v824 = vstv %s823
    %v825 = vmul.f32 %v824, %v211
    %v826 = vmul.f32 %v824, %v212
    %v827 = vadd.f32 %v821, %v825
    %v828 = vadd.f32 %v822, %v826
    %s829 = sld [smem:[#allocation6 + $0x780]]
    %v830 = vstv %s829
    %v831 = vadd.f32 %v827, %v830
    %v832 = vadd.f32 %v828, %v830
    %v833 = vmax.f32 %v831, 0.0
    %v834 = vmax.f32 %v832, 0.0
    %s835 = sld [smem:[#allocation8 + $0x780]]
    %v836 = vstv %s835
    %v837 = vmul.f32 %v836, %v833
    %v838 = vmul.f32 %v836, %v834
    %v839 = vadd.f32 %v799, %v837
    %v840 = vadd.f32 %v800, %v838
    %s841 = sld [smem:[#allocation8 + $0x781]]
    %v842 = vstv %s841
    %v843 = vmul.f32 %v842, %v833
    %v844 = vmul.f32 %v842, %v834
    %v845 = vadd.f32 %v805, %v843
    %v846 = vadd.f32 %v806, %v844
    %s847 = sld [smem:[#allocation8 + $0x782]]
    %v848 = vstv %s847
    %v849 = vmul.f32 %v848, %v833
    %v850 = vmul.f32 %v848, %v834
    %v851 = vadd.f32 %v811, %v849
    %v852 = vadd.f32 %v812, %v850
    %v855 = vrot.slane %v839, 7
    %v856 = vrot.slane %v840, 7
    %v857 = vsel %vm165, %v855, %v856
    %v859 = vsel %vm165, 0.0, %v855
    %861 = vrot.lane.b32.xlu0 %v859, 97
    %v862 = vpop.permute.xlu0 %861
    %863 = vrot.lane.b32.xlu0 %v857, 97
    %v864 = vpop.permute.xlu0 %863
    %867 = vrot.lane.b32.xlu0 %v839, 1
    %v868 = vpop.permute.xlu0 %867
    %869 = vrot.lane.b32.xlu0 %v840, 1
    %v870 = vpop.permute.xlu0 %869
    %v873 = vsel %vm184, %v862, %v868
    %v874 = vsel %vm184, %v864, %v870
    %v875 = vsel %vm155, 0.0, %v873
    %v876 = vsel %vm156, 0.0, %v874
    %v877 = vadd.f32 %v875, %v845
    %v878 = vadd.f32 %v876, %v846
    %v881 = vrot.slane %v851, 1
    %v882 = vrot.slane %v852, 1
    %v883 = vsel %vm189, %v881, %v882
    %v885 = vsel %vm189, %v882, 0.0
    %886 = vrot.lane.b32.xlu0 %v851, 127
    %v887 = vpop.permute.xlu0 %886
    %888 = vrot.lane.b32.xlu0 %v852, 127
    %v889 = vpop.permute.xlu0 %888
    %893 = vrot.lane.b32.xlu0 %v883, 31
    %v894 = vpop.permute.xlu0 %893
    %895 = vrot.lane.b32.xlu0 %v885, 31
    %v896 = vpop.permute.xlu0 %895
    %v899 = vsel %vm208, %v887, %v894
    %v900 = vsel %vm208, %v889, %v896
    %v901 = vsel %vm161, 0.0, %v899
    %v902 = vsel %vm162, 0.0, %v900
    %v903 = vadd.f32 %v877, %v901
    %v904 = vadd.f32 %v878, %v902
    %s905 = sld [smem:[#allocation2]]
    %v906 = vstv %s905
    %v907 = vadd.f32 %v903, %v906
    %v908 = vadd.f32 %v904, %v906
    %v909 = vmax.f32 %v907, 0.0
    %v910 = vmax.f32 %v908, 0.0
    %v911 = vadd.s32 %v139, 16
    %v912 = vadd.s32 %v139, 24
    %v913 = vmul.u32 %v137, 8
    %vm914 = vcmp.ge.s32.totalorder %v139, %v913
    %vm915 = vcmp.ge.s32.totalorder %v140, %v913
    %vm916 = vcmp.ge.s32.totalorder %v911, %v913
    %vm917 = vcmp.ge.s32.totalorder %v912, %v913
    %v918 = vadd.s32 %v137, 1
    %v919 = vmul.u32 %v918, 8
    %vm920 = vcmp.lt.s32.totalorder %v139, %v919
    %vm921 = vcmp.lt.s32.totalorder %v140, %v919
    %vm922 = vcmp.lt.s32.totalorder %v911, %v919
    %vm923 = vcmp.lt.s32.totalorder %v912, %v919
    %vm924 = vmand %vm914, %vm920
    %vm925 = vmand %vm915, %vm921
    %vm926 = vmand %vm916, %vm922
    %vm927 = vmand %vm917, %vm923
    %v928 = vsel %vm924, 1.0, 0.0
    %v929 = vsel %vm925, 1.0, 0.0
    %v930 = vsel %vm926, 1.0, 0.0
    %v931 = vsel %vm927, 1.0, 0.0
    %v932 = vmul.u32 %v139, 8
    %vm933 = vcmp.ge.s32.totalorder %v137, %v932
    %v934 = vadd.s32 %v139, 1
    %v935 = vmul.u32 %v934, 8
    %vm936 = vcmp.lt.s32.totalorder %v137, %v935
    %vm937 = vmand %vm933, %vm936
    %v938 = vsel %vm937, 1.0, 0.0
    %v939 = vld [vmem:[%s6] sm:$0xff]
    %v940 = vld [vmem:[%s6 + $0x8] sm:$0xff]
    %v941 = vld [vmem:[%s6 + $0x10] sm:$0xff]
    %v942 = vld [vmem:[%s6 + $0x18] sm:$0xff]
    %v943 = vld [vmem:[%s7] sm:$0x1]
    %v945 = vlaneseq
    %v946 = vshrl.u32 %v945, 7
    %v947 = vsub.s32 0, %v946
    %v948 = vrot.slane %v943, %v947
    %vm950 = vcmask 261120
    %v952 = vsel %vm950, %v909, 0
    %v955 = vsel %vm950, %v910, 0
    %957 = vmatprep.subr.mxu0 0.0
    %958 = vmatpush1.msra.mxu0 %v939
    %959 = vmatprep.subr.mxu0 0.0
    %960 = vmatpush1.msra.mxu0 %v940
    %961 = vmatprep.subr.mxu0 0.0
    %962 = vmatpush1.msra.mxu0 %v941
    %963 = vmatprep.subr.mxu0 0.0
    %964 = vmatpush1.msra.mxu0 %v942
    %965 = vmatprep.subr.mxu0 0.0
    %966 = vmatpush1.msra.mxu0 0.0
    %967 = vmatprep.subr.mxu0 0.0
    %968 = vmatpush1.msra.mxu0 0.0
    %969 = vmatprep.subr.mxu0 0.0
    %970 = vmatpush1.msra.mxu0 0.0
    %971 = vmatprep.subr.mxu0 0.0
    %972 = vmatpush1.msra.mxu0 0.0
    %973 = vmatprep.subr.mxu0 0.0
    %974 = vmatpush1.msra.mxu0 0.0
    %975 = vmatprep.subr.mxu0 0.0
    %976 = vmatpush1.msra.mxu0 0.0
    %977 = vmatprep.subr.mxu0 0.0
    %978 = vmatpush1.msra.mxu0 0.0
    %979 = vmatprep.subr.mxu0 0.0
    %980 = vmatpush1.msra.mxu0 0.0
    %981 = vmatprep.subr.mxu0 0.0
    %982 = vmatpush1.msra.mxu0 0.0
    %983 = vmatprep.subr.mxu0 0.0
    %984 = vmatpush1.msra.mxu0 0.0
    %985 = vmatprep.subr.mxu0 0.0
    %986 = vmatpush1.msra.mxu0 0.0
    %987 = vmatprep.subr.mxu0 0.0
    %988 = vmatpush1.msra.mxu0 0.0
    %989 = vmatprep.subr.mxu0 0.0
    %990 = vmatpush1.msra.mxu0 0.0
    %991 = vmatprep.subr.mxu0 0.0
    %992 = vmatpush1.msra.mxu0 0.0
    %993 = vmatprep.subr.mxu0 0.0
    %994 = vmatpush1.msra.mxu0 0.0
    %995 = vmatprep.subr.mxu0 0.0
    %996 = vmatpush1.msra.mxu0 0.0
    %997 = vmatprep.subr.mxu0 0.0
    %998 = vmatpush1.msra.mxu0 0.0
    %999 = vmatprep.subr.mxu0 0.0
    %1000 = vmatpush1.msra.mxu0 0.0
    %1001 = vmatprep.subr.mxu0 0.0
    %1002 = vmatpush1.msra.mxu0 0.0
    %1003 = vmatprep.subr.mxu0 0.0
    %1004 = vmatpush1.msra.mxu0 0.0
    %1005 = vmatprep.subr.mxu0 0.0
    %1006 = vmatpush1.msra.mxu0 0.0
    %1007 = vmatprep.subr.mxu0 0.0
    %1008 = vmatpush1.msra.mxu0 0.0
    %1009 = vmatprep.subr.mxu0 0.0
    %1010 = vmatpush1.msra.mxu0 0.0
    %1011 = vmatprep.subr.mxu0 0.0
    %1012 = vmatpush1.msra.mxu0 0.0
    %1013 = vmatprep.subr.mxu0 0.0
    %1014 = vmatpush1.msra.mxu0 0.0
    %1015 = vmatprep.subr.mxu0 0.0
    %1016 = vmatpush1.msra.mxu0 0.0
    %1017 = vmatprep.subr.mxu0 0.0
    %1018 = vmatpush1.msra.mxu0 0.0
    %1019 = vmatprep.subr.mxu0 0.0
    %1020 = vmatpush1.msra.mxu0 0.0
    %1021 = vmatprep.mubr.f32.mxu0 0.0
    %1022 = vmatmul.mubr.f32.gmra.mrb[0].mxu0 %v952
    %v1023 = vpop.f32.mrb[0].mxu0
    %v1024 = vadd.f32 %v948, %v1023
    %v1025 = vpop.f32.mrb[0].mxu0
    %1026 = vmatprep.mubr.f32.mxu0 0.0
    %1027 = vmatmul.mubr.f32.gmra.mrb[0].mxu0 %v955
    %v1028 = vpop.f32.mrb[0].mxu0
    %v1029 = vadd.f32 %v948, %v1028
    %v1030 = vpop.f32.mrb[0].mxu0
    %1031 = vdwg.mxu0
    %v1032 = vld [vmem:[%s5] sm:$0xff]
    %v1033 = vld [vmem:[%s5 + $0x8] sm:$0xff]
    %v1034 = vadd.f32 %v1024, %v1032
    %v1035 = vadd.f32 %v1029, %v1033
    %v1036 = vld [vmem:[%s8] sm:$0xff]
    %v1037 = vld [vmem:[%s8 + $0x8] sm:$0xff]
    %v1038 = vld [vmem:[%s8 + $0x10] sm:$0xff]
    %v1039 = vld [vmem:[%s8 + $0x18] sm:$0xff]
    %v1040 = vld [vmem:[%s9] sm:$0x1]
    %v1042 = vlaneseq
    %v1043 = vshrl.u32 %v1042, 7
    %v1044 = vsub.s32 0, %v1043
    %v1045 = vrot.slane %v1040, %v1044
    %v1048 = vsel %vm950, %v1034, 0
    %v1051 = vsel %vm950, %v1035, 0
    %1053 = vmatprep.subr.mxu0 0.0
    %1054 = vmatpush1.msra.mxu0 %v1036
    %1055 = vmatprep.subr.mxu0 0.0
    %1056 = vmatpush1.msra.mxu0 %v1037
    %1057 = vmatprep.subr.mxu0 0.0
    %1058 = vmatpush1.msra.mxu0 %v1038
    %1059 = vmatprep.subr.mxu0 0.0
    %1060 = vmatpush1.msra.mxu0 %v1039
    %1061 = vmatprep.subr.mxu0 0.0
    %1062 = vmatpush1.msra.mxu0 0.0
    %1063 = vmatprep.subr.mxu0 0.0
    %1064 = vmatpush1.msra.mxu0 0.0
    %1065 = vmatprep.subr.mxu0 0.0
    %1066 = vmatpush1.msra.mxu0 0.0
    %1067 = vmatprep.subr.mxu0 0.0
    %1068 = vmatpush1.msra.mxu0 0.0
    %1069 = vmatprep.subr.mxu0 0.0
    %1070 = vmatpush1.msra.mxu0 0.0
    %1071 = vmatprep.subr.mxu0 0.0
    %1072 = vmatpush1.msra.mxu0 0.0
    %1073 = vmatprep.subr.mxu0 0.0
    %1074 = vmatpush1.msra.mxu0 0.0
    %1075 = vmatprep.subr.mxu0 0.0
    %1076 = vmatpush1.msra.mxu0 0.0
    %1077 = vmatprep.subr.mxu0 0.0
    %1078 = vmatpush1.msra.mxu0 0.0
    %1079 = vmatprep.subr.mxu0 0.0
    %1080 = vmatpush1.msra.mxu0 0.0
    %1081 = vmatprep.subr.mxu0 0.0
    %1082 = vmatpush1.msra.mxu0 0.0
    %1083 = vmatprep.subr.mxu0 0.0
    %1084 = vmatpush1.msra.mxu0 0.0
    %1085 = vmatprep.subr.mxu0 0.0
    %1086 = vmatpush1.msra.mxu0 0.0
    %1087 = vmatprep.subr.mxu0 0.0
    %1088 = vmatpush1.msra.mxu0 0.0
    %1089 = vmatprep.subr.mxu0 0.0
    %1090 = vmatpush1.msra.mxu0 0.0
    %1091 = vmatprep.subr.mxu0 0.0
    %1092 = vmatpush1.msra.mxu0 0.0
    %1093 = vmatprep.subr.mxu0 0.0
    %1094 = vmatpush1.msra.mxu0 0.0
    %1095 = vmatprep.subr.mxu0 0.0
    %1096 = vmatpush1.msra.mxu0 0.0
    %1097 = vmatprep.subr.mxu0 0.0
    %1098 = vmatpush1.msra.mxu0 0.0
    %1099 = vmatprep.subr.mxu0 0.0
    %1100 = vmatpush1.msra.mxu0 0.0
    %1101 = vmatprep.subr.mxu0 0.0
    %1102 = vmatpush1.msra.mxu0 0.0
    %1103 = vmatprep.subr.mxu0 0.0
    %1104 = vmatpush1.msra.mxu0 0.0
    %1105 = vmatprep.subr.mxu0 0.0
    %1106 = vmatpush1.msra.mxu0 0.0
    %1107 = vmatprep.subr.mxu0 0.0
    %1108 = vmatpush1.msra.mxu0 0.0
    %1109 = vmatprep.subr.mxu0 0.0
    %1110 = vmatpush1.msra.mxu0 0.0
    %1111 = vmatprep.subr.mxu0 0.0
    %1112 = vmatpush1.msra.mxu0 0.0
    %1113 = vmatprep.subr.mxu0 0.0
    %1114 = vmatpush1.msra.mxu0 0.0
    %1115 = vmatprep.subr.mxu0 0.0
    %1116 = vmatpush1.msra.mxu0 0.0
    %1117 = vmatprep.mubr.f32.mxu0 0.0
    %1118 = vmatmul.mubr.f32.gmra.mrb[0].mxu0 %v1048
    %v1119 = vpop.f32.mrb[0].mxu0
    %v1120 = vadd.f32 %v1045, %v1119
    %v1121 = vpop.f32.mrb[0].mxu0
    %1122 = vmatprep.mubr.f32.mxu0 0.0
    %1123 = vmatmul.mubr.f32.gmra.mrb[0].mxu0 %v1051
    %v1124 = vpop.f32.mrb[0].mxu0
    %v1125 = vadd.f32 %v1045, %v1124
    %v1126 = vpop.f32.mrb[0].mxu0
    %1127 = vdwg.mxu0
    %1129 = vrot.lane.b32.xlu0 %v1120, 96
    %v1130 = vpop.permute.xlu0 %1129
    %v1132 = vmul.f32 %v1120, %v1130
    %v1134 = vsel %vm950, %v1132, 0
    %1136 = vmatprep.subr.mxu0 0.0
    %1137 = vmatpush1.msra.mxu0 %v928
    %1138 = vmatprep.subr.mxu0 0.0
    %1139 = vmatpush1.msra.mxu0 %v929
    %1140 = vmatprep.subr.mxu0 0.0
    %1141 = vmatpush1.msra.mxu0 %v930
    %1142 = vmatprep.subr.mxu0 0.0
    %1143 = vmatpush1.msra.mxu0 %v931
    %1144 = vmatprep.subr.mxu0 0.0
    %1145 = vmatpush1.msra.mxu0 0.0
    %1146 = vmatprep.subr.mxu0 0.0
    %1147 = vmatpush1.msra.mxu0 0.0
    %1148 = vmatprep.subr.mxu0 0.0
    %1149 = vmatpush1.msra.mxu0 0.0
    %1150 = vmatprep.subr.mxu0 0.0
    %1151 = vmatpush1.msra.mxu0 0.0
    %1152 = vmatprep.subr.mxu0 0.0
    %1153 = vmatpush1.msra.mxu0 0.0
    %1154 = vmatprep.subr.mxu0 0.0
    %1155 = vmatpush1.msra.mxu0 0.0
    %1156 = vmatprep.subr.mxu0 0.0
    %1157 = vmatpush1.msra.mxu0 0.0
    %1158 = vmatprep.subr.mxu0 0.0
    %1159 = vmatpush1.msra.mxu0 0.0
    %1160 = vmatprep.subr.mxu0 0.0
    %1161 = vmatpush1.msra.mxu0 0.0
    %1162 = vmatprep.subr.mxu0 0.0
    %1163 = vmatpush1.msra.mxu0 0.0
    %1164 = vmatprep.subr.mxu0 0.0
    %1165 = vmatpush1.msra.mxu0 0.0
    %1166 = vmatprep.subr.mxu0 0.0
    %1167 = vmatpush1.msra.mxu0 0.0
    %1168 = vmatprep.subr.mxu0 0.0
    %1169 = vmatpush1.msra.mxu0 0.0
    %1170 = vmatprep.subr.mxu0 0.0
    %1171 = vmatpush1.msra.mxu0 0.0
    %1172 = vmatprep.subr.mxu0 0.0
    %1173 = vmatpush1.msra.mxu0 0.0
    %1174 = vmatprep.subr.mxu0 0.0
    %1175 = vmatpush1.msra.mxu0 0.0
    %1176 = vmatprep.subr.mxu0 0.0
    %1177 = vmatpush1.msra.mxu0 0.0
    %1178 = vmatprep.subr.mxu0 0.0
    %1179 = vmatpush1.msra.mxu0 0.0
    %1180 = vmatprep.subr.mxu0 0.0
    %1181 = vmatpush1.msra.mxu0 0.0
    %1182 = vmatprep.subr.mxu0 0.0
    %1183 = vmatpush1.msra.mxu0 0.0
    %1184 = vmatprep.subr.mxu0 0.0
    %1185 = vmatpush1.msra.mxu0 0.0
    %1186 = vmatprep.subr.mxu0 0.0
    %1187 = vmatpush1.msra.mxu0 0.0
    %1188 = vmatprep.subr.mxu0 0.0
    %1189 = vmatpush1.msra.mxu0 0.0
    %1190 = vmatprep.subr.mxu0 0.0
    %1191 = vmatpush1.msra.mxu0 0.0
    %1192 = vmatprep.subr.mxu0 0.0
    %1193 = vmatpush1.msra.mxu0 0.0
    %1194 = vmatprep.subr.mxu0 0.0
    %1195 = vmatpush1.msra.mxu0 0.0
    %1196 = vmatprep.subr.mxu0 0.0
    %1197 = vmatpush1.msra.mxu0 0.0
    %1198 = vmatprep.subr.mxu0 0.0
    %1199 = vmatpush1.msra.mxu0 0.0
    %1200 = vmatprep.mubr.f32.mxu0 0.0
    %1201 = vmatmul.mubr.f32.gmra.mrb[0].mxu0 %v1134
    %v1202 = vpop.f32.mrb[0].mxu0
    %v1203 = vadd.f32 0.0, %v1202
    %v1204 = vpop.f32.mrb[0].mxu0
    %1205 = vdwg.mxu0
    %v1206 = vmul.f32 %v1203, 0.35355338
    %1208 = vrot.lane.b32.xlu0 %v1125, 96
    %v1209 = vpop.permute.xlu0 %1208
    %v1211 = vmul.f32 %v1120, %v1209
    %v1213 = vsel %vm950, %v1211, 0
    %1215 = vmatprep.subr.mxu0 0.0
    %1216 = vmatpush1.msra.mxu0 %v928
    %1217 = vmatprep.subr.mxu0 0.0
    %1218 = vmatpush1.msra.mxu0 %v929
    %1219 = vmatprep.subr.mxu0 0.0
    %1220 = vmatpush1.msra.mxu0 %v930
    %1221 = vmatprep.subr.mxu0 0.0
    %1222 = vmatpush1.msra.mxu0 %v931
    %1223 = vmatprep.subr.mxu0 0.0
    %1224 = vmatpush1.msra.mxu0 0.0
    %1225 = vmatprep.subr.mxu0 0.0
    %1226 = vmatpush1.msra.mxu0 0.0
    %1227 = vmatprep.subr.mxu0 0.0
    %1228 = vmatpush1.msra.mxu0 0.0
    %1229 = vmatprep.subr.mxu0 0.0
    %1230 = vmatpush1.msra.mxu0 0.0
    %1231 = vmatprep.subr.mxu0 0.0
    %1232 = vmatpush1.msra.mxu0 0.0
    %1233 = vmatprep.subr.mxu0 0.0
    %1234 = vmatpush1.msra.mxu0 0.0
    %1235 = vmatprep.subr.mxu0 0.0
    %1236 = vmatpush1.msra.mxu0 0.0
    %1237 = vmatprep.subr.mxu0 0.0
    %1238 = vmatpush1.msra.mxu0 0.0
    %1239 = vmatprep.subr.mxu0 0.0
    %1240 = vmatpush1.msra.mxu0 0.0
    %1241 = vmatprep.subr.mxu0 0.0
    %1242 = vmatpush1.msra.mxu0 0.0
    %1243 = vmatprep.subr.mxu0 0.0
    %1244 = vmatpush1.msra.mxu0 0.0
    %1245 = vmatprep.subr.mxu0 0.0
    %1246 = vmatpush1.msra.mxu0 0.0
    %1247 = vmatprep.subr.mxu0 0.0
    %1248 = vmatpush1.msra.mxu0 0.0
    %1249 = vmatprep.subr.mxu0 0.0
    %1250 = vmatpush1.msra.mxu0 0.0
    %1251 = vmatprep.subr.mxu0 0.0
    %1252 = vmatpush1.msra.mxu0 0.0
    %1253 = vmatprep.subr.mxu0 0.0
    %1254 = vmatpush1.msra.mxu0 0.0
    %1255 = vmatprep.subr.mxu0 0.0
    %1256 = vmatpush1.msra.mxu0 0.0
    %1257 = vmatprep.subr.mxu0 0.0
    %1258 = vmatpush1.msra.mxu0 0.0
    %1259 = vmatprep.subr.mxu0 0.0
    %1260 = vmatpush1.msra.mxu0 0.0
    %1261 = vmatprep.subr.mxu0 0.0
    %1262 = vmatpush1.msra.mxu0 0.0
    %1263 = vmatprep.subr.mxu0 0.0
    %1264 = vmatpush1.msra.mxu0 0.0
    %1265 = vmatprep.subr.mxu0 0.0
    %1266 = vmatpush1.msra.mxu0 0.0
    %1267 = vmatprep.subr.mxu0 0.0
    %1268 = vmatpush1.msra.mxu0 0.0
    %1269 = vmatprep.subr.mxu0 0.0
    %1270 = vmatpush1.msra.mxu0 0.0
    %1271 = vmatprep.subr.mxu0 0.0
    %1272 = vmatpush1.msra.mxu0 0.0
    %1273 = vmatprep.subr.mxu0 0.0
    %1274 = vmatpush1.msra.mxu0 0.0
    %1275 = vmatprep.subr.mxu0 0.0
    %1276 = vmatpush1.msra.mxu0 0.0
    %1277 = vmatprep.subr.mxu0 0.0
    %1278 = vmatpush1.msra.mxu0 0.0
    %1279 = vmatprep.mubr.f32.mxu0 0.0
    %1280 = vmatmul.mubr.f32.gmra.mrb[0].mxu0 %v1213
    %v1281 = vpop.f32.mrb[0].mxu0
    %v1282 = vadd.f32 0.0, %v1281
    %v1283 = vpop.f32.mrb[0].mxu0
    %1284 = vdwg.mxu0
    %v1285 = vmul.f32 %v1282, 0.35355338
    %v1286 = vmul.f32 %v1125, %v1130
    %v1288 = vsel %vm950, %v1286, 0
    %1290 = vmatprep.subr.mxu0 0.0
    %1291 = vmatpush1.msra.mxu0 %v928
    %1292 = vmatprep.subr.mxu0 0.0
    %1293 = vmatpush1.msra.mxu0 %v929
    %1294 = vmatprep.subr.mxu0 0.0
    %1295 = vmatpush1.msra.mxu0 %v930
    %1296 = vmatprep.subr.mxu0 0.0
    %1297 = vmatpush1.msra.mxu0 %v931
    %1298 = vmatprep.subr.mxu0 0.0
    %1299 = vmatpush1.msra.mxu0 0.0
    %1300 = vmatprep.subr.mxu0 0.0
    %1301 = vmatpush1.msra.mxu0 0.0
    %1302 = vmatprep.subr.mxu0 0.0
    %1303 = vmatpush1.msra.mxu0 0.0
    %1304 = vmatprep.subr.mxu0 0.0
    %1305 = vmatpush1.msra.mxu0 0.0
    %1306 = vmatprep.subr.mxu0 0.0
    %1307 = vmatpush1.msra.mxu0 0.0
    %1308 = vmatprep.subr.mxu0 0.0
    %1309 = vmatpush1.msra.mxu0 0.0
    %1310 = vmatprep.subr.mxu0 0.0
    %1311 = vmatpush1.msra.mxu0 0.0
    %1312 = vmatprep.subr.mxu0 0.0
    %1313 = vmatpush1.msra.mxu0 0.0
    %1314 = vmatprep.subr.mxu0 0.0
    %1315 = vmatpush1.msra.mxu0 0.0
    %1316 = vmatprep.subr.mxu0 0.0
    %1317 = vmatpush1.msra.mxu0 0.0
    %1318 = vmatprep.subr.mxu0 0.0
    %1319 = vmatpush1.msra.mxu0 0.0
    %1320 = vmatprep.subr.mxu0 0.0
    %1321 = vmatpush1.msra.mxu0 0.0
    %1322 = vmatprep.subr.mxu0 0.0
    %1323 = vmatpush1.msra.mxu0 0.0
    %1324 = vmatprep.subr.mxu0 0.0
    %1325 = vmatpush1.msra.mxu0 0.0
    %1326 = vmatprep.subr.mxu0 0.0
    %1327 = vmatpush1.msra.mxu0 0.0
    %1328 = vmatprep.subr.mxu0 0.0
    %1329 = vmatpush1.msra.mxu0 0.0
    %1330 = vmatprep.subr.mxu0 0.0
    %1331 = vmatpush1.msra.mxu0 0.0
    %1332 = vmatprep.subr.mxu0 0.0
    %1333 = vmatpush1.msra.mxu0 0.0
    %1334 = vmatprep.subr.mxu0 0.0
    %1335 = vmatpush1.msra.mxu0 0.0
    %1336 = vmatprep.subr.mxu0 0.0
    %1337 = vmatpush1.msra.mxu0 0.0
    %1338 = vmatprep.subr.mxu0 0.0
    %1339 = vmatpush1.msra.mxu0 0.0
    %1340 = vmatprep.subr.mxu0 0.0
    %1341 = vmatpush1.msra.mxu0 0.0
    %1342 = vmatprep.subr.mxu0 0.0
    %1343 = vmatpush1.msra.mxu0 0.0
    %1344 = vmatprep.subr.mxu0 0.0
    %1345 = vmatpush1.msra.mxu0 0.0
    %1346 = vmatprep.subr.mxu0 0.0
    %1347 = vmatpush1.msra.mxu0 0.0
    %1348 = vmatprep.subr.mxu0 0.0
    %1349 = vmatpush1.msra.mxu0 0.0
    %1350 = vmatprep.subr.mxu0 0.0
    %1351 = vmatpush1.msra.mxu0 0.0
    %1352 = vmatprep.subr.mxu0 0.0
    %1353 = vmatpush1.msra.mxu0 0.0
    %1354 = vmatprep.mubr.f32.mxu0 0.0
    %1355 = vmatmul.mubr.f32.gmra.mrb[0].mxu0 %v1288
    %v1356 = vpop.f32.mrb[0].mxu0
    %v1357 = vadd.f32 0.0, %v1356
    %v1358 = vpop.f32.mrb[0].mxu0
    %1359 = vdwg.mxu0
    %v1360 = vmul.f32 %v1357, 0.35355338
    %v1361 = vmul.f32 %v1125, %v1209
    %v1363 = vsel %vm950, %v1361, 0
    %1365 = vmatprep.subr.mxu0 0.0
    %1366 = vmatpush1.msra.mxu0 %v928
    %1367 = vmatprep.subr.mxu0 0.0
    %1368 = vmatpush1.msra.mxu0 %v929
    %1369 = vmatprep.subr.mxu0 0.0
    %1370 = vmatpush1.msra.mxu0 %v930
    %1371 = vmatprep.subr.mxu0 0.0
    %1372 = vmatpush1.msra.mxu0 %v931
    %1373 = vmatprep.subr.mxu0 0.0
    %1374 = vmatpush1.msra.mxu0 0.0
    %1375 = vmatprep.subr.mxu0 0.0
    %1376 = vmatpush1.msra.mxu0 0.0
    %1377 = vmatprep.subr.mxu0 0.0
    %1378 = vmatpush1.msra.mxu0 0.0
    %1379 = vmatprep.subr.mxu0 0.0
    %1380 = vmatpush1.msra.mxu0 0.0
    %1381 = vmatprep.subr.mxu0 0.0
    %1382 = vmatpush1.msra.mxu0 0.0
    %1383 = vmatprep.subr.mxu0 0.0
    %1384 = vmatpush1.msra.mxu0 0.0
    %1385 = vmatprep.subr.mxu0 0.0
    %1386 = vmatpush1.msra.mxu0 0.0
    %1387 = vmatprep.subr.mxu0 0.0
    %1388 = vmatpush1.msra.mxu0 0.0
    %1389 = vmatprep.subr.mxu0 0.0
    %1390 = vmatpush1.msra.mxu0 0.0
    %1391 = vmatprep.subr.mxu0 0.0
    %1392 = vmatpush1.msra.mxu0 0.0
    %1393 = vmatprep.subr.mxu0 0.0
    %1394 = vmatpush1.msra.mxu0 0.0
    %1395 = vmatprep.subr.mxu0 0.0
    %1396 = vmatpush1.msra.mxu0 0.0
    %1397 = vmatprep.subr.mxu0 0.0
    %1398 = vmatpush1.msra.mxu0 0.0
    %1399 = vmatprep.subr.mxu0 0.0
    %1400 = vmatpush1.msra.mxu0 0.0
    %1401 = vmatprep.subr.mxu0 0.0
    %1402 = vmatpush1.msra.mxu0 0.0
    %1403 = vmatprep.subr.mxu0 0.0
    %1404 = vmatpush1.msra.mxu0 0.0
    %1405 = vmatprep.subr.mxu0 0.0
    %1406 = vmatpush1.msra.mxu0 0.0
    %1407 = vmatprep.subr.mxu0 0.0
    %1408 = vmatpush1.msra.mxu0 0.0
    %1409 = vmatprep.subr.mxu0 0.0
    %1410 = vmatpush1.msra.mxu0 0.0
    %1411 = vmatprep.subr.mxu0 0.0
    %1412 = vmatpush1.msra.mxu0 0.0
    %1413 = vmatprep.subr.mxu0 0.0
    %1414 = vmatpush1.msra.mxu0 0.0
    %1415 = vmatprep.subr.mxu0 0.0
    %1416 = vmatpush1.msra.mxu0 0.0
    %1417 = vmatprep.subr.mxu0 0.0
    %1418 = vmatpush1.msra.mxu0 0.0
    %1419 = vmatprep.subr.mxu0 0.0
    %1420 = vmatpush1.msra.mxu0 0.0
    %1421 = vmatprep.subr.mxu0 0.0
    %1422 = vmatpush1.msra.mxu0 0.0
    %1423 = vmatprep.subr.mxu0 0.0
    %1424 = vmatpush1.msra.mxu0 0.0
    %1425 = vmatprep.subr.mxu0 0.0
    %1426 = vmatpush1.msra.mxu0 0.0
    %1427 = vmatprep.subr.mxu0 0.0
    %1428 = vmatpush1.msra.mxu0 0.0
    %1429 = vmatprep.mubr.f32.mxu0 0.0
    %1430 = vmatmul.mubr.f32.gmra.mrb[0].mxu0 %v1363
    %v1431 = vpop.f32.mrb[0].mxu0
    %v1432 = vadd.f32 0.0, %v1431
    %v1433 = vpop.f32.mrb[0].mxu0
    %1434 = vdwg.mxu0
    %v1435 = vmul.f32 %v1432, 0.35355338
    %v1436 = vmax.f32 %v1206, %v1285
    %v1437 = vsub.f32 %v1206, %v1436
    %v1438 = vmul.f32 %v1437, 1.442695
    %v1439 = vpow.pop %v1438
    %v1440 = vsub.f32 %v1285, %v1436
    %v1441 = vmul.f32 %v1440, 1.442695
    %v1442 = vpow.pop %v1441
    %v1443 = vadd.f32 %v1439, %v1442
    %v1444 = vmax.f32 %v1360, %v1435
    %v1445 = vsub.f32 %v1360, %v1444
    %v1446 = vmul.f32 %v1445, 1.442695
    %v1447 = vpow.pop %v1446
    %v1448 = vsub.f32 %v1435, %v1444
    %v1449 = vmul.f32 %v1448, 1.442695
    %v1450 = vpow.pop %v1449
    %v1451 = vadd.f32 %v1447, %v1450
    %v1452 = vrcp.pop %v1443
    %v1453 = vmul.f32 %v1439, %v1452
    %vm1454 = vcmask 31744
    %v1456 = vsel %vm1454, %v1453, 0
    %vm1458 = vcmask 1043456
    %v1460 = vsel %vm1458, %v938, 0
    %1462 = vmatprep.subr.mxu0 0.0
    %1463 = vmatpush1.msra.mxu0 %v1460
    %1464 = vmatprep.subr.mxu0 0.0
    %1465 = vmatpush1.msra.mxu0 0.0
    %1466 = vmatprep.subr.mxu0 0.0
    %1467 = vmatpush1.msra.mxu0 0.0
    %1468 = vmatprep.subr.mxu0 0.0
    %1469 = vmatpush1.msra.mxu0 0.0
    %1470 = vmatprep.subr.mxu0 0.0
    %1471 = vmatpush1.msra.mxu0 0.0
    %1472 = vmatprep.subr.mxu0 0.0
    %1473 = vmatpush1.msra.mxu0 0.0
    %1474 = vmatprep.subr.mxu0 0.0
    %1475 = vmatpush1.msra.mxu0 0.0
    %1476 = vmatprep.subr.mxu0 0.0
    %1477 = vmatpush1.msra.mxu0 0.0
    %1478 = vmatprep.subr.mxu0 0.0
    %1479 = vmatpush1.msra.mxu0 0.0
    %1480 = vmatprep.subr.mxu0 0.0
    %1481 = vmatpush1.msra.mxu0 0.0
    %1482 = vmatprep.subr.mxu0 0.0
    %1483 = vmatpush1.msra.mxu0 0.0
    %1484 = vmatprep.subr.mxu0 0.0
    %1485 = vmatpush1.msra.mxu0 0.0
    %1486 = vmatprep.subr.mxu0 0.0
    %1487 = vmatpush1.msra.mxu0 0.0
    %1488 = vmatprep.subr.mxu0 0.0
    %1489 = vmatpush1.msra.mxu0 0.0
    %1490 = vmatprep.subr.mxu0 0.0
    %1491 = vmatpush1.msra.mxu0 0.0
    %1492 = vmatprep.subr.mxu0 0.0
    %1493 = vmatpush1.msra.mxu0 0.0
    %1494 = vmatprep.subr.mxu0 0.0
    %1495 = vmatpush1.msra.mxu0 0.0
    %1496 = vmatprep.subr.mxu0 0.0
    %1497 = vmatpush1.msra.mxu0 0.0
    %1498 = vmatprep.subr.mxu0 0.0
    %1499 = vmatpush1.msra.mxu0 0.0
    %1500 = vmatprep.subr.mxu0 0.0
    %1501 = vmatpush1.msra.mxu0 0.0
    %1502 = vmatprep.subr.mxu0 0.0
    %1503 = vmatpush1.msra.mxu0 0.0
    %1504 = vmatprep.subr.mxu0 0.0
    %1505 = vmatpush1.msra.mxu0 0.0
    %1506 = vmatprep.subr.mxu0 0.0
    %1507 = vmatpush1.msra.mxu0 0.0
    %1508 = vmatprep.subr.mxu0 0.0
    %1509 = vmatpush1.msra.mxu0 0.0
    %1510 = vmatprep.subr.mxu0 0.0
    %1511 = vmatpush1.msra.mxu0 0.0
    %1512 = vmatprep.subr.mxu0 0.0
    %1513 = vmatpush1.msra.mxu0 0.0
    %1514 = vmatprep.subr.mxu0 0.0
    %1515 = vmatpush1.msra.mxu0 0.0
    %1516 = vmatprep.subr.mxu0 0.0
    %1517 = vmatpush1.msra.mxu0 0.0
    %1518 = vmatprep.subr.mxu0 0.0
    %1519 = vmatpush1.msra.mxu0 0.0
    %1520 = vmatprep.subr.mxu0 0.0
    %1521 = vmatpush1.msra.mxu0 0.0
    %1522 = vmatprep.subr.mxu0 0.0
    %1523 = vmatpush1.msra.mxu0 0.0
    %1524 = vmatprep.subr.mxu0 0.0
    %1525 = vmatpush1.msra.mxu0 0.0
    %1526 = vmatprep.mubr.f32.mxu0 0.0
    %1527 = vmatmul.mubr.f32.gmra.mrb[0].mxu0 %v1456
    %v1528 = vpop.f32.mrb[0].mxu0
    %v1529 = vadd.f32 0.0, %v1528
    %v1530 = vpop.f32.mrb[0].mxu0
    %1531 = vdwg.mxu0
    %v1532 = vmul.f32 %v1442, %v1452
    %v1534 = vsel %vm1454, %v1532, 0
    %1536 = vmatprep.subr.mxu0 0.0
    %1537 = vmatpush1.msra.mxu0 %v1460
    %1538 = vmatprep.subr.mxu0 0.0
    %1539 = vmatpush1.msra.mxu0 0.0
    %1540 = vmatprep.subr.mxu0 0.0
    %1541 = vmatpush1.msra.mxu0 0.0
    %1542 = vmatprep.subr.mxu0 0.0
    %1543 = vmatpush1.msra.mxu0 0.0
    %1544 = vmatprep.subr.mxu0 0.0
    %1545 = vmatpush1.msra.mxu0 0.0
    %1546 = vmatprep.subr.mxu0 0.0
    %1547 = vmatpush1.msra.mxu0 0.0
    %1548 = vmatprep.subr.mxu0 0.0
    %1549 = vmatpush1.msra.mxu0 0.0
    %1550 = vmatprep.subr.mxu0 0.0
    %1551 = vmatpush1.msra.mxu0 0.0
    %1552 = vmatprep.subr.mxu0 0.0
    %1553 = vmatpush1.msra.mxu0 0.0
    %1554 = vmatprep.subr.mxu0 0.0
    %1555 = vmatpush1.msra.mxu0 0.0
    %1556 = vmatprep.subr.mxu0 0.0
    %1557 = vmatpush1.msra.mxu0 0.0
    %1558 = vmatprep.subr.mxu0 0.0
    %1559 = vmatpush1.msra.mxu0 0.0
    %1560 = vmatprep.subr.mxu0 0.0
    %1561 = vmatpush1.msra.mxu0 0.0
    %1562 = vmatprep.subr.mxu0 0.0
    %1563 = vmatpush1.msra.mxu0 0.0
    %1564 = vmatprep.subr.mxu0 0.0
    %1565 = vmatpush1.msra.mxu0 0.0
    %1566 = vmatprep.subr.mxu0 0.0
    %1567 = vmatpush1.msra.mxu0 0.0
    %1568 = vmatprep.subr.mxu0 0.0
    %1569 = vmatpush1.msra.mxu0 0.0
    %1570 = vmatprep.subr.mxu0 0.0
    %1571 = vmatpush1.msra.mxu0 0.0
    %1572 = vmatprep.subr.mxu0 0.0
    %1573 = vmatpush1.msra.mxu0 0.0
    %1574 = vmatprep.subr.mxu0 0.0
    %1575 = vmatpush1.msra.mxu0 0.0
    %1576 = vmatprep.subr.mxu0 0.0
    %1577 = vmatpush1.msra.mxu0 0.0
    %1578 = vmatprep.subr.mxu0 0.0
    %1579 = vmatpush1.msra.mxu0 0.0
    %1580 = vmatprep.subr.mxu0 0.0
    %1581 = vmatpush1.msra.mxu0 0.0
    %1582 = vmatprep.subr.mxu0 0.0
    %1583 = vmatpush1.msra.mxu0 0.0
    %1584 = vmatprep.subr.mxu0 0.0
    %1585 = vmatpush1.msra.mxu0 0.0
    %1586 = vmatprep.subr.mxu0 0.0
    %1587 = vmatpush1.msra.mxu0 0.0
    %1588 = vmatprep.subr.mxu0 0.0
    %1589 = vmatpush1.msra.mxu0 0.0
    %1590 = vmatprep.subr.mxu0 0.0
    %1591 = vmatpush1.msra.mxu0 0.0
    %1592 = vmatprep.subr.mxu0 0.0
    %1593 = vmatpush1.msra.mxu0 0.0
    %1594 = vmatprep.subr.mxu0 0.0
    %1595 = vmatpush1.msra.mxu0 0.0
    %1596 = vmatprep.subr.mxu0 0.0
    %1597 = vmatpush1.msra.mxu0 0.0
    %1598 = vmatprep.subr.mxu0 0.0
    %1599 = vmatpush1.msra.mxu0 0.0
    %1600 = vmatprep.mubr.f32.mxu0 0.0
    %1601 = vmatmul.mubr.f32.gmra.mrb[0].mxu0 %v1534
    %v1602 = vpop.f32.mrb[0].mxu0
    %v1603 = vadd.f32 0.0, %v1602
    %v1604 = vpop.f32.mrb[0].mxu0
    %1605 = vdwg.mxu0
    %v1606 = vrcp.pop %v1451
    %v1607 = vmul.f32 %v1447, %v1606
    %v1609 = vsel %vm1454, %v1607, 0
    %1611 = vmatprep.subr.mxu0 0.0
    %1612 = vmatpush1.msra.mxu0 %v1460
    %1613 = vmatprep.subr.mxu0 0.0
    %1614 = vmatpush1.msra.mxu0 0.0
    %1615 = vmatprep.subr.mxu0 0.0
    %1616 = vmatpush1.msra.mxu0 0.0
    %1617 = vmatprep.subr.mxu0 0.0
    %1618 = vmatpush1.msra.mxu0 0.0
    %1619 = vmatprep.subr.mxu0 0.0
    %1620 = vmatpush1.msra.mxu0 0.0
    %1621 = vmatprep.subr.mxu0 0.0
    %1622 = vmatpush1.msra.mxu0 0.0
    %1623 = vmatprep.subr.mxu0 0.0
    %1624 = vmatpush1.msra.mxu0 0.0
    %1625 = vmatprep.subr.mxu0 0.0
    %1626 = vmatpush1.msra.mxu0 0.0
    %1627 = vmatprep.subr.mxu0 0.0
    %1628 = vmatpush1.msra.mxu0 0.0
    %1629 = vmatprep.subr.mxu0 0.0
    %1630 = vmatpush1.msra.mxu0 0.0
    %1631 = vmatprep.subr.mxu0 0.0
    %1632 = vmatpush1.msra.mxu0 0.0
    %1633 = vmatprep.subr.mxu0 0.0
    %1634 = vmatpush1.msra.mxu0 0.0
    %1635 = vmatprep.subr.mxu0 0.0
    %1636 = vmatpush1.msra.mxu0 0.0
    %1637 = vmatprep.subr.mxu0 0.0
    %1638 = vmatpush1.msra.mxu0 0.0
    %1639 = vmatprep.subr.mxu0 0.0
    %1640 = vmatpush1.msra.mxu0 0.0
    %1641 = vmatprep.subr.mxu0 0.0
    %1642 = vmatpush1.msra.mxu0 0.0
    %1643 = vmatprep.subr.mxu0 0.0
    %1644 = vmatpush1.msra.mxu0 0.0
    %1645 = vmatprep.subr.mxu0 0.0
    %1646 = vmatpush1.msra.mxu0 0.0
    %1647 = vmatprep.subr.mxu0 0.0
    %1648 = vmatpush1.msra.mxu0 0.0
    %1649 = vmatprep.subr.mxu0 0.0
    %1650 = vmatpush1.msra.mxu0 0.0
    %1651 = vmatprep.subr.mxu0 0.0
    %1652 = vmatpush1.msra.mxu0 0.0
    %1653 = vmatprep.subr.mxu0 0.0
    %1654 = vmatpush1.msra.mxu0 0.0
    %1655 = vmatprep.subr.mxu0 0.0
    %1656 = vmatpush1.msra.mxu0 0.0
    %1657 = vmatprep.subr.mxu0 0.0
    %1658 = vmatpush1.msra.mxu0 0.0
    %1659 = vmatprep.subr.mxu0 0.0
    %1660 = vmatpush1.msra.mxu0 0.0
    %1661 = vmatprep.subr.mxu0 0.0
    %1662 = vmatpush1.msra.mxu0 0.0
    %1663 = vmatprep.subr.mxu0 0.0
    %1664 = vmatpush1.msra.mxu0 0.0
    %1665 = vmatprep.subr.mxu0 0.0
    %1666 = vmatpush1.msra.mxu0 0.0
    %1667 = vmatprep.subr.mxu0 0.0
    %1668 = vmatpush1.msra.mxu0 0.0
    %1669 = vmatprep.subr.mxu0 0.0
    %1670 = vmatpush1.msra.mxu0 0.0
    %1671 = vmatprep.subr.mxu0 0.0
    %1672 = vmatpush1.msra.mxu0 0.0
    %1673 = vmatprep.subr.mxu0 0.0
    %1674 = vmatpush1.msra.mxu0 0.0
    %1675 = vmatprep.mubr.f32.mxu0 0.0
    %1676 = vmatmul.mubr.f32.gmra.mrb[0].mxu0 %v1609
    %v1677 = vpop.f32.mrb[0].mxu0
    %v1678 = vadd.f32 0.0, %v1677
    %v1679 = vpop.f32.mrb[0].mxu0
    %1680 = vdwg.mxu0
    %v1681 = vmul.f32 %v1450, %v1606
    %v1683 = vsel %vm1454, %v1681, 0
    %1685 = vmatprep.subr.mxu0 0.0
    %1686 = vmatpush1.msra.mxu0 %v1460
    %1687 = vmatprep.subr.mxu0 0.0
    %1688 = vmatpush1.msra.mxu0 0.0
    %1689 = vmatprep.subr.mxu0 0.0
    %1690 = vmatpush1.msra.mxu0 0.0
    %1691 = vmatprep.subr.mxu0 0.0
    %1692 = vmatpush1.msra.mxu0 0.0
    %1693 = vmatprep.subr.mxu0 0.0
    %1694 = vmatpush1.msra.mxu0 0.0
    %1695 = vmatprep.subr.mxu0 0.0
    %1696 = vmatpush1.msra.mxu0 0.0
    %1697 = vmatprep.subr.mxu0 0.0
    %1698 = vmatpush1.msra.mxu0 0.0
    %1699 = vmatprep.subr.mxu0 0.0
    %1700 = vmatpush1.msra.mxu0 0.0
    %1701 = vmatprep.subr.mxu0 0.0
    %1702 = vmatpush1.msra.mxu0 0.0
    %1703 = vmatprep.subr.mxu0 0.0
    %1704 = vmatpush1.msra.mxu0 0.0
    %1705 = vmatprep.subr.mxu0 0.0
    %1706 = vmatpush1.msra.mxu0 0.0
    %1707 = vmatprep.subr.mxu0 0.0
    %1708 = vmatpush1.msra.mxu0 0.0
    %1709 = vmatprep.subr.mxu0 0.0
    %1710 = vmatpush1.msra.mxu0 0.0
    %1711 = vmatprep.subr.mxu0 0.0
    %1712 = vmatpush1.msra.mxu0 0.0
    %1713 = vmatprep.subr.mxu0 0.0
    %1714 = vmatpush1.msra.mxu0 0.0
    %1715 = vmatprep.subr.mxu0 0.0
    %1716 = vmatpush1.msra.mxu0 0.0
    %1717 = vmatprep.subr.mxu0 0.0
    %1718 = vmatpush1.msra.mxu0 0.0
    %1719 = vmatprep.subr.mxu0 0.0
    %1720 = vmatpush1.msra.mxu0 0.0
    %1721 = vmatprep.subr.mxu0 0.0
    %1722 = vmatpush1.msra.mxu0 0.0
    %1723 = vmatprep.subr.mxu0 0.0
    %1724 = vmatpush1.msra.mxu0 0.0
    %1725 = vmatprep.subr.mxu0 0.0
    %1726 = vmatpush1.msra.mxu0 0.0
    %1727 = vmatprep.subr.mxu0 0.0
    %1728 = vmatpush1.msra.mxu0 0.0
    %1729 = vmatprep.subr.mxu0 0.0
    %1730 = vmatpush1.msra.mxu0 0.0
    %1731 = vmatprep.subr.mxu0 0.0
    %1732 = vmatpush1.msra.mxu0 0.0
    %1733 = vmatprep.subr.mxu0 0.0
    %1734 = vmatpush1.msra.mxu0 0.0
    %1735 = vmatprep.subr.mxu0 0.0
    %1736 = vmatpush1.msra.mxu0 0.0
    %1737 = vmatprep.subr.mxu0 0.0
    %1738 = vmatpush1.msra.mxu0 0.0
    %1739 = vmatprep.subr.mxu0 0.0
    %1740 = vmatpush1.msra.mxu0 0.0
    %1741 = vmatprep.subr.mxu0 0.0
    %1742 = vmatpush1.msra.mxu0 0.0
    %1743 = vmatprep.subr.mxu0 0.0
    %1744 = vmatpush1.msra.mxu0 0.0
    %1745 = vmatprep.subr.mxu0 0.0
    %1746 = vmatpush1.msra.mxu0 0.0
    %1747 = vmatprep.subr.mxu0 0.0
    %1748 = vmatpush1.msra.mxu0 0.0
    %1749 = vmatprep.mubr.f32.mxu0 0.0
    %1750 = vmatmul.mubr.f32.gmra.mrb[0].mxu0 %v1683
    %v1751 = vpop.f32.mrb[0].mxu0
    %v1752 = vadd.f32 0.0, %v1751
    %v1753 = vpop.f32.mrb[0].mxu0
    %1754 = vdwg.mxu0
    %1755 = vrot.lane.b32.xlu0 %v1120, 64
    %v1756 = vpop.permute.xlu0 %1755
    %v1758 = vmul.f32 %v1529, %v1756
    %1759 = vrot.lane.b32.xlu0 %v1125, 64
    %v1760 = vpop.permute.xlu0 %1759
    %v1762 = vmul.f32 %v1603, %v1760
    %v1763 = vadd.f32 %v1758, %v1762
    %v1764 = vmul.f32 %v1678, %v1756
    %v1765 = vmul.f32 %v1752, %v1760
    %v1766 = vadd.f32 %v1764, %v1765
    %v1767 = vld [vmem:[%s10] sm:$0xff]
    %v1768 = vld [vmem:[%s10 + $0x8] sm:$0xff]
    %v1769 = vld [vmem:[%s10 + $0x10] sm:$0xff]
    %v1770 = vld [vmem:[%s10 + $0x18] sm:$0xff]
    %v1771 = vld [vmem:[%s11] sm:$0x1]
    %v1773 = vlaneseq
    %v1774 = vshrl.u32 %v1773, 7
    %v1775 = vsub.s32 0, %v1774
    %v1776 = vrot.slane %v1771, %v1775
    %v1779 = vsel %vm950, %v1763, 0
    %v1782 = vsel %vm950, %v1766, 0
    %1784 = vmatprep.subr.mxu0 0.0
    %1785 = vmatpush1.msra.mxu0 %v1767
    %1786 = vmatprep.subr.mxu0 0.0
    %1787 = vmatpush1.msra.mxu0 %v1768
    %1788 = vmatprep.subr.mxu0 0.0
    %1789 = vmatpush1.msra.mxu0 %v1769
    %1790 = vmatprep.subr.mxu0 0.0
    %1791 = vmatpush1.msra.mxu0 %v1770
    %1792 = vmatprep.subr.mxu0 0.0
    %1793 = vmatpush1.msra.mxu0 0.0
    %1794 = vmatprep.subr.mxu0 0.0
    %1795 = vmatpush1.msra.mxu0 0.0
    %1796 = vmatprep.subr.mxu0 0.0
    %1797 = vmatpush1.msra.mxu0 0.0
    %1798 = vmatprep.subr.mxu0 0.0
    %1799 = vmatpush1.msra.mxu0 0.0
    %1800 = vmatprep.subr.mxu0 0.0
    %1801 = vmatpush1.msra.mxu0 0.0
    %1802 = vmatprep.subr.mxu0 0.0
    %1803 = vmatpush1.msra.mxu0 0.0
    %1804 = vmatprep.subr.mxu0 0.0
    %1805 = vmatpush1.msra.mxu0 0.0
    %1806 = vmatprep.subr.mxu0 0.0
    %1807 = vmatpush1.msra.mxu0 0.0
    %1808 = vmatprep.subr.mxu0 0.0
    %1809 = vmatpush1.msra.mxu0 0.0
    %1810 = vmatprep.subr.mxu0 0.0
    %1811 = vmatpush1.msra.mxu0 0.0
    %1812 = vmatprep.subr.mxu0 0.0
    %1813 = vmatpush1.msra.mxu0 0.0
    %1814 = vmatprep.subr.mxu0 0.0
    %1815 = vmatpush1.msra.mxu0 0.0
    %1816 = vmatprep.subr.mxu0 0.0
    %1817 = vmatpush1.msra.mxu0 0.0
    %1818 = vmatprep.subr.mxu0 0.0
    %1819 = vmatpush1.msra.mxu0 0.0
    %1820 = vmatprep.subr.mxu0 0.0
    %1821 = vmatpush1.msra.mxu0 0.0
    %1822 = vmatprep.subr.mxu0 0.0
    %1823 = vmatpush1.msra.mxu0 0.0
    %1824 = vmatprep.subr.mxu0 0.0
    %1825 = vmatpush1.msra.mxu0 0.0
    %1826 = vmatprep.subr.mxu0 0.0
    %1827 = vmatpush1.msra.mxu0 0.0
    %1828 = vmatprep.subr.mxu0 0.0
    %1829 = vmatpush1.msra.mxu0 0.0
    %1830 = vmatprep.subr.mxu0 0.0
    %1831 = vmatpush1.msra.mxu0 0.0
    %1832 = vmatprep.subr.mxu0 0.0
    %1833 = vmatpush1.msra.mxu0 0.0
    %1834 = vmatprep.subr.mxu0 0.0
    %1835 = vmatpush1.msra.mxu0 0.0
    %1836 = vmatprep.subr.mxu0 0.0
    %1837 = vmatpush1.msra.mxu0 0.0
    %1838 = vmatprep.subr.mxu0 0.0
    %1839 = vmatpush1.msra.mxu0 0.0
    %1840 = vmatprep.subr.mxu0 0.0
    %1841 = vmatpush1.msra.mxu0 0.0
    %1842 = vmatprep.subr.mxu0 0.0
    %1843 = vmatpush1.msra.mxu0 0.0
    %1844 = vmatprep.subr.mxu0 0.0
    %1845 = vmatpush1.msra.mxu0 0.0
    %1846 = vmatprep.subr.mxu0 0.0
    %1847 = vmatpush1.msra.mxu0 0.0
    %1848 = vmatprep.mubr.f32.mxu0 0.0
    %1849 = vmatmul.mubr.f32.gmra.mrb[0].mxu0 %v1779
    %v1850 = vpop.f32.mrb[0].mxu0
    %v1851 = vadd.f32 %v1776, %v1850
    %v1852 = vpop.f32.mrb[0].mxu0
    %1853 = vmatprep.mubr.f32.mxu0 0.0
    %1854 = vmatmul.mubr.f32.gmra.mrb[0].mxu0 %v1782
    %v1855 = vpop.f32.mrb[0].mxu0
    %v1856 = vadd.f32 %v1776, %v1855
    %v1857 = vpop.f32.mrb[0].mxu0
    %1858 = vdwg.mxu0
    %v1859 = vadd.f32 %v1034, %v1851
    %v1860 = vadd.f32 %v1035, %v1856
    %v1861 = vld [vmem:[%s12] sm:$0x1]
    %v1862 = vld [vmem:[%s13] sm:$0x1]
    %v1863 = vsel %vm950, %v1859, 0.0
    %1864 = vadd.xlane.f32.xlu0 %v1863
    %v1865 = vpop.xlane.xlu0 %1864
    %v1866 = vsel %vm950, %v1860, 0.0
    %1867 = vadd.xlane.f32.xlu0 %v1866
    %v1868 = vpop.xlane.xlu0 %1867
    %v1869 = vrcp.pop 32.0
    %v1870 = vmul.f32 %v1865, %v1869
    %v1871 = vmul.f32 %v1868, %v1869
    %v1872 = vsub.f32 %v1859, %v1870
    %v1873 = vsub.f32 %v1860, %v1871
    %v1874 = vmul.f32 %v1872, %v1872
    %v1875 = vmul.f32 %v1873, %v1873
    %v1876 = vsel %vm950, %v1874, 0.0
    %1877 = vadd.xlane.f32.xlu0 %v1876
    %v1878 = vpop.xlane.xlu0 %1877
    %v1879 = vsel %vm950, %v1875, 0.0
    %1880 = vadd.xlane.f32.xlu0 %v1879
    %v1881 = vpop.xlane.xlu0 %1880
    %v1882 = vmul.f32 %v1878, %v1869
    %v1883 = vmul.f32 %v1881, %v1869
    %v1884 = vadd.f32 %v1882, 1e-05
    %v1885 = vadd.f32 %v1883, 1e-05
    %v1886 = vrsqrt.pop %v1884
    %v1887 = vrsqrt.pop %v1885
    %v1888 = vmul.f32 %v1872, %v1886
    %v1889 = vmul.f32 %v1873, %v1887
    %v1891 = vlaneseq
    %v1892 = vshrl.u32 %v1891, 7
    %v1893 = vsub.s32 0, %v1892
    %v1894 = vrot.slane %v1861, %v1893
    %v1896 = vmul.f32 %v1888, %v1894
    %v1897 = vmul.f32 %v1889, %v1894
    %v1899 = vlaneseq
    %v1900 = vshrl.u32 %v1899, 7
    %v1901 = vsub.s32 0, %v1900
    %v1902 = vrot.slane %v1862, %v1901
    %v1904 = vadd.f32 %v1896, %v1902
    %v1905 = vadd.f32 %v1897, %v1902
    %v1906 = vld [vmem:[%s14] sm:$0xff]
    %v1907 = vld [vmem:[%s14 + $0x8] sm:$0xff]
    %v1908 = vld [vmem:[%s14 + $0x10] sm:$0xff]
    %v1909 = vld [vmem:[%s14 + $0x18] sm:$0xff]
    %v1910 = vld [vmem:[%s15] sm:$0x1]
    %v1912 = vlaneseq
    %v1913 = vshrl.u32 %v1912, 7
    %v1914 = vsub.s32 0, %v1913
    %v1915 = vrot.slane %v1910, %v1914
    %v1918 = vsel %vm950, %v1904, 0
    %v1921 = vsel %vm950, %v1905, 0
    %1923 = vmatprep.subr.mxu0 0.0
    %1924 = vmatpush1.msra.mxu0 %v1906
    %1925 = vmatprep.subr.mxu0 0.0
    %1926 = vmatpush1.msra.mxu0 %v1907
    %1927 = vmatprep.subr.mxu0 0.0
    %1928 = vmatpush1.msra.mxu0 %v1908
    %1929 = vmatprep.subr.mxu0 0.0
    %1930 = vmatpush1.msra.mxu0 %v1909
    %1931 = vmatprep.subr.mxu0 0.0
    %1932 = vmatpush1.msra.mxu0 0.0
    %1933 = vmatprep.subr.mxu0 0.0
    %1934 = vmatpush1.msra.mxu0 0.0
    %1935 = vmatprep.subr.mxu0 0.0
    %1936 = vmatpush1.msra.mxu0 0.0
    %1937 = vmatprep.subr.mxu0 0.0
    %1938 = vmatpush1.msra.mxu0 0.0
    %1939 = vmatprep.subr.mxu0 0.0
    %1940 = vmatpush1.msra.mxu0 0.0
    %1941 = vmatprep.subr.mxu0 0.0
    %1942 = vmatpush1.msra.mxu0 0.0
    %1943 = vmatprep.subr.mxu0 0.0
    %1944 = vmatpush1.msra.mxu0 0.0
    %1945 = vmatprep.subr.mxu0 0.0
    %1946 = vmatpush1.msra.mxu0 0.0
    %1947 = vmatprep.subr.mxu0 0.0
    %1948 = vmatpush1.msra.mxu0 0.0
    %1949 = vmatprep.subr.mxu0 0.0
    %1950 = vmatpush1.msra.mxu0 0.0
    %1951 = vmatprep.subr.mxu0 0.0
    %1952 = vmatpush1.msra.mxu0 0.0
    %1953 = vmatprep.subr.mxu0 0.0
    %1954 = vmatpush1.msra.mxu0 0.0
    %1955 = vmatprep.subr.mxu0 0.0
    %1956 = vmatpush1.msra.mxu0 0.0
    %1957 = vmatprep.subr.mxu0 0.0
    %1958 = vmatpush1.msra.mxu0 0.0
    %1959 = vmatprep.subr.mxu0 0.0
    %1960 = vmatpush1.msra.mxu0 0.0
    %1961 = vmatprep.subr.mxu0 0.0
    %1962 = vmatpush1.msra.mxu0 0.0
    %1963 = vmatprep.subr.mxu0 0.0
    %1964 = vmatpush1.msra.mxu0 0.0
    %1965 = vmatprep.subr.mxu0 0.0
    %1966 = vmatpush1.msra.mxu0 0.0
    %1967 = vmatprep.subr.mxu0 0.0
    %1968 = vmatpush1.msra.mxu0 0.0
    %1969 = vmatprep.subr.mxu0 0.0
    %1970 = vmatpush1.msra.mxu0 0.0
    %1971 = vmatprep.subr.mxu0 0.0
    %1972 = vmatpush1.msra.mxu0 0.0
    %1973 = vmatprep.subr.mxu0 0.0
    %1974 = vmatpush1.msra.mxu0 0.0
    %1975 = vmatprep.subr.mxu0 0.0
    %1976 = vmatpush1.msra.mxu0 0.0
    %1977 = vmatprep.subr.mxu0 0.0
    %1978 = vmatpush1.msra.mxu0 0.0
    %1979 = vmatprep.subr.mxu0 0.0
    %1980 = vmatpush1.msra.mxu0 0.0
    %1981 = vmatprep.subr.mxu0 0.0
    %1982 = vmatpush1.msra.mxu0 0.0
    %1983 = vmatprep.subr.mxu0 0.0
    %1984 = vmatpush1.msra.mxu0 0.0
    %1985 = vmatprep.subr.mxu0 0.0
    %1986 = vmatpush1.msra.mxu0 0.0
    %1987 = vmatprep.mubr.f32.mxu0 0.0
    %1988 = vmatmul.mubr.f32.gmra.mrb[0].mxu0 %v1918
    %v1989 = vpop.f32.mrb[0].mxu0
    %v1990 = vadd.f32 %v1915, %v1989
    %v1991 = vpop.f32.mrb[0].mxu0
    %1992 = vmatprep.mubr.f32.mxu0 0.0
    %1993 = vmatmul.mubr.f32.gmra.mrb[0].mxu0 %v1921
    %v1994 = vpop.f32.mrb[0].mxu0
    %v1995 = vadd.f32 %v1915, %v1994
    %v1996 = vpop.f32.mrb[0].mxu0
    %1997 = vdwg.mxu0
    %v1998 = vmax.f32 %v1990, 0.0
    %v1999 = vmax.f32 %v1995, 0.0
    %v2000 = vld [vmem:[%s16] sm:$0xff]
    %v2001 = vld [vmem:[%s16 + $0x8] sm:$0xff]
    %v2002 = vld [vmem:[%s16 + $0x10] sm:$0xff]
    %v2003 = vld [vmem:[%s16 + $0x18] sm:$0xff]
    %v2004 = vld [vmem:[%s16 + $0x20] sm:$0xff]
    %v2005 = vld [vmem:[%s16 + $0x28] sm:$0xff]
    %v2006 = vld [vmem:[%s16 + $0x30] sm:$0xff]
    %v2007 = vld [vmem:[%s16 + $0x38] sm:$0xff]
    %v2008 = vld [vmem:[%s17] sm:$0x1]
    %v2010 = vlaneseq
    %v2011 = vshrl.u32 %v2010, 7
    %v2012 = vsub.s32 0, %v2011
    %v2013 = vrot.slane %v2008, %v2012
    %vm2015 = vcmask 523264
    %v2017 = vsel %vm2015, %v1998, 0
    %v2020 = vsel %vm2015, %v1999, 0
    %2022 = vmatprep.subr.mxu0 0.0
    %2023 = vmatpush1.msra.mxu0 %v2000
    %2024 = vmatprep.subr.mxu0 0.0
    %2025 = vmatpush1.msra.mxu0 %v2001
    %2026 = vmatprep.subr.mxu0 0.0
    %2027 = vmatpush1.msra.mxu0 %v2002
    %2028 = vmatprep.subr.mxu0 0.0
    %2029 = vmatpush1.msra.mxu0 %v2003
    %2030 = vmatprep.subr.mxu0 0.0
    %2031 = vmatpush1.msra.mxu0 %v2004
    %2032 = vmatprep.subr.mxu0 0.0
    %2033 = vmatpush1.msra.mxu0 %v2005
    %2034 = vmatprep.subr.mxu0 0.0
    %2035 = vmatpush1.msra.mxu0 %v2006
    %2036 = vmatprep.subr.mxu0 0.0
    %2037 = vmatpush1.msra.mxu0 %v2007
    %2038 = vmatprep.subr.mxu0 0.0
    %2039 = vmatpush1.msra.mxu0 0.0
    %2040 = vmatprep.subr.mxu0 0.0
    %2041 = vmatpush1.msra.mxu0 0.0
    %2042 = vmatprep.subr.mxu0 0.0
    %2043 = vmatpush1.msra.mxu0 0.0
    %2044 = vmatprep.subr.mxu0 0.0
    %2045 = vmatpush1.msra.mxu0 0.0
    %2046 = vmatprep.subr.mxu0 0.0
    %2047 = vmatpush1.msra.mxu0 0.0
    %2048 = vmatprep.subr.mxu0 0.0
    %2049 = vmatpush1.msra.mxu0 0.0
    %2050 = vmatprep.subr.mxu0 0.0
    %2051 = vmatpush1.msra.mxu0 0.0
    %2052 = vmatprep.subr.mxu0 0.0
    %2053 = vmatpush1.msra.mxu0 0.0
    %2054 = vmatprep.subr.mxu0 0.0
    %2055 = vmatpush1.msra.mxu0 0.0
    %2056 = vmatprep.subr.mxu0 0.0
    %2057 = vmatpush1.msra.mxu0 0.0
    %2058 = vmatprep.subr.mxu0 0.0
    %2059 = vmatpush1.msra.mxu0 0.0
    %2060 = vmatprep.subr.mxu0 0.0
    %2061 = vmatpush1.msra.mxu0 0.0
    %2062 = vmatprep.subr.mxu0 0.0
    %2063 = vmatpush1.msra.mxu0 0.0
    %2064 = vmatprep.subr.mxu0 0.0
    %2065 = vmatpush1.msra.mxu0 0.0
    %2066 = vmatprep.subr.mxu0 0.0
    %2067 = vmatpush1.msra.mxu0 0.0
    %2068 = vmatprep.subr.mxu0 0.0
    %2069 = vmatpush1.msra.mxu0 0.0
    %2070 = vmatprep.subr.mxu0 0.0
    %2071 = vmatpush1.msra.mxu0 0.0
    %2072 = vmatprep.subr.mxu0 0.0
    %2073 = vmatpush1.msra.mxu0 0.0
    %2074 = vmatprep.subr.mxu0 0.0
    %2075 = vmatpush1.msra.mxu0 0.0
    %2076 = vmatprep.subr.mxu0 0.0
    %2077 = vmatpush1.msra.mxu0 0.0
    %2078 = vmatprep.subr.mxu0 0.0
    %2079 = vmatpush1.msra.mxu0 0.0
    %2080 = vmatprep.subr.mxu0 0.0
    %2081 = vmatpush1.msra.mxu0 0.0
    %2082 = vmatprep.subr.mxu0 0.0
    %2083 = vmatpush1.msra.mxu0 0.0
    %2084 = vmatprep.subr.mxu0 0.0
    %2085 = vmatpush1.msra.mxu0 0.0
    %2086 = vmatprep.mubr.f32.mxu0 0.0
    %2087 = vmatmul.mubr.f32.gmra.mrb[0].mxu0 %v2017
    %v2088 = vpop.f32.mrb[0].mxu0
    %v2089 = vadd.f32 %v2013, %v2088
    %v2090 = vpop.f32.mrb[0].mxu0
    %2091 = vmatprep.mubr.f32.mxu0 0.0
    %2092 = vmatmul.mubr.f32.gmra.mrb[0].mxu0 %v2020
    %v2093 = vpop.f32.mrb[0].mxu0
    %v2094 = vadd.f32 %v2013, %v2093
    %v2095 = vpop.f32.mrb[0].mxu0
    %2096 = vdwg.mxu0
    %v2097 = vadd.f32 %v1904, %v2089
    %v2098 = vadd.f32 %v1905, %v2094
    %v2099 = vld [vmem:[%s18] sm:$0x1]
    %v2100 = vld [vmem:[%s19] sm:$0x1]
    %v2101 = vsel %vm950, %v2097, 0.0
    %2102 = vadd.xlane.f32.xlu0 %v2101
    %v2103 = vpop.xlane.xlu0 %2102
    %v2104 = vsel %vm950, %v2098, 0.0
    %2105 = vadd.xlane.f32.xlu0 %v2104
    %v2106 = vpop.xlane.xlu0 %2105
    %v2107 = vmul.f32 %v2103, %v1869
    %v2108 = vmul.f32 %v2106, %v1869
    %v2109 = vsub.f32 %v2097, %v2107
    %v2110 = vsub.f32 %v2098, %v2108
    %v2111 = vmul.f32 %v2109, %v2109
    %v2112 = vmul.f32 %v2110, %v2110
    %v2113 = vsel %vm950, %v2111, 0.0
    %2114 = vadd.xlane.f32.xlu0 %v2113
    %v2115 = vpop.xlane.xlu0 %2114
    %v2116 = vsel %vm950, %v2112, 0.0
    %2117 = vadd.xlane.f32.xlu0 %v2116
    %v2118 = vpop.xlane.xlu0 %2117
    %v2119 = vmul.f32 %v2115, %v1869
    %v2120 = vmul.f32 %v2118, %v1869
    %v2121 = vadd.f32 %v2119, 1e-05
    %v2122 = vadd.f32 %v2120, 1e-05
    %v2123 = vrsqrt.pop %v2121
    %v2124 = vrsqrt.pop %v2122
    %v2125 = vmul.f32 %v2109, %v2123
    %v2126 = vmul.f32 %v2110, %v2124
    %v2128 = vlaneseq
    %v2129 = vshrl.u32 %v2128, 7
    %v2130 = vsub.s32 0, %v2129
    %v2131 = vrot.slane %v2099, %v2130
    %v2133 = vmul.f32 %v2125, %v2131
    %v2134 = vmul.f32 %v2126, %v2131
    %v2136 = vlaneseq
    %v2137 = vshrl.u32 %v2136, 7
    %v2138 = vsub.s32 0, %v2137
    %v2139 = vrot.slane %v2100, %v2138
    %v2141 = vadd.f32 %v2133, %v2139
    %v2142 = vadd.f32 %v2134, %v2139
    %s2143 = scalar_lea.vmem %s8, 32
    %v2144 = vld [vmem:[%s2143] sm:$0xff]
    %v2145 = vld [vmem:[%s2143 + $0x8] sm:$0xff]
    %v2146 = vld [vmem:[%s2143 + $0x10] sm:$0xff]
    %v2147 = vld [vmem:[%s2143 + $0x18] sm:$0xff]
    %s2148 = scalar_lea.vmem %s9, 1
    %v2149 = vld [vmem:[%s2148] sm:$0x1]
    %v2151 = vlaneseq
    %v2152 = vshrl.u32 %v2151, 7
    %v2153 = vsub.s32 0, %v2152
    %v2154 = vrot.slane %v2149, %v2153
    %v2157 = vsel %vm950, %v2141, 0
    %v2160 = vsel %vm950, %v2142, 0
    %2162 = vmatprep.subr.mxu0 0.0
    %2163 = vmatpush1.msra.mxu0 %v2144
    %2164 = vmatprep.subr.mxu0 0.0
    %2165 = vmatpush1.msra.mxu0 %v2145
    %2166 = vmatprep.subr.mxu0 0.0
    %2167 = vmatpush1.msra.mxu0 %v2146
    %2168 = vmatprep.subr.mxu0 0.0
    %2169 = vmatpush1.msra.mxu0 %v2147
    %2170 = vmatprep.subr.mxu0 0.0
    %2171 = vmatpush1.msra.mxu0 0.0
    %2172 = vmatprep.subr.mxu0 0.0
    %2173 = vmatpush1.msra.mxu0 0.0
    %2174 = vmatprep.subr.mxu0 0.0
    %2175 = vmatpush1.msra.mxu0 0.0
    %2176 = vmatprep.subr.mxu0 0.0
    %2177 = vmatpush1.msra.mxu0 0.0
    %2178 = vmatprep.subr.mxu0 0.0
    %2179 = vmatpush1.msra.mxu0 0.0
    %2180 = vmatprep.subr.mxu0 0.0
    %2181 = vmatpush1.msra.mxu0 0.0
    %2182 = vmatprep.subr.mxu0 0.0
    %2183 = vmatpush1.msra.mxu0 0.0
    %2184 = vmatprep.subr.mxu0 0.0
    %2185 = vmatpush1.msra.mxu0 0.0
    %2186 = vmatprep.subr.mxu0 0.0
    %2187 = vmatpush1.msra.mxu0 0.0
    %2188 = vmatprep.subr.mxu0 0.0
    %2189 = vmatpush1.msra.mxu0 0.0
    %2190 = vmatprep.subr.mxu0 0.0
    %2191 = vmatpush1.msra.mxu0 0.0
    %2192 = vmatprep.subr.mxu0 0.0
    %2193 = vmatpush1.msra.mxu0 0.0
    %2194 = vmatprep.subr.mxu0 0.0
    %2195 = vmatpush1.msra.mxu0 0.0
    %2196 = vmatprep.subr.mxu0 0.0
    %2197 = vmatpush1.msra.mxu0 0.0
    %2198 = vmatprep.subr.mxu0 0.0
    %2199 = vmatpush1.msra.mxu0 0.0
    %2200 = vmatprep.subr.mxu0 0.0
    %2201 = vmatpush1.msra.mxu0 0.0
    %2202 = vmatprep.subr.mxu0 0.0
    %2203 = vmatpush1.msra.mxu0 0.0
    %2204 = vmatprep.subr.mxu0 0.0
    %2205 = vmatpush1.msra.mxu0 0.0
    %2206 = vmatprep.subr.mxu0 0.0
    %2207 = vmatpush1.msra.mxu0 0.0
    %2208 = vmatprep.subr.mxu0 0.0
    %2209 = vmatpush1.msra.mxu0 0.0
    %2210 = vmatprep.subr.mxu0 0.0
    %2211 = vmatpush1.msra.mxu0 0.0
    %2212 = vmatprep.subr.mxu0 0.0
    %2213 = vmatpush1.msra.mxu0 0.0
    %2214 = vmatprep.subr.mxu0 0.0
    %2215 = vmatpush1.msra.mxu0 0.0
    %2216 = vmatprep.subr.mxu0 0.0
    %2217 = vmatpush1.msra.mxu0 0.0
    %2218 = vmatprep.subr.mxu0 0.0
    %2219 = vmatpush1.msra.mxu0 0.0
    %2220 = vmatprep.subr.mxu0 0.0
    %2221 = vmatpush1.msra.mxu0 0.0
    %2222 = vmatprep.subr.mxu0 0.0
    %2223 = vmatpush1.msra.mxu0 0.0
    %2224 = vmatprep.subr.mxu0 0.0
    %2225 = vmatpush1.msra.mxu0 0.0
    %2226 = vmatprep.mubr.f32.mxu0 0.0
    %2227 = vmatmul.mubr.f32.gmra.mrb[0].mxu0 %v2157
    %v2228 = vpop.f32.mrb[0].mxu0
    %v2229 = vadd.f32 %v2154, %v2228
    %v2230 = vpop.f32.mrb[0].mxu0
    %2231 = vmatprep.mubr.f32.mxu0 0.0
    %2232 = vmatmul.mubr.f32.gmra.mrb[0].mxu0 %v2160
    %v2233 = vpop.f32.mrb[0].mxu0
    %v2234 = vadd.f32 %v2154, %v2233
    %v2235 = vpop.f32.mrb[0].mxu0
    %2236 = vdwg.mxu0
    %2238 = vrot.lane.b32.xlu0 %v2229, 96
    %v2239 = vpop.permute.xlu0 %2238
    %v2241 = vmul.f32 %v2229, %v2239
    %v2243 = vsel %vm950, %v2241, 0
    %2245 = vmatprep.subr.mxu0 0.0
    %2246 = vmatpush1.msra.mxu0 %v928
    %2247 = vmatprep.subr.mxu0 0.0
    %2248 = vmatpush1.msra.mxu0 %v929
    %2249 = vmatprep.subr.mxu0 0.0
    %2250 = vmatpush1.msra.mxu0 %v930
    %2251 = vmatprep.subr.mxu0 0.0
    %2252 = vmatpush1.msra.mxu0 %v931
    %2253 = vmatprep.subr.mxu0 0.0
    %2254 = vmatpush1.msra.mxu0 0.0
    %2255 = vmatprep.subr.mxu0 0.0
    %2256 = vmatpush1.msra.mxu0 0.0
    %2257 = vmatprep.subr.mxu0 0.0
    %2258 = vmatpush1.msra.mxu0 0.0
    %2259 = vmatprep.subr.mxu0 0.0
    %2260 = vmatpush1.msra.mxu0 0.0
    %2261 = vmatprep.subr.mxu0 0.0
    %2262 = vmatpush1.msra.mxu0 0.0
    %2263 = vmatprep.subr.mxu0 0.0
    %2264 = vmatpush1.msra.mxu0 0.0
    %2265 = vmatprep.subr.mxu0 0.0
    %2266 = vmatpush1.msra.mxu0 0.0
    %2267 = vmatprep.subr.mxu0 0.0
    %2268 = vmatpush1.msra.mxu0 0.0
    %2269 = vmatprep.subr.mxu0 0.0
    %2270 = vmatpush1.msra.mxu0 0.0
    %2271 = vmatprep.subr.mxu0 0.0
    %2272 = vmatpush1.msra.mxu0 0.0
    %2273 = vmatprep.subr.mxu0 0.0
    %2274 = vmatpush1.msra.mxu0 0.0
    %2275 = vmatprep.subr.mxu0 0.0
    %2276 = vmatpush1.msra.mxu0 0.0
    %2277 = vmatprep.subr.mxu0 0.0
    %2278 = vmatpush1.msra.mxu0 0.0
    %2279 = vmatprep.subr.mxu0 0.0
    %2280 = vmatpush1.msra.mxu0 0.0
    %2281 = vmatprep.subr.mxu0 0.0
    %2282 = vmatpush1.msra.mxu0 0.0
    %2283 = vmatprep.subr.mxu0 0.0
    %2284 = vmatpush1.msra.mxu0 0.0
    %2285 = vmatprep.subr.mxu0 0.0
    %2286 = vmatpush1.msra.mxu0 0.0
    %2287 = vmatprep.subr.mxu0 0.0
    %2288 = vmatpush1.msra.mxu0 0.0
    %2289 = vmatprep.subr.mxu0 0.0
    %2290 = vmatpush1.msra.mxu0 0.0
    %2291 = vmatprep.subr.mxu0 0.0
    %2292 = vmatpush1.msra.mxu0 0.0
    %2293 = vmatprep.subr.mxu0 0.0
    %2294 = vmatpush1.msra.mxu0 0.0
    %2295 = vmatprep.subr.mxu0 0.0
    %2296 = vmatpush1.msra.mxu0 0.0
    %2297 = vmatprep.subr.mxu0 0.0
    %2298 = vmatpush1.msra.mxu0 0.0
    %2299 = vmatprep.subr.mxu0 0.0
    %2300 = vmatpush1.msra.mxu0 0.0
    %2301 = vmatprep.subr.mxu0 0.0
    %2302 = vmatpush1.msra.mxu0 0.0
    %2303 = vmatprep.subr.mxu0 0.0
    %2304 = vmatpush1.msra.mxu0 0.0
    %2305 = vmatprep.subr.mxu0 0.0
    %2306 = vmatpush1.msra.mxu0 0.0
    %2307 = vmatprep.subr.mxu0 0.0
    %2308 = vmatpush1.msra.mxu0 0.0
    %2309 = vmatprep.mubr.f32.mxu0 0.0
    %2310 = vmatmul.mubr.f32.gmra.mrb[0].mxu0 %v2243
    %v2311 = vpop.f32.mrb[0].mxu0
    %v2312 = vadd.f32 0.0, %v2311
    %v2313 = vpop.f32.mrb[0].mxu0
    %2314 = vdwg.mxu0
    %v2315 = vmul.f32 %v2312, 0.35355338
    %2317 = vrot.lane.b32.xlu0 %v2234, 96
    %v2318 = vpop.permute.xlu0 %2317
    %v2320 = vmul.f32 %v2229, %v2318
    %v2322 = vsel %vm950, %v2320, 0
    %2324 = vmatprep.subr.mxu0 0.0
    %2325 = vmatpush1.msra.mxu0 %v928
    %2326 = vmatprep.subr.mxu0 0.0
    %2327 = vmatpush1.msra.mxu0 %v929
    %2328 = vmatprep.subr.mxu0 0.0
    %2329 = vmatpush1.msra.mxu0 %v930
    %2330 = vmatprep.subr.mxu0 0.0
    %2331 = vmatpush1.msra.mxu0 %v931
    %2332 = vmatprep.subr.mxu0 0.0
    %2333 = vmatpush1.msra.mxu0 0.0
    %2334 = vmatprep.subr.mxu0 0.0
    %2335 = vmatpush1.msra.mxu0 0.0
    %2336 = vmatprep.subr.mxu0 0.0
    %2337 = vmatpush1.msra.mxu0 0.0
    %2338 = vmatprep.subr.mxu0 0.0
    %2339 = vmatpush1.msra.mxu0 0.0
    %2340 = vmatprep.subr.mxu0 0.0
    %2341 = vmatpush1.msra.mxu0 0.0
    %2342 = vmatprep.subr.mxu0 0.0
    %2343 = vmatpush1.msra.mxu0 0.0
    %2344 = vmatprep.subr.mxu0 0.0
    %2345 = vmatpush1.msra.mxu0 0.0
    %2346 = vmatprep.subr.mxu0 0.0
    %2347 = vmatpush1.msra.mxu0 0.0
    %2348 = vmatprep.subr.mxu0 0.0
    %2349 = vmatpush1.msra.mxu0 0.0
    %2350 = vmatprep.subr.mxu0 0.0
    %2351 = vmatpush1.msra.mxu0 0.0
    %2352 = vmatprep.subr.mxu0 0.0
    %2353 = vmatpush1.msra.mxu0 0.0
    %2354 = vmatprep.subr.mxu0 0.0
    %2355 = vmatpush1.msra.mxu0 0.0
    %2356 = vmatprep.subr.mxu0 0.0
    %2357 = vmatpush1.msra.mxu0 0.0
    %2358 = vmatprep.subr.mxu0 0.0
    %2359 = vmatpush1.msra.mxu0 0.0
    %2360 = vmatprep.subr.mxu0 0.0
    %2361 = vmatpush1.msra.mxu0 0.0
    %2362 = vmatprep.subr.mxu0 0.0
    %2363 = vmatpush1.msra.mxu0 0.0
    %2364 = vmatprep.subr.mxu0 0.0
    %2365 = vmatpush1.msra.mxu0 0.0
    %2366 = vmatprep.subr.mxu0 0.0
    %2367 = vmatpush1.msra.mxu0 0.0
    %2368 = vmatprep.subr.mxu0 0.0
    %2369 = vmatpush1.msra.mxu0 0.0
    %2370 = vmatprep.subr.mxu0 0.0
    %2371 = vmatpush1.msra.mxu0 0.0
    %2372 = vmatprep.subr.mxu0 0.0
    %2373 = vmatpush1.msra.mxu0 0.0
    %2374 = vmatprep.subr.mxu0 0.0
    %2375 = vmatpush1.msra.mxu0 0.0
    %2376 = vmatprep.subr.mxu0 0.0
    %2377 = vmatpush1.msra.mxu0 0.0
    %2378 = vmatprep.subr.mxu0 0.0
    %2379 = vmatpush1.msra.mxu0 0.0
    %2380 = vmatprep.subr.mxu0 0.0
    %2381 = vmatpush1.msra.mxu0 0.0
    %2382 = vmatprep.subr.mxu0 0.0
    %2383 = vmatpush1.msra.mxu0 0.0
    %2384 = vmatprep.subr.mxu0 0.0
    %2385 = vmatpush1.msra.mxu0 0.0
    %2386 = vmatprep.subr.mxu0 0.0
    %2387 = vmatpush1.msra.mxu0 0.0
    %2388 = vmatprep.mubr.f32.mxu0 0.0
    %2389 = vmatmul.mubr.f32.gmra.mrb[0].mxu0 %v2322
    %v2390 = vpop.f32.mrb[0].mxu0
    %v2391 = vadd.f32 0.0, %v2390
    %v2392 = vpop.f32.mrb[0].mxu0
    %2393 = vdwg.mxu0
    %v2394 = vmul.f32 %v2391, 0.35355338
    %v2395 = vmul.f32 %v2234, %v2239
    %v2397 = vsel %vm950, %v2395, 0
    %2399 = vmatprep.subr.mxu0 0.0
    %2400 = vmatpush1.msra.mxu0 %v928
    %2401 = vmatprep.subr.mxu0 0.0
    %2402 = vmatpush1.msra.mxu0 %v929
    %2403 = vmatprep.subr.mxu0 0.0
    %2404 = vmatpush1.msra.mxu0 %v930
    %2405 = vmatprep.subr.mxu0 0.0
    %2406 = vmatpush1.msra.mxu0 %v931
    %2407 = vmatprep.subr.mxu0 0.0
    %2408 = vmatpush1.msra.mxu0 0.0
    %2409 = vmatprep.subr.mxu0 0.0
    %2410 = vmatpush1.msra.mxu0 0.0
    %2411 = vmatprep.subr.mxu0 0.0
    %2412 = vmatpush1.msra.mxu0 0.0
    %2413 = vmatprep.subr.mxu0 0.0
    %2414 = vmatpush1.msra.mxu0 0.0
    %2415 = vmatprep.subr.mxu0 0.0
    %2416 = vmatpush1.msra.mxu0 0.0
    %2417 = vmatprep.subr.mxu0 0.0
    %2418 = vmatpush1.msra.mxu0 0.0
    %2419 = vmatprep.subr.mxu0 0.0
    %2420 = vmatpush1.msra.mxu0 0.0
    %2421 = vmatprep.subr.mxu0 0.0
    %2422 = vmatpush1.msra.mxu0 0.0
    %2423 = vmatprep.subr.mxu0 0.0
    %2424 = vmatpush1.msra.mxu0 0.0
    %2425 = vmatprep.subr.mxu0 0.0
    %2426 = vmatpush1.msra.mxu0 0.0
    %2427 = vmatprep.subr.mxu0 0.0
    %2428 = vmatpush1.msra.mxu0 0.0
    %2429 = vmatprep.subr.mxu0 0.0
    %2430 = vmatpush1.msra.mxu0 0.0
    %2431 = vmatprep.subr.mxu0 0.0
    %2432 = vmatpush1.msra.mxu0 0.0
    %2433 = vmatprep.subr.mxu0 0.0
    %2434 = vmatpush1.msra.mxu0 0.0
    %2435 = vmatprep.subr.mxu0 0.0
    %2436 = vmatpush1.msra.mxu0 0.0
    %2437 = vmatprep.subr.mxu0 0.0
    %2438 = vmatpush1.msra.mxu0 0.0
    %2439 = vmatprep.subr.mxu0 0.0
    %2440 = vmatpush1.msra.mxu0 0.0
    %2441 = vmatprep.subr.mxu0 0.0
    %2442 = vmatpush1.msra.mxu0 0.0
    %2443 = vmatprep.subr.mxu0 0.0
    %2444 = vmatpush1.msra.mxu0 0.0
    %2445 = vmatprep.subr.mxu0 0.0
    %2446 = vmatpush1.msra.mxu0 0.0
    %2447 = vmatprep.subr.mxu0 0.0
    %2448 = vmatpush1.msra.mxu0 0.0
    %2449 = vmatprep.subr.mxu0 0.0
    %2450 = vmatpush1.msra.mxu0 0.0
    %2451 = vmatprep.subr.mxu0 0.0
    %2452 = vmatpush1.msra.mxu0 0.0
    %2453 = vmatprep.subr.mxu0 0.0
    %2454 = vmatpush1.msra.mxu0 0.0
    %2455 = vmatprep.subr.mxu0 0.0
    %2456 = vmatpush1.msra.mxu0 0.0
    %2457 = vmatprep.subr.mxu0 0.0
    %2458 = vmatpush1.msra.mxu0 0.0
    %2459 = vmatprep.subr.mxu0 0.0
    %2460 = vmatpush1.msra.mxu0 0.0
    %2461 = vmatprep.subr.mxu0 0.0
    %2462 = vmatpush1.msra.mxu0 0.0
    %2463 = vmatprep.mubr.f32.mxu0 0.0
    %2464 = vmatmul.mubr.f32.gmra.mrb[0].mxu0 %v2397
    %v2465 = vpop.f32.mrb[0].mxu0
    %v2466 = vadd.f32 0.0, %v2465
    %v2467 = vpop.f32.mrb[0].mxu0
    %2468 = vdwg.mxu0
    %v2469 = vmul.f32 %v2466, 0.35355338
    %v2470 = vmul.f32 %v2234, %v2318
    %v2472 = vsel %vm950, %v2470, 0
    %2474 = vmatprep.subr.mxu0 0.0
    %2475 = vmatpush1.msra.mxu0 %v928
    %2476 = vmatprep.subr.mxu0 0.0
    %2477 = vmatpush1.msra.mxu0 %v929
    %2478 = vmatprep.subr.mxu0 0.0
    %2479 = vmatpush1.msra.mxu0 %v930
    %2480 = vmatprep.subr.mxu0 0.0
    %2481 = vmatpush1.msra.mxu0 %v931
    %2482 = vmatprep.subr.mxu0 0.0
    %2483 = vmatpush1.msra.mxu0 0.0
    %2484 = vmatprep.subr.mxu0 0.0
    %2485 = vmatpush1.msra.mxu0 0.0
    %2486 = vmatprep.subr.mxu0 0.0
    %2487 = vmatpush1.msra.mxu0 0.0
    %2488 = vmatprep.subr.mxu0 0.0
    %2489 = vmatpush1.msra.mxu0 0.0
    %2490 = vmatprep.subr.mxu0 0.0
    %2491 = vmatpush1.msra.mxu0 0.0
    %2492 = vmatprep.subr.mxu0 0.0
    %2493 = vmatpush1.msra.mxu0 0.0
    %2494 = vmatprep.subr.mxu0 0.0
    %2495 = vmatpush1.msra.mxu0 0.0
    %2496 = vmatprep.subr.mxu0 0.0
    %2497 = vmatpush1.msra.mxu0 0.0
    %2498 = vmatprep.subr.mxu0 0.0
    %2499 = vmatpush1.msra.mxu0 0.0
    %2500 = vmatprep.subr.mxu0 0.0
    %2501 = vmatpush1.msra.mxu0 0.0
    %2502 = vmatprep.subr.mxu0 0.0
    %2503 = vmatpush1.msra.mxu0 0.0
    %2504 = vmatprep.subr.mxu0 0.0
    %2505 = vmatpush1.msra.mxu0 0.0
    %2506 = vmatprep.subr.mxu0 0.0
    %2507 = vmatpush1.msra.mxu0 0.0
    %2508 = vmatprep.subr.mxu0 0.0
    %2509 = vmatpush1.msra.mxu0 0.0
    %2510 = vmatprep.subr.mxu0 0.0
    %2511 = vmatpush1.msra.mxu0 0.0
    %2512 = vmatprep.subr.mxu0 0.0
    %2513 = vmatpush1.msra.mxu0 0.0
    %2514 = vmatprep.subr.mxu0 0.0
    %2515 = vmatpush1.msra.mxu0 0.0
    %2516 = vmatprep.subr.mxu0 0.0
    %2517 = vmatpush1.msra.mxu0 0.0
    %2518 = vmatprep.subr.mxu0 0.0
    %2519 = vmatpush1.msra.mxu0 0.0
    %2520 = vmatprep.subr.mxu0 0.0
    %2521 = vmatpush1.msra.mxu0 0.0
    %2522 = vmatprep.subr.mxu0 0.0
    %2523 = vmatpush1.msra.mxu0 0.0
    %2524 = vmatprep.subr.mxu0 0.0
    %2525 = vmatpush1.msra.mxu0 0.0
    %2526 = vmatprep.subr.mxu0 0.0
    %2527 = vmatpush1.msra.mxu0 0.0
    %2528 = vmatprep.subr.mxu0 0.0
    %2529 = vmatpush1.msra.mxu0 0.0
    %2530 = vmatprep.subr.mxu0 0.0
    %2531 = vmatpush1.msra.mxu0 0.0
    %2532 = vmatprep.subr.mxu0 0.0
    %2533 = vmatpush1.msra.mxu0 0.0
    %2534 = vmatprep.subr.mxu0 0.0
    %2535 = vmatpush1.msra.mxu0 0.0
    %2536 = vmatprep.subr.mxu0 0.0
    %2537 = vmatpush1.msra.mxu0 0.0
    %2538 = vmatprep.mubr.f32.mxu0 0.0
    %2539 = vmatmul.mubr.f32.gmra.mrb[0].mxu0 %v2472
    %v2540 = vpop.f32.mrb[0].mxu0
    %v2541 = vadd.f32 0.0, %v2540
    %v2542 = vpop.f32.mrb[0].mxu0
    %2543 = vdwg.mxu0
    %v2544 = vmul.f32 %v2541, 0.35355338
    %v2545 = vmax.f32 %v2315, %v2394
    %v2546 = vsub.f32 %v2315, %v2545
    %v2547 = vmul.f32 %v2546, 1.442695
    %v2548 = vpow.pop %v2547
    %v2549 = vsub.f32 %v2394, %v2545
    %v2550 = vmul.f32 %v2549, 1.442695
    %v2551 = vpow.pop %v2550
    %v2552 = vadd.f32 %v2548, %v2551
    %v2553 = vmax.f32 %v2469, %v2544
    %v2554 = vsub.f32 %v2469, %v2553
    %v2555 = vmul.f32 %v2554, 1.442695
    %v2556 = vpow.pop %v2555
    %v2557 = vsub.f32 %v2544, %v2553
    %v2558 = vmul.f32 %v2557, 1.442695
    %v2559 = vpow.pop %v2558
    %v2560 = vadd.f32 %v2556, %v2559
    %v2561 = vrcp.pop %v2552
    %v2562 = vmul.f32 %v2548, %v2561
    %v2564 = vsel %vm1454, %v2562, 0
    %2566 = vmatprep.subr.mxu0 0.0
    %2567 = vmatpush1.msra.mxu0 %v1460
    %2568 = vmatprep.subr.mxu0 0.0
    %2569 = vmatpush1.msra.mxu0 0.0
    %2570 = vmatprep.subr.mxu0 0.0
    %2571 = vmatpush1.msra.mxu0 0.0
    %2572 = vmatprep.subr.mxu0 0.0
    %2573 = vmatpush1.msra.mxu0 0.0
    %2574 = vmatprep.subr.mxu0 0.0
    %2575 = vmatpush1.msra.mxu0 0.0
    %2576 = vmatprep.subr.mxu0 0.0
    %2577 = vmatpush1.msra.mxu0 0.0
    %2578 = vmatprep.subr.mxu0 0.0
    %2579 = vmatpush1.msra.mxu0 0.0
    %2580 = vmatprep.subr.mxu0 0.0
    %2581 = vmatpush1.msra.mxu0 0.0
    %2582 = vmatprep.subr.mxu0 0.0
    %2583 = vmatpush1.msra.mxu0 0.0
    %2584 = vmatprep.subr.mxu0 0.0
    %2585 = vmatpush1.msra.mxu0 0.0
    %2586 = vmatprep.subr.mxu0 0.0
    %2587 = vmatpush1.msra.mxu0 0.0
    %2588 = vmatprep.subr.mxu0 0.0
    %2589 = vmatpush1.msra.mxu0 0.0
    %2590 = vmatprep.subr.mxu0 0.0
    %2591 = vmatpush1.msra.mxu0 0.0
    %2592 = vmatprep.subr.mxu0 0.0
    %2593 = vmatpush1.msra.mxu0 0.0
    %2594 = vmatprep.subr.mxu0 0.0
    %2595 = vmatpush1.msra.mxu0 0.0
    %2596 = vmatprep.subr.mxu0 0.0
    %2597 = vmatpush1.msra.mxu0 0.0
    %2598 = vmatprep.subr.mxu0 0.0
    %2599 = vmatpush1.msra.mxu0 0.0
    %2600 = vmatprep.subr.mxu0 0.0
    %2601 = vmatpush1.msra.mxu0 0.0
    %2602 = vmatprep.subr.mxu0 0.0
    %2603 = vmatpush1.msra.mxu0 0.0
    %2604 = vmatprep.subr.mxu0 0.0
    %2605 = vmatpush1.msra.mxu0 0.0
    %2606 = vmatprep.subr.mxu0 0.0
    %2607 = vmatpush1.msra.mxu0 0.0
    %2608 = vmatprep.subr.mxu0 0.0
    %2609 = vmatpush1.msra.mxu0 0.0
    %2610 = vmatprep.subr.mxu0 0.0
    %2611 = vmatpush1.msra.mxu0 0.0
    %2612 = vmatprep.subr.mxu0 0.0
    %2613 = vmatpush1.msra.mxu0 0.0
    %2614 = vmatprep.subr.mxu0 0.0
    %2615 = vmatpush1.msra.mxu0 0.0
    %2616 = vmatprep.subr.mxu0 0.0
    %2617 = vmatpush1.msra.mxu0 0.0
    %2618 = vmatprep.subr.mxu0 0.0
    %2619 = vmatpush1.msra.mxu0 0.0
    %2620 = vmatprep.subr.mxu0 0.0
    %2621 = vmatpush1.msra.mxu0 0.0
    %2622 = vmatprep.subr.mxu0 0.0
    %2623 = vmatpush1.msra.mxu0 0.0
    %2624 = vmatprep.subr.mxu0 0.0
    %2625 = vmatpush1.msra.mxu0 0.0
    %2626 = vmatprep.subr.mxu0 0.0
    %2627 = vmatpush1.msra.mxu0 0.0
    %2628 = vmatprep.subr.mxu0 0.0
    %2629 = vmatpush1.msra.mxu0 0.0
    %2630 = vmatprep.mubr.f32.mxu0 0.0
    %2631 = vmatmul.mubr.f32.gmra.mrb[0].mxu0 %v2564
    %v2632 = vpop.f32.mrb[0].mxu0
    %v2633 = vadd.f32 0.0, %v2632
    %v2634 = vpop.f32.mrb[0].mxu0
    %2635 = vdwg.mxu0
    %v2636 = vmul.f32 %v2551, %v2561
    %v2638 = vsel %vm1454, %v2636, 0
    %2640 = vmatprep.subr.mxu0 0.0
    %2641 = vmatpush1.msra.mxu0 %v1460
    %2642 = vmatprep.subr.mxu0 0.0
    %2643 = vmatpush1.msra.mxu0 0.0
    %2644 = vmatprep.subr.mxu0 0.0
    %2645 = vmatpush1.msra.mxu0 0.0
    %2646 = vmatprep.subr.mxu0 0.0
    %2647 = vmatpush1.msra.mxu0 0.0
    %2648 = vmatprep.subr.mxu0 0.0
    %2649 = vmatpush1.msra.mxu0 0.0
    %2650 = vmatprep.subr.mxu0 0.0
    %2651 = vmatpush1.msra.mxu0 0.0
    %2652 = vmatprep.subr.mxu0 0.0
    %2653 = vmatpush1.msra.mxu0 0.0
    %2654 = vmatprep.subr.mxu0 0.0
    %2655 = vmatpush1.msra.mxu0 0.0
    %2656 = vmatprep.subr.mxu0 0.0
    %2657 = vmatpush1.msra.mxu0 0.0
    %2658 = vmatprep.subr.mxu0 0.0
    %2659 = vmatpush1.msra.mxu0 0.0
    %2660 = vmatprep.subr.mxu0 0.0
    %2661 = vmatpush1.msra.mxu0 0.0
    %2662 = vmatprep.subr.mxu0 0.0
    %2663 = vmatpush1.msra.mxu0 0.0
    %2664 = vmatprep.subr.mxu0 0.0
    %2665 = vmatpush1.msra.mxu0 0.0
    %2666 = vmatprep.subr.mxu0 0.0
    %2667 = vmatpush1.msra.mxu0 0.0
    %2668 = vmatprep.subr.mxu0 0.0
    %2669 = vmatpush1.msra.mxu0 0.0
    %2670 = vmatprep.subr.mxu0 0.0
    %2671 = vmatpush1.msra.mxu0 0.0
    %2672 = vmatprep.subr.mxu0 0.0
    %2673 = vmatpush1.msra.mxu0 0.0
    %2674 = vmatprep.subr.mxu0 0.0
    %2675 = vmatpush1.msra.mxu0 0.0
    %2676 = vmatprep.subr.mxu0 0.0
    %2677 = vmatpush1.msra.mxu0 0.0
    %2678 = vmatprep.subr.mxu0 0.0
    %2679 = vmatpush1.msra.mxu0 0.0
    %2680 = vmatprep.subr.mxu0 0.0
    %2681 = vmatpush1.msra.mxu0 0.0
    %2682 = vmatprep.subr.mxu0 0.0
    %2683 = vmatpush1.msra.mxu0 0.0
    %2684 = vmatprep.subr.mxu0 0.0
    %2685 = vmatpush1.msra.mxu0 0.0
    %2686 = vmatprep.subr.mxu0 0.0
    %2687 = vmatpush1.msra.mxu0 0.0
    %2688 = vmatprep.subr.mxu0 0.0
    %2689 = vmatpush1.msra.mxu0 0.0
    %2690 = vmatprep.subr.mxu0 0.0
    %2691 = vmatpush1.msra.mxu0 0.0
    %2692 = vmatprep.subr.mxu0 0.0
    %2693 = vmatpush1.msra.mxu0 0.0
    %2694 = vmatprep.subr.mxu0 0.0
    %2695 = vmatpush1.msra.mxu0 0.0
    %2696 = vmatprep.subr.mxu0 0.0
    %2697 = vmatpush1.msra.mxu0 0.0
    %2698 = vmatprep.subr.mxu0 0.0
    %2699 = vmatpush1.msra.mxu0 0.0
    %2700 = vmatprep.subr.mxu0 0.0
    %2701 = vmatpush1.msra.mxu0 0.0
    %2702 = vmatprep.subr.mxu0 0.0
    %2703 = vmatpush1.msra.mxu0 0.0
    %2704 = vmatprep.mubr.f32.mxu0 0.0
    %2705 = vmatmul.mubr.f32.gmra.mrb[0].mxu0 %v2638
    %v2706 = vpop.f32.mrb[0].mxu0
    %v2707 = vadd.f32 0.0, %v2706
    %v2708 = vpop.f32.mrb[0].mxu0
    %2709 = vdwg.mxu0
    %v2710 = vrcp.pop %v2560
    %v2711 = vmul.f32 %v2556, %v2710
    %v2713 = vsel %vm1454, %v2711, 0
    %2715 = vmatprep.subr.mxu0 0.0
    %2716 = vmatpush1.msra.mxu0 %v1460
    %2717 = vmatprep.subr.mxu0 0.0
    %2718 = vmatpush1.msra.mxu0 0.0
    %2719 = vmatprep.subr.mxu0 0.0
    %2720 = vmatpush1.msra.mxu0 0.0
    %2721 = vmatprep.subr.mxu0 0.0
    %2722 = vmatpush1.msra.mxu0 0.0
    %2723 = vmatprep.subr.mxu0 0.0
    %2724 = vmatpush1.msra.mxu0 0.0
    %2725 = vmatprep.subr.mxu0 0.0
    %2726 = vmatpush1.msra.mxu0 0.0
    %2727 = vmatprep.subr.mxu0 0.0
    %2728 = vmatpush1.msra.mxu0 0.0
    %2729 = vmatprep.subr.mxu0 0.0
    %2730 = vmatpush1.msra.mxu0 0.0
    %2731 = vmatprep.subr.mxu0 0.0
    %2732 = vmatpush1.msra.mxu0 0.0
    %2733 = vmatprep.subr.mxu0 0.0
    %2734 = vmatpush1.msra.mxu0 0.0
    %2735 = vmatprep.subr.mxu0 0.0
    %2736 = vmatpush1.msra.mxu0 0.0
    %2737 = vmatprep.subr.mxu0 0.0
    %2738 = vmatpush1.msra.mxu0 0.0
    %2739 = vmatprep.subr.mxu0 0.0
    %2740 = vmatpush1.msra.mxu0 0.0
    %2741 = vmatprep.subr.mxu0 0.0
    %2742 = vmatpush1.msra.mxu0 0.0
    %2743 = vmatprep.subr.mxu0 0.0
    %2744 = vmatpush1.msra.mxu0 0.0
    %2745 = vmatprep.subr.mxu0 0.0
    %2746 = vmatpush1.msra.mxu0 0.0
    %2747 = vmatprep.subr.mxu0 0.0
    %2748 = vmatpush1.msra.mxu0 0.0
    %2749 = vmatprep.subr.mxu0 0.0
    %2750 = vmatpush1.msra.mxu0 0.0
    %2751 = vmatprep.subr.mxu0 0.0
    %2752 = vmatpush1.msra.mxu0 0.0
    %2753 = vmatprep.subr.mxu0 0.0
    %2754 = vmatpush1.msra.mxu0 0.0
    %2755 = vmatprep.subr.mxu0 0.0
    %2756 = vmatpush1.msra.mxu0 0.0
    %2757 = vmatprep.subr.mxu0 0.0
    %2758 = vmatpush1.msra.mxu0 0.0
    %2759 = vmatprep.subr.mxu0 0.0
    %2760 = vmatpush1.msra.mxu0 0.0
    %2761 = vmatprep.subr.mxu0 0.0
    %2762 = vmatpush1.msra.mxu0 0.0
    %2763 = vmatprep.subr.mxu0 0.0
    %2764 = vmatpush1.msra.mxu0 0.0
    %2765 = vmatprep.subr.mxu0 0.0
    %2766 = vmatpush1.msra.mxu0 0.0
    %2767 = vmatprep.subr.mxu0 0.0
    %2768 = vmatpush1.msra.mxu0 0.0
    %2769 = vmatprep.subr.mxu0 0.0
    %2770 = vmatpush1.msra.mxu0 0.0
    %2771 = vmatprep.subr.mxu0 0.0
    %2772 = vmatpush1.msra.mxu0 0.0
    %2773 = vmatprep.subr.mxu0 0.0
    %2774 = vmatpush1.msra.mxu0 0.0
    %2775 = vmatprep.subr.mxu0 0.0
    %2776 = vmatpush1.msra.mxu0 0.0
    %2777 = vmatprep.subr.mxu0 0.0
    %2778 = vmatpush1.msra.mxu0 0.0
    %2779 = vmatprep.mubr.f32.mxu0 0.0
    %2780 = vmatmul.mubr.f32.gmra.mrb[0].mxu0 %v2713
    %v2781 = vpop.f32.mrb[0].mxu0
    %v2782 = vadd.f32 0.0, %v2781
    %v2783 = vpop.f32.mrb[0].mxu0
    %2784 = vdwg.mxu0
    %v2785 = vmul.f32 %v2559, %v2710
    %v2787 = vsel %vm1454, %v2785, 0
    %2789 = vmatprep.subr.mxu0 0.0
    %2790 = vmatpush1.msra.mxu0 %v1460
    %2791 = vmatprep.subr.mxu0 0.0
    %2792 = vmatpush1.msra.mxu0 0.0
    %2793 = vmatprep.subr.mxu0 0.0
    %2794 = vmatpush1.msra.mxu0 0.0
    %2795 = vmatprep.subr.mxu0 0.0
    %2796 = vmatpush1.msra.mxu0 0.0
    %2797 = vmatprep.subr.mxu0 0.0
    %2798 = vmatpush1.msra.mxu0 0.0
    %2799 = vmatprep.subr.mxu0 0.0
    %2800 = vmatpush1.msra.mxu0 0.0
    %2801 = vmatprep.subr.mxu0 0.0
    %2802 = vmatpush1.msra.mxu0 0.0
    %2803 = vmatprep.subr.mxu0 0.0
    %2804 = vmatpush1.msra.mxu0 0.0
    %2805 = vmatprep.subr.mxu0 0.0
    %2806 = vmatpush1.msra.mxu0 0.0
    %2807 = vmatprep.subr.mxu0 0.0
    %2808 = vmatpush1.msra.mxu0 0.0
    %2809 = vmatprep.subr.mxu0 0.0
    %2810 = vmatpush1.msra.mxu0 0.0
    %2811 = vmatprep.subr.mxu0 0.0
    %2812 = vmatpush1.msra.mxu0 0.0
    %2813 = vmatprep.subr.mxu0 0.0
    %2814 = vmatpush1.msra.mxu0 0.0
    %2815 = vmatprep.subr.mxu0 0.0
    %2816 = vmatpush1.msra.mxu0 0.0
    %2817 = vmatprep.subr.mxu0 0.0
    %2818 = vmatpush1.msra.mxu0 0.0
    %2819 = vmatprep.subr.mxu0 0.0
    %2820 = vmatpush1.msra.mxu0 0.0
    %2821 = vmatprep.subr.mxu0 0.0
    %2822 = vmatpush1.msra.mxu0 0.0
    %2823 = vmatprep.subr.mxu0 0.0
    %2824 = vmatpush1.msra.mxu0 0.0
    %2825 = vmatprep.subr.mxu0 0.0
    %2826 = vmatpush1.msra.mxu0 0.0
    %2827 = vmatprep.subr.mxu0 0.0
    %2828 = vmatpush1.msra.mxu0 0.0
    %2829 = vmatprep.subr.mxu0 0.0
    %2830 = vmatpush1.msra.mxu0 0.0
    %2831 = vmatprep.subr.mxu0 0.0
    %2832 = vmatpush1.msra.mxu0 0.0
    %2833 = vmatprep.subr.mxu0 0.0
    %2834 = vmatpush1.msra.mxu0 0.0
    %2835 = vmatprep.subr.mxu0 0.0
    %2836 = vmatpush1.msra.mxu0 0.0
    %2837 = vmatprep.subr.mxu0 0.0
    %2838 = vmatpush1.msra.mxu0 0.0
    %2839 = vmatprep.subr.mxu0 0.0
    %2840 = vmatpush1.msra.mxu0 0.0
    %2841 = vmatprep.subr.mxu0 0.0
    %2842 = vmatpush1.msra.mxu0 0.0
    %2843 = vmatprep.subr.mxu0 0.0
    %2844 = vmatpush1.msra.mxu0 0.0
    %2845 = vmatprep.subr.mxu0 0.0
    %2846 = vmatpush1.msra.mxu0 0.0
    %2847 = vmatprep.subr.mxu0 0.0
    %2848 = vmatpush1.msra.mxu0 0.0
    %2849 = vmatprep.subr.mxu0 0.0
    %2850 = vmatpush1.msra.mxu0 0.0
    %2851 = vmatprep.subr.mxu0 0.0
    %2852 = vmatpush1.msra.mxu0 0.0
    %2853 = vmatprep.mubr.f32.mxu0 0.0
    %2854 = vmatmul.mubr.f32.gmra.mrb[0].mxu0 %v2787
    %v2855 = vpop.f32.mrb[0].mxu0
    %v2856 = vadd.f32 0.0, %v2855
    %v2857 = vpop.f32.mrb[0].mxu0
    %2858 = vdwg.mxu0
    %2859 = vrot.lane.b32.xlu0 %v2229, 64
    %v2860 = vpop.permute.xlu0 %2859
    %v2862 = vmul.f32 %v2633, %v2860
    %2863 = vrot.lane.b32.xlu0 %v2234, 64
    %v2864 = vpop.permute.xlu0 %2863
    %v2866 = vmul.f32 %v2707, %v2864
    %v2867 = vadd.f32 %v2862, %v2866
    %v2868 = vmul.f32 %v2782, %v2860
    %v2869 = vmul.f32 %v2856, %v2864
    %v2870 = vadd.f32 %v2868, %v2869
    %s2871 = scalar_lea.vmem %s10, 32
    %v2872 = vld [vmem:[%s2871] sm:$0xff]
    %v2873 = vld [vmem:[%s2871 + $0x8] sm:$0xff]
    %v2874 = vld [vmem:[%s2871 + $0x10] sm:$0xff]
    %v2875 = vld [vmem:[%s2871 + $0x18] sm:$0xff]
    %s2876 = scalar_lea.vmem %s11, 1
    %v2877 = vld [vmem:[%s2876] sm:$0x1]
    %v2879 = vlaneseq
    %v2880 = vshrl.u32 %v2879, 7
    %v2881 = vsub.s32 0, %v2880
    %v2882 = vrot.slane %v2877, %v2881
    %v2885 = vsel %vm950, %v2867, 0
    %v2888 = vsel %vm950, %v2870, 0
    %2890 = vmatprep.subr.mxu0 0.0
    %2891 = vmatpush1.msra.mxu0 %v2872
    %2892 = vmatprep.subr.mxu0 0.0
    %2893 = vmatpush1.msra.mxu0 %v2873
    %2894 = vmatprep.subr.mxu0 0.0
    %2895 = vmatpush1.msra.mxu0 %v2874
    %2896 = vmatprep.subr.mxu0 0.0
    %2897 = vmatpush1.msra.mxu0 %v2875
    %2898 = vmatprep.subr.mxu0 0.0
    %2899 = vmatpush1.msra.mxu0 0.0
    %2900 = vmatprep.subr.mxu0 0.0
    %2901 = vmatpush1.msra.mxu0 0.0
    %2902 = vmatprep.subr.mxu0 0.0
    %2903 = vmatpush1.msra.mxu0 0.0
    %2904 = vmatprep.subr.mxu0 0.0
    %2905 = vmatpush1.msra.mxu0 0.0
    %2906 = vmatprep.subr.mxu0 0.0
    %2907 = vmatpush1.msra.mxu0 0.0
    %2908 = vmatprep.subr.mxu0 0.0
    %2909 = vmatpush1.msra.mxu0 0.0
    %2910 = vmatprep.subr.mxu0 0.0
    %2911 = vmatpush1.msra.mxu0 0.0
    %2912 = vmatprep.subr.mxu0 0.0
    %2913 = vmatpush1.msra.mxu0 0.0
    %2914 = vmatprep.subr.mxu0 0.0
    %2915 = vmatpush1.msra.mxu0 0.0
    %2916 = vmatprep.subr.mxu0 0.0
    %2917 = vmatpush1.msra.mxu0 0.0
    %2918 = vmatprep.subr.mxu0 0.0
    %2919 = vmatpush1.msra.mxu0 0.0
    %2920 = vmatprep.subr.mxu0 0.0
    %2921 = vmatpush1.msra.mxu0 0.0
    %2922 = vmatprep.subr.mxu0 0.0
    %2923 = vmatpush1.msra.mxu0 0.0
    %2924 = vmatprep.subr.mxu0 0.0
    %2925 = vmatpush1.msra.mxu0 0.0
    %2926 = vmatprep.subr.mxu0 0.0
    %2927 = vmatpush1.msra.mxu0 0.0
    %2928 = vmatprep.subr.mxu0 0.0
    %2929 = vmatpush1.msra.mxu0 0.0
    %2930 = vmatprep.subr.mxu0 0.0
    %2931 = vmatpush1.msra.mxu0 0.0
    %2932 = vmatprep.subr.mxu0 0.0
    %2933 = vmatpush1.msra.mxu0 0.0
    %2934 = vmatprep.subr.mxu0 0.0
    %2935 = vmatpush1.msra.mxu0 0.0
    %2936 = vmatprep.subr.mxu0 0.0
    %2937 = vmatpush1.msra.mxu0 0.0
    %2938 = vmatprep.subr.mxu0 0.0
    %2939 = vmatpush1.msra.mxu0 0.0
    %2940 = vmatprep.subr.mxu0 0.0
    %2941 = vmatpush1.msra.mxu0 0.0
    %2942 = vmatprep.subr.mxu0 0.0
    %2943 = vmatpush1.msra.mxu0 0.0
    %2944 = vmatprep.subr.mxu0 0.0
    %2945 = vmatpush1.msra.mxu0 0.0
    %2946 = vmatprep.subr.mxu0 0.0
    %2947 = vmatpush1.msra.mxu0 0.0
    %2948 = vmatprep.subr.mxu0 0.0
    %2949 = vmatpush1.msra.mxu0 0.0
    %2950 = vmatprep.subr.mxu0 0.0
    %2951 = vmatpush1.msra.mxu0 0.0
    %2952 = vmatprep.subr.mxu0 0.0
    %2953 = vmatpush1.msra.mxu0 0.0
    %2954 = vmatprep.mubr.f32.mxu0 0.0
    %2955 = vmatmul.mubr.f32.gmra.mrb[0].mxu0 %v2885
    %v2956 = vpop.f32.mrb[0].mxu0
    %v2957 = vadd.f32 %v2882, %v2956
    %v2958 = vpop.f32.mrb[0].mxu0
    %2959 = vmatprep.mubr.f32.mxu0 0.0
    %2960 = vmatmul.mubr.f32.gmra.mrb[0].mxu0 %v2888
    %v2961 = vpop.f32.mrb[0].mxu0
    %v2962 = vadd.f32 %v2882, %v2961
    %v2963 = vpop.f32.mrb[0].mxu0
    %2964 = vdwg.mxu0
    %v2965 = vadd.f32 %v2141, %v2957
    %v2966 = vadd.f32 %v2142, %v2962
    %s2967 = scalar_lea.vmem %s12, 1
    %v2968 = vld [vmem:[%s2967] sm:$0x1]
    %s2969 = scalar_lea.vmem %s13, 1
    %v2970 = vld [vmem:[%s2969] sm:$0x1]
    %v2971 = vsel %vm950, %v2965, 0.0
    %2972 = vadd.xlane.f32.xlu0 %v2971
    %v2973 = vpop.xlane.xlu0 %2972
    %v2974 = vsel %vm950, %v2966, 0.0
    %2975 = vadd.xlane.f32.xlu0 %v2974
    %v2976 = vpop.xlane.xlu0 %2975
    %v2977 = vmul.f32 %v2973, %v1869
    %v2978 = vmul.f32 %v2976, %v1869
    %v2979 = vsub.f32 %v2965, %v2977
    %v2980 = vsub.f32 %v2966, %v2978
    %v2981 = vmul.f32 %v2979, %v2979
    %v2982 = vmul.f32 %v2980, %v2980
    %v2983 = vsel %vm950, %v2981, 0.0
    %2984 = vadd.xlane.f32.xlu0 %v2983
    %v2985 = vpop.xlane.xlu0 %2984
    %v2986 = vsel %vm950, %v2982, 0.0
    %2987 = vadd.xlane.f32.xlu0 %v2986
    %v2988 = vpop.xlane.xlu0 %2987
    %v2989 = vmul.f32 %v2985, %v1869
    %v2990 = vmul.f32 %v2988, %v1869
    %v2991 = vadd.f32 %v2989, 1e-05
    %v2992 = vadd.f32 %v2990, 1e-05
    %v2993 = vrsqrt.pop %v2991
    %v2994 = vrsqrt.pop %v2992
    %v2995 = vmul.f32 %v2979, %v2993
    %v2996 = vmul.f32 %v2980, %v2994
    %v2998 = vlaneseq
    %v2999 = vshrl.u32 %v2998, 7
    %v3000 = vsub.s32 0, %v2999
    %v3001 = vrot.slane %v2968, %v3000
    %v3003 = vmul.f32 %v2995, %v3001
    %v3004 = vmul.f32 %v2996, %v3001
    %v3006 = vlaneseq
    %v3007 = vshrl.u32 %v3006, 7
    %v3008 = vsub.s32 0, %v3007
    %v3009 = vrot.slane %v2970, %v3008
    %v3011 = vadd.f32 %v3003, %v3009
    %v3012 = vadd.f32 %v3004, %v3009
    %s3013 = scalar_lea.vmem %s14, 32
    %v3014 = vld [vmem:[%s3013] sm:$0xff]
    %v3015 = vld [vmem:[%s3013 + $0x8] sm:$0xff]
    %v3016 = vld [vmem:[%s3013 + $0x10] sm:$0xff]
    %v3017 = vld [vmem:[%s3013 + $0x18] sm:$0xff]
    %s3018 = scalar_lea.vmem %s15, 1
    %v3019 = vld [vmem:[%s3018] sm:$0x1]
    %v3021 = vlaneseq
    %v3022 = vshrl.u32 %v3021, 7
    %v3023 = vsub.s32 0, %v3022
    %v3024 = vrot.slane %v3019, %v3023
    %v3027 = vsel %vm950, %v3011, 0
    %v3030 = vsel %vm950, %v3012, 0
    %3032 = vmatprep.subr.mxu0 0.0
    %3033 = vmatpush1.msra.mxu0 %v3014
    %3034 = vmatprep.subr.mxu0 0.0
    %3035 = vmatpush1.msra.mxu0 %v3015
    %3036 = vmatprep.subr.mxu0 0.0
    %3037 = vmatpush1.msra.mxu0 %v3016
    %3038 = vmatprep.subr.mxu0 0.0
    %3039 = vmatpush1.msra.mxu0 %v3017
    %3040 = vmatprep.subr.mxu0 0.0
    %3041 = vmatpush1.msra.mxu0 0.0
    %3042 = vmatprep.subr.mxu0 0.0
    %3043 = vmatpush1.msra.mxu0 0.0
    %3044 = vmatprep.subr.mxu0 0.0
    %3045 = vmatpush1.msra.mxu0 0.0
    %3046 = vmatprep.subr.mxu0 0.0
    %3047 = vmatpush1.msra.mxu0 0.0
    %3048 = vmatprep.subr.mxu0 0.0
    %3049 = vmatpush1.msra.mxu0 0.0
    %3050 = vmatprep.subr.mxu0 0.0
    %3051 = vmatpush1.msra.mxu0 0.0
    %3052 = vmatprep.subr.mxu0 0.0
    %3053 = vmatpush1.msra.mxu0 0.0
    %3054 = vmatprep.subr.mxu0 0.0
    %3055 = vmatpush1.msra.mxu0 0.0
    %3056 = vmatprep.subr.mxu0 0.0
    %3057 = vmatpush1.msra.mxu0 0.0
    %3058 = vmatprep.subr.mxu0 0.0
    %3059 = vmatpush1.msra.mxu0 0.0
    %3060 = vmatprep.subr.mxu0 0.0
    %3061 = vmatpush1.msra.mxu0 0.0
    %3062 = vmatprep.subr.mxu0 0.0
    %3063 = vmatpush1.msra.mxu0 0.0
    %3064 = vmatprep.subr.mxu0 0.0
    %3065 = vmatpush1.msra.mxu0 0.0
    %3066 = vmatprep.subr.mxu0 0.0
    %3067 = vmatpush1.msra.mxu0 0.0
    %3068 = vmatprep.subr.mxu0 0.0
    %3069 = vmatpush1.msra.mxu0 0.0
    %3070 = vmatprep.subr.mxu0 0.0
    %3071 = vmatpush1.msra.mxu0 0.0
    %3072 = vmatprep.subr.mxu0 0.0
    %3073 = vmatpush1.msra.mxu0 0.0
    %3074 = vmatprep.subr.mxu0 0.0
    %3075 = vmatpush1.msra.mxu0 0.0
    %3076 = vmatprep.subr.mxu0 0.0
    %3077 = vmatpush1.msra.mxu0 0.0
    %3078 = vmatprep.subr.mxu0 0.0
    %3079 = vmatpush1.msra.mxu0 0.0
    %3080 = vmatprep.subr.mxu0 0.0
    %3081 = vmatpush1.msra.mxu0 0.0
    %3082 = vmatprep.subr.mxu0 0.0
    %3083 = vmatpush1.msra.mxu0 0.0
    %3084 = vmatprep.subr.mxu0 0.0
    %3085 = vmatpush1.msra.mxu0 0.0
    %3086 = vmatprep.subr.mxu0 0.0
    %3087 = vmatpush1.msra.mxu0 0.0
    %3088 = vmatprep.subr.mxu0 0.0
    %3089 = vmatpush1.msra.mxu0 0.0
    %3090 = vmatprep.subr.mxu0 0.0
    %3091 = vmatpush1.msra.mxu0 0.0
    %3092 = vmatprep.subr.mxu0 0.0
    %3093 = vmatpush1.msra.mxu0 0.0
    %3094 = vmatprep.subr.mxu0 0.0
    %3095 = vmatpush1.msra.mxu0 0.0
    %3096 = vmatprep.mubr.f32.mxu0 0.0
    %3097 = vmatmul.mubr.f32.gmra.mrb[0].mxu0 %v3027
    %v3098 = vpop.f32.mrb[0].mxu0
    %v3099 = vadd.f32 %v3024, %v3098
    %v3100 = vpop.f32.mrb[0].mxu0
    %3101 = vmatprep.mubr.f32.mxu0 0.0
    %3102 = vmatmul.mubr.f32.gmra.mrb[0].mxu0 %v3030
    %v3103 = vpop.f32.mrb[0].mxu0
    %v3104 = vadd.f32 %v3024, %v3103
    %v3105 = vpop.f32.mrb[0].mxu0
    %3106 = vdwg.mxu0
    %v3107 = vmax.f32 %v3099, 0.0
    %v3108 = vmax.f32 %v3104, 0.0
    %s3109 = scalar_lea.vmem %s16, 64
    %v3110 = vld [vmem:[%s3109] sm:$0xff]
    %v3111 = vld [vmem:[%s3109 + $0x8] sm:$0xff]
    %v3112 = vld [vmem:[%s3109 + $0x10] sm:$0xff]
    %v3113 = vld [vmem:[%s3109 + $0x18] sm:$0xff]
    %v3114 = vld [vmem:[%s3109 + $0x20] sm:$0xff]
    %v3115 = vld [vmem:[%s3109 + $0x28] sm:$0xff]
    %v3116 = vld [vmem:[%s3109 + $0x30] sm:$0xff]
    %v3117 = vld [vmem:[%s3109 + $0x38] sm:$0xff]
    %s3118 = scalar_lea.vmem %s17, 1
    %v3119 = vld [vmem:[%s3118] sm:$0x1]
    %v3121 = vlaneseq
    %v3122 = vshrl.u32 %v3121, 7
    %v3123 = vsub.s32 0, %v3122
    %v3124 = vrot.slane %v3119, %v3123
    %v3127 = vsel %vm2015, %v3107, 0
    %v3130 = vsel %vm2015, %v3108, 0
    %3132 = vmatprep.subr.mxu0 0.0
    %3133 = vmatpush1.msra.mxu0 %v3110
    %3134 = vmatprep.subr.mxu0 0.0
    %3135 = vmatpush1.msra.mxu0 %v3111
    %3136 = vmatprep.subr.mxu0 0.0
    %3137 = vmatpush1.msra.mxu0 %v3112
    %3138 = vmatprep.subr.mxu0 0.0
    %3139 = vmatpush1.msra.mxu0 %v3113
    %3140 = vmatprep.subr.mxu0 0.0
    %3141 = vmatpush1.msra.mxu0 %v3114
    %3142 = vmatprep.subr.mxu0 0.0
    %3143 = vmatpush1.msra.mxu0 %v3115
    %3144 = vmatprep.subr.mxu0 0.0
    %3145 = vmatpush1.msra.mxu0 %v3116
    %3146 = vmatprep.subr.mxu0 0.0
    %3147 = vmatpush1.msra.mxu0 %v3117
    %3148 = vmatprep.subr.mxu0 0.0
    %3149 = vmatpush1.msra.mxu0 0.0
    %3150 = vmatprep.subr.mxu0 0.0
    %3151 = vmatpush1.msra.mxu0 0.0
    %3152 = vmatprep.subr.mxu0 0.0
    %3153 = vmatpush1.msra.mxu0 0.0
    %3154 = vmatprep.subr.mxu0 0.0
    %3155 = vmatpush1.msra.mxu0 0.0
    %3156 = vmatprep.subr.mxu0 0.0
    %3157 = vmatpush1.msra.mxu0 0.0
    %3158 = vmatprep.subr.mxu0 0.0
    %3159 = vmatpush1.msra.mxu0 0.0
    %3160 = vmatprep.subr.mxu0 0.0
    %3161 = vmatpush1.msra.mxu0 0.0
    %3162 = vmatprep.subr.mxu0 0.0
    %3163 = vmatpush1.msra.mxu0 0.0
    %3164 = vmatprep.subr.mxu0 0.0
    %3165 = vmatpush1.msra.mxu0 0.0
    %3166 = vmatprep.subr.mxu0 0.0
    %3167 = vmatpush1.msra.mxu0 0.0
    %3168 = vmatprep.subr.mxu0 0.0
    %3169 = vmatpush1.msra.mxu0 0.0
    %3170 = vmatprep.subr.mxu0 0.0
    %3171 = vmatpush1.msra.mxu0 0.0
    %3172 = vmatprep.subr.mxu0 0.0
    %3173 = vmatpush1.msra.mxu0 0.0
    %3174 = vmatprep.subr.mxu0 0.0
    %3175 = vmatpush1.msra.mxu0 0.0
    %3176 = vmatprep.subr.mxu0 0.0
    %3177 = vmatpush1.msra.mxu0 0.0
    %3178 = vmatprep.subr.mxu0 0.0
    %3179 = vmatpush1.msra.mxu0 0.0
    %3180 = vmatprep.subr.mxu0 0.0
    %3181 = vmatpush1.msra.mxu0 0.0
    %3182 = vmatprep.subr.mxu0 0.0
    %3183 = vmatpush1.msra.mxu0 0.0
    %3184 = vmatprep.subr.mxu0 0.0
    %3185 = vmatpush1.msra.mxu0 0.0
    %3186 = vmatprep.subr.mxu0 0.0
    %3187 = vmatpush1.msra.mxu0 0.0
    %3188 = vmatprep.subr.mxu0 0.0
    %3189 = vmatpush1.msra.mxu0 0.0
    %3190 = vmatprep.subr.mxu0 0.0
    %3191 = vmatpush1.msra.mxu0 0.0
    %3192 = vmatprep.subr.mxu0 0.0
    %3193 = vmatpush1.msra.mxu0 0.0
    %3194 = vmatprep.subr.mxu0 0.0
    %3195 = vmatpush1.msra.mxu0 0.0
    %3196 = vmatprep.mubr.f32.mxu0 0.0
    %3197 = vmatmul.mubr.f32.gmra.mrb[0].mxu0 %v3127
    %v3198 = vpop.f32.mrb[0].mxu0
    %v3199 = vadd.f32 %v3124, %v3198
    %v3200 = vpop.f32.mrb[0].mxu0
    %3201 = vmatprep.mubr.f32.mxu0 0.0
    %3202 = vmatmul.mubr.f32.gmra.mrb[0].mxu0 %v3130
    %v3203 = vpop.f32.mrb[0].mxu0
    %v3204 = vadd.f32 %v3124, %v3203
    %v3205 = vpop.f32.mrb[0].mxu0
    %3206 = vdwg.mxu0
    %v3207 = vadd.f32 %v3011, %v3199
    %v3208 = vadd.f32 %v3012, %v3204
    %s3209 = scalar_lea.vmem %s18, 1
    %v3210 = vld [vmem:[%s3209] sm:$0x1]
    %s3211 = scalar_lea.vmem %s19, 1
    %v3212 = vld [vmem:[%s3211] sm:$0x1]
    %v3213 = vsel %vm950, %v3207, 0.0
    %3214 = vadd.xlane.f32.xlu0 %v3213
    %v3215 = vpop.xlane.xlu0 %3214
    %v3216 = vsel %vm950, %v3208, 0.0
    %3217 = vadd.xlane.f32.xlu0 %v3216
    %v3218 = vpop.xlane.xlu0 %3217
    %v3219 = vmul.f32 %v3215, %v1869
    %v3220 = vmul.f32 %v3218, %v1869
    %v3221 = vsub.f32 %v3207, %v3219
    %v3222 = vsub.f32 %v3208, %v3220
    %v3223 = vmul.f32 %v3221, %v3221
    %v3224 = vmul.f32 %v3222, %v3222
    %v3225 = vsel %vm950, %v3223, 0.0
    %3226 = vadd.xlane.f32.xlu0 %v3225
    %v3227 = vpop.xlane.xlu0 %3226
    %v3228 = vsel %vm950, %v3224, 0.0
    %3229 = vadd.xlane.f32.xlu0 %v3228
    %v3230 = vpop.xlane.xlu0 %3229
    %v3231 = vmul.f32 %v3227, %v1869
    %v3232 = vmul.f32 %v3230, %v1869
    %v3233 = vadd.f32 %v3231, 1e-05
    %v3234 = vadd.f32 %v3232, 1e-05
    %v3235 = vrsqrt.pop %v3233
    %v3236 = vrsqrt.pop %v3234
    %v3237 = vmul.f32 %v3221, %v3235
    %v3238 = vmul.f32 %v3222, %v3236
    %v3240 = vlaneseq
    %v3241 = vshrl.u32 %v3240, 7
    %v3242 = vsub.s32 0, %v3241
    %v3243 = vrot.slane %v3210, %v3242
    %v3245 = vmul.f32 %v3237, %v3243
    %v3246 = vmul.f32 %v3238, %v3243
    %v3248 = vlaneseq
    %v3249 = vshrl.u32 %v3248, 7
    %v3250 = vsub.s32 0, %v3249
    %v3251 = vrot.slane %v3212, %v3250
    %v3253 = vadd.f32 %v3245, %v3251
    %v3254 = vadd.f32 %v3246, %v3251
    %s3255 = scalar_lea.vmem %s8, 64
    %v3256 = vld [vmem:[%s3255] sm:$0xff]
    %v3257 = vld [vmem:[%s3255 + $0x8] sm:$0xff]
    %v3258 = vld [vmem:[%s3255 + $0x10] sm:$0xff]
    %v3259 = vld [vmem:[%s3255 + $0x18] sm:$0xff]
    %s3260 = scalar_lea.vmem %s9, 2
    %v3261 = vld [vmem:[%s3260] sm:$0x1]
    %v3263 = vlaneseq
    %v3264 = vshrl.u32 %v3263, 7
    %v3265 = vsub.s32 0, %v3264
    %v3266 = vrot.slane %v3261, %v3265
    %v3269 = vsel %vm950, %v3253, 0
    %v3272 = vsel %vm950, %v3254, 0
    %3274 = vmatprep.subr.mxu0 0.0
    %3275 = vmatpush1.msra.mxu0 %v3256
    %3276 = vmatprep.subr.mxu0 0.0
    %3277 = vmatpush1.msra.mxu0 %v3257
    %3278 = vmatprep.subr.mxu0 0.0
    %3279 = vmatpush1.msra.mxu0 %v3258
    %3280 = vmatprep.subr.mxu0 0.0
    %3281 = vmatpush1.msra.mxu0 %v3259
    %3282 = vmatprep.subr.mxu0 0.0
    %3283 = vmatpush1.msra.mxu0 0.0
    %3284 = vmatprep.subr.mxu0 0.0
    %3285 = vmatpush1.msra.mxu0 0.0
    %3286 = vmatprep.subr.mxu0 0.0
    %3287 = vmatpush1.msra.mxu0 0.0
    %3288 = vmatprep.subr.mxu0 0.0
    %3289 = vmatpush1.msra.mxu0 0.0
    %3290 = vmatprep.subr.mxu0 0.0
    %3291 = vmatpush1.msra.mxu0 0.0
    %3292 = vmatprep.subr.mxu0 0.0
    %3293 = vmatpush1.msra.mxu0 0.0
    %3294 = vmatprep.subr.mxu0 0.0
    %3295 = vmatpush1.msra.mxu0 0.0
    %3296 = vmatprep.subr.mxu0 0.0
    %3297 = vmatpush1.msra.mxu0 0.0
    %3298 = vmatprep.subr.mxu0 0.0
    %3299 = vmatpush1.msra.mxu0 0.0
    %3300 = vmatprep.subr.mxu0 0.0
    %3301 = vmatpush1.msra.mxu0 0.0
    %3302 = vmatprep.subr.mxu0 0.0
    %3303 = vmatpush1.msra.mxu0 0.0
    %3304 = vmatprep.subr.mxu0 0.0
    %3305 = vmatpush1.msra.mxu0 0.0
    %3306 = vmatprep.subr.mxu0 0.0
    %3307 = vmatpush1.msra.mxu0 0.0
    %3308 = vmatprep.subr.mxu0 0.0
    %3309 = vmatpush1.msra.mxu0 0.0
    %3310 = vmatprep.subr.mxu0 0.0
    %3311 = vmatpush1.msra.mxu0 0.0
    %3312 = vmatprep.subr.mxu0 0.0
    %3313 = vmatpush1.msra.mxu0 0.0
    %3314 = vmatprep.subr.mxu0 0.0
    %3315 = vmatpush1.msra.mxu0 0.0
    %3316 = vmatprep.subr.mxu0 0.0
    %3317 = vmatpush1.msra.mxu0 0.0
    %3318 = vmatprep.subr.mxu0 0.0
    %3319 = vmatpush1.msra.mxu0 0.0
    %3320 = vmatprep.subr.mxu0 0.0
    %3321 = vmatpush1.msra.mxu0 0.0
    %3322 = vmatprep.subr.mxu0 0.0
    %3323 = vmatpush1.msra.mxu0 0.0
    %3324 = vmatprep.subr.mxu0 0.0
    %3325 = vmatpush1.msra.mxu0 0.0
    %3326 = vmatprep.subr.mxu0 0.0
    %3327 = vmatpush1.msra.mxu0 0.0
    %3328 = vmatprep.subr.mxu0 0.0
    %3329 = vmatpush1.msra.mxu0 0.0
    %3330 = vmatprep.subr.mxu0 0.0
    %3331 = vmatpush1.msra.mxu0 0.0
    %3332 = vmatprep.subr.mxu0 0.0
    %3333 = vmatpush1.msra.mxu0 0.0
    %3334 = vmatprep.subr.mxu0 0.0
    %3335 = vmatpush1.msra.mxu0 0.0
    %3336 = vmatprep.subr.mxu0 0.0
    %3337 = vmatpush1.msra.mxu0 0.0
    %3338 = vmatprep.mubr.f32.mxu0 0.0
    %3339 = vmatmul.mubr.f32.gmra.mrb[0].mxu0 %v3269
    %v3340 = vpop.f32.mrb[0].mxu0
    %v3341 = vadd.f32 %v3266, %v3340
    %v3342 = vpop.f32.mrb[0].mxu0
    %3343 = vmatprep.mubr.f32.mxu0 0.0
    %3344 = vmatmul.mubr.f32.gmra.mrb[0].mxu0 %v3272
    %v3345 = vpop.f32.mrb[0].mxu0
    %v3346 = vadd.f32 %v3266, %v3345
    %v3347 = vpop.f32.mrb[0].mxu0
    %3348 = vdwg.mxu0
    %3350 = vrot.lane.b32.xlu0 %v3341, 96
    %v3351 = vpop.permute.xlu0 %3350
    %v3353 = vmul.f32 %v3341, %v3351
    %v3355 = vsel %vm950, %v3353, 0
    %3357 = vmatprep.subr.mxu0 0.0
    %3358 = vmatpush1.msra.mxu0 %v928
    %3359 = vmatprep.subr.mxu0 0.0
    %3360 = vmatpush1.msra.mxu0 %v929
    %3361 = vmatprep.subr.mxu0 0.0
    %3362 = vmatpush1.msra.mxu0 %v930
    %3363 = vmatprep.subr.mxu0 0.0
    %3364 = vmatpush1.msra.mxu0 %v931
    %3365 = vmatprep.subr.mxu0 0.0
    %3366 = vmatpush1.msra.mxu0 0.0
    %3367 = vmatprep.subr.mxu0 0.0
    %3368 = vmatpush1.msra.mxu0 0.0
    %3369 = vmatprep.subr.mxu0 0.0
    %3370 = vmatpush1.msra.mxu0 0.0
    %3371 = vmatprep.subr.mxu0 0.0
    %3372 = vmatpush1.msra.mxu0 0.0
    %3373 = vmatprep.subr.mxu0 0.0
    %3374 = vmatpush1.msra.mxu0 0.0
    %3375 = vmatprep.subr.mxu0 0.0
    %3376 = vmatpush1.msra.mxu0 0.0
    %3377 = vmatprep.subr.mxu0 0.0
    %3378 = vmatpush1.msra.mxu0 0.0
    %3379 = vmatprep.subr.mxu0 0.0
    %3380 = vmatpush1.msra.mxu0 0.0
    %3381 = vmatprep.subr.mxu0 0.0
    %3382 = vmatpush1.msra.mxu0 0.0
    %3383 = vmatprep.subr.mxu0 0.0
    %3384 = vmatpush1.msra.mxu0 0.0
    %3385 = vmatprep.subr.mxu0 0.0
    %3386 = vmatpush1.msra.mxu0 0.0
    %3387 = vmatprep.subr.mxu0 0.0
    %3388 = vmatpush1.msra.mxu0 0.0
    %3389 = vmatprep.subr.mxu0 0.0
    %3390 = vmatpush1.msra.mxu0 0.0
    %3391 = vmatprep.subr.mxu0 0.0
    %3392 = vmatpush1.msra.mxu0 0.0
    %3393 = vmatprep.subr.mxu0 0.0
    %3394 = vmatpush1.msra.mxu0 0.0
    %3395 = vmatprep.subr.mxu0 0.0
    %3396 = vmatpush1.msra.mxu0 0.0
    %3397 = vmatprep.subr.mxu0 0.0
    %3398 = vmatpush1.msra.mxu0 0.0
    %3399 = vmatprep.subr.mxu0 0.0
    %3400 = vmatpush1.msra.mxu0 0.0
    %3401 = vmatprep.subr.mxu0 0.0
    %3402 = vmatpush1.msra.mxu0 0.0
    %3403 = vmatprep.subr.mxu0 0.0
    %3404 = vmatpush1.msra.mxu0 0.0
    %3405 = vmatprep.subr.mxu0 0.0
    %3406 = vmatpush1.msra.mxu0 0.0
    %3407 = vmatprep.subr.mxu0 0.0
    %3408 = vmatpush1.msra.mxu0 0.0
    %3409 = vmatprep.subr.mxu0 0.0
    %3410 = vmatpush1.msra.mxu0 0.0
    %3411 = vmatprep.subr.mxu0 0.0
    %3412 = vmatpush1.msra.mxu0 0.0
    %3413 = vmatprep.subr.mxu0 0.0
    %3414 = vmatpush1.msra.mxu0 0.0
    %3415 = vmatprep.subr.mxu0 0.0
    %3416 = vmatpush1.msra.mxu0 0.0
    %3417 = vmatprep.subr.mxu0 0.0
    %3418 = vmatpush1.msra.mxu0 0.0
    %3419 = vmatprep.subr.mxu0 0.0
    %3420 = vmatpush1.msra.mxu0 0.0
    %3421 = vmatprep.mubr.f32.mxu0 0.0
    %3422 = vmatmul.mubr.f32.gmra.mrb[0].mxu0 %v3355
    %v3423 = vpop.f32.mrb[0].mxu0
    %v3424 = vadd.f32 0.0, %v3423
    %v3425 = vpop.f32.mrb[0].mxu0
    %3426 = vdwg.mxu0
    %v3427 = vmul.f32 %v3424, 0.35355338
    %3429 = vrot.lane.b32.xlu0 %v3346, 96
    %v3430 = vpop.permute.xlu0 %3429
    %v3432 = vmul.f32 %v3341, %v3430
    %v3434 = vsel %vm950, %v3432, 0
    %3436 = vmatprep.subr.mxu0 0.0
    %3437 = vmatpush1.msra.mxu0 %v928
    %3438 = vmatprep.subr.mxu0 0.0
    %3439 = vmatpush1.msra.mxu0 %v929
    %3440 = vmatprep.subr.mxu0 0.0
    %3441 = vmatpush1.msra.mxu0 %v930
    %3442 = vmatprep.subr.mxu0 0.0
    %3443 = vmatpush1.msra.mxu0 %v931
    %3444 = vmatprep.subr.mxu0 0.0
    %3445 = vmatpush1.msra.mxu0 0.0
    %3446 = vmatprep.subr.mxu0 0.0
    %3447 = vmatpush1.msra.mxu0 0.0
    %3448 = vmatprep.subr.mxu0 0.0
    %3449 = vmatpush1.msra.mxu0 0.0
    %3450 = vmatprep.subr.mxu0 0.0
    %3451 = vmatpush1.msra.mxu0 0.0
    %3452 = vmatprep.subr.mxu0 0.0
    %3453 = vmatpush1.msra.mxu0 0.0
    %3454 = vmatprep.subr.mxu0 0.0
    %3455 = vmatpush1.msra.mxu0 0.0
    %3456 = vmatprep.subr.mxu0 0.0
    %3457 = vmatpush1.msra.mxu0 0.0
    %3458 = vmatprep.subr.mxu0 0.0
    %3459 = vmatpush1.msra.mxu0 0.0
    %3460 = vmatprep.subr.mxu0 0.0
    %3461 = vmatpush1.msra.mxu0 0.0
    %3462 = vmatprep.subr.mxu0 0.0
    %3463 = vmatpush1.msra.mxu0 0.0
    %3464 = vmatprep.subr.mxu0 0.0
    %3465 = vmatpush1.msra.mxu0 0.0
    %3466 = vmatprep.subr.mxu0 0.0
    %3467 = vmatpush1.msra.mxu0 0.0
    %3468 = vmatprep.subr.mxu0 0.0
    %3469 = vmatpush1.msra.mxu0 0.0
    %3470 = vmatprep.subr.mxu0 0.0
    %3471 = vmatpush1.msra.mxu0 0.0
    %3472 = vmatprep.subr.mxu0 0.0
    %3473 = vmatpush1.msra.mxu0 0.0
    %3474 = vmatprep.subr.mxu0 0.0
    %3475 = vmatpush1.msra.mxu0 0.0
    %3476 = vmatprep.subr.mxu0 0.0
    %3477 = vmatpush1.msra.mxu0 0.0
    %3478 = vmatprep.subr.mxu0 0.0
    %3479 = vmatpush1.msra.mxu0 0.0
    %3480 = vmatprep.subr.mxu0 0.0
    %3481 = vmatpush1.msra.mxu0 0.0
    %3482 = vmatprep.subr.mxu0 0.0
    %3483 = vmatpush1.msra.mxu0 0.0
    %3484 = vmatprep.subr.mxu0 0.0
    %3485 = vmatpush1.msra.mxu0 0.0
    %3486 = vmatprep.subr.mxu0 0.0
    %3487 = vmatpush1.msra.mxu0 0.0
    %3488 = vmatprep.subr.mxu0 0.0
    %3489 = vmatpush1.msra.mxu0 0.0
    %3490 = vmatprep.subr.mxu0 0.0
    %3491 = vmatpush1.msra.mxu0 0.0
    %3492 = vmatprep.subr.mxu0 0.0
    %3493 = vmatpush1.msra.mxu0 0.0
    %3494 = vmatprep.subr.mxu0 0.0
    %3495 = vmatpush1.msra.mxu0 0.0
    %3496 = vmatprep.subr.mxu0 0.0
    %3497 = vmatpush1.msra.mxu0 0.0
    %3498 = vmatprep.subr.mxu0 0.0
    %3499 = vmatpush1.msra.mxu0 0.0
    %3500 = vmatprep.mubr.f32.mxu0 0.0
    %3501 = vmatmul.mubr.f32.gmra.mrb[0].mxu0 %v3434
    %v3502 = vpop.f32.mrb[0].mxu0
    %v3503 = vadd.f32 0.0, %v3502
    %v3504 = vpop.f32.mrb[0].mxu0
    %3505 = vdwg.mxu0
    %v3506 = vmul.f32 %v3503, 0.35355338
    %v3507 = vmul.f32 %v3346, %v3351
    %v3509 = vsel %vm950, %v3507, 0
    %3511 = vmatprep.subr.mxu0 0.0
    %3512 = vmatpush1.msra.mxu0 %v928
    %3513 = vmatprep.subr.mxu0 0.0
    %3514 = vmatpush1.msra.mxu0 %v929
    %3515 = vmatprep.subr.mxu0 0.0
    %3516 = vmatpush1.msra.mxu0 %v930
    %3517 = vmatprep.subr.mxu0 0.0
    %3518 = vmatpush1.msra.mxu0 %v931
    %3519 = vmatprep.subr.mxu0 0.0
    %3520 = vmatpush1.msra.mxu0 0.0
    %3521 = vmatprep.subr.mxu0 0.0
    %3522 = vmatpush1.msra.mxu0 0.0
    %3523 = vmatprep.subr.mxu0 0.0
    %3524 = vmatpush1.msra.mxu0 0.0
    %3525 = vmatprep.subr.mxu0 0.0
    %3526 = vmatpush1.msra.mxu0 0.0
    %3527 = vmatprep.subr.mxu0 0.0
    %3528 = vmatpush1.msra.mxu0 0.0
    %3529 = vmatprep.subr.mxu0 0.0
    %3530 = vmatpush1.msra.mxu0 0.0
    %3531 = vmatprep.subr.mxu0 0.0
    %3532 = vmatpush1.msra.mxu0 0.0
    %3533 = vmatprep.subr.mxu0 0.0
    %3534 = vmatpush1.msra.mxu0 0.0
    %3535 = vmatprep.subr.mxu0 0.0
    %3536 = vmatpush1.msra.mxu0 0.0
    %3537 = vmatprep.subr.mxu0 0.0
    %3538 = vmatpush1.msra.mxu0 0.0
    %3539 = vmatprep.subr.mxu0 0.0
    %3540 = vmatpush1.msra.mxu0 0.0
    %3541 = vmatprep.subr.mxu0 0.0
    %3542 = vmatpush1.msra.mxu0 0.0
    %3543 = vmatprep.subr.mxu0 0.0
    %3544 = vmatpush1.msra.mxu0 0.0
    %3545 = vmatprep.subr.mxu0 0.0
    %3546 = vmatpush1.msra.mxu0 0.0
    %3547 = vmatprep.subr.mxu0 0.0
    %3548 = vmatpush1.msra.mxu0 0.0
    %3549 = vmatprep.subr.mxu0 0.0
    %3550 = vmatpush1.msra.mxu0 0.0
    %3551 = vmatprep.subr.mxu0 0.0
    %3552 = vmatpush1.msra.mxu0 0.0
    %3553 = vmatprep.subr.mxu0 0.0
    %3554 = vmatpush1.msra.mxu0 0.0
    %3555 = vmatprep.subr.mxu0 0.0
    %3556 = vmatpush1.msra.mxu0 0.0
    %3557 = vmatprep.subr.mxu0 0.0
    %3558 = vmatpush1.msra.mxu0 0.0
    %3559 = vmatprep.subr.mxu0 0.0
    %3560 = vmatpush1.msra.mxu0 0.0
    %3561 = vmatprep.subr.mxu0 0.0
    %3562 = vmatpush1.msra.mxu0 0.0
    %3563 = vmatprep.subr.mxu0 0.0
    %3564 = vmatpush1.msra.mxu0 0.0
    %3565 = vmatprep.subr.mxu0 0.0
    %3566 = vmatpush1.msra.mxu0 0.0
    %3567 = vmatprep.subr.mxu0 0.0
    %3568 = vmatpush1.msra.mxu0 0.0
    %3569 = vmatprep.subr.mxu0 0.0
    %3570 = vmatpush1.msra.mxu0 0.0
    %3571 = vmatprep.subr.mxu0 0.0
    %3572 = vmatpush1.msra.mxu0 0.0
    %3573 = vmatprep.subr.mxu0 0.0
    %3574 = vmatpush1.msra.mxu0 0.0
    %3575 = vmatprep.mubr.f32.mxu0 0.0
    %3576 = vmatmul.mubr.f32.gmra.mrb[0].mxu0 %v3509
    %v3577 = vpop.f32.mrb[0].mxu0
    %v3578 = vadd.f32 0.0, %v3577
    %v3579 = vpop.f32.mrb[0].mxu0
    %3580 = vdwg.mxu0
    %v3581 = vmul.f32 %v3578, 0.35355338
    %v3582 = vmul.f32 %v3346, %v3430
    %v3584 = vsel %vm950, %v3582, 0
    %3586 = vmatprep.subr.mxu0 0.0
    %3587 = vmatpush1.msra.mxu0 %v928
    %3588 = vmatprep.subr.mxu0 0.0
    %3589 = vmatpush1.msra.mxu0 %v929
    %3590 = vmatprep.subr.mxu0 0.0
    %3591 = vmatpush1.msra.mxu0 %v930
    %3592 = vmatprep.subr.mxu0 0.0
    %3593 = vmatpush1.msra.mxu0 %v931
    %3594 = vmatprep.subr.mxu0 0.0
    %3595 = vmatpush1.msra.mxu0 0.0
    %3596 = vmatprep.subr.mxu0 0.0
    %3597 = vmatpush1.msra.mxu0 0.0
    %3598 = vmatprep.subr.mxu0 0.0
    %3599 = vmatpush1.msra.mxu0 0.0
    %3600 = vmatprep.subr.mxu0 0.0
    %3601 = vmatpush1.msra.mxu0 0.0
    %3602 = vmatprep.subr.mxu0 0.0
    %3603 = vmatpush1.msra.mxu0 0.0
    %3604 = vmatprep.subr.mxu0 0.0
    %3605 = vmatpush1.msra.mxu0 0.0
    %3606 = vmatprep.subr.mxu0 0.0
    %3607 = vmatpush1.msra.mxu0 0.0
    %3608 = vmatprep.subr.mxu0 0.0
    %3609 = vmatpush1.msra.mxu0 0.0
    %3610 = vmatprep.subr.mxu0 0.0
    %3611 = vmatpush1.msra.mxu0 0.0
    %3612 = vmatprep.subr.mxu0 0.0
    %3613 = vmatpush1.msra.mxu0 0.0
    %3614 = vmatprep.subr.mxu0 0.0
    %3615 = vmatpush1.msra.mxu0 0.0
    %3616 = vmatprep.subr.mxu0 0.0
    %3617 = vmatpush1.msra.mxu0 0.0
    %3618 = vmatprep.subr.mxu0 0.0
    %3619 = vmatpush1.msra.mxu0 0.0
    %3620 = vmatprep.subr.mxu0 0.0
    %3621 = vmatpush1.msra.mxu0 0.0
    %3622 = vmatprep.subr.mxu0 0.0
    %3623 = vmatpush1.msra.mxu0 0.0
    %3624 = vmatprep.subr.mxu0 0.0
    %3625 = vmatpush1.msra.mxu0 0.0
    %3626 = vmatprep.subr.mxu0 0.0
    %3627 = vmatpush1.msra.mxu0 0.0
    %3628 = vmatprep.subr.mxu0 0.0
    %3629 = vmatpush1.msra.mxu0 0.0
    %3630 = vmatprep.subr.mxu0 0.0
    %3631 = vmatpush1.msra.mxu0 0.0
    %3632 = vmatprep.subr.mxu0 0.0
    %3633 = vmatpush1.msra.mxu0 0.0
    %3634 = vmatprep.subr.mxu0 0.0
    %3635 = vmatpush1.msra.mxu0 0.0
    %3636 = vmatprep.subr.mxu0 0.0
    %3637 = vmatpush1.msra.mxu0 0.0
    %3638 = vmatprep.subr.mxu0 0.0
    %3639 = vmatpush1.msra.mxu0 0.0
    %3640 = vmatprep.subr.mxu0 0.0
    %3641 = vmatpush1.msra.mxu0 0.0
    %3642 = vmatprep.subr.mxu0 0.0
    %3643 = vmatpush1.msra.mxu0 0.0
    %3644 = vmatprep.subr.mxu0 0.0
    %3645 = vmatpush1.msra.mxu0 0.0
    %3646 = vmatprep.subr.mxu0 0.0
    %3647 = vmatpush1.msra.mxu0 0.0
    %3648 = vmatprep.subr.mxu0 0.0
    %3649 = vmatpush1.msra.mxu0 0.0
    %3650 = vmatprep.mubr.f32.mxu0 0.0
    %3651 = vmatmul.mubr.f32.gmra.mrb[0].mxu0 %v3584
    %v3652 = vpop.f32.mrb[0].mxu0
    %v3653 = vadd.f32 0.0, %v3652
    %v3654 = vpop.f32.mrb[0].mxu0
    %3655 = vdwg.mxu0
    %v3656 = vmul.f32 %v3653, 0.35355338
    %v3657 = vmax.f32 %v3427, %v3506
    %v3658 = vsub.f32 %v3427, %v3657
    %v3659 = vmul.f32 %v3658, 1.442695
    %v3660 = vpow.pop %v3659
    %v3661 = vsub.f32 %v3506, %v3657
    %v3662 = vmul.f32 %v3661, 1.442695
    %v3663 = vpow.pop %v3662
    %v3664 = vadd.f32 %v3660, %v3663
    %v3665 = vmax.f32 %v3581, %v3656
    %v3666 = vsub.f32 %v3581, %v3665
    %v3667 = vmul.f32 %v3666, 1.442695
    %v3668 = vpow.pop %v3667
    %v3669 = vsub.f32 %v3656, %v3665
    %v3670 = vmul.f32 %v3669, 1.442695
    %v3671 = vpow.pop %v3670
    %v3672 = vadd.f32 %v3668, %v3671
    %v3673 = vrcp.pop %v3664
    %v3674 = vmul.f32 %v3660, %v3673
    %v3676 = vsel %vm1454, %v3674, 0
    %3678 = vmatprep.subr.mxu0 0.0
    %3679 = vmatpush1.msra.mxu0 %v1460
    %3680 = vmatprep.subr.mxu0 0.0
    %3681 = vmatpush1.msra.mxu0 0.0
    %3682 = vmatprep.subr.mxu0 0.0
    %3683 = vmatpush1.msra.mxu0 0.0
    %3684 = vmatprep.subr.mxu0 0.0
    %3685 = vmatpush1.msra.mxu0 0.0
    %3686 = vmatprep.subr.mxu0 0.0
    %3687 = vmatpush1.msra.mxu0 0.0
    %3688 = vmatprep.subr.mxu0 0.0
    %3689 = vmatpush1.msra.mxu0 0.0
    %3690 = vmatprep.subr.mxu0 0.0
    %3691 = vmatpush1.msra.mxu0 0.0
    %3692 = vmatprep.subr.mxu0 0.0
    %3693 = vmatpush1.msra.mxu0 0.0
    %3694 = vmatprep.subr.mxu0 0.0
    %3695 = vmatpush1.msra.mxu0 0.0
    %3696 = vmatprep.subr.mxu0 0.0
    %3697 = vmatpush1.msra.mxu0 0.0
    %3698 = vmatprep.subr.mxu0 0.0
    %3699 = vmatpush1.msra.mxu0 0.0
    %3700 = vmatprep.subr.mxu0 0.0
    %3701 = vmatpush1.msra.mxu0 0.0
    %3702 = vmatprep.subr.mxu0 0.0
    %3703 = vmatpush1.msra.mxu0 0.0
    %3704 = vmatprep.subr.mxu0 0.0
    %3705 = vmatpush1.msra.mxu0 0.0
    %3706 = vmatprep.subr.mxu0 0.0
    %3707 = vmatpush1.msra.mxu0 0.0
    %3708 = vmatprep.subr.mxu0 0.0
    %3709 = vmatpush1.msra.mxu0 0.0
    %3710 = vmatprep.subr.mxu0 0.0
    %3711 = vmatpush1.msra.mxu0 0.0
    %3712 = vmatprep.subr.mxu0 0.0
    %3713 = vmatpush1.msra.mxu0 0.0
    %3714 = vmatprep.subr.mxu0 0.0
    %3715 = vmatpush1.msra.mxu0 0.0
    %3716 = vmatprep.subr.mxu0 0.0
    %3717 = vmatpush1.msra.mxu0 0.0
    %3718 = vmatprep.subr.mxu0 0.0
    %3719 = vmatpush1.msra.mxu0 0.0
    %3720 = vmatprep.subr.mxu0 0.0
    %3721 = vmatpush1.msra.mxu0 0.0
    %3722 = vmatprep.subr.mxu0 0.0
    %3723 = vmatpush1.msra.mxu0 0.0
    %3724 = vmatprep.subr.mxu0 0.0
    %3725 = vmatpush1.msra.mxu0 0.0
    %3726 = vmatprep.subr.mxu0 0.0
    %3727 = vmatpush1.msra.mxu0 0.0
    %3728 = vmatprep.subr.mxu0 0.0
    %3729 = vmatpush1.msra.mxu0 0.0
    %3730 = vmatprep.subr.mxu0 0.0
    %3731 = vmatpush1.msra.mxu0 0.0
    %3732 = vmatprep.subr.mxu0 0.0
    %3733 = vmatpush1.msra.mxu0 0.0
    %3734 = vmatprep.subr.mxu0 0.0
    %3735 = vmatpush1.msra.mxu0 0.0
    %3736 = vmatprep.subr.mxu0 0.0
    %3737 = vmatpush1.msra.mxu0 0.0
    %3738 = vmatprep.subr.mxu0 0.0
    %3739 = vmatpush1.msra.mxu0 0.0
    %3740 = vmatprep.subr.mxu0 0.0
    %3741 = vmatpush1.msra.mxu0 0.0
    %3742 = vmatprep.mubr.f32.mxu0 0.0
    %3743 = vmatmul.mubr.f32.gmra.mrb[0].mxu0 %v3676
    %v3744 = vpop.f32.mrb[0].mxu0
    %v3745 = vadd.f32 0.0, %v3744
    %v3746 = vpop.f32.mrb[0].mxu0
    %3747 = vdwg.mxu0
    %v3748 = vmul.f32 %v3663, %v3673
    %v3750 = vsel %vm1454, %v3748, 0
    %3752 = vmatprep.subr.mxu0 0.0
    %3753 = vmatpush1.msra.mxu0 %v1460
    %3754 = vmatprep.subr.mxu0 0.0
    %3755 = vmatpush1.msra.mxu0 0.0
    %3756 = vmatprep.subr.mxu0 0.0
    %3757 = vmatpush1.msra.mxu0 0.0
    %3758 = vmatprep.subr.mxu0 0.0
    %3759 = vmatpush1.msra.mxu0 0.0
    %3760 = vmatprep.subr.mxu0 0.0
    %3761 = vmatpush1.msra.mxu0 0.0
    %3762 = vmatprep.subr.mxu0 0.0
    %3763 = vmatpush1.msra.mxu0 0.0
    %3764 = vmatprep.subr.mxu0 0.0
    %3765 = vmatpush1.msra.mxu0 0.0
    %3766 = vmatprep.subr.mxu0 0.0
    %3767 = vmatpush1.msra.mxu0 0.0
    %3768 = vmatprep.subr.mxu0 0.0
    %3769 = vmatpush1.msra.mxu0 0.0
    %3770 = vmatprep.subr.mxu0 0.0
    %3771 = vmatpush1.msra.mxu0 0.0
    %3772 = vmatprep.subr.mxu0 0.0
    %3773 = vmatpush1.msra.mxu0 0.0
    %3774 = vmatprep.subr.mxu0 0.0
    %3775 = vmatpush1.msra.mxu0 0.0
    %3776 = vmatprep.subr.mxu0 0.0
    %3777 = vmatpush1.msra.mxu0 0.0
    %3778 = vmatprep.subr.mxu0 0.0
    %3779 = vmatpush1.msra.mxu0 0.0
    %3780 = vmatprep.subr.mxu0 0.0
    %3781 = vmatpush1.msra.mxu0 0.0
    %3782 = vmatprep.subr.mxu0 0.0
    %3783 = vmatpush1.msra.mxu0 0.0
    %3784 = vmatprep.subr.mxu0 0.0
    %3785 = vmatpush1.msra.mxu0 0.0
    %3786 = vmatprep.subr.mxu0 0.0
    %3787 = vmatpush1.msra.mxu0 0.0
    %3788 = vmatprep.subr.mxu0 0.0
    %3789 = vmatpush1.msra.mxu0 0.0
    %3790 = vmatprep.subr.mxu0 0.0
    %3791 = vmatpush1.msra.mxu0 0.0
    %3792 = vmatprep.subr.mxu0 0.0
    %3793 = vmatpush1.msra.mxu0 0.0
    %3794 = vmatprep.subr.mxu0 0.0
    %3795 = vmatpush1.msra.mxu0 0.0
    %3796 = vmatprep.subr.mxu0 0.0
    %3797 = vmatpush1.msra.mxu0 0.0
    %3798 = vmatprep.subr.mxu0 0.0
    %3799 = vmatpush1.msra.mxu0 0.0
    %3800 = vmatprep.subr.mxu0 0.0
    %3801 = vmatpush1.msra.mxu0 0.0
    %3802 = vmatprep.subr.mxu0 0.0
    %3803 = vmatpush1.msra.mxu0 0.0
    %3804 = vmatprep.subr.mxu0 0.0
    %3805 = vmatpush1.msra.mxu0 0.0
    %3806 = vmatprep.subr.mxu0 0.0
    %3807 = vmatpush1.msra.mxu0 0.0
    %3808 = vmatprep.subr.mxu0 0.0
    %3809 = vmatpush1.msra.mxu0 0.0
    %3810 = vmatprep.subr.mxu0 0.0
    %3811 = vmatpush1.msra.mxu0 0.0
    %3812 = vmatprep.subr.mxu0 0.0
    %3813 = vmatpush1.msra.mxu0 0.0
    %3814 = vmatprep.subr.mxu0 0.0
    %3815 = vmatpush1.msra.mxu0 0.0
    %3816 = vmatprep.mubr.f32.mxu0 0.0
    %3817 = vmatmul.mubr.f32.gmra.mrb[0].mxu0 %v3750
    %v3818 = vpop.f32.mrb[0].mxu0
    %v3819 = vadd.f32 0.0, %v3818
    %v3820 = vpop.f32.mrb[0].mxu0
    %3821 = vdwg.mxu0
    %v3822 = vrcp.pop %v3672
    %v3823 = vmul.f32 %v3668, %v3822
    %v3825 = vsel %vm1454, %v3823, 0
    %3827 = vmatprep.subr.mxu0 0.0
    %3828 = vmatpush1.msra.mxu0 %v1460
    %3829 = vmatprep.subr.mxu0 0.0
    %3830 = vmatpush1.msra.mxu0 0.0
    %3831 = vmatprep.subr.mxu0 0.0
    %3832 = vmatpush1.msra.mxu0 0.0
    %3833 = vmatprep.subr.mxu0 0.0
    %3834 = vmatpush1.msra.mxu0 0.0
    %3835 = vmatprep.subr.mxu0 0.0
    %3836 = vmatpush1.msra.mxu0 0.0
    %3837 = vmatprep.subr.mxu0 0.0
    %3838 = vmatpush1.msra.mxu0 0.0
    %3839 = vmatprep.subr.mxu0 0.0
    %3840 = vmatpush1.msra.mxu0 0.0
    %3841 = vmatprep.subr.mxu0 0.0
    %3842 = vmatpush1.msra.mxu0 0.0
    %3843 = vmatprep.subr.mxu0 0.0
    %3844 = vmatpush1.msra.mxu0 0.0
    %3845 = vmatprep.subr.mxu0 0.0
    %3846 = vmatpush1.msra.mxu0 0.0
    %3847 = vmatprep.subr.mxu0 0.0
    %3848 = vmatpush1.msra.mxu0 0.0
    %3849 = vmatprep.subr.mxu0 0.0
    %3850 = vmatpush1.msra.mxu0 0.0
    %3851 = vmatprep.subr.mxu0 0.0
    %3852 = vmatpush1.msra.mxu0 0.0
    %3853 = vmatprep.subr.mxu0 0.0
    %3854 = vmatpush1.msra.mxu0 0.0
    %3855 = vmatprep.subr.mxu0 0.0
    %3856 = vmatpush1.msra.mxu0 0.0
    %3857 = vmatprep.subr.mxu0 0.0
    %3858 = vmatpush1.msra.mxu0 0.0
    %3859 = vmatprep.subr.mxu0 0.0
    %3860 = vmatpush1.msra.mxu0 0.0
    %3861 = vmatprep.subr.mxu0 0.0
    %3862 = vmatpush1.msra.mxu0 0.0
    %3863 = vmatprep.subr.mxu0 0.0
    %3864 = vmatpush1.msra.mxu0 0.0
    %3865 = vmatprep.subr.mxu0 0.0
    %3866 = vmatpush1.msra.mxu0 0.0
    %3867 = vmatprep.subr.mxu0 0.0
    %3868 = vmatpush1.msra.mxu0 0.0
    %3869 = vmatprep.subr.mxu0 0.0
    %3870 = vmatpush1.msra.mxu0 0.0
    %3871 = vmatprep.subr.mxu0 0.0
    %3872 = vmatpush1.msra.mxu0 0.0
    %3873 = vmatprep.subr.mxu0 0.0
    %3874 = vmatpush1.msra.mxu0 0.0
    %3875 = vmatprep.subr.mxu0 0.0
    %3876 = vmatpush1.msra.mxu0 0.0
    %3877 = vmatprep.subr.mxu0 0.0
    %3878 = vmatpush1.msra.mxu0 0.0
    %3879 = vmatprep.subr.mxu0 0.0
    %3880 = vmatpush1.msra.mxu0 0.0
    %3881 = vmatprep.subr.mxu0 0.0
    %3882 = vmatpush1.msra.mxu0 0.0
    %3883 = vmatprep.subr.mxu0 0.0
    %3884 = vmatpush1.msra.mxu0 0.0
    %3885 = vmatprep.subr.mxu0 0.0
    %3886 = vmatpush1.msra.mxu0 0.0
    %3887 = vmatprep.subr.mxu0 0.0
    %3888 = vmatpush1.msra.mxu0 0.0
    %3889 = vmatprep.subr.mxu0 0.0
    %3890 = vmatpush1.msra.mxu0 0.0
    %3891 = vmatprep.mubr.f32.mxu0 0.0
    %3892 = vmatmul.mubr.f32.gmra.mrb[0].mxu0 %v3825
    %v3893 = vpop.f32.mrb[0].mxu0
    %v3894 = vadd.f32 0.0, %v3893
    %v3895 = vpop.f32.mrb[0].mxu0
    %3896 = vdwg.mxu0
    %v3897 = vmul.f32 %v3671, %v3822
    %v3899 = vsel %vm1454, %v3897, 0
    %3901 = vmatprep.subr.mxu0 0.0
    %3902 = vmatpush1.msra.mxu0 %v1460
    %3903 = vmatprep.subr.mxu0 0.0
    %3904 = vmatpush1.msra.mxu0 0.0
    %3905 = vmatprep.subr.mxu0 0.0
    %3906 = vmatpush1.msra.mxu0 0.0
    %3907 = vmatprep.subr.mxu0 0.0
    %3908 = vmatpush1.msra.mxu0 0.0
    %3909 = vmatprep.subr.mxu0 0.0
    %3910 = vmatpush1.msra.mxu0 0.0
    %3911 = vmatprep.subr.mxu0 0.0
    %3912 = vmatpush1.msra.mxu0 0.0
    %3913 = vmatprep.subr.mxu0 0.0
    %3914 = vmatpush1.msra.mxu0 0.0
    %3915 = vmatprep.subr.mxu0 0.0
    %3916 = vmatpush1.msra.mxu0 0.0
    %3917 = vmatprep.subr.mxu0 0.0
    %3918 = vmatpush1.msra.mxu0 0.0
    %3919 = vmatprep.subr.mxu0 0.0
    %3920 = vmatpush1.msra.mxu0 0.0
    %3921 = vmatprep.subr.mxu0 0.0
    %3922 = vmatpush1.msra.mxu0 0.0
    %3923 = vmatprep.subr.mxu0 0.0
    %3924 = vmatpush1.msra.mxu0 0.0
    %3925 = vmatprep.subr.mxu0 0.0
    %3926 = vmatpush1.msra.mxu0 0.0
    %3927 = vmatprep.subr.mxu0 0.0
    %3928 = vmatpush1.msra.mxu0 0.0
    %3929 = vmatprep.subr.mxu0 0.0
    %3930 = vmatpush1.msra.mxu0 0.0
    %3931 = vmatprep.subr.mxu0 0.0
    %3932 = vmatpush1.msra.mxu0 0.0
    %3933 = vmatprep.subr.mxu0 0.0
    %3934 = vmatpush1.msra.mxu0 0.0
    %3935 = vmatprep.subr.mxu0 0.0
    %3936 = vmatpush1.msra.mxu0 0.0
    %3937 = vmatprep.subr.mxu0 0.0
    %3938 = vmatpush1.msra.mxu0 0.0
    %3939 = vmatprep.subr.mxu0 0.0
    %3940 = vmatpush1.msra.mxu0 0.0
    %3941 = vmatprep.subr.mxu0 0.0
    %3942 = vmatpush1.msra.mxu0 0.0
    %3943 = vmatprep.subr.mxu0 0.0
    %3944 = vmatpush1.msra.mxu0 0.0
    %3945 = vmatprep.subr.mxu0 0.0
    %3946 = vmatpush1.msra.mxu0 0.0
    %3947 = vmatprep.subr.mxu0 0.0
    %3948 = vmatpush1.msra.mxu0 0.0
    %3949 = vmatprep.subr.mxu0 0.0
    %3950 = vmatpush1.msra.mxu0 0.0
    %3951 = vmatprep.subr.mxu0 0.0
    %3952 = vmatpush1.msra.mxu0 0.0
    %3953 = vmatprep.subr.mxu0 0.0
    %3954 = vmatpush1.msra.mxu0 0.0
    %3955 = vmatprep.subr.mxu0 0.0
    %3956 = vmatpush1.msra.mxu0 0.0
    %3957 = vmatprep.subr.mxu0 0.0
    %3958 = vmatpush1.msra.mxu0 0.0
    %3959 = vmatprep.subr.mxu0 0.0
    %3960 = vmatpush1.msra.mxu0 0.0
    %3961 = vmatprep.subr.mxu0 0.0
    %3962 = vmatpush1.msra.mxu0 0.0
    %3963 = vmatprep.subr.mxu0 0.0
    %3964 = vmatpush1.msra.mxu0 0.0
    %3965 = vmatprep.mubr.f32.mxu0 0.0
    %3966 = vmatmul.mubr.f32.gmra.mrb[0].mxu0 %v3899
    %v3967 = vpop.f32.mrb[0].mxu0
    %v3968 = vadd.f32 0.0, %v3967
    %v3969 = vpop.f32.mrb[0].mxu0
    %3970 = vdwg.mxu0
    %3971 = vrot.lane.b32.xlu0 %v3341, 64
    %v3972 = vpop.permute.xlu0 %3971
    %v3974 = vmul.f32 %v3745, %v3972
    %3975 = vrot.lane.b32.xlu0 %v3346, 64
    %v3976 = vpop.permute.xlu0 %3975
    %v3978 = vmul.f32 %v3819, %v3976
    %v3979 = vadd.f32 %v3974, %v3978
    %v3980 = vmul.f32 %v3894, %v3972
    %v3981 = vmul.f32 %v3968, %v3976
    %v3982 = vadd.f32 %v3980, %v3981
    %s3983 = scalar_lea.vmem %s10, 64
    %v3984 = vld [vmem:[%s3983] sm:$0xff]
    %v3985 = vld [vmem:[%s3983 + $0x8] sm:$0xff]
    %v3986 = vld [vmem:[%s3983 + $0x10] sm:$0xff]
    %v3987 = vld [vmem:[%s3983 + $0x18] sm:$0xff]
    %s3988 = scalar_lea.vmem %s11, 2
    %v3989 = vld [vmem:[%s3988] sm:$0x1]
    %v3991 = vlaneseq
    %v3992 = vshrl.u32 %v3991, 7
    %v3993 = vsub.s32 0, %v3992
    %v3994 = vrot.slane %v3989, %v3993
    %v3997 = vsel %vm950, %v3979, 0
    %v4000 = vsel %vm950, %v3982, 0
    %4002 = vmatprep.subr.mxu0 0.0
    %4003 = vmatpush1.msra.mxu0 %v3984
    %4004 = vmatprep.subr.mxu0 0.0
    %4005 = vmatpush1.msra.mxu0 %v3985
    %4006 = vmatprep.subr.mxu0 0.0
    %4007 = vmatpush1.msra.mxu0 %v3986
    %4008 = vmatprep.subr.mxu0 0.0
    %4009 = vmatpush1.msra.mxu0 %v3987
    %4010 = vmatprep.subr.mxu0 0.0
    %4011 = vmatpush1.msra.mxu0 0.0
    %4012 = vmatprep.subr.mxu0 0.0
    %4013 = vmatpush1.msra.mxu0 0.0
    %4014 = vmatprep.subr.mxu0 0.0
    %4015 = vmatpush1.msra.mxu0 0.0
    %4016 = vmatprep.subr.mxu0 0.0
    %4017 = vmatpush1.msra.mxu0 0.0
    %4018 = vmatprep.subr.mxu0 0.0
    %4019 = vmatpush1.msra.mxu0 0.0
    %4020 = vmatprep.subr.mxu0 0.0
    %4021 = vmatpush1.msra.mxu0 0.0
    %4022 = vmatprep.subr.mxu0 0.0
    %4023 = vmatpush1.msra.mxu0 0.0
    %4024 = vmatprep.subr.mxu0 0.0
    %4025 = vmatpush1.msra.mxu0 0.0
    %4026 = vmatprep.subr.mxu0 0.0
    %4027 = vmatpush1.msra.mxu0 0.0
    %4028 = vmatprep.subr.mxu0 0.0
    %4029 = vmatpush1.msra.mxu0 0.0
    %4030 = vmatprep.subr.mxu0 0.0
    %4031 = vmatpush1.msra.mxu0 0.0
    %4032 = vmatprep.subr.mxu0 0.0
    %4033 = vmatpush1.msra.mxu0 0.0
    %4034 = vmatprep.subr.mxu0 0.0
    %4035 = vmatpush1.msra.mxu0 0.0
    %4036 = vmatprep.subr.mxu0 0.0
    %4037 = vmatpush1.msra.mxu0 0.0
    %4038 = vmatprep.subr.mxu0 0.0
    %4039 = vmatpush1.msra.mxu0 0.0
    %4040 = vmatprep.subr.mxu0 0.0
    %4041 = vmatpush1.msra.mxu0 0.0
    %4042 = vmatprep.subr.mxu0 0.0
    %4043 = vmatpush1.msra.mxu0 0.0
    %4044 = vmatprep.subr.mxu0 0.0
    %4045 = vmatpush1.msra.mxu0 0.0
    %4046 = vmatprep.subr.mxu0 0.0
    %4047 = vmatpush1.msra.mxu0 0.0
    %4048 = vmatprep.subr.mxu0 0.0
    %4049 = vmatpush1.msra.mxu0 0.0
    %4050 = vmatprep.subr.mxu0 0.0
    %4051 = vmatpush1.msra.mxu0 0.0
    %4052 = vmatprep.subr.mxu0 0.0
    %4053 = vmatpush1.msra.mxu0 0.0
    %4054 = vmatprep.subr.mxu0 0.0
    %4055 = vmatpush1.msra.mxu0 0.0
    %4056 = vmatprep.subr.mxu0 0.0
    %4057 = vmatpush1.msra.mxu0 0.0
    %4058 = vmatprep.subr.mxu0 0.0
    %4059 = vmatpush1.msra.mxu0 0.0
    %4060 = vmatprep.subr.mxu0 0.0
    %4061 = vmatpush1.msra.mxu0 0.0
    %4062 = vmatprep.subr.mxu0 0.0
    %4063 = vmatpush1.msra.mxu0 0.0
    %4064 = vmatprep.subr.mxu0 0.0
    %4065 = vmatpush1.msra.mxu0 0.0
    %4066 = vmatprep.mubr.f32.mxu0 0.0
    %4067 = vmatmul.mubr.f32.gmra.mrb[0].mxu0 %v3997
    %v4068 = vpop.f32.mrb[0].mxu0
    %v4069 = vadd.f32 %v3994, %v4068
    %v4070 = vpop.f32.mrb[0].mxu0
    %4071 = vmatprep.mubr.f32.mxu0 0.0
    %4072 = vmatmul.mubr.f32.gmra.mrb[0].mxu0 %v4000
    %v4073 = vpop.f32.mrb[0].mxu0
    %v4074 = vadd.f32 %v3994, %v4073
    %v4075 = vpop.f32.mrb[0].mxu0
    %4076 = vdwg.mxu0
    %v4077 = vadd.f32 %v3253, %v4069
    %v4078 = vadd.f32 %v3254, %v4074
    %s4079 = scalar_lea.vmem %s12, 2
    %v4080 = vld [vmem:[%s4079] sm:$0x1]
    %s4081 = scalar_lea.vmem %s13, 2
    %v4082 = vld [vmem:[%s4081] sm:$0x1]
    %v4083 = vsel %vm950, %v4077, 0.0
    %4084 = vadd.xlane.f32.xlu0 %v4083
    %v4085 = vpop.xlane.xlu0 %4084
    %v4086 = vsel %vm950, %v4078, 0.0
    %4087 = vadd.xlane.f32.xlu0 %v4086
    %v4088 = vpop.xlane.xlu0 %4087
    %v4089 = vmul.f32 %v4085, %v1869
    %v4090 = vmul.f32 %v4088, %v1869
    %v4091 = vsub.f32 %v4077, %v4089
    %v4092 = vsub.f32 %v4078, %v4090
    %v4093 = vmul.f32 %v4091, %v4091
    %v4094 = vmul.f32 %v4092, %v4092
    %v4095 = vsel %vm950, %v4093, 0.0
    %4096 = vadd.xlane.f32.xlu0 %v4095
    %v4097 = vpop.xlane.xlu0 %4096
    %v4098 = vsel %vm950, %v4094, 0.0
    %4099 = vadd.xlane.f32.xlu0 %v4098
    %v4100 = vpop.xlane.xlu0 %4099
    %v4101 = vmul.f32 %v4097, %v1869
    %v4102 = vmul.f32 %v4100, %v1869
    %v4103 = vadd.f32 %v4101, 1e-05
    %v4104 = vadd.f32 %v4102, 1e-05
    %v4105 = vrsqrt.pop %v4103
    %v4106 = vrsqrt.pop %v4104
    %v4107 = vmul.f32 %v4091, %v4105
    %v4108 = vmul.f32 %v4092, %v4106
    %v4110 = vlaneseq
    %v4111 = vshrl.u32 %v4110, 7
    %v4112 = vsub.s32 0, %v4111
    %v4113 = vrot.slane %v4080, %v4112
    %v4115 = vmul.f32 %v4107, %v4113
    %v4116 = vmul.f32 %v4108, %v4113
    %v4118 = vlaneseq
    %v4119 = vshrl.u32 %v4118, 7
    %v4120 = vsub.s32 0, %v4119
    %v4121 = vrot.slane %v4082, %v4120
    %v4123 = vadd.f32 %v4115, %v4121
    %v4124 = vadd.f32 %v4116, %v4121
    %s4125 = scalar_lea.vmem %s14, 64
    %v4126 = vld [vmem:[%s4125] sm:$0xff]
    %v4127 = vld [vmem:[%s4125 + $0x8] sm:$0xff]
    %v4128 = vld [vmem:[%s4125 + $0x10] sm:$0xff]
    %v4129 = vld [vmem:[%s4125 + $0x18] sm:$0xff]
    %s4130 = scalar_lea.vmem %s15, 2
    %v4131 = vld [vmem:[%s4130] sm:$0x1]
    %v4133 = vlaneseq
    %v4134 = vshrl.u32 %v4133, 7
    %v4135 = vsub.s32 0, %v4134
    %v4136 = vrot.slane %v4131, %v4135
    %v4139 = vsel %vm950, %v4123, 0
    %v4142 = vsel %vm950, %v4124, 0
    %4144 = vmatprep.subr.mxu0 0.0
    %4145 = vmatpush1.msra.mxu0 %v4126
    %4146 = vmatprep.subr.mxu0 0.0
    %4147 = vmatpush1.msra.mxu0 %v4127
    %4148 = vmatprep.subr.mxu0 0.0
    %4149 = vmatpush1.msra.mxu0 %v4128
    %4150 = vmatprep.subr.mxu0 0.0
    %4151 = vmatpush1.msra.mxu0 %v4129
    %4152 = vmatprep.subr.mxu0 0.0
    %4153 = vmatpush1.msra.mxu0 0.0
    %4154 = vmatprep.subr.mxu0 0.0
    %4155 = vmatpush1.msra.mxu0 0.0
    %4156 = vmatprep.subr.mxu0 0.0
    %4157 = vmatpush1.msra.mxu0 0.0
    %4158 = vmatprep.subr.mxu0 0.0
    %4159 = vmatpush1.msra.mxu0 0.0
    %4160 = vmatprep.subr.mxu0 0.0
    %4161 = vmatpush1.msra.mxu0 0.0
    %4162 = vmatprep.subr.mxu0 0.0
    %4163 = vmatpush1.msra.mxu0 0.0
    %4164 = vmatprep.subr.mxu0 0.0
    %4165 = vmatpush1.msra.mxu0 0.0
    %4166 = vmatprep.subr.mxu0 0.0
    %4167 = vmatpush1.msra.mxu0 0.0
    %4168 = vmatprep.subr.mxu0 0.0
    %4169 = vmatpush1.msra.mxu0 0.0
    %4170 = vmatprep.subr.mxu0 0.0
    %4171 = vmatpush1.msra.mxu0 0.0
    %4172 = vmatprep.subr.mxu0 0.0
    %4173 = vmatpush1.msra.mxu0 0.0
    %4174 = vmatprep.subr.mxu0 0.0
    %4175 = vmatpush1.msra.mxu0 0.0
    %4176 = vmatprep.subr.mxu0 0.0
    %4177 = vmatpush1.msra.mxu0 0.0
    %4178 = vmatprep.subr.mxu0 0.0
    %4179 = vmatpush1.msra.mxu0 0.0
    %4180 = vmatprep.subr.mxu0 0.0
    %4181 = vmatpush1.msra.mxu0 0.0
    %4182 = vmatprep.subr.mxu0 0.0
    %4183 = vmatpush1.msra.mxu0 0.0
    %4184 = vmatprep.subr.mxu0 0.0
    %4185 = vmatpush1.msra.mxu0 0.0
    %4186 = vmatprep.subr.mxu0 0.0
    %4187 = vmatpush1.msra.mxu0 0.0
    %4188 = vmatprep.subr.mxu0 0.0
    %4189 = vmatpush1.msra.mxu0 0.0
    %4190 = vmatprep.subr.mxu0 0.0
    %4191 = vmatpush1.msra.mxu0 0.0
    %4192 = vmatprep.subr.mxu0 0.0
    %4193 = vmatpush1.msra.mxu0 0.0
    %4194 = vmatprep.subr.mxu0 0.0
    %4195 = vmatpush1.msra.mxu0 0.0
    %4196 = vmatprep.subr.mxu0 0.0
    %4197 = vmatpush1.msra.mxu0 0.0
    %4198 = vmatprep.subr.mxu0 0.0
    %4199 = vmatpush1.msra.mxu0 0.0
    %4200 = vmatprep.subr.mxu0 0.0
    %4201 = vmatpush1.msra.mxu0 0.0
    %4202 = vmatprep.subr.mxu0 0.0
    %4203 = vmatpush1.msra.mxu0 0.0
    %4204 = vmatprep.subr.mxu0 0.0
    %4205 = vmatpush1.msra.mxu0 0.0
    %4206 = vmatprep.subr.mxu0 0.0
    %4207 = vmatpush1.msra.mxu0 0.0
    %4208 = vmatprep.mubr.f32.mxu0 0.0
    %4209 = vmatmul.mubr.f32.gmra.mrb[0].mxu0 %v4139
    %v4210 = vpop.f32.mrb[0].mxu0
    %v4211 = vadd.f32 %v4136, %v4210
    %v4212 = vpop.f32.mrb[0].mxu0
    %4213 = vmatprep.mubr.f32.mxu0 0.0
    %4214 = vmatmul.mubr.f32.gmra.mrb[0].mxu0 %v4142
    %v4215 = vpop.f32.mrb[0].mxu0
    %v4216 = vadd.f32 %v4136, %v4215
    %v4217 = vpop.f32.mrb[0].mxu0
    %4218 = vdwg.mxu0
    %v4219 = vmax.f32 %v4211, 0.0
    %v4220 = vmax.f32 %v4216, 0.0
    %s4221 = scalar_lea.vmem %s16, 128
    %v4222 = vld [vmem:[%s4221] sm:$0xff]
    %v4223 = vld [vmem:[%s4221 + $0x8] sm:$0xff]
    %v4224 = vld [vmem:[%s4221 + $0x10] sm:$0xff]
    %v4225 = vld [vmem:[%s4221 + $0x18] sm:$0xff]
    %v4226 = vld [vmem:[%s4221 + $0x20] sm:$0xff]
    %v4227 = vld [vmem:[%s4221 + $0x28] sm:$0xff]
    %v4228 = vld [vmem:[%s4221 + $0x30] sm:$0xff]
    %v4229 = vld [vmem:[%s4221 + $0x38] sm:$0xff]
    %s4230 = scalar_lea.vmem %s17, 2
    %v4231 = vld [vmem:[%s4230] sm:$0x1]
    %v4233 = vlaneseq
    %v4234 = vshrl.u32 %v4233, 7
    %v4235 = vsub.s32 0, %v4234
    %v4236 = vrot.slane %v4231, %v4235
    %v4239 = vsel %vm2015, %v4219, 0
    %v4242 = vsel %vm2015, %v4220, 0
    %4244 = vmatprep.subr.mxu0 0.0
    %4245 = vmatpush1.msra.mxu0 %v4222
    %4246 = vmatprep.subr.mxu0 0.0
    %4247 = vmatpush1.msra.mxu0 %v4223
    %4248 = vmatprep.subr.mxu0 0.0
    %4249 = vmatpush1.msra.mxu0 %v4224
    %4250 = vmatprep.subr.mxu0 0.0
    %4251 = vmatpush1.msra.mxu0 %v4225
    %4252 = vmatprep.subr.mxu0 0.0
    %4253 = vmatpush1.msra.mxu0 %v4226
    %4254 = vmatprep.subr.mxu0 0.0
    %4255 = vmatpush1.msra.mxu0 %v4227
    %4256 = vmatprep.subr.mxu0 0.0
    %4257 = vmatpush1.msra.mxu0 %v4228
    %4258 = vmatprep.subr.mxu0 0.0
    %4259 = vmatpush1.msra.mxu0 %v4229
    %4260 = vmatprep.subr.mxu0 0.0
    %4261 = vmatpush1.msra.mxu0 0.0
    %4262 = vmatprep.subr.mxu0 0.0
    %4263 = vmatpush1.msra.mxu0 0.0
    %4264 = vmatprep.subr.mxu0 0.0
    %4265 = vmatpush1.msra.mxu0 0.0
    %4266 = vmatprep.subr.mxu0 0.0
    %4267 = vmatpush1.msra.mxu0 0.0
    %4268 = vmatprep.subr.mxu0 0.0
    %4269 = vmatpush1.msra.mxu0 0.0
    %4270 = vmatprep.subr.mxu0 0.0
    %4271 = vmatpush1.msra.mxu0 0.0
    %4272 = vmatprep.subr.mxu0 0.0
    %4273 = vmatpush1.msra.mxu0 0.0
    %4274 = vmatprep.subr.mxu0 0.0
    %4275 = vmatpush1.msra.mxu0 0.0
    %4276 = vmatprep.subr.mxu0 0.0
    %4277 = vmatpush1.msra.mxu0 0.0
    %4278 = vmatprep.subr.mxu0 0.0
    %4279 = vmatpush1.msra.mxu0 0.0
    %4280 = vmatprep.subr.mxu0 0.0
    %4281 = vmatpush1.msra.mxu0 0.0
    %4282 = vmatprep.subr.mxu0 0.0
    %4283 = vmatpush1.msra.mxu0 0.0
    %4284 = vmatprep.subr.mxu0 0.0
    %4285 = vmatpush1.msra.mxu0 0.0
    %4286 = vmatprep.subr.mxu0 0.0
    %4287 = vmatpush1.msra.mxu0 0.0
    %4288 = vmatprep.subr.mxu0 0.0
    %4289 = vmatpush1.msra.mxu0 0.0
    %4290 = vmatprep.subr.mxu0 0.0
    %4291 = vmatpush1.msra.mxu0 0.0
    %4292 = vmatprep.subr.mxu0 0.0
    %4293 = vmatpush1.msra.mxu0 0.0
    %4294 = vmatprep.subr.mxu0 0.0
    %4295 = vmatpush1.msra.mxu0 0.0
    %4296 = vmatprep.subr.mxu0 0.0
    %4297 = vmatpush1.msra.mxu0 0.0
    %4298 = vmatprep.subr.mxu0 0.0
    %4299 = vmatpush1.msra.mxu0 0.0
    %4300 = vmatprep.subr.mxu0 0.0
    %4301 = vmatpush1.msra.mxu0 0.0
    %4302 = vmatprep.subr.mxu0 0.0
    %4303 = vmatpush1.msra.mxu0 0.0
    %4304 = vmatprep.subr.mxu0 0.0
    %4305 = vmatpush1.msra.mxu0 0.0
    %4306 = vmatprep.subr.mxu0 0.0
    %4307 = vmatpush1.msra.mxu0 0.0
    %4308 = vmatprep.mubr.f32.mxu0 0.0
    %4309 = vmatmul.mubr.f32.gmra.mrb[0].mxu0 %v4239
    %v4310 = vpop.f32.mrb[0].mxu0
    %v4311 = vadd.f32 %v4236, %v4310
    %v4312 = vpop.f32.mrb[0].mxu0
    %4313 = vmatprep.mubr.f32.mxu0 0.0
    %4314 = vmatmul.mubr.f32.gmra.mrb[0].mxu0 %v4242
    %v4315 = vpop.f32.mrb[0].mxu0
    %v4316 = vadd.f32 %v4236, %v4315
    %v4317 = vpop.f32.mrb[0].mxu0
    %4318 = vdwg.mxu0
    %v4319 = vadd.f32 %v4123, %v4311
    %v4320 = vadd.f32 %v4124, %v4316
    %s4321 = scalar_lea.vmem %s18, 2
    %v4322 = vld [vmem:[%s4321] sm:$0x1]
    %s4323 = scalar_lea.vmem %s19, 2
    %v4324 = vld [vmem:[%s4323] sm:$0x1]
    %v4325 = vsel %vm950, %v4319, 0.0
    %4326 = vadd.xlane.f32.xlu0 %v4325
    %v4327 = vpop.xlane.xlu0 %4326
    %v4328 = vsel %vm950, %v4320, 0.0
    %4329 = vadd.xlane.f32.xlu0 %v4328
    %v4330 = vpop.xlane.xlu0 %4329
    %v4331 = vmul.f32 %v4327, %v1869
    %v4332 = vmul.f32 %v4330, %v1869
    %v4333 = vsub.f32 %v4319, %v4331
    %v4334 = vsub.f32 %v4320, %v4332
    %v4335 = vmul.f32 %v4333, %v4333
    %v4336 = vmul.f32 %v4334, %v4334
    %v4337 = vsel %vm950, %v4335, 0.0
    %4338 = vadd.xlane.f32.xlu0 %v4337
    %v4339 = vpop.xlane.xlu0 %4338
    %v4340 = vsel %vm950, %v4336, 0.0
    %4341 = vadd.xlane.f32.xlu0 %v4340
    %v4342 = vpop.xlane.xlu0 %4341
    %v4343 = vmul.f32 %v4339, %v1869
    %v4344 = vmul.f32 %v4342, %v1869
    %v4345 = vadd.f32 %v4343, 1e-05
    %v4346 = vadd.f32 %v4344, 1e-05
    %v4347 = vrsqrt.pop %v4345
    %v4348 = vrsqrt.pop %v4346
    %v4349 = vmul.f32 %v4333, %v4347
    %v4350 = vmul.f32 %v4334, %v4348
    %v4352 = vlaneseq
    %v4353 = vshrl.u32 %v4352, 7
    %v4354 = vsub.s32 0, %v4353
    %v4355 = vrot.slane %v4322, %v4354
    %v4357 = vmul.f32 %v4349, %v4355
    %v4358 = vmul.f32 %v4350, %v4355
    %v4360 = vlaneseq
    %v4361 = vshrl.u32 %v4360, 7
    %v4362 = vsub.s32 0, %v4361
    %v4363 = vrot.slane %v4324, %v4362
    %v4365 = vadd.f32 %v4357, %v4363
    %v4366 = vadd.f32 %v4358, %v4363
    %v4367 = vsel %vm950, %v4365, 0.0
    %v4368 = vrot.slane %v4367, 4
    %v4369 = vadd.f32 %v4367, %v4368
    %v4370 = vrot.slane %v4369, 2
    %v4371 = vadd.f32 %v4369, %v4370
    %v4372 = vrot.slane %v4371, 1
    %v4373 = vadd.f32 %v4371, %v4372
    %v4374 = vrcp.pop 8.0
    %v4375 = vmul.f32 %v4373, %v4374
    %v4376 = vsel %vm950, %v4366, 0.0
    %v4377 = vrot.slane %v4376, 4
    %v4378 = vadd.f32 %v4376, %v4377
    %v4379 = vrot.slane %v4378, 2
    %v4380 = vadd.f32 %v4378, %v4379
    %v4381 = vrot.slane %v4380, 1
    %v4382 = vadd.f32 %v4380, %v4381
    %v4383 = vmul.f32 %v4382, %v4374
    %v4384 = vsel %vm165, %v4375, %v4383
    %v4385 = vld [vmem:[%s20] sm:$0xff]
    %v4386 = vld [vmem:[%s20 + $0x8] sm:$0xff]
    %v4387 = vld [vmem:[%s20 + $0x10] sm:$0xff]
    %v4388 = vld [vmem:[%s20 + $0x18] sm:$0xff]
    %v4389 = vld [vmem:[%s21] sm:$0x1]
    %v4391 = vlaneseq
    %v4392 = vshrl.u32 %v4391, 7
    %v4393 = vsub.s32 0, %v4392
    %v4394 = vrot.slane %v4389, %v4393
    %v4397 = vsel %vm950, %v4384, 0
    %4399 = vmatprep.subr.mxu0 0.0
    %4400 = vmatpush1.msra.mxu0 %v4385
    %4401 = vmatprep.subr.mxu0 0.0
    %4402 = vmatpush1.msra.mxu0 %v4386
    %4403 = vmatprep.subr.mxu0 0.0
    %4404 = vmatpush1.msra.mxu0 %v4387
    %4405 = vmatprep.subr.mxu0 0.0
    %4406 = vmatpush1.msra.mxu0 %v4388
    %4407 = vmatprep.subr.mxu0 0.0
    %4408 = vmatpush1.msra.mxu0 0.0
    %4409 = vmatprep.subr.mxu0 0.0
    %4410 = vmatpush1.msra.mxu0 0.0
    %4411 = vmatprep.subr.mxu0 0.0
    %4412 = vmatpush1.msra.mxu0 0.0
    %4413 = vmatprep.subr.mxu0 0.0
    %4414 = vmatpush1.msra.mxu0 0.0
    %4415 = vmatprep.subr.mxu0 0.0
    %4416 = vmatpush1.msra.mxu0 0.0
    %4417 = vmatprep.subr.mxu0 0.0
    %4418 = vmatpush1.msra.mxu0 0.0
    %4419 = vmatprep.subr.mxu0 0.0
    %4420 = vmatpush1.msra.mxu0 0.0
    %4421 = vmatprep.subr.mxu0 0.0
    %4422 = vmatpush1.msra.mxu0 0.0
    %4423 = vmatprep.subr.mxu0 0.0
    %4424 = vmatpush1.msra.mxu0 0.0
    %4425 = vmatprep.subr.mxu0 0.0
    %4426 = vmatpush1.msra.mxu0 0.0
    %4427 = vmatprep.subr.mxu0 0.0
    %4428 = vmatpush1.msra.mxu0 0.0
    %4429 = vmatprep.subr.mxu0 0.0
    %4430 = vmatpush1.msra.mxu0 0.0
    %4431 = vmatprep.subr.mxu0 0.0
    %4432 = vmatpush1.msra.mxu0 0.0
    %4433 = vmatprep.subr.mxu0 0.0
    %4434 = vmatpush1.msra.mxu0 0.0
    %4435 = vmatprep.subr.mxu0 0.0
    %4436 = vmatpush1.msra.mxu0 0.0
    %4437 = vmatprep.subr.mxu0 0.0
    %4438 = vmatpush1.msra.mxu0 0.0
    %4439 = vmatprep.subr.mxu0 0.0
    %4440 = vmatpush1.msra.mxu0 0.0
    %4441 = vmatprep.subr.mxu0 0.0
    %4442 = vmatpush1.msra.mxu0 0.0
    %4443 = vmatprep.subr.mxu0 0.0
    %4444 = vmatpush1.msra.mxu0 0.0
    %4445 = vmatprep.subr.mxu0 0.0
    %4446 = vmatpush1.msra.mxu0 0.0
    %4447 = vmatprep.subr.mxu0 0.0
    %4448 = vmatpush1.msra.mxu0 0.0
    %4449 = vmatprep.subr.mxu0 0.0
    %4450 = vmatpush1.msra.mxu0 0.0
    %4451 = vmatprep.subr.mxu0 0.0
    %4452 = vmatpush1.msra.mxu0 0.0
    %4453 = vmatprep.subr.mxu0 0.0
    %4454 = vmatpush1.msra.mxu0 0.0
    %4455 = vmatprep.subr.mxu0 0.0
    %4456 = vmatpush1.msra.mxu0 0.0
    %4457 = vmatprep.subr.mxu0 0.0
    %4458 = vmatpush1.msra.mxu0 0.0
    %4459 = vmatprep.subr.mxu0 0.0
    %4460 = vmatpush1.msra.mxu0 0.0
    %4461 = vmatprep.subr.mxu0 0.0
    %4462 = vmatpush1.msra.mxu0 0.0
    %4463 = vmatprep.mubr.f32.mxu0 0.0
    %4464 = vmatmul.mubr.f32.gmra.mrb[0].mxu0 %v4397
    %v4465 = vpop.f32.mrb[0].mxu0
    %v4466 = vadd.f32 %v4394, %v4465
    %v4467 = vpop.f32.mrb[0].mxu0
    %4468 = vdwg.mxu0
    %v4469 = vmax.f32 %v4466, 0.0
    %v4470 = vld [vmem:[%s22] sm:$0xff]
    %v4471 = vld [vmem:[%s22 + $0x8] sm:$0xff]
    %v4472 = vld [vmem:[%s22 + $0x10] sm:$0xff]
    %v4473 = vld [vmem:[%s22 + $0x18] sm:$0xff]
    %v4474 = vld [vmem:[%s22 + $0x20] sm:$0xff]
    %v4475 = vld [vmem:[%s22 + $0x28] sm:$0xff]
    %v4476 = vld [vmem:[%s22 + $0x30] sm:$0xff]
    %v4477 = vld [vmem:[%s22 + $0x38] sm:$0xff]
    %v4478 = vld [vmem:[%s22 + $0x40] sm:$0xff]
    %v4479 = vld [vmem:[%s22 + $0x48] sm:$0xff]
    %v4480 = vld [vmem:[%s22 + $0x50] sm:$0xff]
    %v4481 = vld [vmem:[%s22 + $0x58] sm:$0xff]
    %v4482 = vld [vmem:[%s22 + $0x60] sm:$0xff]
    %v4483 = vld [vmem:[%s22 + $0x68] sm:$0xff]
    %v4484 = vld [vmem:[%s22 + $0x70] sm:$0xff]
    %v4485 = vld [vmem:[%s22 + $0x78] sm:$0xff]
    %v4486 = vld [vmem:[%s23] sm:$0x1]
    %v4488 = vlaneseq
    %v4489 = vshrl.u32 %v4488, 7
    %v4490 = vsub.s32 0, %v4489
    %v4491 = vrot.slane %v4486, %v4490
    %4493 = vmatprep.subr.mxu0 0.0
    %4494 = vmatpush1.msra.mxu0 %v4470
    %4495 = vmatprep.subr.mxu0 0.0
    %4496 = vmatpush1.msra.mxu0 %v4471
    %4497 = vmatprep.subr.mxu0 0.0
    %4498 = vmatpush1.msra.mxu0 %v4472
    %4499 = vmatprep.subr.mxu0 0.0
    %4500 = vmatpush1.msra.mxu0 %v4473
    %4501 = vmatprep.subr.mxu0 0.0
    %4502 = vmatpush1.msra.mxu0 %v4474
    %4503 = vmatprep.subr.mxu0 0.0
    %4504 = vmatpush1.msra.mxu0 %v4475
    %4505 = vmatprep.subr.mxu0 0.0
    %4506 = vmatpush1.msra.mxu0 %v4476
    %4507 = vmatprep.subr.mxu0 0.0
    %4508 = vmatpush1.msra.mxu0 %v4477
    %4509 = vmatprep.subr.mxu0 0.0
    %4510 = vmatpush1.msra.mxu0 %v4478
    %4511 = vmatprep.subr.mxu0 0.0
    %4512 = vmatpush1.msra.mxu0 %v4479
    %4513 = vmatprep.subr.mxu0 0.0
    %4514 = vmatpush1.msra.mxu0 %v4480
    %4515 = vmatprep.subr.mxu0 0.0
    %4516 = vmatpush1.msra.mxu0 %v4481
    %4517 = vmatprep.subr.mxu0 0.0
    %4518 = vmatpush1.msra.mxu0 %v4482
    %4519 = vmatprep.subr.mxu0 0.0
    %4520 = vmatpush1.msra.mxu0 %v4483
    %4521 = vmatprep.subr.mxu0 0.0
    %4522 = vmatpush1.msra.mxu0 %v4484
    %4523 = vmatprep.subr.mxu0 0.0
    %4524 = vmatpush1.msra.mxu0 %v4485
    %4525 = vmatprep.subr.mxu0 0.0
    %4526 = vmatpush1.msra.mxu0 0.0
    %4527 = vmatprep.subr.mxu0 0.0
    %4528 = vmatpush1.msra.mxu0 0.0
    %4529 = vmatprep.subr.mxu0 0.0
    %4530 = vmatpush1.msra.mxu0 0.0
    %4531 = vmatprep.subr.mxu0 0.0
    %4532 = vmatpush1.msra.mxu0 0.0
    %4533 = vmatprep.subr.mxu0 0.0
    %4534 = vmatpush1.msra.mxu0 0.0
    %4535 = vmatprep.subr.mxu0 0.0
    %4536 = vmatpush1.msra.mxu0 0.0
    %4537 = vmatprep.subr.mxu0 0.0
    %4538 = vmatpush1.msra.mxu0 0.0
    %4539 = vmatprep.subr.mxu0 0.0
    %4540 = vmatpush1.msra.mxu0 0.0
    %4541 = vmatprep.subr.mxu0 0.0
    %4542 = vmatpush1.msra.mxu0 0.0
    %4543 = vmatprep.subr.mxu0 0.0
    %4544 = vmatpush1.msra.mxu0 0.0
    %4545 = vmatprep.subr.mxu0 0.0
    %4546 = vmatpush1.msra.mxu0 0.0
    %4547 = vmatprep.subr.mxu0 0.0
    %4548 = vmatpush1.msra.mxu0 0.0
    %4549 = vmatprep.subr.mxu0 0.0
    %4550 = vmatpush1.msra.mxu0 0.0
    %4551 = vmatprep.subr.mxu0 0.0
    %4552 = vmatpush1.msra.mxu0 0.0
    %4553 = vmatprep.subr.mxu0 0.0
    %4554 = vmatpush1.msra.mxu0 0.0
    %4555 = vmatprep.subr.mxu0 0.0
    %4556 = vmatpush1.msra.mxu0 0.0
    %4557 = vmatprep.mubr.f32.mxu0 0.0
    %4558 = vmatmul.mubr.f32.gmra.mrb[0].mxu0 %v4469
    %v4559 = vpop.f32.mrb[0].mxu0
    %v4560 = vadd.f32 %v4491, %v4559
    %v4561 = vpop.f32.mrb[0].mxu0
    %4562 = vdwg.mxu0
    %v4563 = vmax.f32 %v4560, 0.0
    %v4564 = vld [vmem:[%s24] sm:$0xff]
    %v4565 = vld [vmem:[%s24 + $0x8] sm:$0xff]
    %v4566 = vld [vmem:[%s24 + $0x10] sm:$0xff]
    %v4567 = vld [vmem:[%s24 + $0x18] sm:$0xff]
    %v4568 = vld [vmem:[%s24 + $0x20] sm:$0xff]
    %v4569 = vld [vmem:[%s24 + $0x28] sm:$0xff]
    %v4570 = vld [vmem:[%s24 + $0x30] sm:$0xff]
    %v4571 = vld [vmem:[%s24 + $0x38] sm:$0xff]
    %v4572 = vld [vmem:[%s25] sm:$0x1]
    %v4574 = vlaneseq
    %v4575 = vshrl.u32 %v4574, 7
    %v4576 = vsub.s32 0, %v4575
    %v4577 = vrot.slane %v4572, %v4576
    %v4580 = vsel %vm2015, %v4563, 0
    %4582 = vmatprep.subr.mxu0 0.0
    %4583 = vmatpush1.msra.mxu0 %v4564
    %4584 = vmatprep.subr.mxu0 0.0
    %4585 = vmatpush1.msra.mxu0 %v4565
    %4586 = vmatprep.subr.mxu0 0.0
    %4587 = vmatpush1.msra.mxu0 %v4566
    %4588 = vmatprep.subr.mxu0 0.0
    %4589 = vmatpush1.msra.mxu0 %v4567
    %4590 = vmatprep.subr.mxu0 0.0
    %4591 = vmatpush1.msra.mxu0 %v4568
    %4592 = vmatprep.subr.mxu0 0.0
    %4593 = vmatpush1.msra.mxu0 %v4569
    %4594 = vmatprep.subr.mxu0 0.0
    %4595 = vmatpush1.msra.mxu0 %v4570
    %4596 = vmatprep.subr.mxu0 0.0
    %4597 = vmatpush1.msra.mxu0 %v4571
    %4598 = vmatprep.subr.mxu0 0.0
    %4599 = vmatpush1.msra.mxu0 0.0
    %4600 = vmatprep.subr.mxu0 0.0
    %4601 = vmatpush1.msra.mxu0 0.0
    %4602 = vmatprep.subr.mxu0 0.0
    %4603 = vmatpush1.msra.mxu0 0.0
    %4604 = vmatprep.subr.mxu0 0.0
    %4605 = vmatpush1.msra.mxu0 0.0
    %4606 = vmatprep.subr.mxu0 0.0
    %4607 = vmatpush1.msra.mxu0 0.0
    %4608 = vmatprep.subr.mxu0 0.0
    %4609 = vmatpush1.msra.mxu0 0.0
    %4610 = vmatprep.subr.mxu0 0.0
    %4611 = vmatpush1.msra.mxu0 0.0
    %4612 = vmatprep.subr.mxu0 0.0
    %4613 = vmatpush1.msra.mxu0 0.0
    %4614 = vmatprep.subr.mxu0 0.0
    %4615 = vmatpush1.msra.mxu0 0.0
    %4616 = vmatprep.subr.mxu0 0.0
    %4617 = vmatpush1.msra.mxu0 0.0
    %4618 = vmatprep.subr.mxu0 0.0
    %4619 = vmatpush1.msra.mxu0 0.0
    %4620 = vmatprep.subr.mxu0 0.0
    %4621 = vmatpush1.msra.mxu0 0.0
    %4622 = vmatprep.subr.mxu0 0.0
    %4623 = vmatpush1.msra.mxu0 0.0
    %4624 = vmatprep.subr.mxu0 0.0
    %4625 = vmatpush1.msra.mxu0 0.0
    %4626 = vmatprep.subr.mxu0 0.0
    %4627 = vmatpush1.msra.mxu0 0.0
    %4628 = vmatprep.subr.mxu0 0.0
    %4629 = vmatpush1.msra.mxu0 0.0
    %4630 = vmatprep.subr.mxu0 0.0
    %4631 = vmatpush1.msra.mxu0 0.0
    %4632 = vmatprep.subr.mxu0 0.0
    %4633 = vmatpush1.msra.mxu0 0.0
    %4634 = vmatprep.subr.mxu0 0.0
    %4635 = vmatpush1.msra.mxu0 0.0
    %4636 = vmatprep.subr.mxu0 0.0
    %4637 = vmatpush1.msra.mxu0 0.0
    %4638 = vmatprep.subr.mxu0 0.0
    %4639 = vmatpush1.msra.mxu0 0.0
    %4640 = vmatprep.subr.mxu0 0.0
    %4641 = vmatpush1.msra.mxu0 0.0
    %4642 = vmatprep.subr.mxu0 0.0
    %4643 = vmatpush1.msra.mxu0 0.0
    %4644 = vmatprep.subr.mxu0 0.0
    %4645 = vmatpush1.msra.mxu0 0.0
    %4646 = vmatprep.mubr.f32.mxu0 0.0
    %4647 = vmatmul.mubr.f32.gmra.mrb[0].mxu0 %v4580
    %v4648 = vpop.f32.mrb[0].mxu0
    %v4649 = vadd.f32 %v4577, %v4648
    %v4650 = vpop.f32.mrb[0].mxu0
    %4651 = vdwg.mxu0
    %v4652 = vmax.f32 %v4649, 0.0
    %v4653 = vld [vmem:[%s26] sm:$0xff]
    %v4654 = vld [vmem:[%s26 + $0x8] sm:$0xff]
    %v4655 = vld [vmem:[%s26 + $0x10] sm:$0xff]
    %v4656 = vld [vmem:[%s26 + $0x18] sm:$0xff]
    %v4657 = vld [vmem:[#allocation3] sm:$0x1]
    %v4659 = vlaneseq
    %v4660 = vshrl.u32 %v4659, 7
    %v4661 = vsub.s32 0, %v4660
    %v4662 = vrot.slane %v4657, %v4661
    %v4665 = vsel %vm950, %v4652, 0
    %4667 = vmatprep.subr.mxu0 0.0
    %4668 = vmatpush1.msra.mxu0 %v4653
    %4669 = vmatprep.subr.mxu0 0.0
    %4670 = vmatpush1.msra.mxu0 %v4654
    %4671 = vmatprep.subr.mxu0 0.0
    %4672 = vmatpush1.msra.mxu0 %v4655
    %4673 = vmatprep.subr.mxu0 0.0
    %4674 = vmatpush1.msra.mxu0 %v4656
    %4675 = vmatprep.subr.mxu0 0.0
    %4676 = vmatpush1.msra.mxu0 0.0
    %4677 = vmatprep.subr.mxu0 0.0
    %4678 = vmatpush1.msra.mxu0 0.0
    %4679 = vmatprep.subr.mxu0 0.0
    %4680 = vmatpush1.msra.mxu0 0.0
    %4681 = vmatprep.subr.mxu0 0.0
    %4682 = vmatpush1.msra.mxu0 0.0
    %4683 = vmatprep.subr.mxu0 0.0
    %4684 = vmatpush1.msra.mxu0 0.0
    %4685 = vmatprep.subr.mxu0 0.0
    %4686 = vmatpush1.msra.mxu0 0.0
    %4687 = vmatprep.subr.mxu0 0.0
    %4688 = vmatpush1.msra.mxu0 0.0
    %4689 = vmatprep.subr.mxu0 0.0
    %4690 = vmatpush1.msra.mxu0 0.0
    %4691 = vmatprep.subr.mxu0 0.0
    %4692 = vmatpush1.msra.mxu0 0.0
    %4693 = vmatprep.subr.mxu0 0.0
    %4694 = vmatpush1.msra.mxu0 0.0
    %4695 = vmatprep.subr.mxu0 0.0
    %4696 = vmatpush1.msra.mxu0 0.0
    %4697 = vmatprep.subr.mxu0 0.0
    %4698 = vmatpush1.msra.mxu0 0.0
    %4699 = vmatprep.subr.mxu0 0.0
    %4700 = vmatpush1.msra.mxu0 0.0
    %4701 = vmatprep.subr.mxu0 0.0
    %4702 = vmatpush1.msra.mxu0 0.0
    %4703 = vmatprep.subr.mxu0 0.0
    %4704 = vmatpush1.msra.mxu0 0.0
    %4705 = vmatprep.subr.mxu0 0.0
    %4706 = vmatpush1.msra.mxu0 0.0
    %4707 = vmatprep.subr.mxu0 0.0
    %4708 = vmatpush1.msra.mxu0 0.0
    %4709 = vmatprep.subr.mxu0 0.0
    %4710 = vmatpush1.msra.mxu0 0.0
    %4711 = vmatprep.subr.mxu0 0.0
    %4712 = vmatpush1.msra.mxu0 0.0
    %4713 = vmatprep.subr.mxu0 0.0
    %4714 = vmatpush1.msra.mxu0 0.0
    %4715 = vmatprep.subr.mxu0 0.0
    %4716 = vmatpush1.msra.mxu0 0.0
    %4717 = vmatprep.subr.mxu0 0.0
    %4718 = vmatpush1.msra.mxu0 0.0
    %4719 = vmatprep.subr.mxu0 0.0
    %4720 = vmatpush1.msra.mxu0 0.0
    %4721 = vmatprep.subr.mxu0 0.0
    %4722 = vmatpush1.msra.mxu0 0.0
    %4723 = vmatprep.subr.mxu0 0.0
    %4724 = vmatpush1.msra.mxu0 0.0
    %4725 = vmatprep.subr.mxu0 0.0
    %4726 = vmatpush1.msra.mxu0 0.0
    %4727 = vmatprep.subr.mxu0 0.0
    %4728 = vmatpush1.msra.mxu0 0.0
    %4729 = vmatprep.subr.mxu0 0.0
    %4730 = vmatpush1.msra.mxu0 0.0
    %4731 = vmatprep.mubr.f32.mxu0 0.0
    %4732 = vmatmul.mubr.f32.gmra.mrb[0].mxu0 %v4665
    %v4733 = vpop.f32.mrb[0].mxu0
    %v4734 = vadd.f32 %v4662, %v4733
    %v4735 = vpop.f32.mrb[0].mxu0
    %4736 = vdwg.mxu0
    %vm4737 = vcmask 1024
    %4738 = vst.msk [vmem:[%s28] sm:$0x3] %vm4737, %v4734
    // Predicated region
    $region126: #{combined_forward.1} parent=1 // pred_check
      _
    $region127: #{combined_forward.1} parent=1 // pred_check_branch
      %4740 = sbr.rel (0) target = $region129
    $region128: #{combined_forward.1} parent=1 // pred_region
      _
    $region129: #{combined_forward.1} parent=1 // pred_fallthru
      _
    // Predicated region
    $region130: #{combined_forward.1} parent=1 // pred_check
      _
    $region131: #{combined_forward.1} parent=1 // pred_check_branch
      %4742 = sbr.rel (0) target = $region133
    $region132: #{combined_forward.1} parent=1 // pred_region
      _
    $region133: #{combined_forward.1} parent=1 // pred_fallthru
      _
    %4743 = vsyncpa [#allocation5], 1
    %4744 = vsyncpa [#allocation7], 1

</llo_original>
